<compile_context>
chip_gen: v7x
topology: tpu7x:2x2x1
jax: 0.10.0
libtpu: 0.0.40
codegen_flags: <defaults>
</compile_context>

<pallas_src>
import jax
import jax.numpy as jnp
from jax import lax
from jax.experimental import pallas as pl
from jax.experimental.pallas import tpu as pltpu


# ---------------------------------------------------------------------------
# Kernel
# ---------------------------------------------------------------------------
def _head_kernel(x_ref, w_ref, b_ref, o_ref):
    """Fused AdaptiveAvgPool2d((1,1)) + flatten + Linear (pool folded into the MXU).

    x_ref: (Nb, C*HW)  f32/bf16 -- backbone features, NCHW flattened (lane-dense)
    w_ref: (Kp, C*HW)  bf16     -- Linear weight replicated across HW, pre-scaled 1/HW,
                                   zero-padded classes -> Kp lanes (prepared at init)
    b_ref: (1, Kp)     f32      -- Linear bias, zero-padded (prepared at init)
    o_ref: (Nb, Kp)    f32      -- padded logits (lane-dense store)
    """
    x = x_ref[...]
    x_bf = x if x.dtype == jnp.bfloat16 else x.astype(jnp.bfloat16)

    # Contract the full C*HW axis on the MXU (the 1/HW pool scale is baked into w_ref).
    logits = lax.dot_general(
        x_bf, w_ref[...],
        dimension_numbers=(((1,), (1,)), ((), ())),
        preferred_element_type=jnp.float32,
    ) + b_ref[...]

    o_ref[...] = logits.astype(o_ref.dtype)


# ---------------------------------------------------------------------------
# One-time parameter preparation (hoisted out of the hot path)
# ---------------------------------------------------------------------------
def prepare_head_params(weight, bias, hw):
    """Fold the average pool into the Linear weight and lay it out for the kernel.

    weight: (K, C) f32 (PyTorch nn.Linear layout), bias: (K,) f32, hw = H*W.
    Returns w_rep (Kp, C*HW) bf16 and b_p (1, Kp) f32 with Kp = ceil(K/128)*128.
    """
    k, c = weight.shape
    kp = ((k + 127) // 128) * 128
    # Scale by 1/HW in f32 BEFORE the bf16 cast (avoids double rounding).
    w_scaled = weight.astype(jnp.float32) / float(hw)
    w_rep = jnp.broadcast_to(w_scaled[:, :, None], (k, c, hw)).reshape(k, c * hw)
    w_rep = jnp.pad(w_rep, ((0, kp - k), (0, 0))).astype(jnp.bfloat16)
    b_p = jnp.pad(bias.astype(jnp.float32), (0, kp - k)).reshape(1, kp)
    return w_rep, b_p


def _pick_block_n(n, chw, w_resident_bytes):
    """Batch tile: multiple of 8, up to 128, sized so double-buffered f32 feature tiles
    plus the resident (double-buffered) bf16 weight fit a conservative VMEM budget."""
    if n <= 8:
        return max(int(n), 1)
    vmem_budget = 26 * 1024 * 1024          # safely under the 32 MiB scoped limit
    per_row = 2 * chw * 4                   # double-buffered f32 feature rows
    budget = max(vmem_budget - w_resident_bytes, per_row * 8)
    cap = min(128, max(8, (budget // per_row) // 8 * 8))
    return int(min(cap, max(8, (n // 8) * 8)))


# ---------------------------------------------------------------------------
# Wrapper
# ---------------------------------------------------------------------------
def classifier_head(features_nchw, w_rep, b_p, num_classes, *, block_n=None):
    """features_nchw: (N, C, H, W); w_rep/b_p from prepare_head_params -> logits (N, K)."""
    n, c, h, w = features_nchw.shape
    hw = h * w
    chw = c * hw
    kp = w_rep.shape[0]
    assert w_rep.shape == (kp, chw) and b_p.shape == (1, kp)

    # Free contiguous reshape of NCHW (no transpose, no extra HBM round trip).
    x = features_nchw.reshape(n, chw)

    if block_n is None:
        # Weight is grid-invariant but budgeted as double-buffered to be safe.
        block_n = _pick_block_n(n, chw, 2 * kp * chw * 2)
    grid = (pl.cdiv(n, block_n),)

    out_padded = pl.pallas_call(
        _head_kernel,
        out_shape=jax.ShapeDtypeStruct((n, kp), jnp.float32),
        grid_spec=pltpu.PrefetchScalarGridSpec(
            num_scalar_prefetch=0,
            grid=grid,
            in_specs=[
                pl.BlockSpec((block_n, chw), lambda i: (i, 0)),
                pl.BlockSpec((kp, chw), lambda i: (0, 0)),   # resident weight
                pl.BlockSpec((1, kp), lambda i: (0, 0)),     # resident bias
            ],
            out_specs=pl.BlockSpec((block_n, kp), lambda i: (i, 0)),
        ),
        compiler_params=pltpu.CompilerParams(
            dimension_semantics=("parallel",),
            vmem_limit_bytes=32 * 1024 * 1024,
        ),
    )(x, w_rep, b_p)

    return out_padded[:, :num_classes]


def _init_linear_params(key, in_features, num_classes):
    """Deterministic init mimicking torch.nn.Linear default U(-1/sqrt(in), 1/sqrt(in))."""
    kw, kb = jax.random.split(key)
    bound = 1.0 / (in_features ** 0.5)
    weight = jax.random.uniform(
        kw, (num_classes, in_features), jnp.float32, -bound, bound
    )
    bias = jax.random.uniform(kb, (num_classes,), jnp.float32, -bound, bound)
    return weight, bias


if __name__ == "__main__":
    # Synthetic instantiation: Classifier('ResNet18_Weights.DEFAULT', num_classes=10).
    # resnet18 emits (N, 512, 7, 7) features for a 224x224 input.
    N, C, H, W = 16, 512, 7, 7
    NUM_CLASSES = 10

    key = jax.random.PRNGKey(0)
    k_feat, k_head = jax.random.split(key)

    features = jax.random.normal(k_feat, (N, C, H, W), jnp.float32)
    weight, bias = _init_linear_params(k_head, C, NUM_CLASSES)

    # One-time prep (pool fold + pad + bf16 cast) — not part of the per-call hot path.
    w_rep, b_p = prepare_head_params(weight, bias, H * W)

    logits = classifier_head(features, w_rep, b_p, NUM_CLASSES)
    logits = jax.block_until_ready(logits)
    assert logits.shape == (N, NUM_CLASSES)

    # Pure-JAX references for the head semantics.
    pooled_ref = jnp.mean(features, axis=(2, 3))                 # AvgPool((1,1)) + flatten
    logits_f32_ref = pooled_ref @ weight.T + bias                # full-f32 module semantics

    # bf16-operand / f32-accumulate reference matching the kernel's MXU precision.
    x_flat_bf = features.reshape(N, C * H * W).astype(jnp.bfloat16)
    logits_bf16_ref = lax.dot_general(
        x_flat_bf, w_rep,
        dimension_numbers=(((1,), (1,)), ((), ())),
        preferred_element_type=jnp.float32,
    )[:, :NUM_CLASSES] + bias

    assert jnp.allclose(logits, logits_bf16_ref, atol=1e-3, rtol=1e-3)
    assert jnp.allclose(logits, logits_f32_ref, atol=2e-2, rtol=2e-2)

    print("KERNEL_OK")
</pallas_src>

<mosaic_0001>
module attributes {stable_mosaic.version = 11 : i64} {
  func.func @_head_kernel(%arg0: i32, %arg1: memref<16x25088xf32, #tpu.memory_space<vmem>>, %arg2: memref<128x25088xbf16, #tpu.memory_space<vmem>>, %arg3: memref<1x128xf32, #tpu.memory_space<vmem>>, %arg4: memref<16x128xf32, #tpu.memory_space<vmem>>) attributes {dimension_semantics = [#tpu.dimension_semantics<parallel>], iteration_bounds = array<i64: 1>, scalar_prefetch = 0 : i64, scratch_operands = 0 : i64, tpu.core_type = #tpu.core_type<tc>, window_params = [{transform_indices = @transform_0, window_bounds = array<i64: 16, 25088>}, {pipeline_mode = #tpu.pipeline_mode<synchronous>, transform_indices = @transform_1, window_bounds = array<i64: 128, 25088>}, {pipeline_mode = #tpu.pipeline_mode<synchronous>, transform_indices = @transform_2, window_bounds = array<i64: 1, 128>}, {transform_indices = @transform_3, window_bounds = array<i64: 16, 128>}]} {
    %c0 = arith.constant 0 : index
    %c0_0 = arith.constant 0 : index
    %0 = vector.load %arg1[%c0, %c0_0] : memref<16x25088xf32, #tpu.memory_space<vmem>>, vector<16x25088xf32>
    %1 = arith.truncf %0 : vector<16x25088xf32> to vector<16x25088xbf16>
    %c0_1 = arith.constant 0 : index
    %c0_2 = arith.constant 0 : index
    %2 = vector.load %arg2[%c0_1, %c0_2] : memref<128x25088xbf16, #tpu.memory_space<vmem>>, vector<128x25088xbf16>
    %cst = arith.constant dense<0.000000e+00> : vector<16x128xf32>
    %3 = tpu.matmul %1, %2, %cst {dimension_numbers = #tpu.dot_dimension_numbers<[1], [1], [0], [0], [0, 0, 1, 0], [], []>} : vector<16x25088xbf16>, vector<128x25088xbf16>, vector<16x128xf32> -> vector<16x128xf32>
    %c0_3 = arith.constant 0 : index
    %c0_4 = arith.constant 0 : index
    %4 = vector.load %arg3[%c0_3, %c0_4] : memref<1x128xf32, #tpu.memory_space<vmem>>, vector<1x128xf32>
    %5 = vector.broadcast %4 : vector<1x128xf32> to vector<16x128xf32>
    %6 = arith.addf %3, %5 : vector<16x128xf32>
    %c0_5 = arith.constant 0 : index
    %c0_6 = arith.constant 0 : index
    %7 = vector.load %arg4[%c0_5, %c0_6] : memref<16x128xf32, #tpu.memory_space<vmem>>, vector<16x128xf32>
    tpu.vector_store %arg4[%c0_5, %c0_6], %6 {strides = array<i32>} : memref<16x128xf32, #tpu.memory_space<vmem>>, vector<16x128xf32>,
    return
  }
  func.func @transform_0(%arg0: i32) -> (i32, i32) {
    %c0_i32 = arith.constant 0 : i32
    %c0_i32_0 = arith.constant 0 : i32
    return %arg0, %c0_i32 : i32, i32
  }
  func.func @transform_1(%arg0: i32) -> (i32, i32) {
    %c0_i32 = arith.constant 0 : i32
    %c0_i32_0 = arith.constant 0 : i32
    %c0_i32_1 = arith.constant 0 : i32
    return %c0_i32, %c0_i32_0 : i32, i32
  }
  func.func @transform_2(%arg0: i32) -> (i32, i32) {
    %c0_i32 = arith.constant 0 : i32
    %c0_i32_0 = arith.constant 0 : i32
    %c0_i32_1 = arith.constant 0 : i32
    return %c0_i32, %c0_i32_0 : i32, i32
  }
  func.func @transform_3(%arg0: i32) -> (i32, i32) {
    %c0_i32 = arith.constant 0 : i32
    %c0_i32_0 = arith.constant 0 : i32
    return %arg0, %c0_i32 : i32, i32
  }
}

</mosaic_0001>

<llo_original>
// kernel: tpu_custom_call.1
$region0: #{tpu_custom_call.1}
  #allocation0 [shape = 'u32[]', space=smem, size = 0x4, offset = 0x4, fixed_abs, tag = 'smem constant byte address 0x4 - core index']
  #allocation1 [shape = 'u32[144,128]{1,0:T(1,128)}', space=vmem, size = 0x12000, scoped, tag = 'internal scratch']
  %s0 = inlined_call_operand.hbm [shape: f32[16,25088], index: 0, kind: input, shape index: {}]
  %s1 = inlined_call_operand.hbm [shape: bf16[128,25088], index: 1, kind: input, shape index: {}]
  %s2 = inlined_call_operand.hbm [shape: f32[1,128], index: 2, kind: input, shape index: {}]
  %s3 = inlined_call_operand.hbm [shape: f32[16,128], index: 3, kind: output, shape index: {}]
  %s4 = sld [smem:[#allocation0]]
  $region34: #{tpu_custom_call.1} parent=0
    _
  %s6 = ssub.s32 1, %s4
  %s7 = scalar_select 0, %s6, %s4
  $region1: #{tpu_custom_call.1} parent=0
    #allocation2 [shape = 'u8[1605632]{0}', space=vmem, size = 0x188000, scoped, tag = 'input window, operand 0, single buffered']
    #allocation3 [shape = 's32[1]{0}', space=sflag, size = 0x4, scoped, tag = 'scoped memory for tpu_custom_call.1']
    #allocation4 [shape = 's32[1]{0}', space=sflag, size = 0x4, scoped, tag = 'scoped memory for tpu_custom_call.1']
    #allocation5 [shape = 'u8[6422528]{0}', space=vmem, size = 0x620000, scoped, tag = 'input window, operand 1, single buffered']
    #allocation6 [shape = 's32[1]{0}', space=sflag, size = 0x4, scoped, tag = 'scoped memory for tpu_custom_call.1']
    #allocation7 [shape = 'u8[512]{0}', space=vmem, size = 0x400, scoped, tag = 'input window, operand 2, single buffered']
    #allocation8 [shape = 'u8[8192]{0}', space=vmem, size = 0x2000, scoped, tag = 'output window, operand 0, single buffered']
    %8 = vsyncpa [#allocation3], 0
    %9 = vsyncpa [#allocation6], 0
    %10 = vsyncpa [#allocation4], 0
    // Predicated region
    $region2: #{tpu_custom_call.1} parent=1 // pred_check
      _
    $region3: #{tpu_custom_call.1} parent=1 // pred_check_branch
      %12 = sbr.rel (0) target = $region5
    $region4: #{tpu_custom_call.1} parent=1 // pred_region
      %s14 = ssub.s32 50176, 50176
      %15 = vsyncadd [#allocation3], %s14
      %s16 = sshll.u32 [#allocation2], 4
      %s17 = int_to_ptr.vmem [resolvable:$true] %s16
      %22 = dma.hbm_to_vmem [thread:$0]  %s0, 50176, %s17, [#allocation3], 25088, 25088, 1568
    $region5: #{tpu_custom_call.1} parent=1 // pred_fallthru
      _
    // Predicated region
    $region6: #{tpu_custom_call.1} parent=1 // pred_check
      _
    $region7: #{tpu_custom_call.1} parent=1 // pred_check_branch
      %24 = sbr.rel (0) target = $region9
    $region8: #{tpu_custom_call.1} parent=1 // pred_region
      %s26 = ssub.s32 200704, 200704
      %27 = vsyncadd [#allocation6], %s26
      %s28 = sshll.u32 [#allocation5], 4
      %s29 = int_to_ptr.vmem [resolvable:$true] %s28
      %34 = dma.hbm_to_vmem [thread:$0]  %s1, 200704, %s29, [#allocation6], 12544, 12544, 784
    $region9: #{tpu_custom_call.1} parent=1 // pred_fallthru
      _
    // Predicated region
    $region10: #{tpu_custom_call.1} parent=1 // pred_check
      _
    $region11: #{tpu_custom_call.1} parent=1 // pred_check_branch
      %36 = sbr.rel (0) target = $region13
    $region12: #{tpu_custom_call.1} parent=1 // pred_region
      %s38 = ssub.s32 16, 16
      %39 = vsyncadd [#allocation6], %s38
      %s41 = sshll.u32 [#allocation7], 4
      %s42 = int_to_ptr.vmem [resolvable:$true] %s41
      %44 = dma.hbm_to_vmem [thread:$0]  %s2, 16, %s42, [#allocation6]
    $region13: #{tpu_custom_call.1} parent=1 // pred_fallthru
      _
    // Predicated region
    $region14: #{tpu_custom_call.1} parent=1 // pred_check
      _
    $region15: #{tpu_custom_call.1} parent=1 // pred_check_branch
      %46 = sbr.rel (0) target = $region17
    $region16: #{tpu_custom_call.1} parent=1 // pred_region
      %47 = dma.done [#allocation3], 50176
    $region17: #{tpu_custom_call.1} parent=1 // pred_fallthru
      _
    // Predicated region
    $region18: #{tpu_custom_call.1} parent=1 // pred_check
      _
    $region19: #{tpu_custom_call.1} parent=1 // pred_check_branch
      %49 = sbr.rel (0) target = $region21
    $region20: #{tpu_custom_call.1} parent=1 // pred_region
      %50 = dma.done [#allocation6], 200704
    $region21: #{tpu_custom_call.1} parent=1 // pred_fallthru
      _
    // Predicated region
    $region22: #{tpu_custom_call.1} parent=1 // pred_check
      _
    $region23: #{tpu_custom_call.1} parent=1 // pred_check_branch
      %52 = sbr.rel (0) target = $region25
    $region24: #{tpu_custom_call.1} parent=1 // pred_region
      %53 = dma.done [#allocation6], 16
    $region25: #{tpu_custom_call.1} parent=1 // pred_fallthru
      _
    %v55 = vld [vmem:[#allocation2] sm:$0xff]
    %v56 = vld [vmem:[#allocation2 + $0x8] sm:$0xff]
    %v57 = vld [vmem:[#allocation2 + $0x10] sm:$0xff]
    %v58 = vld [vmem:[#allocation2 + $0x18] sm:$0xff]
    %v59 = vld [vmem:[#allocation2 + $0x20] sm:$0xff]
    %v60 = vld [vmem:[#allocation2 + $0x28] sm:$0xff]
    %v61 = vld [vmem:[#allocation2 + $0x30] sm:$0xff]
    %v62 = vld [vmem:[#allocation2 + $0x38] sm:$0xff]
    %v63 = vld [vmem:[#allocation2 + $0x40] sm:$0xff]
    %v64 = vld [vmem:[#allocation2 + $0x48] sm:$0xff]
    %v65 = vld [vmem:[#allocation2 + $0x50] sm:$0xff]
    %v66 = vld [vmem:[#allocation2 + $0x58] sm:$0xff]
    %v67 = vld [vmem:[#allocation2 + $0x60] sm:$0xff]
    %v68 = vld [vmem:[#allocation2 + $0x68] sm:$0xff]
    %v69 = vld [vmem:[#allocation2 + $0x70] sm:$0xff]
    %v70 = vld [vmem:[#allocation2 + $0x78] sm:$0xff]
    %v71 = vld [vmem:[#allocation2 + $0x80] sm:$0xff]
    %v72 = vld [vmem:[#allocation2 + $0x88] sm:$0xff]
    %v73 = vld [vmem:[#allocation2 + $0x90] sm:$0xff]
    %v74 = vld [vmem:[#allocation2 + $0x98] sm:$0xff]
    %v75 = vld [vmem:[#allocation2 + $0xa0] sm:$0xff]
    %v76 = vld [vmem:[#allocation2 + $0xa8] sm:$0xff]
    %v77 = vld [vmem:[#allocation2 + $0xb0] sm:$0xff]
    %v78 = vld [vmem:[#allocation2 + $0xb8] sm:$0xff]
    %v79 = vld [vmem:[#allocation2 + $0xc0] sm:$0xff]
    %v80 = vld [vmem:[#allocation2 + $0xc8] sm:$0xff]
    %v81 = vld [vmem:[#allocation2 + $0xd0] sm:$0xff]
    %v82 = vld [vmem:[#allocation2 + $0xd8] sm:$0xff]
    %v83 = vld [vmem:[#allocation2 + $0xe0] sm:$0xff]
    %v84 = vld [vmem:[#allocation2 + $0xe8] sm:$0xff]
    %v85 = vld [vmem:[#allocation2 + $0xf0] sm:$0xff]
    %v86 = vld [vmem:[#allocation2 + $0xf8] sm:$0xff]
    %v87 = vld [vmem:[#allocation2 + $0x100] sm:$0xff]
    %v88 = vld [vmem:[#allocation2 + $0x108] sm:$0xff]
    %v89 = vld [vmem:[#allocation2 + $0x110] sm:$0xff]
    %v90 = vld [vmem:[#allocation2 + $0x118] sm:$0xff]
    %v91 = vld [vmem:[#allocation2 + $0x120] sm:$0xff]
    %v92 = vld [vmem:[#allocation2 + $0x128] sm:$0xff]
    %v93 = vld [vmem:[#allocation2 + $0x130] sm:$0xff]
    %v94 = vld [vmem:[#allocation2 + $0x138] sm:$0xff]
    %v95 = vld [vmem:[#allocation2 + $0x140] sm:$0xff]
    %v96 = vld [vmem:[#allocation2 + $0x148] sm:$0xff]
    %v97 = vld [vmem:[#allocation2 + $0x150] sm:$0xff]
    %v98 = vld [vmem:[#allocation2 + $0x158] sm:$0xff]
    %v99 = vld [vmem:[#allocation2 + $0x160] sm:$0xff]
    %v100 = vld [vmem:[#allocation2 + $0x168] sm:$0xff]
    %v101 = vld [vmem:[#allocation2 + $0x170] sm:$0xff]
    %v102 = vld [vmem:[#allocation2 + $0x178] sm:$0xff]
    %v103 = vld [vmem:[#allocation2 + $0x180] sm:$0xff]
    %v104 = vld [vmem:[#allocation2 + $0x188] sm:$0xff]
    %v105 = vld [vmem:[#allocation2 + $0x190] sm:$0xff]
    %v106 = vld [vmem:[#allocation2 + $0x198] sm:$0xff]
    %v107 = vld [vmem:[#allocation2 + $0x1a0] sm:$0xff]
    %v108 = vld [vmem:[#allocation2 + $0x1a8] sm:$0xff]
    %v109 = vld [vmem:[#allocation2 + $0x1b0] sm:$0xff]
    %v110 = vld [vmem:[#allocation2 + $0x1b8] sm:$0xff]
    %v111 = vld [vmem:[#allocation2 + $0x1c0] sm:$0xff]
    %v112 = vld [vmem:[#allocation2 + $0x1c8] sm:$0xff]
    %v113 = vld [vmem:[#allocation2 + $0x1d0] sm:$0xff]
    %v114 = vld [vmem:[#allocation2 + $0x1d8] sm:$0xff]
    %v115 = vld [vmem:[#allocation2 + $0x1e0] sm:$0xff]
    %v116 = vld [vmem:[#allocation2 + $0x1e8] sm:$0xff]
    %v117 = vld [vmem:[#allocation2 + $0x1f0] sm:$0xff]
    %v118 = vld [vmem:[#allocation2 + $0x1f8] sm:$0xff]
    %v119 = vld [vmem:[#allocation2 + $0x200] sm:$0xff]
    %v120 = vld [vmem:[#allocation2 + $0x208] sm:$0xff]
    %v121 = vld [vmem:[#allocation2 + $0x210] sm:$0xff]
    %v122 = vld [vmem:[#allocation2 + $0x218] sm:$0xff]
    %v123 = vld [vmem:[#allocation2 + $0x220] sm:$0xff]
    %v124 = vld [vmem:[#allocation2 + $0x228] sm:$0xff]
    %v125 = vld [vmem:[#allocation2 + $0x230] sm:$0xff]
    %v126 = vld [vmem:[#allocation2 + $0x238] sm:$0xff]
    %v127 = vld [vmem:[#allocation2 + $0x240] sm:$0xff]
    %v128 = vld [vmem:[#allocation2 + $0x248] sm:$0xff]
    %v129 = vld [vmem:[#allocation2 + $0x250] sm:$0xff]
    %v130 = vld [vmem:[#allocation2 + $0x258] sm:$0xff]
    %v131 = vld [vmem:[#allocation2 + $0x260] sm:$0xff]
    %v132 = vld [vmem:[#allocation2 + $0x268] sm:$0xff]
    %v133 = vld [vmem:[#allocation2 + $0x270] sm:$0xff]
    %v134 = vld [vmem:[#allocation2 + $0x278] sm:$0xff]
    %v135 = vld [vmem:[#allocation2 + $0x280] sm:$0xff]
    %v136 = vld [vmem:[#allocation2 + $0x288] sm:$0xff]
    %v137 = vld [vmem:[#allocation2 + $0x290] sm:$0xff]
    %v138 = vld [vmem:[#allocation2 + $0x298] sm:$0xff]
    %v139 = vld [vmem:[#allocation2 + $0x2a0] sm:$0xff]
    %v140 = vld [vmem:[#allocation2 + $0x2a8] sm:$0xff]
    %v141 = vld [vmem:[#allocation2 + $0x2b0] sm:$0xff]
    %v142 = vld [vmem:[#allocation2 + $0x2b8] sm:$0xff]
    %v143 = vld [vmem:[#allocation2 + $0x2c0] sm:$0xff]
    %v144 = vld [vmem:[#allocation2 + $0x2c8] sm:$0xff]
    %v145 = vld [vmem:[#allocation2 + $0x2d0] sm:$0xff]
    %v146 = vld [vmem:[#allocation2 + $0x2d8] sm:$0xff]
    %v147 = vld [vmem:[#allocation2 + $0x2e0] sm:$0xff]
    %v148 = vld [vmem:[#allocation2 + $0x2e8] sm:$0xff]
    %v149 = vld [vmem:[#allocation2 + $0x2f0] sm:$0xff]
    %v150 = vld [vmem:[#allocation2 + $0x2f8] sm:$0xff]
    %v151 = vld [vmem:[#allocation2 + $0x300] sm:$0xff]
    %v152 = vld [vmem:[#allocation2 + $0x308] sm:$0xff]
    %v153 = vld [vmem:[#allocation2 + $0x310] sm:$0xff]
    %v154 = vld [vmem:[#allocation2 + $0x318] sm:$0xff]
    %v155 = vld [vmem:[#allocation2 + $0x320] sm:$0xff]
    %v156 = vld [vmem:[#allocation2 + $0x328] sm:$0xff]
    %v157 = vld [vmem:[#allocation2 + $0x330] sm:$0xff]
    %v158 = vld [vmem:[#allocation2 + $0x338] sm:$0xff]
    %v159 = vld [vmem:[#allocation2 + $0x340] sm:$0xff]
    %v160 = vld [vmem:[#allocation2 + $0x348] sm:$0xff]
    %v161 = vld [vmem:[#allocation2 + $0x350] sm:$0xff]
    %v162 = vld [vmem:[#allocation2 + $0x358] sm:$0xff]
    %v163 = vld [vmem:[#allocation2 + $0x360] sm:$0xff]
    %v164 = vld [vmem:[#allocation2 + $0x368] sm:$0xff]
    %v165 = vld [vmem:[#allocation2 + $0x370] sm:$0xff]
    %v166 = vld [vmem:[#allocation2 + $0x378] sm:$0xff]
    %v167 = vld [vmem:[#allocation2 + $0x380] sm:$0xff]
    %v168 = vld [vmem:[#allocation2 + $0x388] sm:$0xff]
    %v169 = vld [vmem:[#allocation2 + $0x390] sm:$0xff]
    %v170 = vld [vmem:[#allocation2 + $0x398] sm:$0xff]
    %v171 = vld [vmem:[#allocation2 + $0x3a0] sm:$0xff]
    %v172 = vld [vmem:[#allocation2 + $0x3a8] sm:$0xff]
    %v173 = vld [vmem:[#allocation2 + $0x3b0] sm:$0xff]
    %v174 = vld [vmem:[#allocation2 + $0x3b8] sm:$0xff]
    %v175 = vld [vmem:[#allocation2 + $0x3c0] sm:$0xff]
    %v176 = vld [vmem:[#allocation2 + $0x3c8] sm:$0xff]
    %v177 = vld [vmem:[#allocation2 + $0x3d0] sm:$0xff]
    %v178 = vld [vmem:[#allocation2 + $0x3d8] sm:$0xff]
    %v179 = vld [vmem:[#allocation2 + $0x3e0] sm:$0xff]
    %v180 = vld [vmem:[#allocation2 + $0x3e8] sm:$0xff]
    %v181 = vld [vmem:[#allocation2 + $0x3f0] sm:$0xff]
    %v182 = vld [vmem:[#allocation2 + $0x3f8] sm:$0xff]
    %v183 = vld [vmem:[#allocation2 + $0x400] sm:$0xff]
    %v184 = vld [vmem:[#allocation2 + $0x408] sm:$0xff]
    %v185 = vld [vmem:[#allocation2 + $0x410] sm:$0xff]
    %v186 = vld [vmem:[#allocation2 + $0x418] sm:$0xff]
    %v187 = vld [vmem:[#allocation2 + $0x420] sm:$0xff]
    %v188 = vld [vmem:[#allocation2 + $0x428] sm:$0xff]
    %v189 = vld [vmem:[#allocation2 + $0x430] sm:$0xff]
    %v190 = vld [vmem:[#allocation2 + $0x438] sm:$0xff]
    %v191 = vld [vmem:[#allocation2 + $0x440] sm:$0xff]
    %v192 = vld [vmem:[#allocation2 + $0x448] sm:$0xff]
    %v193 = vld [vmem:[#allocation2 + $0x450] sm:$0xff]
    %v194 = vld [vmem:[#allocation2 + $0x458] sm:$0xff]
    %v195 = vld [vmem:[#allocation2 + $0x460] sm:$0xff]
    %v196 = vld [vmem:[#allocation2 + $0x468] sm:$0xff]
    %v197 = vld [vmem:[#allocation2 + $0x470] sm:$0xff]
    %v198 = vld [vmem:[#allocation2 + $0x478] sm:$0xff]
    %v199 = vld [vmem:[#allocation2 + $0x480] sm:$0xff]
    %v200 = vld [vmem:[#allocation2 + $0x488] sm:$0xff]
    %v201 = vld [vmem:[#allocation2 + $0x490] sm:$0xff]
    %v202 = vld [vmem:[#allocation2 + $0x498] sm:$0xff]
    %v203 = vld [vmem:[#allocation2 + $0x4a0] sm:$0xff]
    %v204 = vld [vmem:[#allocation2 + $0x4a8] sm:$0xff]
    %v205 = vld [vmem:[#allocation2 + $0x4b0] sm:$0xff]
    %v206 = vld [vmem:[#allocation2 + $0x4b8] sm:$0xff]
    %v207 = vld [vmem:[#allocation2 + $0x4c0] sm:$0xff]
    %v208 = vld [vmem:[#allocation2 + $0x4c8] sm:$0xff]
    %v209 = vld [vmem:[#allocation2 + $0x4d0] sm:$0xff]
    %v210 = vld [vmem:[#allocation2 + $0x4d8] sm:$0xff]
    %v211 = vld [vmem:[#allocation2 + $0x4e0] sm:$0xff]
    %v212 = vld [vmem:[#allocation2 + $0x4e8] sm:$0xff]
    %v213 = vld [vmem:[#allocation2 + $0x4f0] sm:$0xff]
    %v214 = vld [vmem:[#allocation2 + $0x4f8] sm:$0xff]
    %v215 = vld [vmem:[#allocation2 + $0x500] sm:$0xff]
    %v216 = vld [vmem:[#allocation2 + $0x508] sm:$0xff]
    %v217 = vld [vmem:[#allocation2 + $0x510] sm:$0xff]
    %v218 = vld [vmem:[#allocation2 + $0x518] sm:$0xff]
    %v219 = vld [vmem:[#allocation2 + $0x520] sm:$0xff]
    %v220 = vld [vmem:[#allocation2 + $0x528] sm:$0xff]
    %v221 = vld [vmem:[#allocation2 + $0x530] sm:$0xff]
    %v222 = vld [vmem:[#allocation2 + $0x538] sm:$0xff]
    %v223 = vld [vmem:[#allocation2 + $0x540] sm:$0xff]
    %v224 = vld [vmem:[#allocation2 + $0x548] sm:$0xff]
    %v225 = vld [vmem:[#allocation2 + $0x550] sm:$0xff]
    %v226 = vld [vmem:[#allocation2 + $0x558] sm:$0xff]
    %v227 = vld [vmem:[#allocation2 + $0x560] sm:$0xff]
    %v228 = vld [vmem:[#allocation2 + $0x568] sm:$0xff]
    %v229 = vld [vmem:[#allocation2 + $0x570] sm:$0xff]
    %v230 = vld [vmem:[#allocation2 + $0x578] sm:$0xff]
    %v231 = vld [vmem:[#allocation2 + $0x580] sm:$0xff]
    %v232 = vld [vmem:[#allocation2 + $0x588] sm:$0xff]
    %v233 = vld [vmem:[#allocation2 + $0x590] sm:$0xff]
    %v234 = vld [vmem:[#allocation2 + $0x598] sm:$0xff]
    %v235 = vld [vmem:[#allocation2 + $0x5a0] sm:$0xff]
    %v236 = vld [vmem:[#allocation2 + $0x5a8] sm:$0xff]
    %v237 = vld [vmem:[#allocation2 + $0x5b0] sm:$0xff]
    %v238 = vld [vmem:[#allocation2 + $0x5b8] sm:$0xff]
    %v239 = vld [vmem:[#allocation2 + $0x5c0] sm:$0xff]
    %v240 = vld [vmem:[#allocation2 + $0x5c8] sm:$0xff]
    %v241 = vld [vmem:[#allocation2 + $0x5d0] sm:$0xff]
    %v242 = vld [vmem:[#allocation2 + $0x5d8] sm:$0xff]
    %v243 = vld [vmem:[#allocation2 + $0x5e0] sm:$0xff]
    %v244 = vld [vmem:[#allocation2 + $0x5e8] sm:$0xff]
    %v245 = vld [vmem:[#allocation2 + $0x5f0] sm:$0xff]
    %v246 = vld [vmem:[#allocation2 + $0x5f8] sm:$0xff]
    %v247 = vld [vmem:[#allocation2 + $0x600] sm:$0xff]
    %v248 = vld [vmem:[#allocation2 + $0x608] sm:$0xff]
    %v249 = vld [vmem:[#allocation2 + $0x610] sm:$0xff]
    %v250 = vld [vmem:[#allocation2 + $0x618] sm:$0xff]
    %v251 = vld [vmem:[#allocation2 + $0x620] sm:$0xff]
    %v252 = vld [vmem:[#allocation2 + $0x628] sm:$0xff]
    %v253 = vld [vmem:[#allocation2 + $0x630] sm:$0xff]
    %v254 = vld [vmem:[#allocation2 + $0x638] sm:$0xff]
    %v255 = vld [vmem:[#allocation2 + $0x640] sm:$0xff]
    %v256 = vld [vmem:[#allocation2 + $0x648] sm:$0xff]
    %v257 = vld [vmem:[#allocation2 + $0x650] sm:$0xff]
    %v258 = vld [vmem:[#allocation2 + $0x658] sm:$0xff]
    %v259 = vld [vmem:[#allocation2 + $0x660] sm:$0xff]
    %v260 = vld [vmem:[#allocation2 + $0x668] sm:$0xff]
    %v261 = vld [vmem:[#allocation2 + $0x670] sm:$0xff]
    %v262 = vld [vmem:[#allocation2 + $0x678] sm:$0xff]
    %v263 = vld [vmem:[#allocation2 + $0x680] sm:$0xff]
    %v264 = vld [vmem:[#allocation2 + $0x688] sm:$0xff]
    %v265 = vld [vmem:[#allocation2 + $0x690] sm:$0xff]
    %v266 = vld [vmem:[#allocation2 + $0x698] sm:$0xff]
    %v267 = vld [vmem:[#allocation2 + $0x6a0] sm:$0xff]
    %v268 = vld [vmem:[#allocation2 + $0x6a8] sm:$0xff]
    %v269 = vld [vmem:[#allocation2 + $0x6b0] sm:$0xff]
    %v270 = vld [vmem:[#allocation2 + $0x6b8] sm:$0xff]
    %v271 = vld [vmem:[#allocation2 + $0x6c0] sm:$0xff]
    %v272 = vld [vmem:[#allocation2 + $0x6c8] sm:$0xff]
    %v273 = vld [vmem:[#allocation2 + $0x6d0] sm:$0xff]
    %v274 = vld [vmem:[#allocation2 + $0x6d8] sm:$0xff]
    %v275 = vld [vmem:[#allocation2 + $0x6e0] sm:$0xff]
    %v276 = vld [vmem:[#allocation2 + $0x6e8] sm:$0xff]
    %v277 = vld [vmem:[#allocation2 + $0x6f0] sm:$0xff]
    %v278 = vld [vmem:[#allocation2 + $0x6f8] sm:$0xff]
    %v279 = vld [vmem:[#allocation2 + $0x700] sm:$0xff]
    %v280 = vld [vmem:[#allocation2 + $0x708] sm:$0xff]
    %v281 = vld [vmem:[#allocation2 + $0x710] sm:$0xff]
    %v282 = vld [vmem:[#allocation2 + $0x718] sm:$0xff]
    %v283 = vld [vmem:[#allocation2 + $0x720] sm:$0xff]
    %v284 = vld [vmem:[#allocation2 + $0x728] sm:$0xff]
    %v285 = vld [vmem:[#allocation2 + $0x730] sm:$0xff]
    %v286 = vld [vmem:[#allocation2 + $0x738] sm:$0xff]
    %v287 = vld [vmem:[#allocation2 + $0x740] sm:$0xff]
    %v288 = vld [vmem:[#allocation2 + $0x748] sm:$0xff]
    %v289 = vld [vmem:[#allocation2 + $0x750] sm:$0xff]
    %v290 = vld [vmem:[#allocation2 + $0x758] sm:$0xff]
    %v291 = vld [vmem:[#allocation2 + $0x760] sm:$0xff]
    %v292 = vld [vmem:[#allocation2 + $0x768] sm:$0xff]
    %v293 = vld [vmem:[#allocation2 + $0x770] sm:$0xff]
    %v294 = vld [vmem:[#allocation2 + $0x778] sm:$0xff]
    %v295 = vld [vmem:[#allocation2 + $0x780] sm:$0xff]
    %v296 = vld [vmem:[#allocation2 + $0x788] sm:$0xff]
    %v297 = vld [vmem:[#allocation2 + $0x790] sm:$0xff]
    %v298 = vld [vmem:[#allocation2 + $0x798] sm:$0xff]
    %v299 = vld [vmem:[#allocation2 + $0x7a0] sm:$0xff]
    %v300 = vld [vmem:[#allocation2 + $0x7a8] sm:$0xff]
    %v301 = vld [vmem:[#allocation2 + $0x7b0] sm:$0xff]
    %v302 = vld [vmem:[#allocation2 + $0x7b8] sm:$0xff]
    %v303 = vld [vmem:[#allocation2 + $0x7c0] sm:$0xff]
    %v304 = vld [vmem:[#allocation2 + $0x7c8] sm:$0xff]
    %v305 = vld [vmem:[#allocation2 + $0x7d0] sm:$0xff]
    %v306 = vld [vmem:[#allocation2 + $0x7d8] sm:$0xff]
    %v307 = vld [vmem:[#allocation2 + $0x7e0] sm:$0xff]
    %v308 = vld [vmem:[#allocation2 + $0x7e8] sm:$0xff]
    %v309 = vld [vmem:[#allocation2 + $0x7f0] sm:$0xff]
    %v310 = vld [vmem:[#allocation2 + $0x7f8] sm:$0xff]
    %v311 = vld [vmem:[#allocation2 + $0x800] sm:$0xff]
    %v312 = vld [vmem:[#allocation2 + $0x808] sm:$0xff]
    %v313 = vld [vmem:[#allocation2 + $0x810] sm:$0xff]
    %v314 = vld [vmem:[#allocation2 + $0x818] sm:$0xff]
    %v315 = vld [vmem:[#allocation2 + $0x820] sm:$0xff]
    %v316 = vld [vmem:[#allocation2 + $0x828] sm:$0xff]
    %v317 = vld [vmem:[#allocation2 + $0x830] sm:$0xff]
    %v318 = vld [vmem:[#allocation2 + $0x838] sm:$0xff]
    %v319 = vld [vmem:[#allocation2 + $0x840] sm:$0xff]
    %v320 = vld [vmem:[#allocation2 + $0x848] sm:$0xff]
    %v321 = vld [vmem:[#allocation2 + $0x850] sm:$0xff]
    %v322 = vld [vmem:[#allocation2 + $0x858] sm:$0xff]
    %v323 = vld [vmem:[#allocation2 + $0x860] sm:$0xff]
    %v324 = vld [vmem:[#allocation2 + $0x868] sm:$0xff]
    %v325 = vld [vmem:[#allocation2 + $0x870] sm:$0xff]
    %v326 = vld [vmem:[#allocation2 + $0x878] sm:$0xff]
    %v327 = vld [vmem:[#allocation2 + $0x880] sm:$0xff]
    %v328 = vld [vmem:[#allocation2 + $0x888] sm:$0xff]
    %v329 = vld [vmem:[#allocation2 + $0x890] sm:$0xff]
    %v330 = vld [vmem:[#allocation2 + $0x898] sm:$0xff]
    %v331 = vld [vmem:[#allocation2 + $0x8a0] sm:$0xff]
    %v332 = vld [vmem:[#allocation2 + $0x8a8] sm:$0xff]
    %v333 = vld [vmem:[#allocation2 + $0x8b0] sm:$0xff]
    %v334 = vld [vmem:[#allocation2 + $0x8b8] sm:$0xff]
    %v335 = vld [vmem:[#allocation2 + $0x8c0] sm:$0xff]
    %v336 = vld [vmem:[#allocation2 + $0x8c8] sm:$0xff]
    %v337 = vld [vmem:[#allocation2 + $0x8d0] sm:$0xff]
    %v338 = vld [vmem:[#allocation2 + $0x8d8] sm:$0xff]
    %v339 = vld [vmem:[#allocation2 + $0x8e0] sm:$0xff]
    %v340 = vld [vmem:[#allocation2 + $0x8e8] sm:$0xff]
    %v341 = vld [vmem:[#allocation2 + $0x8f0] sm:$0xff]
    %v342 = vld [vmem:[#allocation2 + $0x8f8] sm:$0xff]
    %v343 = vld [vmem:[#allocation2 + $0x900] sm:$0xff]
    %v344 = vld [vmem:[#allocation2 + $0x908] sm:$0xff]
    %v345 = vld [vmem:[#allocation2 + $0x910] sm:$0xff]
    %v346 = vld [vmem:[#allocation2 + $0x918] sm:$0xff]
    %v347 = vld [vmem:[#allocation2 + $0x920] sm:$0xff]
    %v348 = vld [vmem:[#allocation2 + $0x928] sm:$0xff]
    %v349 = vld [vmem:[#allocation2 + $0x930] sm:$0xff]
    %v350 = vld [vmem:[#allocation2 + $0x938] sm:$0xff]
    %v351 = vld [vmem:[#allocation2 + $0x940] sm:$0xff]
    %v352 = vld [vmem:[#allocation2 + $0x948] sm:$0xff]
    %v353 = vld [vmem:[#allocation2 + $0x950] sm:$0xff]
    %v354 = vld [vmem:[#allocation2 + $0x958] sm:$0xff]
    %v355 = vld [vmem:[#allocation2 + $0x960] sm:$0xff]
    %v356 = vld [vmem:[#allocation2 + $0x968] sm:$0xff]
    %v357 = vld [vmem:[#allocation2 + $0x970] sm:$0xff]
    %v358 = vld [vmem:[#allocation2 + $0x978] sm:$0xff]
    %v359 = vld [vmem:[#allocation2 + $0x980] sm:$0xff]
    %v360 = vld [vmem:[#allocation2 + $0x988] sm:$0xff]
    %v361 = vld [vmem:[#allocation2 + $0x990] sm:$0xff]
    %v362 = vld [vmem:[#allocation2 + $0x998] sm:$0xff]
    %v363 = vld [vmem:[#allocation2 + $0x9a0] sm:$0xff]
    %v364 = vld [vmem:[#allocation2 + $0x9a8] sm:$0xff]
    %v365 = vld [vmem:[#allocation2 + $0x9b0] sm:$0xff]
    %v366 = vld [vmem:[#allocation2 + $0x9b8] sm:$0xff]
    %v367 = vld [vmem:[#allocation2 + $0x9c0] sm:$0xff]
    %v368 = vld [vmem:[#allocation2 + $0x9c8] sm:$0xff]
    %v369 = vld [vmem:[#allocation2 + $0x9d0] sm:$0xff]
    %v370 = vld [vmem:[#allocation2 + $0x9d8] sm:$0xff]
    %v371 = vld [vmem:[#allocation2 + $0x9e0] sm:$0xff]
    %v372 = vld [vmem:[#allocation2 + $0x9e8] sm:$0xff]
    %v373 = vld [vmem:[#allocation2 + $0x9f0] sm:$0xff]
    %v374 = vld [vmem:[#allocation2 + $0x9f8] sm:$0xff]
    %v375 = vld [vmem:[#allocation2 + $0xa00] sm:$0xff]
    %v376 = vld [vmem:[#allocation2 + $0xa08] sm:$0xff]
    %v377 = vld [vmem:[#allocation2 + $0xa10] sm:$0xff]
    %v378 = vld [vmem:[#allocation2 + $0xa18] sm:$0xff]
    %v379 = vld [vmem:[#allocation2 + $0xa20] sm:$0xff]
    %v380 = vld [vmem:[#allocation2 + $0xa28] sm:$0xff]
    %v381 = vld [vmem:[#allocation2 + $0xa30] sm:$0xff]
    %v382 = vld [vmem:[#allocation2 + $0xa38] sm:$0xff]
    %v383 = vld [vmem:[#allocation2 + $0xa40] sm:$0xff]
    %v384 = vld [vmem:[#allocation2 + $0xa48] sm:$0xff]
    %v385 = vld [vmem:[#allocation2 + $0xa50] sm:$0xff]
    %v386 = vld [vmem:[#allocation2 + $0xa58] sm:$0xff]
    %v387 = vld [vmem:[#allocation2 + $0xa60] sm:$0xff]
    %v388 = vld [vmem:[#allocation2 + $0xa68] sm:$0xff]
    %v389 = vld [vmem:[#allocation2 + $0xa70] sm:$0xff]
    %v390 = vld [vmem:[#allocation2 + $0xa78] sm:$0xff]
    %v391 = vld [vmem:[#allocation2 + $0xa80] sm:$0xff]
    %v392 = vld [vmem:[#allocation2 + $0xa88] sm:$0xff]
    %v393 = vld [vmem:[#allocation2 + $0xa90] sm:$0xff]
    %v394 = vld [vmem:[#allocation2 + $0xa98] sm:$0xff]
    %v395 = vld [vmem:[#allocation2 + $0xaa0] sm:$0xff]
    %v396 = vld [vmem:[#allocation2 + $0xaa8] sm:$0xff]
    %v397 = vld [vmem:[#allocation2 + $0xab0] sm:$0xff]
    %v398 = vld [vmem:[#allocation2 + $0xab8] sm:$0xff]
    %v399 = vld [vmem:[#allocation2 + $0xac0] sm:$0xff]
    %v400 = vld [vmem:[#allocation2 + $0xac8] sm:$0xff]
    %v401 = vld [vmem:[#allocation2 + $0xad0] sm:$0xff]
    %v402 = vld [vmem:[#allocation2 + $0xad8] sm:$0xff]
    %v403 = vld [vmem:[#allocation2 + $0xae0] sm:$0xff]
    %v404 = vld [vmem:[#allocation2 + $0xae8] sm:$0xff]
    %v405 = vld [vmem:[#allocation2 + $0xaf0] sm:$0xff]
    %v406 = vld [vmem:[#allocation2 + $0xaf8] sm:$0xff]
    %v407 = vld [vmem:[#allocation2 + $0xb00] sm:$0xff]
    %v408 = vld [vmem:[#allocation2 + $0xb08] sm:$0xff]
    %v409 = vld [vmem:[#allocation2 + $0xb10] sm:$0xff]
    %v410 = vld [vmem:[#allocation2 + $0xb18] sm:$0xff]
    %v411 = vld [vmem:[#allocation2 + $0xb20] sm:$0xff]
    %v412 = vld [vmem:[#allocation2 + $0xb28] sm:$0xff]
    %v413 = vld [vmem:[#allocation2 + $0xb30] sm:$0xff]
    %v414 = vld [vmem:[#allocation2 + $0xb38] sm:$0xff]
    %v415 = vld [vmem:[#allocation2 + $0xb40] sm:$0xff]
    %v416 = vld [vmem:[#allocation2 + $0xb48] sm:$0xff]
    %v417 = vld [vmem:[#allocation2 + $0xb50] sm:$0xff]
    %v418 = vld [vmem:[#allocation2 + $0xb58] sm:$0xff]
    %v419 = vld [vmem:[#allocation2 + $0xb60] sm:$0xff]
    %v420 = vld [vmem:[#allocation2 + $0xb68] sm:$0xff]
    %v421 = vld [vmem:[#allocation2 + $0xb70] sm:$0xff]
    %v422 = vld [vmem:[#allocation2 + $0xb78] sm:$0xff]
    %v423 = vld [vmem:[#allocation2 + $0xb80] sm:$0xff]
    %v424 = vld [vmem:[#allocation2 + $0xb88] sm:$0xff]
    %v425 = vld [vmem:[#allocation2 + $0xb90] sm:$0xff]
    %v426 = vld [vmem:[#allocation2 + $0xb98] sm:$0xff]
    %v427 = vld [vmem:[#allocation2 + $0xba0] sm:$0xff]
    %v428 = vld [vmem:[#allocation2 + $0xba8] sm:$0xff]
    %v429 = vld [vmem:[#allocation2 + $0xbb0] sm:$0xff]
    %v430 = vld [vmem:[#allocation2 + $0xbb8] sm:$0xff]
    %v431 = vld [vmem:[#allocation2 + $0xbc0] sm:$0xff]
    %v432 = vld [vmem:[#allocation2 + $0xbc8] sm:$0xff]
    %v433 = vld [vmem:[#allocation2 + $0xbd0] sm:$0xff]
    %v434 = vld [vmem:[#allocation2 + $0xbd8] sm:$0xff]
    %v435 = vld [vmem:[#allocation2 + $0xbe0] sm:$0xff]
    %v436 = vld [vmem:[#allocation2 + $0xbe8] sm:$0xff]
    %v437 = vld [vmem:[#allocation2 + $0xbf0] sm:$0xff]
    %v438 = vld [vmem:[#allocation2 + $0xbf8] sm:$0xff]
    %v439 = vld [vmem:[#allocation2 + $0xc00] sm:$0xff]
    %v440 = vld [vmem:[#allocation2 + $0xc08] sm:$0xff]
    %v441 = vld [vmem:[#allocation2 + $0xc10] sm:$0xff]
    %v442 = vld [vmem:[#allocation2 + $0xc18] sm:$0xff]
    %v443 = vld [vmem:[#allocation2 + $0xc20] sm:$0xff]
    %v444 = vld [vmem:[#allocation2 + $0xc28] sm:$0xff]
    %v445 = vld [vmem:[#allocation2 + $0xc30] sm:$0xff]
    %v446 = vld [vmem:[#allocation2 + $0xc38] sm:$0xff]
    %v447 = vpack.c.bf16 %v251, %v55
    %v448 = vpack.c.bf16 %v252, %v56
    %v449 = vpack.c.bf16 %v253, %v57
    %v450 = vpack.c.bf16 %v254, %v58
    %v451 = vpack.c.bf16 %v255, %v59
    %v452 = vpack.c.bf16 %v256, %v60
    %v453 = vpack.c.bf16 %v257, %v61
    %v454 = vpack.c.bf16 %v258, %v62
    %v455 = vpack.c.bf16 %v259, %v63
    %v456 = vpack.c.bf16 %v260, %v64
    %v457 = vpack.c.bf16 %v261, %v65
    %v458 = vpack.c.bf16 %v262, %v66
    %v459 = vpack.c.bf16 %v263, %v67
    %v460 = vpack.c.bf16 %v264, %v68
    %v461 = vpack.c.bf16 %v265, %v69
    %v462 = vpack.c.bf16 %v266, %v70
    %v463 = vpack.c.bf16 %v267, %v71
    %v464 = vpack.c.bf16 %v268, %v72
    %v465 = vpack.c.bf16 %v269, %v73
    %v466 = vpack.c.bf16 %v270, %v74
    %v467 = vpack.c.bf16 %v271, %v75
    %v468 = vpack.c.bf16 %v272, %v76
    %v469 = vpack.c.bf16 %v273, %v77
    %v470 = vpack.c.bf16 %v274, %v78
    %v471 = vpack.c.bf16 %v275, %v79
    %v472 = vpack.c.bf16 %v276, %v80
    %v473 = vpack.c.bf16 %v277, %v81
    %v474 = vpack.c.bf16 %v278, %v82
    %v475 = vpack.c.bf16 %v279, %v83
    %v476 = vpack.c.bf16 %v280, %v84
    %v477 = vpack.c.bf16 %v281, %v85
    %v478 = vpack.c.bf16 %v282, %v86
    %v479 = vpack.c.bf16 %v283, %v87
    %v480 = vpack.c.bf16 %v284, %v88
    %v481 = vpack.c.bf16 %v285, %v89
    %v482 = vpack.c.bf16 %v286, %v90
    %v483 = vpack.c.bf16 %v287, %v91
    %v484 = vpack.c.bf16 %v288, %v92
    %v485 = vpack.c.bf16 %v289, %v93
    %v486 = vpack.c.bf16 %v290, %v94
    %v487 = vpack.c.bf16 %v291, %v95
    %v488 = vpack.c.bf16 %v292, %v96
    %v489 = vpack.c.bf16 %v293, %v97
    %v490 = vpack.c.bf16 %v294, %v98
    %v491 = vpack.c.bf16 %v295, %v99
    %v492 = vpack.c.bf16 %v296, %v100
    %v493 = vpack.c.bf16 %v297, %v101
    %v494 = vpack.c.bf16 %v298, %v102
    %v495 = vpack.c.bf16 %v299, %v103
    %v496 = vpack.c.bf16 %v300, %v104
    %v497 = vpack.c.bf16 %v301, %v105
    %v498 = vpack.c.bf16 %v302, %v106
    %v499 = vpack.c.bf16 %v303, %v107
    %v500 = vpack.c.bf16 %v304, %v108
    %v501 = vpack.c.bf16 %v305, %v109
    %v502 = vpack.c.bf16 %v306, %v110
    %v503 = vpack.c.bf16 %v307, %v111
    %v504 = vpack.c.bf16 %v308, %v112
    %v505 = vpack.c.bf16 %v309, %v113
    %v506 = vpack.c.bf16 %v310, %v114
    %v507 = vpack.c.bf16 %v311, %v115
    %v508 = vpack.c.bf16 %v312, %v116
    %v509 = vpack.c.bf16 %v313, %v117
    %v510 = vpack.c.bf16 %v314, %v118
    %v511 = vpack.c.bf16 %v315, %v119
    %v512 = vpack.c.bf16 %v316, %v120
    %v513 = vpack.c.bf16 %v317, %v121
    %v514 = vpack.c.bf16 %v318, %v122
    %v515 = vpack.c.bf16 %v319, %v123
    %v516 = vpack.c.bf16 %v320, %v124
    %v517 = vpack.c.bf16 %v321, %v125
    %v518 = vpack.c.bf16 %v322, %v126
    %v519 = vpack.c.bf16 %v323, %v127
    %v520 = vpack.c.bf16 %v324, %v128
    %v521 = vpack.c.bf16 %v325, %v129
    %v522 = vpack.c.bf16 %v326, %v130
    %v523 = vpack.c.bf16 %v327, %v131
    %v524 = vpack.c.bf16 %v328, %v132
    %v525 = vpack.c.bf16 %v329, %v133
    %v526 = vpack.c.bf16 %v330, %v134
    %v527 = vpack.c.bf16 %v331, %v135
    %v528 = vpack.c.bf16 %v332, %v136
    %v529 = vpack.c.bf16 %v333, %v137
    %v530 = vpack.c.bf16 %v334, %v138
    %v531 = vpack.c.bf16 %v335, %v139
    %v532 = vpack.c.bf16 %v336, %v140
    %v533 = vpack.c.bf16 %v337, %v141
    %v534 = vpack.c.bf16 %v338, %v142
    %v535 = vpack.c.bf16 %v339, %v143
    %v536 = vpack.c.bf16 %v340, %v144
    %v537 = vpack.c.bf16 %v341, %v145
    %v538 = vpack.c.bf16 %v342, %v146
    %v539 = vpack.c.bf16 %v343, %v147
    %v540 = vpack.c.bf16 %v344, %v148
    %v541 = vpack.c.bf16 %v345, %v149
    %v542 = vpack.c.bf16 %v346, %v150
    %v543 = vpack.c.bf16 %v347, %v151
    %v544 = vpack.c.bf16 %v348, %v152
    %v545 = vpack.c.bf16 %v349, %v153
    %v546 = vpack.c.bf16 %v350, %v154
    %v547 = vpack.c.bf16 %v351, %v155
    %v548 = vpack.c.bf16 %v352, %v156
    %v549 = vpack.c.bf16 %v353, %v157
    %v550 = vpack.c.bf16 %v354, %v158
    %v551 = vpack.c.bf16 %v355, %v159
    %v552 = vpack.c.bf16 %v356, %v160
    %v553 = vpack.c.bf16 %v357, %v161
    %v554 = vpack.c.bf16 %v358, %v162
    %v555 = vpack.c.bf16 %v359, %v163
    %v556 = vpack.c.bf16 %v360, %v164
    %v557 = vpack.c.bf16 %v361, %v165
    %v558 = vpack.c.bf16 %v362, %v166
    %v559 = vpack.c.bf16 %v363, %v167
    %v560 = vpack.c.bf16 %v364, %v168
    %v561 = vpack.c.bf16 %v365, %v169
    %v562 = vpack.c.bf16 %v366, %v170
    %v563 = vpack.c.bf16 %v367, %v171
    %v564 = vpack.c.bf16 %v368, %v172
    %v565 = vpack.c.bf16 %v369, %v173
    %v566 = vpack.c.bf16 %v370, %v174
    %v567 = vpack.c.bf16 %v371, %v175
    %v568 = vpack.c.bf16 %v372, %v176
    %v569 = vpack.c.bf16 %v373, %v177
    %v570 = vpack.c.bf16 %v374, %v178
    %v571 = vpack.c.bf16 %v375, %v179
    %v572 = vpack.c.bf16 %v376, %v180
    %v573 = vpack.c.bf16 %v377, %v181
    %v574 = vpack.c.bf16 %v378, %v182
    %v575 = vpack.c.bf16 %v379, %v183
    %v576 = vpack.c.bf16 %v380, %v184
    %v577 = vpack.c.bf16 %v381, %v185
    %v578 = vpack.c.bf16 %v382, %v186
    %v579 = vpack.c.bf16 %v383, %v187
    %v580 = vpack.c.bf16 %v384, %v188
    %v581 = vpack.c.bf16 %v385, %v189
    %v582 = vpack.c.bf16 %v386, %v190
    %v583 = vpack.c.bf16 %v387, %v191
    %v584 = vpack.c.bf16 %v388, %v192
    %v585 = vpack.c.bf16 %v389, %v193
    %v586 = vpack.c.bf16 %v390, %v194
    %v587 = vpack.c.bf16 %v391, %v195
    %v588 = vpack.c.bf16 %v392, %v196
    %v589 = vpack.c.bf16 %v393, %v197
    %v590 = vpack.c.bf16 %v394, %v198
    %v591 = vpack.c.bf16 %v395, %v199
    %v592 = vpack.c.bf16 %v396, %v200
    %v593 = vpack.c.bf16 %v397, %v201
    %v594 = vpack.c.bf16 %v398, %v202
    %v595 = vpack.c.bf16 %v399, %v203
    %v596 = vpack.c.bf16 %v400, %v204
    %v597 = vpack.c.bf16 %v401, %v205
    %v598 = vpack.c.bf16 %v402, %v206
    %v599 = vpack.c.bf16 %v403, %v207
    %v600 = vpack.c.bf16 %v404, %v208
    %v601 = vpack.c.bf16 %v405, %v209
    %v602 = vpack.c.bf16 %v406, %v210
    %v603 = vpack.c.bf16 %v407, %v211
    %v604 = vpack.c.bf16 %v408, %v212
    %v605 = vpack.c.bf16 %v409, %v213
    %v606 = vpack.c.bf16 %v410, %v214
    %v607 = vpack.c.bf16 %v411, %v215
    %v608 = vpack.c.bf16 %v412, %v216
    %v609 = vpack.c.bf16 %v413, %v217
    %v610 = vpack.c.bf16 %v414, %v218
    %v611 = vpack.c.bf16 %v415, %v219
    %v612 = vpack.c.bf16 %v416, %v220
    %v613 = vpack.c.bf16 %v417, %v221
    %v614 = vpack.c.bf16 %v418, %v222
    %v615 = vpack.c.bf16 %v419, %v223
    %v616 = vpack.c.bf16 %v420, %v224
    %v617 = vpack.c.bf16 %v421, %v225
    %v618 = vpack.c.bf16 %v422, %v226
    %v619 = vpack.c.bf16 %v423, %v227
    %v620 = vpack.c.bf16 %v424, %v228
    %v621 = vpack.c.bf16 %v425, %v229
    %v622 = vpack.c.bf16 %v426, %v230
    %v623 = vpack.c.bf16 %v427, %v231
    %v624 = vpack.c.bf16 %v428, %v232
    %v625 = vpack.c.bf16 %v429, %v233
    %v626 = vpack.c.bf16 %v430, %v234
    %v627 = vpack.c.bf16 %v431, %v235
    %v628 = vpack.c.bf16 %v432, %v236
    %v629 = vpack.c.bf16 %v433, %v237
    %v630 = vpack.c.bf16 %v434, %v238
    %v631 = vpack.c.bf16 %v435, %v239
    %v632 = vpack.c.bf16 %v436, %v240
    %v633 = vpack.c.bf16 %v437, %v241
    %v634 = vpack.c.bf16 %v438, %v242
    %v635 = vpack.c.bf16 %v439, %v243
    %v636 = vpack.c.bf16 %v440, %v244
    %v637 = vpack.c.bf16 %v441, %v245
    %v638 = vpack.c.bf16 %v442, %v246
    %v639 = vpack.c.bf16 %v443, %v247
    %v640 = vpack.c.bf16 %v444, %v248
    %v641 = vpack.c.bf16 %v445, %v249
    %v642 = vpack.c.bf16 %v446, %v250
    %v643 = vld [vmem:[#allocation5] sm:$0xff]
    %v644 = vld [vmem:[#allocation5 + $0x8] sm:$0xff]
    %v645 = vld [vmem:[#allocation5 + $0x10] sm:$0xff]
    %v646 = vld [vmem:[#allocation5 + $0x18] sm:$0xff]
    %v647 = vld [vmem:[#allocation5 + $0x20] sm:$0xff]
    %v648 = vld [vmem:[#allocation5 + $0x28] sm:$0xff]
    %v649 = vld [vmem:[#allocation5 + $0x30] sm:$0xff]
    %v650 = vld [vmem:[#allocation5 + $0x38] sm:$0xff]
    %v651 = vld [vmem:[#allocation5 + $0x40] sm:$0xff]
    %v652 = vld [vmem:[#allocation5 + $0x48] sm:$0xff]
    %v653 = vld [vmem:[#allocation5 + $0x50] sm:$0xff]
    %v654 = vld [vmem:[#allocation5 + $0x58] sm:$0xff]
    %v655 = vld [vmem:[#allocation5 + $0x60] sm:$0xff]
    %v656 = vld [vmem:[#allocation5 + $0x68] sm:$0xff]
    %v657 = vld [vmem:[#allocation5 + $0x70] sm:$0xff]
    %v658 = vld [vmem:[#allocation5 + $0x78] sm:$0xff]
    %v659 = vld [vmem:[#allocation5 + $0x80] sm:$0xff]
    %v660 = vld [vmem:[#allocation5 + $0x88] sm:$0xff]
    %v661 = vld [vmem:[#allocation5 + $0x90] sm:$0xff]
    %v662 = vld [vmem:[#allocation5 + $0x98] sm:$0xff]
    %v663 = vld [vmem:[#allocation5 + $0xa0] sm:$0xff]
    %v664 = vld [vmem:[#allocation5 + $0xa8] sm:$0xff]
    %v665 = vld [vmem:[#allocation5 + $0xb0] sm:$0xff]
    %v666 = vld [vmem:[#allocation5 + $0xb8] sm:$0xff]
    %v667 = vld [vmem:[#allocation5 + $0xc0] sm:$0xff]
    %v668 = vld [vmem:[#allocation5 + $0xc8] sm:$0xff]
    %v669 = vld [vmem:[#allocation5 + $0xd0] sm:$0xff]
    %v670 = vld [vmem:[#allocation5 + $0xd8] sm:$0xff]
    %v671 = vld [vmem:[#allocation5 + $0xe0] sm:$0xff]
    %v672 = vld [vmem:[#allocation5 + $0xe8] sm:$0xff]
    %v673 = vld [vmem:[#allocation5 + $0xf0] sm:$0xff]
    %v674 = vld [vmem:[#allocation5 + $0xf8] sm:$0xff]
    %v675 = vld [vmem:[#allocation5 + $0x100] sm:$0xff]
    %v676 = vld [vmem:[#allocation5 + $0x108] sm:$0xff]
    %v677 = vld [vmem:[#allocation5 + $0x110] sm:$0xff]
    %v678 = vld [vmem:[#allocation5 + $0x118] sm:$0xff]
    %v679 = vld [vmem:[#allocation5 + $0x120] sm:$0xff]
    %v680 = vld [vmem:[#allocation5 + $0x128] sm:$0xff]
    %v681 = vld [vmem:[#allocation5 + $0x130] sm:$0xff]
    %v682 = vld [vmem:[#allocation5 + $0x138] sm:$0xff]
    %v683 = vld [vmem:[#allocation5 + $0x140] sm:$0xff]
    %v684 = vld [vmem:[#allocation5 + $0x148] sm:$0xff]
    %v685 = vld [vmem:[#allocation5 + $0x150] sm:$0xff]
    %v686 = vld [vmem:[#allocation5 + $0x158] sm:$0xff]
    %v687 = vld [vmem:[#allocation5 + $0x160] sm:$0xff]
    %v688 = vld [vmem:[#allocation5 + $0x168] sm:$0xff]
    %v689 = vld [vmem:[#allocation5 + $0x170] sm:$0xff]
    %v690 = vld [vmem:[#allocation5 + $0x178] sm:$0xff]
    %v691 = vld [vmem:[#allocation5 + $0x180] sm:$0xff]
    %v692 = vld [vmem:[#allocation5 + $0x188] sm:$0xff]
    %v693 = vld [vmem:[#allocation5 + $0x190] sm:$0xff]
    %v694 = vld [vmem:[#allocation5 + $0x198] sm:$0xff]
    %v695 = vld [vmem:[#allocation5 + $0x1a0] sm:$0xff]
    %v696 = vld [vmem:[#allocation5 + $0x1a8] sm:$0xff]
    %v697 = vld [vmem:[#allocation5 + $0x1b0] sm:$0xff]
    %v698 = vld [vmem:[#allocation5 + $0x1b8] sm:$0xff]
    %v699 = vld [vmem:[#allocation5 + $0x1c0] sm:$0xff]
    %v700 = vld [vmem:[#allocation5 + $0x1c8] sm:$0xff]
    %v701 = vld [vmem:[#allocation5 + $0x1d0] sm:$0xff]
    %v702 = vld [vmem:[#allocation5 + $0x1d8] sm:$0xff]
    %v703 = vld [vmem:[#allocation5 + $0x1e0] sm:$0xff]
    %v704 = vld [vmem:[#allocation5 + $0x1e8] sm:$0xff]
    %v705 = vld [vmem:[#allocation5 + $0x1f0] sm:$0xff]
    %v706 = vld [vmem:[#allocation5 + $0x1f8] sm:$0xff]
    %v707 = vld [vmem:[#allocation5 + $0x200] sm:$0xff]
    %v708 = vld [vmem:[#allocation5 + $0x208] sm:$0xff]
    %v709 = vld [vmem:[#allocation5 + $0x210] sm:$0xff]
    %v710 = vld [vmem:[#allocation5 + $0x218] sm:$0xff]
    %v711 = vld [vmem:[#allocation5 + $0x220] sm:$0xff]
    %v712 = vld [vmem:[#allocation5 + $0x228] sm:$0xff]
    %v713 = vld [vmem:[#allocation5 + $0x230] sm:$0xff]
    %v714 = vld [vmem:[#allocation5 + $0x238] sm:$0xff]
    %v715 = vld [vmem:[#allocation5 + $0x240] sm:$0xff]
    %v716 = vld [vmem:[#allocation5 + $0x248] sm:$0xff]
    %v717 = vld [vmem:[#allocation5 + $0x250] sm:$0xff]
    %v718 = vld [vmem:[#allocation5 + $0x258] sm:$0xff]
    %v719 = vld [vmem:[#allocation5 + $0x260] sm:$0xff]
    %v720 = vld [vmem:[#allocation5 + $0x268] sm:$0xff]
    %v721 = vld [vmem:[#allocation5 + $0x270] sm:$0xff]
    %v722 = vld [vmem:[#allocation5 + $0x278] sm:$0xff]
    %v723 = vld [vmem:[#allocation5 + $0x280] sm:$0xff]
    %v724 = vld [vmem:[#allocation5 + $0x288] sm:$0xff]
    %v725 = vld [vmem:[#allocation5 + $0x290] sm:$0xff]
    %v726 = vld [vmem:[#allocation5 + $0x298] sm:$0xff]
    %v727 = vld [vmem:[#allocation5 + $0x2a0] sm:$0xff]
    %v728 = vld [vmem:[#allocation5 + $0x2a8] sm:$0xff]
    %v729 = vld [vmem:[#allocation5 + $0x2b0] sm:$0xff]
    %v730 = vld [vmem:[#allocation5 + $0x2b8] sm:$0xff]
    %v731 = vld [vmem:[#allocation5 + $0x2c0] sm:$0xff]
    %v732 = vld [vmem:[#allocation5 + $0x2c8] sm:$0xff]
    %v733 = vld [vmem:[#allocation5 + $0x2d0] sm:$0xff]
    %v734 = vld [vmem:[#allocation5 + $0x2d8] sm:$0xff]
    %v735 = vld [vmem:[#allocation5 + $0x2e0] sm:$0xff]
    %v736 = vld [vmem:[#allocation5 + $0x2e8] sm:$0xff]
    %v737 = vld [vmem:[#allocation5 + $0x2f0] sm:$0xff]
    %v738 = vld [vmem:[#allocation5 + $0x2f8] sm:$0xff]
    %v739 = vld [vmem:[#allocation5 + $0x300] sm:$0xff]
    %v740 = vld [vmem:[#allocation5 + $0x308] sm:$0xff]
    %v741 = vld [vmem:[#allocation5 + $0x310] sm:$0xff]
    %v742 = vld [vmem:[#allocation5 + $0x318] sm:$0xff]
    %v743 = vld [vmem:[#allocation5 + $0x320] sm:$0xff]
    %v744 = vld [vmem:[#allocation5 + $0x328] sm:$0xff]
    %v745 = vld [vmem:[#allocation5 + $0x330] sm:$0xff]
    %v746 = vld [vmem:[#allocation5 + $0x338] sm:$0xff]
    %v747 = vld [vmem:[#allocation5 + $0x340] sm:$0xff]
    %v748 = vld [vmem:[#allocation5 + $0x348] sm:$0xff]
    %v749 = vld [vmem:[#allocation5 + $0x350] sm:$0xff]
    %v750 = vld [vmem:[#allocation5 + $0x358] sm:$0xff]
    %v751 = vld [vmem:[#allocation5 + $0x360] sm:$0xff]
    %v752 = vld [vmem:[#allocation5 + $0x368] sm:$0xff]
    %v753 = vld [vmem:[#allocation5 + $0x370] sm:$0xff]
    %v754 = vld [vmem:[#allocation5 + $0x378] sm:$0xff]
    %v755 = vld [vmem:[#allocation5 + $0x380] sm:$0xff]
    %v756 = vld [vmem:[#allocation5 + $0x388] sm:$0xff]
    %v757 = vld [vmem:[#allocation5 + $0x390] sm:$0xff]
    %v758 = vld [vmem:[#allocation5 + $0x398] sm:$0xff]
    %v759 = vld [vmem:[#allocation5 + $0x3a0] sm:$0xff]
    %v760 = vld [vmem:[#allocation5 + $0x3a8] sm:$0xff]
    %v761 = vld [vmem:[#allocation5 + $0x3b0] sm:$0xff]
    %v762 = vld [vmem:[#allocation5 + $0x3b8] sm:$0xff]
    %v763 = vld [vmem:[#allocation5 + $0x3c0] sm:$0xff]
    %v764 = vld [vmem:[#allocation5 + $0x3c8] sm:$0xff]
    %v765 = vld [vmem:[#allocation5 + $0x3d0] sm:$0xff]
    %v766 = vld [vmem:[#allocation5 + $0x3d8] sm:$0xff]
    %v767 = vld [vmem:[#allocation5 + $0x3e0] sm:$0xff]
    %v768 = vld [vmem:[#allocation5 + $0x3e8] sm:$0xff]
    %v769 = vld [vmem:[#allocation5 + $0x3f0] sm:$0xff]
    %v770 = vld [vmem:[#allocation5 + $0x3f8] sm:$0xff]
    %v771 = vld [vmem:[#allocation5 + $0x400] sm:$0xff]
    %v772 = vld [vmem:[#allocation5 + $0x408] sm:$0xff]
    %v773 = vld [vmem:[#allocation5 + $0x410] sm:$0xff]
    %v774 = vld [vmem:[#allocation5 + $0x418] sm:$0xff]
    %v775 = vld [vmem:[#allocation5 + $0x420] sm:$0xff]
    %v776 = vld [vmem:[#allocation5 + $0x428] sm:$0xff]
    %v777 = vld [vmem:[#allocation5 + $0x430] sm:$0xff]
    %v778 = vld [vmem:[#allocation5 + $0x438] sm:$0xff]
    %v779 = vld [vmem:[#allocation5 + $0x440] sm:$0xff]
    %v780 = vld [vmem:[#allocation5 + $0x448] sm:$0xff]
    %v781 = vld [vmem:[#allocation5 + $0x450] sm:$0xff]
    %v782 = vld [vmem:[#allocation5 + $0x458] sm:$0xff]
    %v783 = vld [vmem:[#allocation5 + $0x460] sm:$0xff]
    %v784 = vld [vmem:[#allocation5 + $0x468] sm:$0xff]
    %v785 = vld [vmem:[#allocation5 + $0x470] sm:$0xff]
    %v786 = vld [vmem:[#allocation5 + $0x478] sm:$0xff]
    %v787 = vld [vmem:[#allocation5 + $0x480] sm:$0xff]
    %v788 = vld [vmem:[#allocation5 + $0x488] sm:$0xff]
    %v789 = vld [vmem:[#allocation5 + $0x490] sm:$0xff]
    %v790 = vld [vmem:[#allocation5 + $0x498] sm:$0xff]
    %v791 = vld [vmem:[#allocation5 + $0x4a0] sm:$0xff]
    %v792 = vld [vmem:[#allocation5 + $0x4a8] sm:$0xff]
    %v793 = vld [vmem:[#allocation5 + $0x4b0] sm:$0xff]
    %v794 = vld [vmem:[#allocation5 + $0x4b8] sm:$0xff]
    %v795 = vld [vmem:[#allocation5 + $0x4c0] sm:$0xff]
    %v796 = vld [vmem:[#allocation5 + $0x4c8] sm:$0xff]
    %v797 = vld [vmem:[#allocation5 + $0x4d0] sm:$0xff]
    %v798 = vld [vmem:[#allocation5 + $0x4d8] sm:$0xff]
    %v799 = vld [vmem:[#allocation5 + $0x4e0] sm:$0xff]
    %v800 = vld [vmem:[#allocation5 + $0x4e8] sm:$0xff]
    %v801 = vld [vmem:[#allocation5 + $0x4f0] sm:$0xff]
    %v802 = vld [vmem:[#allocation5 + $0x4f8] sm:$0xff]
    %v803 = vld [vmem:[#allocation5 + $0x500] sm:$0xff]
    %v804 = vld [vmem:[#allocation5 + $0x508] sm:$0xff]
    %v805 = vld [vmem:[#allocation5 + $0x510] sm:$0xff]
    %v806 = vld [vmem:[#allocation5 + $0x518] sm:$0xff]
    %v807 = vld [vmem:[#allocation5 + $0x520] sm:$0xff]
    %v808 = vld [vmem:[#allocation5 + $0x528] sm:$0xff]
    %v809 = vld [vmem:[#allocation5 + $0x530] sm:$0xff]
    %v810 = vld [vmem:[#allocation5 + $0x538] sm:$0xff]
    %v811 = vld [vmem:[#allocation5 + $0x540] sm:$0xff]
    %v812 = vld [vmem:[#allocation5 + $0x548] sm:$0xff]
    %v813 = vld [vmem:[#allocation5 + $0x550] sm:$0xff]
    %v814 = vld [vmem:[#allocation5 + $0x558] sm:$0xff]
    %v815 = vld [vmem:[#allocation5 + $0x560] sm:$0xff]
    %v816 = vld [vmem:[#allocation5 + $0x568] sm:$0xff]
    %v817 = vld [vmem:[#allocation5 + $0x570] sm:$0xff]
    %v818 = vld [vmem:[#allocation5 + $0x578] sm:$0xff]
    %v819 = vld [vmem:[#allocation5 + $0x580] sm:$0xff]
    %v820 = vld [vmem:[#allocation5 + $0x588] sm:$0xff]
    %v821 = vld [vmem:[#allocation5 + $0x590] sm:$0xff]
    %v822 = vld [vmem:[#allocation5 + $0x598] sm:$0xff]
    %v823 = vld [vmem:[#allocation5 + $0x5a0] sm:$0xff]
    %v824 = vld [vmem:[#allocation5 + $0x5a8] sm:$0xff]
    %v825 = vld [vmem:[#allocation5 + $0x5b0] sm:$0xff]
    %v826 = vld [vmem:[#allocation5 + $0x5b8] sm:$0xff]
    %v827 = vld [vmem:[#allocation5 + $0x5c0] sm:$0xff]
    %v828 = vld [vmem:[#allocation5 + $0x5c8] sm:$0xff]
    %v829 = vld [vmem:[#allocation5 + $0x5d0] sm:$0xff]
    %v830 = vld [vmem:[#allocation5 + $0x5d8] sm:$0xff]
    %v831 = vld [vmem:[#allocation5 + $0x5e0] sm:$0xff]
    %v832 = vld [vmem:[#allocation5 + $0x5e8] sm:$0xff]
    %v833 = vld [vmem:[#allocation5 + $0x5f0] sm:$0xff]
    %v834 = vld [vmem:[#allocation5 + $0x5f8] sm:$0xff]
    %v835 = vld [vmem:[#allocation5 + $0x600] sm:$0xff]
    %v836 = vld [vmem:[#allocation5 + $0x608] sm:$0xff]
    %v837 = vld [vmem:[#allocation5 + $0x610] sm:$0xff]
    %v838 = vld [vmem:[#allocation5 + $0x618] sm:$0xff]
    %v839 = vld [vmem:[#allocation5 + $0x620] sm:$0xff]
    %v840 = vld [vmem:[#allocation5 + $0x628] sm:$0xff]
    %v841 = vld [vmem:[#allocation5 + $0x630] sm:$0xff]
    %v842 = vld [vmem:[#allocation5 + $0x638] sm:$0xff]
    %v843 = vld [vmem:[#allocation5 + $0x640] sm:$0xff]
    %v844 = vld [vmem:[#allocation5 + $0x648] sm:$0xff]
    %v845 = vld [vmem:[#allocation5 + $0x650] sm:$0xff]
    %v846 = vld [vmem:[#allocation5 + $0x658] sm:$0xff]
    %v847 = vld [vmem:[#allocation5 + $0x660] sm:$0xff]
    %v848 = vld [vmem:[#allocation5 + $0x668] sm:$0xff]
    %v849 = vld [vmem:[#allocation5 + $0x670] sm:$0xff]
    %v850 = vld [vmem:[#allocation5 + $0x678] sm:$0xff]
    %v851 = vld [vmem:[#allocation5 + $0x680] sm:$0xff]
    %v852 = vld [vmem:[#allocation5 + $0x688] sm:$0xff]
    %v853 = vld [vmem:[#allocation5 + $0x690] sm:$0xff]
    %v854 = vld [vmem:[#allocation5 + $0x698] sm:$0xff]
    %v855 = vld [vmem:[#allocation5 + $0x6a0] sm:$0xff]
    %v856 = vld [vmem:[#allocation5 + $0x6a8] sm:$0xff]
    %v857 = vld [vmem:[#allocation5 + $0x6b0] sm:$0xff]
    %v858 = vld [vmem:[#allocation5 + $0x6b8] sm:$0xff]
    %v859 = vld [vmem:[#allocation5 + $0x6c0] sm:$0xff]
    %v860 = vld [vmem:[#allocation5 + $0x6c8] sm:$0xff]
    %v861 = vld [vmem:[#allocation5 + $0x6d0] sm:$0xff]
    %v862 = vld [vmem:[#allocation5 + $0x6d8] sm:$0xff]
    %v863 = vld [vmem:[#allocation5 + $0x6e0] sm:$0xff]
    %v864 = vld [vmem:[#allocation5 + $0x6e8] sm:$0xff]
    %v865 = vld [vmem:[#allocation5 + $0x6f0] sm:$0xff]
    %v866 = vld [vmem:[#allocation5 + $0x6f8] sm:$0xff]
    %v867 = vld [vmem:[#allocation5 + $0x700] sm:$0xff]
    %v868 = vld [vmem:[#allocation5 + $0x708] sm:$0xff]
    %v869 = vld [vmem:[#allocation5 + $0x710] sm:$0xff]
    %v870 = vld [vmem:[#allocation5 + $0x718] sm:$0xff]
    %v871 = vld [vmem:[#allocation5 + $0x720] sm:$0xff]
    %v872 = vld [vmem:[#allocation5 + $0x728] sm:$0xff]
    %v873 = vld [vmem:[#allocation5 + $0x730] sm:$0xff]
    %v874 = vld [vmem:[#allocation5 + $0x738] sm:$0xff]
    %v875 = vld [vmem:[#allocation5 + $0x740] sm:$0xff]
    %v876 = vld [vmem:[#allocation5 + $0x748] sm:$0xff]
    %v877 = vld [vmem:[#allocation5 + $0x750] sm:$0xff]
    %v878 = vld [vmem:[#allocation5 + $0x758] sm:$0xff]
    %v879 = vld [vmem:[#allocation5 + $0x760] sm:$0xff]
    %v880 = vld [vmem:[#allocation5 + $0x768] sm:$0xff]
    %v881 = vld [vmem:[#allocation5 + $0x770] sm:$0xff]
    %v882 = vld [vmem:[#allocation5 + $0x778] sm:$0xff]
    %v883 = vld [vmem:[#allocation5 + $0x780] sm:$0xff]
    %v884 = vld [vmem:[#allocation5 + $0x788] sm:$0xff]
    %v885 = vld [vmem:[#allocation5 + $0x790] sm:$0xff]
    %v886 = vld [vmem:[#allocation5 + $0x798] sm:$0xff]
    %v887 = vld [vmem:[#allocation5 + $0x7a0] sm:$0xff]
    %v888 = vld [vmem:[#allocation5 + $0x7a8] sm:$0xff]
    %v889 = vld [vmem:[#allocation5 + $0x7b0] sm:$0xff]
    %v890 = vld [vmem:[#allocation5 + $0x7b8] sm:$0xff]
    %v891 = vld [vmem:[#allocation5 + $0x7c0] sm:$0xff]
    %v892 = vld [vmem:[#allocation5 + $0x7c8] sm:$0xff]
    %v893 = vld [vmem:[#allocation5 + $0x7d0] sm:$0xff]
    %v894 = vld [vmem:[#allocation5 + $0x7d8] sm:$0xff]
    %v895 = vld [vmem:[#allocation5 + $0x7e0] sm:$0xff]
    %v896 = vld [vmem:[#allocation5 + $0x7e8] sm:$0xff]
    %v897 = vld [vmem:[#allocation5 + $0x7f0] sm:$0xff]
    %v898 = vld [vmem:[#allocation5 + $0x7f8] sm:$0xff]
    %v899 = vld [vmem:[#allocation5 + $0x800] sm:$0xff]
    %v900 = vld [vmem:[#allocation5 + $0x808] sm:$0xff]
    %v901 = vld [vmem:[#allocation5 + $0x810] sm:$0xff]
    %v902 = vld [vmem:[#allocation5 + $0x818] sm:$0xff]
    %v903 = vld [vmem:[#allocation5 + $0x820] sm:$0xff]
    %v904 = vld [vmem:[#allocation5 + $0x828] sm:$0xff]
    %v905 = vld [vmem:[#allocation5 + $0x830] sm:$0xff]
    %v906 = vld [vmem:[#allocation5 + $0x838] sm:$0xff]
    %v907 = vld [vmem:[#allocation5 + $0x840] sm:$0xff]
    %v908 = vld [vmem:[#allocation5 + $0x848] sm:$0xff]
    %v909 = vld [vmem:[#allocation5 + $0x850] sm:$0xff]
    %v910 = vld [vmem:[#allocation5 + $0x858] sm:$0xff]
    %v911 = vld [vmem:[#allocation5 + $0x860] sm:$0xff]
    %v912 = vld [vmem:[#allocation5 + $0x868] sm:$0xff]
    %v913 = vld [vmem:[#allocation5 + $0x870] sm:$0xff]
    %v914 = vld [vmem:[#allocation5 + $0x878] sm:$0xff]
    %v915 = vld [vmem:[#allocation5 + $0x880] sm:$0xff]
    %v916 = vld [vmem:[#allocation5 + $0x888] sm:$0xff]
    %v917 = vld [vmem:[#allocation5 + $0x890] sm:$0xff]
    %v918 = vld [vmem:[#allocation5 + $0x898] sm:$0xff]
    %v919 = vld [vmem:[#allocation5 + $0x8a0] sm:$0xff]
    %v920 = vld [vmem:[#allocation5 + $0x8a8] sm:$0xff]
    %v921 = vld [vmem:[#allocation5 + $0x8b0] sm:$0xff]
    %v922 = vld [vmem:[#allocation5 + $0x8b8] sm:$0xff]
    %v923 = vld [vmem:[#allocation5 + $0x8c0] sm:$0xff]
    %v924 = vld [vmem:[#allocation5 + $0x8c8] sm:$0xff]
    %v925 = vld [vmem:[#allocation5 + $0x8d0] sm:$0xff]
    %v926 = vld [vmem:[#allocation5 + $0x8d8] sm:$0xff]
    %v927 = vld [vmem:[#allocation5 + $0x8e0] sm:$0xff]
    %v928 = vld [vmem:[#allocation5 + $0x8e8] sm:$0xff]
    %v929 = vld [vmem:[#allocation5 + $0x8f0] sm:$0xff]
    %v930 = vld [vmem:[#allocation5 + $0x8f8] sm:$0xff]
    %v931 = vld [vmem:[#allocation5 + $0x900] sm:$0xff]
    %v932 = vld [vmem:[#allocation5 + $0x908] sm:$0xff]
    %v933 = vld [vmem:[#allocation5 + $0x910] sm:$0xff]
    %v934 = vld [vmem:[#allocation5 + $0x918] sm:$0xff]
    %v935 = vld [vmem:[#allocation5 + $0x920] sm:$0xff]
    %v936 = vld [vmem:[#allocation5 + $0x928] sm:$0xff]
    %v937 = vld [vmem:[#allocation5 + $0x930] sm:$0xff]
    %v938 = vld [vmem:[#allocation5 + $0x938] sm:$0xff]
    %v939 = vld [vmem:[#allocation5 + $0x940] sm:$0xff]
    %v940 = vld [vmem:[#allocation5 + $0x948] sm:$0xff]
    %v941 = vld [vmem:[#allocation5 + $0x950] sm:$0xff]
    %v942 = vld [vmem:[#allocation5 + $0x958] sm:$0xff]
    %v943 = vld [vmem:[#allocation5 + $0x960] sm:$0xff]
    %v944 = vld [vmem:[#allocation5 + $0x968] sm:$0xff]
    %v945 = vld [vmem:[#allocation5 + $0x970] sm:$0xff]
    %v946 = vld [vmem:[#allocation5 + $0x978] sm:$0xff]
    %v947 = vld [vmem:[#allocation5 + $0x980] sm:$0xff]
    %v948 = vld [vmem:[#allocation5 + $0x988] sm:$0xff]
    %v949 = vld [vmem:[#allocation5 + $0x990] sm:$0xff]
    %v950 = vld [vmem:[#allocation5 + $0x998] sm:$0xff]
    %v951 = vld [vmem:[#allocation5 + $0x9a0] sm:$0xff]
    %v952 = vld [vmem:[#allocation5 + $0x9a8] sm:$0xff]
    %v953 = vld [vmem:[#allocation5 + $0x9b0] sm:$0xff]
    %v954 = vld [vmem:[#allocation5 + $0x9b8] sm:$0xff]
    %v955 = vld [vmem:[#allocation5 + $0x9c0] sm:$0xff]
    %v956 = vld [vmem:[#allocation5 + $0x9c8] sm:$0xff]
    %v957 = vld [vmem:[#allocation5 + $0x9d0] sm:$0xff]
    %v958 = vld [vmem:[#allocation5 + $0x9d8] sm:$0xff]
    %v959 = vld [vmem:[#allocation5 + $0x9e0] sm:$0xff]
    %v960 = vld [vmem:[#allocation5 + $0x9e8] sm:$0xff]
    %v961 = vld [vmem:[#allocation5 + $0x9f0] sm:$0xff]
    %v962 = vld [vmem:[#allocation5 + $0x9f8] sm:$0xff]
    %v963 = vld [vmem:[#allocation5 + $0xa00] sm:$0xff]
    %v964 = vld [vmem:[#allocation5 + $0xa08] sm:$0xff]
    %v965 = vld [vmem:[#allocation5 + $0xa10] sm:$0xff]
    %v966 = vld [vmem:[#allocation5 + $0xa18] sm:$0xff]
    %v967 = vld [vmem:[#allocation5 + $0xa20] sm:$0xff]
    %v968 = vld [vmem:[#allocation5 + $0xa28] sm:$0xff]
    %v969 = vld [vmem:[#allocation5 + $0xa30] sm:$0xff]
    %v970 = vld [vmem:[#allocation5 + $0xa38] sm:$0xff]
    %v971 = vld [vmem:[#allocation5 + $0xa40] sm:$0xff]
    %v972 = vld [vmem:[#allocation5 + $0xa48] sm:$0xff]
    %v973 = vld [vmem:[#allocation5 + $0xa50] sm:$0xff]
    %v974 = vld [vmem:[#allocation5 + $0xa58] sm:$0xff]
    %v975 = vld [vmem:[#allocation5 + $0xa60] sm:$0xff]
    %v976 = vld [vmem:[#allocation5 + $0xa68] sm:$0xff]
    %v977 = vld [vmem:[#allocation5 + $0xa70] sm:$0xff]
    %v978 = vld [vmem:[#allocation5 + $0xa78] sm:$0xff]
    %v979 = vld [vmem:[#allocation5 + $0xa80] sm:$0xff]
    %v980 = vld [vmem:[#allocation5 + $0xa88] sm:$0xff]
    %v981 = vld [vmem:[#allocation5 + $0xa90] sm:$0xff]
    %v982 = vld [vmem:[#allocation5 + $0xa98] sm:$0xff]
    %v983 = vld [vmem:[#allocation5 + $0xaa0] sm:$0xff]
    %v984 = vld [vmem:[#allocation5 + $0xaa8] sm:$0xff]
    %v985 = vld [vmem:[#allocation5 + $0xab0] sm:$0xff]
    %v986 = vld [vmem:[#allocation5 + $0xab8] sm:$0xff]
    %v987 = vld [vmem:[#allocation5 + $0xac0] sm:$0xff]
    %v988 = vld [vmem:[#allocation5 + $0xac8] sm:$0xff]
    %v989 = vld [vmem:[#allocation5 + $0xad0] sm:$0xff]
    %v990 = vld [vmem:[#allocation5 + $0xad8] sm:$0xff]
    %v991 = vld [vmem:[#allocation5 + $0xae0] sm:$0xff]
    %v992 = vld [vmem:[#allocation5 + $0xae8] sm:$0xff]
    %v993 = vld [vmem:[#allocation5 + $0xaf0] sm:$0xff]
    %v994 = vld [vmem:[#allocation5 + $0xaf8] sm:$0xff]
    %v995 = vld [vmem:[#allocation5 + $0xb00] sm:$0xff]
    %v996 = vld [vmem:[#allocation5 + $0xb08] sm:$0xff]
    %v997 = vld [vmem:[#allocation5 + $0xb10] sm:$0xff]
    %v998 = vld [vmem:[#allocation5 + $0xb18] sm:$0xff]
    %v999 = vld [vmem:[#allocation5 + $0xb20] sm:$0xff]
    %v1000 = vld [vmem:[#allocation5 + $0xb28] sm:$0xff]
    %v1001 = vld [vmem:[#allocation5 + $0xb30] sm:$0xff]
    %v1002 = vld [vmem:[#allocation5 + $0xb38] sm:$0xff]
    %v1003 = vld [vmem:[#allocation5 + $0xb40] sm:$0xff]
    %v1004 = vld [vmem:[#allocation5 + $0xb48] sm:$0xff]
    %v1005 = vld [vmem:[#allocation5 + $0xb50] sm:$0xff]
    %v1006 = vld [vmem:[#allocation5 + $0xb58] sm:$0xff]
    %v1007 = vld [vmem:[#allocation5 + $0xb60] sm:$0xff]
    %v1008 = vld [vmem:[#allocation5 + $0xb68] sm:$0xff]
    %v1009 = vld [vmem:[#allocation5 + $0xb70] sm:$0xff]
    %v1010 = vld [vmem:[#allocation5 + $0xb78] sm:$0xff]
    %v1011 = vld [vmem:[#allocation5 + $0xb80] sm:$0xff]
    %v1012 = vld [vmem:[#allocation5 + $0xb88] sm:$0xff]
    %v1013 = vld [vmem:[#allocation5 + $0xb90] sm:$0xff]
    %v1014 = vld [vmem:[#allocation5 + $0xb98] sm:$0xff]
    %v1015 = vld [vmem:[#allocation5 + $0xba0] sm:$0xff]
    %v1016 = vld [vmem:[#allocation5 + $0xba8] sm:$0xff]
    %v1017 = vld [vmem:[#allocation5 + $0xbb0] sm:$0xff]
    %v1018 = vld [vmem:[#allocation5 + $0xbb8] sm:$0xff]
    %v1019 = vld [vmem:[#allocation5 + $0xbc0] sm:$0xff]
    %v1020 = vld [vmem:[#allocation5 + $0xbc8] sm:$0xff]
    %v1021 = vld [vmem:[#allocation5 + $0xbd0] sm:$0xff]
    %v1022 = vld [vmem:[#allocation5 + $0xbd8] sm:$0xff]
    %v1023 = vld [vmem:[#allocation5 + $0xbe0] sm:$0xff]
    %v1024 = vld [vmem:[#allocation5 + $0xbe8] sm:$0xff]
    %v1025 = vld [vmem:[#allocation5 + $0xbf0] sm:$0xff]
    %v1026 = vld [vmem:[#allocation5 + $0xbf8] sm:$0xff]
    %v1027 = vld [vmem:[#allocation5 + $0xc00] sm:$0xff]
    %v1028 = vld [vmem:[#allocation5 + $0xc08] sm:$0xff]
    %v1029 = vld [vmem:[#allocation5 + $0xc10] sm:$0xff]
    %v1030 = vld [vmem:[#allocation5 + $0xc18] sm:$0xff]
    %v1031 = vld [vmem:[#allocation5 + $0xc20] sm:$0xff]
    %v1032 = vld [vmem:[#allocation5 + $0xc28] sm:$0xff]
    %v1033 = vld [vmem:[#allocation5 + $0xc30] sm:$0xff]
    %v1034 = vld [vmem:[#allocation5 + $0xc38] sm:$0xff]
    %v1035 = vld [vmem:[#allocation5 + $0xc40] sm:$0xff]
    %v1036 = vld [vmem:[#allocation5 + $0xc48] sm:$0xff]
    %v1037 = vld [vmem:[#allocation5 + $0xc50] sm:$0xff]
    %v1038 = vld [vmem:[#allocation5 + $0xc58] sm:$0xff]
    %v1039 = vld [vmem:[#allocation5 + $0xc60] sm:$0xff]
    %v1040 = vld [vmem:[#allocation5 + $0xc68] sm:$0xff]
    %v1041 = vld [vmem:[#allocation5 + $0xc70] sm:$0xff]
    %v1042 = vld [vmem:[#allocation5 + $0xc78] sm:$0xff]
    %v1043 = vld [vmem:[#allocation5 + $0xc80] sm:$0xff]
    %v1044 = vld [vmem:[#allocation5 + $0xc88] sm:$0xff]
    %v1045 = vld [vmem:[#allocation5 + $0xc90] sm:$0xff]
    %v1046 = vld [vmem:[#allocation5 + $0xc98] sm:$0xff]
    %v1047 = vld [vmem:[#allocation5 + $0xca0] sm:$0xff]
    %v1048 = vld [vmem:[#allocation5 + $0xca8] sm:$0xff]
    %v1049 = vld [vmem:[#allocation5 + $0xcb0] sm:$0xff]
    %v1050 = vld [vmem:[#allocation5 + $0xcb8] sm:$0xff]
    %v1051 = vld [vmem:[#allocation5 + $0xcc0] sm:$0xff]
    %v1052 = vld [vmem:[#allocation5 + $0xcc8] sm:$0xff]
    %v1053 = vld [vmem:[#allocation5 + $0xcd0] sm:$0xff]
    %v1054 = vld [vmem:[#allocation5 + $0xcd8] sm:$0xff]
    %v1055 = vld [vmem:[#allocation5 + $0xce0] sm:$0xff]
    %v1056 = vld [vmem:[#allocation5 + $0xce8] sm:$0xff]
    %v1057 = vld [vmem:[#allocation5 + $0xcf0] sm:$0xff]
    %v1058 = vld [vmem:[#allocation5 + $0xcf8] sm:$0xff]
    %v1059 = vld [vmem:[#allocation5 + $0xd00] sm:$0xff]
    %v1060 = vld [vmem:[#allocation5 + $0xd08] sm:$0xff]
    %v1061 = vld [vmem:[#allocation5 + $0xd10] sm:$0xff]
    %v1062 = vld [vmem:[#allocation5 + $0xd18] sm:$0xff]
    %v1063 = vld [vmem:[#allocation5 + $0xd20] sm:$0xff]
    %v1064 = vld [vmem:[#allocation5 + $0xd28] sm:$0xff]
    %v1065 = vld [vmem:[#allocation5 + $0xd30] sm:$0xff]
    %v1066 = vld [vmem:[#allocation5 + $0xd38] sm:$0xff]
    %v1067 = vld [vmem:[#allocation5 + $0xd40] sm:$0xff]
    %v1068 = vld [vmem:[#allocation5 + $0xd48] sm:$0xff]
    %v1069 = vld [vmem:[#allocation5 + $0xd50] sm:$0xff]
    %v1070 = vld [vmem:[#allocation5 + $0xd58] sm:$0xff]
    %v1071 = vld [vmem:[#allocation5 + $0xd60] sm:$0xff]
    %v1072 = vld [vmem:[#allocation5 + $0xd68] sm:$0xff]
    %v1073 = vld [vmem:[#allocation5 + $0xd70] sm:$0xff]
    %v1074 = vld [vmem:[#allocation5 + $0xd78] sm:$0xff]
    %v1075 = vld [vmem:[#allocation5 + $0xd80] sm:$0xff]
    %v1076 = vld [vmem:[#allocation5 + $0xd88] sm:$0xff]
    %v1077 = vld [vmem:[#allocation5 + $0xd90] sm:$0xff]
    %v1078 = vld [vmem:[#allocation5 + $0xd98] sm:$0xff]
    %v1079 = vld [vmem:[#allocation5 + $0xda0] sm:$0xff]
    %v1080 = vld [vmem:[#allocation5 + $0xda8] sm:$0xff]
    %v1081 = vld [vmem:[#allocation5 + $0xdb0] sm:$0xff]
    %v1082 = vld [vmem:[#allocation5 + $0xdb8] sm:$0xff]
    %v1083 = vld [vmem:[#allocation5 + $0xdc0] sm:$0xff]
    %v1084 = vld [vmem:[#allocation5 + $0xdc8] sm:$0xff]
    %v1085 = vld [vmem:[#allocation5 + $0xdd0] sm:$0xff]
    %v1086 = vld [vmem:[#allocation5 + $0xdd8] sm:$0xff]
    %v1087 = vld [vmem:[#allocation5 + $0xde0] sm:$0xff]
    %v1088 = vld [vmem:[#allocation5 + $0xde8] sm:$0xff]
    %v1089 = vld [vmem:[#allocation5 + $0xdf0] sm:$0xff]
    %v1090 = vld [vmem:[#allocation5 + $0xdf8] sm:$0xff]
    %v1091 = vld [vmem:[#allocation5 + $0xe00] sm:$0xff]
    %v1092 = vld [vmem:[#allocation5 + $0xe08] sm:$0xff]
    %v1093 = vld [vmem:[#allocation5 + $0xe10] sm:$0xff]
    %v1094 = vld [vmem:[#allocation5 + $0xe18] sm:$0xff]
    %v1095 = vld [vmem:[#allocation5 + $0xe20] sm:$0xff]
    %v1096 = vld [vmem:[#allocation5 + $0xe28] sm:$0xff]
    %v1097 = vld [vmem:[#allocation5 + $0xe30] sm:$0xff]
    %v1098 = vld [vmem:[#allocation5 + $0xe38] sm:$0xff]
    %v1099 = vld [vmem:[#allocation5 + $0xe40] sm:$0xff]
    %v1100 = vld [vmem:[#allocation5 + $0xe48] sm:$0xff]
    %v1101 = vld [vmem:[#allocation5 + $0xe50] sm:$0xff]
    %v1102 = vld [vmem:[#allocation5 + $0xe58] sm:$0xff]
    %v1103 = vld [vmem:[#allocation5 + $0xe60] sm:$0xff]
    %v1104 = vld [vmem:[#allocation5 + $0xe68] sm:$0xff]
    %v1105 = vld [vmem:[#allocation5 + $0xe70] sm:$0xff]
    %v1106 = vld [vmem:[#allocation5 + $0xe78] sm:$0xff]
    %v1107 = vld [vmem:[#allocation5 + $0xe80] sm:$0xff]
    %v1108 = vld [vmem:[#allocation5 + $0xe88] sm:$0xff]
    %v1109 = vld [vmem:[#allocation5 + $0xe90] sm:$0xff]
    %v1110 = vld [vmem:[#allocation5 + $0xe98] sm:$0xff]
    %v1111 = vld [vmem:[#allocation5 + $0xea0] sm:$0xff]
    %v1112 = vld [vmem:[#allocation5 + $0xea8] sm:$0xff]
    %v1113 = vld [vmem:[#allocation5 + $0xeb0] sm:$0xff]
    %v1114 = vld [vmem:[#allocation5 + $0xeb8] sm:$0xff]
    %v1115 = vld [vmem:[#allocation5 + $0xec0] sm:$0xff]
    %v1116 = vld [vmem:[#allocation5 + $0xec8] sm:$0xff]
    %v1117 = vld [vmem:[#allocation5 + $0xed0] sm:$0xff]
    %v1118 = vld [vmem:[#allocation5 + $0xed8] sm:$0xff]
    %v1119 = vld [vmem:[#allocation5 + $0xee0] sm:$0xff]
    %v1120 = vld [vmem:[#allocation5 + $0xee8] sm:$0xff]
    %v1121 = vld [vmem:[#allocation5 + $0xef0] sm:$0xff]
    %v1122 = vld [vmem:[#allocation5 + $0xef8] sm:$0xff]
    %v1123 = vld [vmem:[#allocation5 + $0xf00] sm:$0xff]
    %v1124 = vld [vmem:[#allocation5 + $0xf08] sm:$0xff]
    %v1125 = vld [vmem:[#allocation5 + $0xf10] sm:$0xff]
    %v1126 = vld [vmem:[#allocation5 + $0xf18] sm:$0xff]
    %v1127 = vld [vmem:[#allocation5 + $0xf20] sm:$0xff]
    %v1128 = vld [vmem:[#allocation5 + $0xf28] sm:$0xff]
    %v1129 = vld [vmem:[#allocation5 + $0xf30] sm:$0xff]
    %v1130 = vld [vmem:[#allocation5 + $0xf38] sm:$0xff]
    %v1131 = vld [vmem:[#allocation5 + $0xf40] sm:$0xff]
    %v1132 = vld [vmem:[#allocation5 + $0xf48] sm:$0xff]
    %v1133 = vld [vmem:[#allocation5 + $0xf50] sm:$0xff]
    %v1134 = vld [vmem:[#allocation5 + $0xf58] sm:$0xff]
    %v1135 = vld [vmem:[#allocation5 + $0xf60] sm:$0xff]
    %v1136 = vld [vmem:[#allocation5 + $0xf68] sm:$0xff]
    %v1137 = vld [vmem:[#allocation5 + $0xf70] sm:$0xff]
    %v1138 = vld [vmem:[#allocation5 + $0xf78] sm:$0xff]
    %v1139 = vld [vmem:[#allocation5 + $0xf80] sm:$0xff]
    %v1140 = vld [vmem:[#allocation5 + $0xf88] sm:$0xff]
    %v1141 = vld [vmem:[#allocation5 + $0xf90] sm:$0xff]
    %v1142 = vld [vmem:[#allocation5 + $0xf98] sm:$0xff]
    %v1143 = vld [vmem:[#allocation5 + $0xfa0] sm:$0xff]
    %v1144 = vld [vmem:[#allocation5 + $0xfa8] sm:$0xff]
    %v1145 = vld [vmem:[#allocation5 + $0xfb0] sm:$0xff]
    %v1146 = vld [vmem:[#allocation5 + $0xfb8] sm:$0xff]
    %v1147 = vld [vmem:[#allocation5 + $0xfc0] sm:$0xff]
    %v1148 = vld [vmem:[#allocation5 + $0xfc8] sm:$0xff]
    %v1149 = vld [vmem:[#allocation5 + $0xfd0] sm:$0xff]
    %v1150 = vld [vmem:[#allocation5 + $0xfd8] sm:$0xff]
    %v1151 = vld [vmem:[#allocation5 + $0xfe0] sm:$0xff]
    %v1152 = vld [vmem:[#allocation5 + $0xfe8] sm:$0xff]
    %v1153 = vld [vmem:[#allocation5 + $0xff0] sm:$0xff]
    %v1154 = vld [vmem:[#allocation5 + $0xff8] sm:$0xff]
    %v1155 = vld [vmem:[#allocation5 + $0x1000] sm:$0xff]
    %v1156 = vld [vmem:[#allocation5 + $0x1008] sm:$0xff]
    %v1157 = vld [vmem:[#allocation5 + $0x1010] sm:$0xff]
    %v1158 = vld [vmem:[#allocation5 + $0x1018] sm:$0xff]
    %v1159 = vld [vmem:[#allocation5 + $0x1020] sm:$0xff]
    %v1160 = vld [vmem:[#allocation5 + $0x1028] sm:$0xff]
    %v1161 = vld [vmem:[#allocation5 + $0x1030] sm:$0xff]
    %v1162 = vld [vmem:[#allocation5 + $0x1038] sm:$0xff]
    %v1163 = vld [vmem:[#allocation5 + $0x1040] sm:$0xff]
    %v1164 = vld [vmem:[#allocation5 + $0x1048] sm:$0xff]
    %v1165 = vld [vmem:[#allocation5 + $0x1050] sm:$0xff]
    %v1166 = vld [vmem:[#allocation5 + $0x1058] sm:$0xff]
    %v1167 = vld [vmem:[#allocation5 + $0x1060] sm:$0xff]
    %v1168 = vld [vmem:[#allocation5 + $0x1068] sm:$0xff]
    %v1169 = vld [vmem:[#allocation5 + $0x1070] sm:$0xff]
    %v1170 = vld [vmem:[#allocation5 + $0x1078] sm:$0xff]
    %v1171 = vld [vmem:[#allocation5 + $0x1080] sm:$0xff]
    %v1172 = vld [vmem:[#allocation5 + $0x1088] sm:$0xff]
    %v1173 = vld [vmem:[#allocation5 + $0x1090] sm:$0xff]
    %v1174 = vld [vmem:[#allocation5 + $0x1098] sm:$0xff]
    %v1175 = vld [vmem:[#allocation5 + $0x10a0] sm:$0xff]
    %v1176 = vld [vmem:[#allocation5 + $0x10a8] sm:$0xff]
    %v1177 = vld [vmem:[#allocation5 + $0x10b0] sm:$0xff]
    %v1178 = vld [vmem:[#allocation5 + $0x10b8] sm:$0xff]
    %v1179 = vld [vmem:[#allocation5 + $0x10c0] sm:$0xff]
    %v1180 = vld [vmem:[#allocation5 + $0x10c8] sm:$0xff]
    %v1181 = vld [vmem:[#allocation5 + $0x10d0] sm:$0xff]
    %v1182 = vld [vmem:[#allocation5 + $0x10d8] sm:$0xff]
    %v1183 = vld [vmem:[#allocation5 + $0x10e0] sm:$0xff]
    %v1184 = vld [vmem:[#allocation5 + $0x10e8] sm:$0xff]
    %v1185 = vld [vmem:[#allocation5 + $0x10f0] sm:$0xff]
    %v1186 = vld [vmem:[#allocation5 + $0x10f8] sm:$0xff]
    %v1187 = vld [vmem:[#allocation5 + $0x1100] sm:$0xff]
    %v1188 = vld [vmem:[#allocation5 + $0x1108] sm:$0xff]
    %v1189 = vld [vmem:[#allocation5 + $0x1110] sm:$0xff]
    %v1190 = vld [vmem:[#allocation5 + $0x1118] sm:$0xff]
    %v1191 = vld [vmem:[#allocation5 + $0x1120] sm:$0xff]
    %v1192 = vld [vmem:[#allocation5 + $0x1128] sm:$0xff]
    %v1193 = vld [vmem:[#allocation5 + $0x1130] sm:$0xff]
    %v1194 = vld [vmem:[#allocation5 + $0x1138] sm:$0xff]
    %v1195 = vld [vmem:[#allocation5 + $0x1140] sm:$0xff]
    %v1196 = vld [vmem:[#allocation5 + $0x1148] sm:$0xff]
    %v1197 = vld [vmem:[#allocation5 + $0x1150] sm:$0xff]
    %v1198 = vld [vmem:[#allocation5 + $0x1158] sm:$0xff]
    %v1199 = vld [vmem:[#allocation5 + $0x1160] sm:$0xff]
    %v1200 = vld [vmem:[#allocation5 + $0x1168] sm:$0xff]
    %v1201 = vld [vmem:[#allocation5 + $0x1170] sm:$0xff]
    %v1202 = vld [vmem:[#allocation5 + $0x1178] sm:$0xff]
    %v1203 = vld [vmem:[#allocation5 + $0x1180] sm:$0xff]
    %v1204 = vld [vmem:[#allocation5 + $0x1188] sm:$0xff]
    %v1205 = vld [vmem:[#allocation5 + $0x1190] sm:$0xff]
    %v1206 = vld [vmem:[#allocation5 + $0x1198] sm:$0xff]
    %v1207 = vld [vmem:[#allocation5 + $0x11a0] sm:$0xff]
    %v1208 = vld [vmem:[#allocation5 + $0x11a8] sm:$0xff]
    %v1209 = vld [vmem:[#allocation5 + $0x11b0] sm:$0xff]
    %v1210 = vld [vmem:[#allocation5 + $0x11b8] sm:$0xff]
    %v1211 = vld [vmem:[#allocation5 + $0x11c0] sm:$0xff]
    %v1212 = vld [vmem:[#allocation5 + $0x11c8] sm:$0xff]
    %v1213 = vld [vmem:[#allocation5 + $0x11d0] sm:$0xff]
    %v1214 = vld [vmem:[#allocation5 + $0x11d8] sm:$0xff]
    %v1215 = vld [vmem:[#allocation5 + $0x11e0] sm:$0xff]
    %v1216 = vld [vmem:[#allocation5 + $0x11e8] sm:$0xff]
    %v1217 = vld [vmem:[#allocation5 + $0x11f0] sm:$0xff]
    %v1218 = vld [vmem:[#allocation5 + $0x11f8] sm:$0xff]
    %v1219 = vld [vmem:[#allocation5 + $0x1200] sm:$0xff]
    %v1220 = vld [vmem:[#allocation5 + $0x1208] sm:$0xff]
    %v1221 = vld [vmem:[#allocation5 + $0x1210] sm:$0xff]
    %v1222 = vld [vmem:[#allocation5 + $0x1218] sm:$0xff]
    %v1223 = vld [vmem:[#allocation5 + $0x1220] sm:$0xff]
    %v1224 = vld [vmem:[#allocation5 + $0x1228] sm:$0xff]
    %v1225 = vld [vmem:[#allocation5 + $0x1230] sm:$0xff]
    %v1226 = vld [vmem:[#allocation5 + $0x1238] sm:$0xff]
    %v1227 = vld [vmem:[#allocation5 + $0x1240] sm:$0xff]
    %v1228 = vld [vmem:[#allocation5 + $0x1248] sm:$0xff]
    %v1229 = vld [vmem:[#allocation5 + $0x1250] sm:$0xff]
    %v1230 = vld [vmem:[#allocation5 + $0x1258] sm:$0xff]
    %v1231 = vld [vmem:[#allocation5 + $0x1260] sm:$0xff]
    %v1232 = vld [vmem:[#allocation5 + $0x1268] sm:$0xff]
    %v1233 = vld [vmem:[#allocation5 + $0x1270] sm:$0xff]
    %v1234 = vld [vmem:[#allocation5 + $0x1278] sm:$0xff]
    %v1235 = vld [vmem:[#allocation5 + $0x1280] sm:$0xff]
    %v1236 = vld [vmem:[#allocation5 + $0x1288] sm:$0xff]
    %v1237 = vld [vmem:[#allocation5 + $0x1290] sm:$0xff]
    %v1238 = vld [vmem:[#allocation5 + $0x1298] sm:$0xff]
    %v1239 = vld [vmem:[#allocation5 + $0x12a0] sm:$0xff]
    %v1240 = vld [vmem:[#allocation5 + $0x12a8] sm:$0xff]
    %v1241 = vld [vmem:[#allocation5 + $0x12b0] sm:$0xff]
    %v1242 = vld [vmem:[#allocation5 + $0x12b8] sm:$0xff]
    %v1243 = vld [vmem:[#allocation5 + $0x12c0] sm:$0xff]
    %v1244 = vld [vmem:[#allocation5 + $0x12c8] sm:$0xff]
    %v1245 = vld [vmem:[#allocation5 + $0x12d0] sm:$0xff]
    %v1246 = vld [vmem:[#allocation5 + $0x12d8] sm:$0xff]
    %v1247 = vld [vmem:[#allocation5 + $0x12e0] sm:$0xff]
    %v1248 = vld [vmem:[#allocation5 + $0x12e8] sm:$0xff]
    %v1249 = vld [vmem:[#allocation5 + $0x12f0] sm:$0xff]
    %v1250 = vld [vmem:[#allocation5 + $0x12f8] sm:$0xff]
    %v1251 = vld [vmem:[#allocation5 + $0x1300] sm:$0xff]
    %v1252 = vld [vmem:[#allocation5 + $0x1308] sm:$0xff]
    %v1253 = vld [vmem:[#allocation5 + $0x1310] sm:$0xff]
    %v1254 = vld [vmem:[#allocation5 + $0x1318] sm:$0xff]
    %v1255 = vld [vmem:[#allocation5 + $0x1320] sm:$0xff]
    %v1256 = vld [vmem:[#allocation5 + $0x1328] sm:$0xff]
    %v1257 = vld [vmem:[#allocation5 + $0x1330] sm:$0xff]
    %v1258 = vld [vmem:[#allocation5 + $0x1338] sm:$0xff]
    %v1259 = vld [vmem:[#allocation5 + $0x1340] sm:$0xff]
    %v1260 = vld [vmem:[#allocation5 + $0x1348] sm:$0xff]
    %v1261 = vld [vmem:[#allocation5 + $0x1350] sm:$0xff]
    %v1262 = vld [vmem:[#allocation5 + $0x1358] sm:$0xff]
    %v1263 = vld [vmem:[#allocation5 + $0x1360] sm:$0xff]
    %v1264 = vld [vmem:[#allocation5 + $0x1368] sm:$0xff]
    %v1265 = vld [vmem:[#allocation5 + $0x1370] sm:$0xff]
    %v1266 = vld [vmem:[#allocation5 + $0x1378] sm:$0xff]
    %v1267 = vld [vmem:[#allocation5 + $0x1380] sm:$0xff]
    %v1268 = vld [vmem:[#allocation5 + $0x1388] sm:$0xff]
    %v1269 = vld [vmem:[#allocation5 + $0x1390] sm:$0xff]
    %v1270 = vld [vmem:[#allocation5 + $0x1398] sm:$0xff]
    %v1271 = vld [vmem:[#allocation5 + $0x13a0] sm:$0xff]
    %v1272 = vld [vmem:[#allocation5 + $0x13a8] sm:$0xff]
    %v1273 = vld [vmem:[#allocation5 + $0x13b0] sm:$0xff]
    %v1274 = vld [vmem:[#allocation5 + $0x13b8] sm:$0xff]
    %v1275 = vld [vmem:[#allocation5 + $0x13c0] sm:$0xff]
    %v1276 = vld [vmem:[#allocation5 + $0x13c8] sm:$0xff]
    %v1277 = vld [vmem:[#allocation5 + $0x13d0] sm:$0xff]
    %v1278 = vld [vmem:[#allocation5 + $0x13d8] sm:$0xff]
    %v1279 = vld [vmem:[#allocation5 + $0x13e0] sm:$0xff]
    %v1280 = vld [vmem:[#allocation5 + $0x13e8] sm:$0xff]
    %v1281 = vld [vmem:[#allocation5 + $0x13f0] sm:$0xff]
    %v1282 = vld [vmem:[#allocation5 + $0x13f8] sm:$0xff]
    %v1283 = vld [vmem:[#allocation5 + $0x1400] sm:$0xff]
    %v1284 = vld [vmem:[#allocation5 + $0x1408] sm:$0xff]
    %v1285 = vld [vmem:[#allocation5 + $0x1410] sm:$0xff]
    %v1286 = vld [vmem:[#allocation5 + $0x1418] sm:$0xff]
    %v1287 = vld [vmem:[#allocation5 + $0x1420] sm:$0xff]
    %v1288 = vld [vmem:[#allocation5 + $0x1428] sm:$0xff]
    %v1289 = vld [vmem:[#allocation5 + $0x1430] sm:$0xff]
    %v1290 = vld [vmem:[#allocation5 + $0x1438] sm:$0xff]
    %v1291 = vld [vmem:[#allocation5 + $0x1440] sm:$0xff]
    %v1292 = vld [vmem:[#allocation5 + $0x1448] sm:$0xff]
    %v1293 = vld [vmem:[#allocation5 + $0x1450] sm:$0xff]
    %v1294 = vld [vmem:[#allocation5 + $0x1458] sm:$0xff]
    %v1295 = vld [vmem:[#allocation5 + $0x1460] sm:$0xff]
    %v1296 = vld [vmem:[#allocation5 + $0x1468] sm:$0xff]
    %v1297 = vld [vmem:[#allocation5 + $0x1470] sm:$0xff]
    %v1298 = vld [vmem:[#allocation5 + $0x1478] sm:$0xff]
    %v1299 = vld [vmem:[#allocation5 + $0x1480] sm:$0xff]
    %v1300 = vld [vmem:[#allocation5 + $0x1488] sm:$0xff]
    %v1301 = vld [vmem:[#allocation5 + $0x1490] sm:$0xff]
    %v1302 = vld [vmem:[#allocation5 + $0x1498] sm:$0xff]
    %v1303 = vld [vmem:[#allocation5 + $0x14a0] sm:$0xff]
    %v1304 = vld [vmem:[#allocation5 + $0x14a8] sm:$0xff]
    %v1305 = vld [vmem:[#allocation5 + $0x14b0] sm:$0xff]
    %v1306 = vld [vmem:[#allocation5 + $0x14b8] sm:$0xff]
    %v1307 = vld [vmem:[#allocation5 + $0x14c0] sm:$0xff]
    %v1308 = vld [vmem:[#allocation5 + $0x14c8] sm:$0xff]
    %v1309 = vld [vmem:[#allocation5 + $0x14d0] sm:$0xff]
    %v1310 = vld [vmem:[#allocation5 + $0x14d8] sm:$0xff]
    %v1311 = vld [vmem:[#allocation5 + $0x14e0] sm:$0xff]
    %v1312 = vld [vmem:[#allocation5 + $0x14e8] sm:$0xff]
    %v1313 = vld [vmem:[#allocation5 + $0x14f0] sm:$0xff]
    %v1314 = vld [vmem:[#allocation5 + $0x14f8] sm:$0xff]
    %v1315 = vld [vmem:[#allocation5 + $0x1500] sm:$0xff]
    %v1316 = vld [vmem:[#allocation5 + $0x1508] sm:$0xff]
    %v1317 = vld [vmem:[#allocation5 + $0x1510] sm:$0xff]
    %v1318 = vld [vmem:[#allocation5 + $0x1518] sm:$0xff]
    %v1319 = vld [vmem:[#allocation5 + $0x1520] sm:$0xff]
    %v1320 = vld [vmem:[#allocation5 + $0x1528] sm:$0xff]
    %v1321 = vld [vmem:[#allocation5 + $0x1530] sm:$0xff]
    %v1322 = vld [vmem:[#allocation5 + $0x1538] sm:$0xff]
    %v1323 = vld [vmem:[#allocation5 + $0x1540] sm:$0xff]
    %v1324 = vld [vmem:[#allocation5 + $0x1548] sm:$0xff]
    %v1325 = vld [vmem:[#allocation5 + $0x1550] sm:$0xff]
    %v1326 = vld [vmem:[#allocation5 + $0x1558] sm:$0xff]
    %v1327 = vld [vmem:[#allocation5 + $0x1560] sm:$0xff]
    %v1328 = vld [vmem:[#allocation5 + $0x1568] sm:$0xff]
    %v1329 = vld [vmem:[#allocation5 + $0x1570] sm:$0xff]
    %v1330 = vld [vmem:[#allocation5 + $0x1578] sm:$0xff]
    %v1331 = vld [vmem:[#allocation5 + $0x1580] sm:$0xff]
    %v1332 = vld [vmem:[#allocation5 + $0x1588] sm:$0xff]
    %v1333 = vld [vmem:[#allocation5 + $0x1590] sm:$0xff]
    %v1334 = vld [vmem:[#allocation5 + $0x1598] sm:$0xff]
    %v1335 = vld [vmem:[#allocation5 + $0x15a0] sm:$0xff]
    %v1336 = vld [vmem:[#allocation5 + $0x15a8] sm:$0xff]
    %v1337 = vld [vmem:[#allocation5 + $0x15b0] sm:$0xff]
    %v1338 = vld [vmem:[#allocation5 + $0x15b8] sm:$0xff]
    %v1339 = vld [vmem:[#allocation5 + $0x15c0] sm:$0xff]
    %v1340 = vld [vmem:[#allocation5 + $0x15c8] sm:$0xff]
    %v1341 = vld [vmem:[#allocation5 + $0x15d0] sm:$0xff]
    %v1342 = vld [vmem:[#allocation5 + $0x15d8] sm:$0xff]
    %v1343 = vld [vmem:[#allocation5 + $0x15e0] sm:$0xff]
    %v1344 = vld [vmem:[#allocation5 + $0x15e8] sm:$0xff]
    %v1345 = vld [vmem:[#allocation5 + $0x15f0] sm:$0xff]
    %v1346 = vld [vmem:[#allocation5 + $0x15f8] sm:$0xff]
    %v1347 = vld [vmem:[#allocation5 + $0x1600] sm:$0xff]
    %v1348 = vld [vmem:[#allocation5 + $0x1608] sm:$0xff]
    %v1349 = vld [vmem:[#allocation5 + $0x1610] sm:$0xff]
    %v1350 = vld [vmem:[#allocation5 + $0x1618] sm:$0xff]
    %v1351 = vld [vmem:[#allocation5 + $0x1620] sm:$0xff]
    %v1352 = vld [vmem:[#allocation5 + $0x1628] sm:$0xff]
    %v1353 = vld [vmem:[#allocation5 + $0x1630] sm:$0xff]
    %v1354 = vld [vmem:[#allocation5 + $0x1638] sm:$0xff]
    %v1355 = vld [vmem:[#allocation5 + $0x1640] sm:$0xff]
    %v1356 = vld [vmem:[#allocation5 + $0x1648] sm:$0xff]
    %v1357 = vld [vmem:[#allocation5 + $0x1650] sm:$0xff]
    %v1358 = vld [vmem:[#allocation5 + $0x1658] sm:$0xff]
    %v1359 = vld [vmem:[#allocation5 + $0x1660] sm:$0xff]
    %v1360 = vld [vmem:[#allocation5 + $0x1668] sm:$0xff]
    %v1361 = vld [vmem:[#allocation5 + $0x1670] sm:$0xff]
    %v1362 = vld [vmem:[#allocation5 + $0x1678] sm:$0xff]
    %v1363 = vld [vmem:[#allocation5 + $0x1680] sm:$0xff]
    %v1364 = vld [vmem:[#allocation5 + $0x1688] sm:$0xff]
    %v1365 = vld [vmem:[#allocation5 + $0x1690] sm:$0xff]
    %v1366 = vld [vmem:[#allocation5 + $0x1698] sm:$0xff]
    %v1367 = vld [vmem:[#allocation5 + $0x16a0] sm:$0xff]
    %v1368 = vld [vmem:[#allocation5 + $0x16a8] sm:$0xff]
    %v1369 = vld [vmem:[#allocation5 + $0x16b0] sm:$0xff]
    %v1370 = vld [vmem:[#allocation5 + $0x16b8] sm:$0xff]
    %v1371 = vld [vmem:[#allocation5 + $0x16c0] sm:$0xff]
    %v1372 = vld [vmem:[#allocation5 + $0x16c8] sm:$0xff]
    %v1373 = vld [vmem:[#allocation5 + $0x16d0] sm:$0xff]
    %v1374 = vld [vmem:[#allocation5 + $0x16d8] sm:$0xff]
    %v1375 = vld [vmem:[#allocation5 + $0x16e0] sm:$0xff]
    %v1376 = vld [vmem:[#allocation5 + $0x16e8] sm:$0xff]
    %v1377 = vld [vmem:[#allocation5 + $0x16f0] sm:$0xff]
    %v1378 = vld [vmem:[#allocation5 + $0x16f8] sm:$0xff]
    %v1379 = vld [vmem:[#allocation5 + $0x1700] sm:$0xff]
    %v1380 = vld [vmem:[#allocation5 + $0x1708] sm:$0xff]
    %v1381 = vld [vmem:[#allocation5 + $0x1710] sm:$0xff]
    %v1382 = vld [vmem:[#allocation5 + $0x1718] sm:$0xff]
    %v1383 = vld [vmem:[#allocation5 + $0x1720] sm:$0xff]
    %v1384 = vld [vmem:[#allocation5 + $0x1728] sm:$0xff]
    %v1385 = vld [vmem:[#allocation5 + $0x1730] sm:$0xff]
    %v1386 = vld [vmem:[#allocation5 + $0x1738] sm:$0xff]
    %v1387 = vld [vmem:[#allocation5 + $0x1740] sm:$0xff]
    %v1388 = vld [vmem:[#allocation5 + $0x1748] sm:$0xff]
    %v1389 = vld [vmem:[#allocation5 + $0x1750] sm:$0xff]
    %v1390 = vld [vmem:[#allocation5 + $0x1758] sm:$0xff]
    %v1391 = vld [vmem:[#allocation5 + $0x1760] sm:$0xff]
    %v1392 = vld [vmem:[#allocation5 + $0x1768] sm:$0xff]
    %v1393 = vld [vmem:[#allocation5 + $0x1770] sm:$0xff]
    %v1394 = vld [vmem:[#allocation5 + $0x1778] sm:$0xff]
    %v1395 = vld [vmem:[#allocation5 + $0x1780] sm:$0xff]
    %v1396 = vld [vmem:[#allocation5 + $0x1788] sm:$0xff]
    %v1397 = vld [vmem:[#allocation5 + $0x1790] sm:$0xff]
    %v1398 = vld [vmem:[#allocation5 + $0x1798] sm:$0xff]
    %v1399 = vld [vmem:[#allocation5 + $0x17a0] sm:$0xff]
    %v1400 = vld [vmem:[#allocation5 + $0x17a8] sm:$0xff]
    %v1401 = vld [vmem:[#allocation5 + $0x17b0] sm:$0xff]
    %v1402 = vld [vmem:[#allocation5 + $0x17b8] sm:$0xff]
    %v1403 = vld [vmem:[#allocation5 + $0x17c0] sm:$0xff]
    %v1404 = vld [vmem:[#allocation5 + $0x17c8] sm:$0xff]
    %v1405 = vld [vmem:[#allocation5 + $0x17d0] sm:$0xff]
    %v1406 = vld [vmem:[#allocation5 + $0x17d8] sm:$0xff]
    %v1407 = vld [vmem:[#allocation5 + $0x17e0] sm:$0xff]
    %v1408 = vld [vmem:[#allocation5 + $0x17e8] sm:$0xff]
    %v1409 = vld [vmem:[#allocation5 + $0x17f0] sm:$0xff]
    %v1410 = vld [vmem:[#allocation5 + $0x17f8] sm:$0xff]
    %v1411 = vld [vmem:[#allocation5 + $0x1800] sm:$0xff]
    %v1412 = vld [vmem:[#allocation5 + $0x1808] sm:$0xff]
    %v1413 = vld [vmem:[#allocation5 + $0x1810] sm:$0xff]
    %v1414 = vld [vmem:[#allocation5 + $0x1818] sm:$0xff]
    %v1415 = vld [vmem:[#allocation5 + $0x1820] sm:$0xff]
    %v1416 = vld [vmem:[#allocation5 + $0x1828] sm:$0xff]
    %v1417 = vld [vmem:[#allocation5 + $0x1830] sm:$0xff]
    %v1418 = vld [vmem:[#allocation5 + $0x1838] sm:$0xff]
    %v1419 = vld [vmem:[#allocation5 + $0x1840] sm:$0xff]
    %v1420 = vld [vmem:[#allocation5 + $0x1848] sm:$0xff]
    %v1421 = vld [vmem:[#allocation5 + $0x1850] sm:$0xff]
    %v1422 = vld [vmem:[#allocation5 + $0x1858] sm:$0xff]
    %v1423 = vld [vmem:[#allocation5 + $0x1860] sm:$0xff]
    %v1424 = vld [vmem:[#allocation5 + $0x1868] sm:$0xff]
    %v1425 = vld [vmem:[#allocation5 + $0x1870] sm:$0xff]
    %v1426 = vld [vmem:[#allocation5 + $0x1878] sm:$0xff]
    %v1427 = vld [vmem:[#allocation5 + $0x1880] sm:$0xff]
    %v1428 = vld [vmem:[#allocation5 + $0x1888] sm:$0xff]
    %v1429 = vld [vmem:[#allocation5 + $0x1890] sm:$0xff]
    %v1430 = vld [vmem:[#allocation5 + $0x1898] sm:$0xff]
    %v1431 = vld [vmem:[#allocation5 + $0x18a0] sm:$0xff]
    %v1432 = vld [vmem:[#allocation5 + $0x18a8] sm:$0xff]
    %v1433 = vld [vmem:[#allocation5 + $0x18b0] sm:$0xff]
    %v1434 = vld [vmem:[#allocation5 + $0x18b8] sm:$0xff]
    %v1435 = vld [vmem:[#allocation5 + $0x18c0] sm:$0xff]
    %v1436 = vld [vmem:[#allocation5 + $0x18c8] sm:$0xff]
    %v1437 = vld [vmem:[#allocation5 + $0x18d0] sm:$0xff]
    %v1438 = vld [vmem:[#allocation5 + $0x18d8] sm:$0xff]
    %v1439 = vld [vmem:[#allocation5 + $0x18e0] sm:$0xff]
    %v1440 = vld [vmem:[#allocation5 + $0x18e8] sm:$0xff]
    %v1441 = vld [vmem:[#allocation5 + $0x18f0] sm:$0xff]
    %v1442 = vld [vmem:[#allocation5 + $0x18f8] sm:$0xff]
    %v1443 = vld [vmem:[#allocation5 + $0x1900] sm:$0xff]
    %v1444 = vld [vmem:[#allocation5 + $0x1908] sm:$0xff]
    %v1445 = vld [vmem:[#allocation5 + $0x1910] sm:$0xff]
    %v1446 = vld [vmem:[#allocation5 + $0x1918] sm:$0xff]
    %v1447 = vld [vmem:[#allocation5 + $0x1920] sm:$0xff]
    %v1448 = vld [vmem:[#allocation5 + $0x1928] sm:$0xff]
    %v1449 = vld [vmem:[#allocation5 + $0x1930] sm:$0xff]
    %v1450 = vld [vmem:[#allocation5 + $0x1938] sm:$0xff]
    %v1451 = vld [vmem:[#allocation5 + $0x1940] sm:$0xff]
    %v1452 = vld [vmem:[#allocation5 + $0x1948] sm:$0xff]
    %v1453 = vld [vmem:[#allocation5 + $0x1950] sm:$0xff]
    %v1454 = vld [vmem:[#allocation5 + $0x1958] sm:$0xff]
    %v1455 = vld [vmem:[#allocation5 + $0x1960] sm:$0xff]
    %v1456 = vld [vmem:[#allocation5 + $0x1968] sm:$0xff]
    %v1457 = vld [vmem:[#allocation5 + $0x1970] sm:$0xff]
    %v1458 = vld [vmem:[#allocation5 + $0x1978] sm:$0xff]
    %v1459 = vld [vmem:[#allocation5 + $0x1980] sm:$0xff]
    %v1460 = vld [vmem:[#allocation5 + $0x1988] sm:$0xff]
    %v1461 = vld [vmem:[#allocation5 + $0x1990] sm:$0xff]
    %v1462 = vld [vmem:[#allocation5 + $0x1998] sm:$0xff]
    %v1463 = vld [vmem:[#allocation5 + $0x19a0] sm:$0xff]
    %v1464 = vld [vmem:[#allocation5 + $0x19a8] sm:$0xff]
    %v1465 = vld [vmem:[#allocation5 + $0x19b0] sm:$0xff]
    %v1466 = vld [vmem:[#allocation5 + $0x19b8] sm:$0xff]
    %v1467 = vld [vmem:[#allocation5 + $0x19c0] sm:$0xff]
    %v1468 = vld [vmem:[#allocation5 + $0x19c8] sm:$0xff]
    %v1469 = vld [vmem:[#allocation5 + $0x19d0] sm:$0xff]
    %v1470 = vld [vmem:[#allocation5 + $0x19d8] sm:$0xff]
    %v1471 = vld [vmem:[#allocation5 + $0x19e0] sm:$0xff]
    %v1472 = vld [vmem:[#allocation5 + $0x19e8] sm:$0xff]
    %v1473 = vld [vmem:[#allocation5 + $0x19f0] sm:$0xff]
    %v1474 = vld [vmem:[#allocation5 + $0x19f8] sm:$0xff]
    %v1475 = vld [vmem:[#allocation5 + $0x1a00] sm:$0xff]
    %v1476 = vld [vmem:[#allocation5 + $0x1a08] sm:$0xff]
    %v1477 = vld [vmem:[#allocation5 + $0x1a10] sm:$0xff]
    %v1478 = vld [vmem:[#allocation5 + $0x1a18] sm:$0xff]
    %v1479 = vld [vmem:[#allocation5 + $0x1a20] sm:$0xff]
    %v1480 = vld [vmem:[#allocation5 + $0x1a28] sm:$0xff]
    %v1481 = vld [vmem:[#allocation5 + $0x1a30] sm:$0xff]
    %v1482 = vld [vmem:[#allocation5 + $0x1a38] sm:$0xff]
    %v1483 = vld [vmem:[#allocation5 + $0x1a40] sm:$0xff]
    %v1484 = vld [vmem:[#allocation5 + $0x1a48] sm:$0xff]
    %v1485 = vld [vmem:[#allocation5 + $0x1a50] sm:$0xff]
    %v1486 = vld [vmem:[#allocation5 + $0x1a58] sm:$0xff]
    %v1487 = vld [vmem:[#allocation5 + $0x1a60] sm:$0xff]
    %v1488 = vld [vmem:[#allocation5 + $0x1a68] sm:$0xff]
    %v1489 = vld [vmem:[#allocation5 + $0x1a70] sm:$0xff]
    %v1490 = vld [vmem:[#allocation5 + $0x1a78] sm:$0xff]
    %v1491 = vld [vmem:[#allocation5 + $0x1a80] sm:$0xff]
    %v1492 = vld [vmem:[#allocation5 + $0x1a88] sm:$0xff]
    %v1493 = vld [vmem:[#allocation5 + $0x1a90] sm:$0xff]
    %v1494 = vld [vmem:[#allocation5 + $0x1a98] sm:$0xff]
    %v1495 = vld [vmem:[#allocation5 + $0x1aa0] sm:$0xff]
    %v1496 = vld [vmem:[#allocation5 + $0x1aa8] sm:$0xff]
    %v1497 = vld [vmem:[#allocation5 + $0x1ab0] sm:$0xff]
    %v1498 = vld [vmem:[#allocation5 + $0x1ab8] sm:$0xff]
    %v1499 = vld [vmem:[#allocation5 + $0x1ac0] sm:$0xff]
    %v1500 = vld [vmem:[#allocation5 + $0x1ac8] sm:$0xff]
    %v1501 = vld [vmem:[#allocation5 + $0x1ad0] sm:$0xff]
    %v1502 = vld [vmem:[#allocation5 + $0x1ad8] sm:$0xff]
    %v1503 = vld [vmem:[#allocation5 + $0x1ae0] sm:$0xff]
    %v1504 = vld [vmem:[#allocation5 + $0x1ae8] sm:$0xff]
    %v1505 = vld [vmem:[#allocation5 + $0x1af0] sm:$0xff]
    %v1506 = vld [vmem:[#allocation5 + $0x1af8] sm:$0xff]
    %v1507 = vld [vmem:[#allocation5 + $0x1b00] sm:$0xff]
    %v1508 = vld [vmem:[#allocation5 + $0x1b08] sm:$0xff]
    %v1509 = vld [vmem:[#allocation5 + $0x1b10] sm:$0xff]
    %v1510 = vld [vmem:[#allocation5 + $0x1b18] sm:$0xff]
    %v1511 = vld [vmem:[#allocation5 + $0x1b20] sm:$0xff]
    %v1512 = vld [vmem:[#allocation5 + $0x1b28] sm:$0xff]
    %v1513 = vld [vmem:[#allocation5 + $0x1b30] sm:$0xff]
    %v1514 = vld [vmem:[#allocation5 + $0x1b38] sm:$0xff]
    %v1515 = vld [vmem:[#allocation5 + $0x1b40] sm:$0xff]
    %v1516 = vld [vmem:[#allocation5 + $0x1b48] sm:$0xff]
    %v1517 = vld [vmem:[#allocation5 + $0x1b50] sm:$0xff]
    %v1518 = vld [vmem:[#allocation5 + $0x1b58] sm:$0xff]
    %v1519 = vld [vmem:[#allocation5 + $0x1b60] sm:$0xff]
    %v1520 = vld [vmem:[#allocation5 + $0x1b68] sm:$0xff]
    %v1521 = vld [vmem:[#allocation5 + $0x1b70] sm:$0xff]
    %v1522 = vld [vmem:[#allocation5 + $0x1b78] sm:$0xff]
    %v1523 = vld [vmem:[#allocation5 + $0x1b80] sm:$0xff]
    %v1524 = vld [vmem:[#allocation5 + $0x1b88] sm:$0xff]
    %v1525 = vld [vmem:[#allocation5 + $0x1b90] sm:$0xff]
    %v1526 = vld [vmem:[#allocation5 + $0x1b98] sm:$0xff]
    %v1527 = vld [vmem:[#allocation5 + $0x1ba0] sm:$0xff]
    %v1528 = vld [vmem:[#allocation5 + $0x1ba8] sm:$0xff]
    %v1529 = vld [vmem:[#allocation5 + $0x1bb0] sm:$0xff]
    %v1530 = vld [vmem:[#allocation5 + $0x1bb8] sm:$0xff]
    %v1531 = vld [vmem:[#allocation5 + $0x1bc0] sm:$0xff]
    %v1532 = vld [vmem:[#allocation5 + $0x1bc8] sm:$0xff]
    %v1533 = vld [vmem:[#allocation5 + $0x1bd0] sm:$0xff]
    %v1534 = vld [vmem:[#allocation5 + $0x1bd8] sm:$0xff]
    %v1535 = vld [vmem:[#allocation5 + $0x1be0] sm:$0xff]
    %v1536 = vld [vmem:[#allocation5 + $0x1be8] sm:$0xff]
    %v1537 = vld [vmem:[#allocation5 + $0x1bf0] sm:$0xff]
    %v1538 = vld [vmem:[#allocation5 + $0x1bf8] sm:$0xff]
    %v1539 = vld [vmem:[#allocation5 + $0x1c00] sm:$0xff]
    %v1540 = vld [vmem:[#allocation5 + $0x1c08] sm:$0xff]
    %v1541 = vld [vmem:[#allocation5 + $0x1c10] sm:$0xff]
    %v1542 = vld [vmem:[#allocation5 + $0x1c18] sm:$0xff]
    %v1543 = vld [vmem:[#allocation5 + $0x1c20] sm:$0xff]
    %v1544 = vld [vmem:[#allocation5 + $0x1c28] sm:$0xff]
    %v1545 = vld [vmem:[#allocation5 + $0x1c30] sm:$0xff]
    %v1546 = vld [vmem:[#allocation5 + $0x1c38] sm:$0xff]
    %v1547 = vld [vmem:[#allocation5 + $0x1c40] sm:$0xff]
    %v1548 = vld [vmem:[#allocation5 + $0x1c48] sm:$0xff]
    %v1549 = vld [vmem:[#allocation5 + $0x1c50] sm:$0xff]
    %v1550 = vld [vmem:[#allocation5 + $0x1c58] sm:$0xff]
    %v1551 = vld [vmem:[#allocation5 + $0x1c60] sm:$0xff]
    %v1552 = vld [vmem:[#allocation5 + $0x1c68] sm:$0xff]
    %v1553 = vld [vmem:[#allocation5 + $0x1c70] sm:$0xff]
    %v1554 = vld [vmem:[#allocation5 + $0x1c78] sm:$0xff]
    %v1555 = vld [vmem:[#allocation5 + $0x1c80] sm:$0xff]
    %v1556 = vld [vmem:[#allocation5 + $0x1c88] sm:$0xff]
    %v1557 = vld [vmem:[#allocation5 + $0x1c90] sm:$0xff]
    %v1558 = vld [vmem:[#allocation5 + $0x1c98] sm:$0xff]
    %v1559 = vld [vmem:[#allocation5 + $0x1ca0] sm:$0xff]
    %v1560 = vld [vmem:[#allocation5 + $0x1ca8] sm:$0xff]
    %v1561 = vld [vmem:[#allocation5 + $0x1cb0] sm:$0xff]
    %v1562 = vld [vmem:[#allocation5 + $0x1cb8] sm:$0xff]
    %v1563 = vld [vmem:[#allocation5 + $0x1cc0] sm:$0xff]
    %v1564 = vld [vmem:[#allocation5 + $0x1cc8] sm:$0xff]
    %v1565 = vld [vmem:[#allocation5 + $0x1cd0] sm:$0xff]
    %v1566 = vld [vmem:[#allocation5 + $0x1cd8] sm:$0xff]
    %v1567 = vld [vmem:[#allocation5 + $0x1ce0] sm:$0xff]
    %v1568 = vld [vmem:[#allocation5 + $0x1ce8] sm:$0xff]
    %v1569 = vld [vmem:[#allocation5 + $0x1cf0] sm:$0xff]
    %v1570 = vld [vmem:[#allocation5 + $0x1cf8] sm:$0xff]
    %v1571 = vld [vmem:[#allocation5 + $0x1d00] sm:$0xff]
    %v1572 = vld [vmem:[#allocation5 + $0x1d08] sm:$0xff]
    %v1573 = vld [vmem:[#allocation5 + $0x1d10] sm:$0xff]
    %v1574 = vld [vmem:[#allocation5 + $0x1d18] sm:$0xff]
    %v1575 = vld [vmem:[#allocation5 + $0x1d20] sm:$0xff]
    %v1576 = vld [vmem:[#allocation5 + $0x1d28] sm:$0xff]
    %v1577 = vld [vmem:[#allocation5 + $0x1d30] sm:$0xff]
    %v1578 = vld [vmem:[#allocation5 + $0x1d38] sm:$0xff]
    %v1579 = vld [vmem:[#allocation5 + $0x1d40] sm:$0xff]
    %v1580 = vld [vmem:[#allocation5 + $0x1d48] sm:$0xff]
    %v1581 = vld [vmem:[#allocation5 + $0x1d50] sm:$0xff]
    %v1582 = vld [vmem:[#allocation5 + $0x1d58] sm:$0xff]
    %v1583 = vld [vmem:[#allocation5 + $0x1d60] sm:$0xff]
    %v1584 = vld [vmem:[#allocation5 + $0x1d68] sm:$0xff]
    %v1585 = vld [vmem:[#allocation5 + $0x1d70] sm:$0xff]
    %v1586 = vld [vmem:[#allocation5 + $0x1d78] sm:$0xff]
    %v1587 = vld [vmem:[#allocation5 + $0x1d80] sm:$0xff]
    %v1588 = vld [vmem:[#allocation5 + $0x1d88] sm:$0xff]
    %v1589 = vld [vmem:[#allocation5 + $0x1d90] sm:$0xff]
    %v1590 = vld [vmem:[#allocation5 + $0x1d98] sm:$0xff]
    %v1591 = vld [vmem:[#allocation5 + $0x1da0] sm:$0xff]
    %v1592 = vld [vmem:[#allocation5 + $0x1da8] sm:$0xff]
    %v1593 = vld [vmem:[#allocation5 + $0x1db0] sm:$0xff]
    %v1594 = vld [vmem:[#allocation5 + $0x1db8] sm:$0xff]
    %v1595 = vld [vmem:[#allocation5 + $0x1dc0] sm:$0xff]
    %v1596 = vld [vmem:[#allocation5 + $0x1dc8] sm:$0xff]
    %v1597 = vld [vmem:[#allocation5 + $0x1dd0] sm:$0xff]
    %v1598 = vld [vmem:[#allocation5 + $0x1dd8] sm:$0xff]
    %v1599 = vld [vmem:[#allocation5 + $0x1de0] sm:$0xff]
    %v1600 = vld [vmem:[#allocation5 + $0x1de8] sm:$0xff]
    %v1601 = vld [vmem:[#allocation5 + $0x1df0] sm:$0xff]
    %v1602 = vld [vmem:[#allocation5 + $0x1df8] sm:$0xff]
    %v1603 = vld [vmem:[#allocation5 + $0x1e00] sm:$0xff]
    %v1604 = vld [vmem:[#allocation5 + $0x1e08] sm:$0xff]
    %v1605 = vld [vmem:[#allocation5 + $0x1e10] sm:$0xff]
    %v1606 = vld [vmem:[#allocation5 + $0x1e18] sm:$0xff]
    %v1607 = vld [vmem:[#allocation5 + $0x1e20] sm:$0xff]
    %v1608 = vld [vmem:[#allocation5 + $0x1e28] sm:$0xff]
    %v1609 = vld [vmem:[#allocation5 + $0x1e30] sm:$0xff]
    %v1610 = vld [vmem:[#allocation5 + $0x1e38] sm:$0xff]
    %v1611 = vld [vmem:[#allocation5 + $0x1e40] sm:$0xff]
    %v1612 = vld [vmem:[#allocation5 + $0x1e48] sm:$0xff]
    %v1613 = vld [vmem:[#allocation5 + $0x1e50] sm:$0xff]
    %v1614 = vld [vmem:[#allocation5 + $0x1e58] sm:$0xff]
    %v1615 = vld [vmem:[#allocation5 + $0x1e60] sm:$0xff]
    %v1616 = vld [vmem:[#allocation5 + $0x1e68] sm:$0xff]
    %v1617 = vld [vmem:[#allocation5 + $0x1e70] sm:$0xff]
    %v1618 = vld [vmem:[#allocation5 + $0x1e78] sm:$0xff]
    %v1619 = vld [vmem:[#allocation5 + $0x1e80] sm:$0xff]
    %v1620 = vld [vmem:[#allocation5 + $0x1e88] sm:$0xff]
    %v1621 = vld [vmem:[#allocation5 + $0x1e90] sm:$0xff]
    %v1622 = vld [vmem:[#allocation5 + $0x1e98] sm:$0xff]
    %v1623 = vld [vmem:[#allocation5 + $0x1ea0] sm:$0xff]
    %v1624 = vld [vmem:[#allocation5 + $0x1ea8] sm:$0xff]
    %v1625 = vld [vmem:[#allocation5 + $0x1eb0] sm:$0xff]
    %v1626 = vld [vmem:[#allocation5 + $0x1eb8] sm:$0xff]
    %v1627 = vld [vmem:[#allocation5 + $0x1ec0] sm:$0xff]
    %v1628 = vld [vmem:[#allocation5 + $0x1ec8] sm:$0xff]
    %v1629 = vld [vmem:[#allocation5 + $0x1ed0] sm:$0xff]
    %v1630 = vld [vmem:[#allocation5 + $0x1ed8] sm:$0xff]
    %v1631 = vld [vmem:[#allocation5 + $0x1ee0] sm:$0xff]
    %v1632 = vld [vmem:[#allocation5 + $0x1ee8] sm:$0xff]
    %v1633 = vld [vmem:[#allocation5 + $0x1ef0] sm:$0xff]
    %v1634 = vld [vmem:[#allocation5 + $0x1ef8] sm:$0xff]
    %v1635 = vld [vmem:[#allocation5 + $0x1f00] sm:$0xff]
    %v1636 = vld [vmem:[#allocation5 + $0x1f08] sm:$0xff]
    %v1637 = vld [vmem:[#allocation5 + $0x1f10] sm:$0xff]
    %v1638 = vld [vmem:[#allocation5 + $0x1f18] sm:$0xff]
    %v1639 = vld [vmem:[#allocation5 + $0x1f20] sm:$0xff]
    %v1640 = vld [vmem:[#allocation5 + $0x1f28] sm:$0xff]
    %v1641 = vld [vmem:[#allocation5 + $0x1f30] sm:$0xff]
    %v1642 = vld [vmem:[#allocation5 + $0x1f38] sm:$0xff]
    %v1643 = vld [vmem:[#allocation5 + $0x1f40] sm:$0xff]
    %v1644 = vld [vmem:[#allocation5 + $0x1f48] sm:$0xff]
    %v1645 = vld [vmem:[#allocation5 + $0x1f50] sm:$0xff]
    %v1646 = vld [vmem:[#allocation5 + $0x1f58] sm:$0xff]
    %v1647 = vld [vmem:[#allocation5 + $0x1f60] sm:$0xff]
    %v1648 = vld [vmem:[#allocation5 + $0x1f68] sm:$0xff]
    %v1649 = vld [vmem:[#allocation5 + $0x1f70] sm:$0xff]
    %v1650 = vld [vmem:[#allocation5 + $0x1f78] sm:$0xff]
    %v1651 = vld [vmem:[#allocation5 + $0x1f80] sm:$0xff]
    %v1652 = vld [vmem:[#allocation5 + $0x1f88] sm:$0xff]
    %v1653 = vld [vmem:[#allocation5 + $0x1f90] sm:$0xff]
    %v1654 = vld [vmem:[#allocation5 + $0x1f98] sm:$0xff]
    %v1655 = vld [vmem:[#allocation5 + $0x1fa0] sm:$0xff]
    %v1656 = vld [vmem:[#allocation5 + $0x1fa8] sm:$0xff]
    %v1657 = vld [vmem:[#allocation5 + $0x1fb0] sm:$0xff]
    %v1658 = vld [vmem:[#allocation5 + $0x1fb8] sm:$0xff]
    %v1659 = vld [vmem:[#allocation5 + $0x1fc0] sm:$0xff]
    %v1660 = vld [vmem:[#allocation5 + $0x1fc8] sm:$0xff]
    %v1661 = vld [vmem:[#allocation5 + $0x1fd0] sm:$0xff]
    %v1662 = vld [vmem:[#allocation5 + $0x1fd8] sm:$0xff]
    %v1663 = vld [vmem:[#allocation5 + $0x1fe0] sm:$0xff]
    %v1664 = vld [vmem:[#allocation5 + $0x1fe8] sm:$0xff]
    %v1665 = vld [vmem:[#allocation5 + $0x1ff0] sm:$0xff]
    %v1666 = vld [vmem:[#allocation5 + $0x1ff8] sm:$0xff]
    %v1667 = vld [vmem:[#allocation5 + $0x2000] sm:$0xff]
    %v1668 = vld [vmem:[#allocation5 + $0x2008] sm:$0xff]
    %v1669 = vld [vmem:[#allocation5 + $0x2010] sm:$0xff]
    %v1670 = vld [vmem:[#allocation5 + $0x2018] sm:$0xff]
    %v1671 = vld [vmem:[#allocation5 + $0x2020] sm:$0xff]
    %v1672 = vld [vmem:[#allocation5 + $0x2028] sm:$0xff]
    %v1673 = vld [vmem:[#allocation5 + $0x2030] sm:$0xff]
    %v1674 = vld [vmem:[#allocation5 + $0x2038] sm:$0xff]
    %v1675 = vld [vmem:[#allocation5 + $0x2040] sm:$0xff]
    %v1676 = vld [vmem:[#allocation5 + $0x2048] sm:$0xff]
    %v1677 = vld [vmem:[#allocation5 + $0x2050] sm:$0xff]
    %v1678 = vld [vmem:[#allocation5 + $0x2058] sm:$0xff]
    %v1679 = vld [vmem:[#allocation5 + $0x2060] sm:$0xff]
    %v1680 = vld [vmem:[#allocation5 + $0x2068] sm:$0xff]
    %v1681 = vld [vmem:[#allocation5 + $0x2070] sm:$0xff]
    %v1682 = vld [vmem:[#allocation5 + $0x2078] sm:$0xff]
    %v1683 = vld [vmem:[#allocation5 + $0x2080] sm:$0xff]
    %v1684 = vld [vmem:[#allocation5 + $0x2088] sm:$0xff]
    %v1685 = vld [vmem:[#allocation5 + $0x2090] sm:$0xff]
    %v1686 = vld [vmem:[#allocation5 + $0x2098] sm:$0xff]
    %v1687 = vld [vmem:[#allocation5 + $0x20a0] sm:$0xff]
    %v1688 = vld [vmem:[#allocation5 + $0x20a8] sm:$0xff]
    %v1689 = vld [vmem:[#allocation5 + $0x20b0] sm:$0xff]
    %v1690 = vld [vmem:[#allocation5 + $0x20b8] sm:$0xff]
    %v1691 = vld [vmem:[#allocation5 + $0x20c0] sm:$0xff]
    %v1692 = vld [vmem:[#allocation5 + $0x20c8] sm:$0xff]
    %v1693 = vld [vmem:[#allocation5 + $0x20d0] sm:$0xff]
    %v1694 = vld [vmem:[#allocation5 + $0x20d8] sm:$0xff]
    %v1695 = vld [vmem:[#allocation5 + $0x20e0] sm:$0xff]
    %v1696 = vld [vmem:[#allocation5 + $0x20e8] sm:$0xff]
    %v1697 = vld [vmem:[#allocation5 + $0x20f0] sm:$0xff]
    %v1698 = vld [vmem:[#allocation5 + $0x20f8] sm:$0xff]
    %v1699 = vld [vmem:[#allocation5 + $0x2100] sm:$0xff]
    %v1700 = vld [vmem:[#allocation5 + $0x2108] sm:$0xff]
    %v1701 = vld [vmem:[#allocation5 + $0x2110] sm:$0xff]
    %v1702 = vld [vmem:[#allocation5 + $0x2118] sm:$0xff]
    %v1703 = vld [vmem:[#allocation5 + $0x2120] sm:$0xff]
    %v1704 = vld [vmem:[#allocation5 + $0x2128] sm:$0xff]
    %v1705 = vld [vmem:[#allocation5 + $0x2130] sm:$0xff]
    %v1706 = vld [vmem:[#allocation5 + $0x2138] sm:$0xff]
    %v1707 = vld [vmem:[#allocation5 + $0x2140] sm:$0xff]
    %v1708 = vld [vmem:[#allocation5 + $0x2148] sm:$0xff]
    %v1709 = vld [vmem:[#allocation5 + $0x2150] sm:$0xff]
    %v1710 = vld [vmem:[#allocation5 + $0x2158] sm:$0xff]
    %v1711 = vld [vmem:[#allocation5 + $0x2160] sm:$0xff]
    %v1712 = vld [vmem:[#allocation5 + $0x2168] sm:$0xff]
    %v1713 = vld [vmem:[#allocation5 + $0x2170] sm:$0xff]
    %v1714 = vld [vmem:[#allocation5 + $0x2178] sm:$0xff]
    %v1715 = vld [vmem:[#allocation5 + $0x2180] sm:$0xff]
    %v1716 = vld [vmem:[#allocation5 + $0x2188] sm:$0xff]
    %v1717 = vld [vmem:[#allocation5 + $0x2190] sm:$0xff]
    %v1718 = vld [vmem:[#allocation5 + $0x2198] sm:$0xff]
    %v1719 = vld [vmem:[#allocation5 + $0x21a0] sm:$0xff]
    %v1720 = vld [vmem:[#allocation5 + $0x21a8] sm:$0xff]
    %v1721 = vld [vmem:[#allocation5 + $0x21b0] sm:$0xff]
    %v1722 = vld [vmem:[#allocation5 + $0x21b8] sm:$0xff]
    %v1723 = vld [vmem:[#allocation5 + $0x21c0] sm:$0xff]
    %v1724 = vld [vmem:[#allocation5 + $0x21c8] sm:$0xff]
    %v1725 = vld [vmem:[#allocation5 + $0x21d0] sm:$0xff]
    %v1726 = vld [vmem:[#allocation5 + $0x21d8] sm:$0xff]
    %v1727 = vld [vmem:[#allocation5 + $0x21e0] sm:$0xff]
    %v1728 = vld [vmem:[#allocation5 + $0x21e8] sm:$0xff]
    %v1729 = vld [vmem:[#allocation5 + $0x21f0] sm:$0xff]
    %v1730 = vld [vmem:[#allocation5 + $0x21f8] sm:$0xff]
    %v1731 = vld [vmem:[#allocation5 + $0x2200] sm:$0xff]
    %v1732 = vld [vmem:[#allocation5 + $0x2208] sm:$0xff]
    %v1733 = vld [vmem:[#allocation5 + $0x2210] sm:$0xff]
    %v1734 = vld [vmem:[#allocation5 + $0x2218] sm:$0xff]
    %v1735 = vld [vmem:[#allocation5 + $0x2220] sm:$0xff]
    %v1736 = vld [vmem:[#allocation5 + $0x2228] sm:$0xff]
    %v1737 = vld [vmem:[#allocation5 + $0x2230] sm:$0xff]
    %v1738 = vld [vmem:[#allocation5 + $0x2238] sm:$0xff]
    %v1739 = vld [vmem:[#allocation5 + $0x2240] sm:$0xff]
    %v1740 = vld [vmem:[#allocation5 + $0x2248] sm:$0xff]
    %v1741 = vld [vmem:[#allocation5 + $0x2250] sm:$0xff]
    %v1742 = vld [vmem:[#allocation5 + $0x2258] sm:$0xff]
    %v1743 = vld [vmem:[#allocation5 + $0x2260] sm:$0xff]
    %v1744 = vld [vmem:[#allocation5 + $0x2268] sm:$0xff]
    %v1745 = vld [vmem:[#allocation5 + $0x2270] sm:$0xff]
    %v1746 = vld [vmem:[#allocation5 + $0x2278] sm:$0xff]
    %v1747 = vld [vmem:[#allocation5 + $0x2280] sm:$0xff]
    %v1748 = vld [vmem:[#allocation5 + $0x2288] sm:$0xff]
    %v1749 = vld [vmem:[#allocation5 + $0x2290] sm:$0xff]
    %v1750 = vld [vmem:[#allocation5 + $0x2298] sm:$0xff]
    %v1751 = vld [vmem:[#allocation5 + $0x22a0] sm:$0xff]
    %v1752 = vld [vmem:[#allocation5 + $0x22a8] sm:$0xff]
    %v1753 = vld [vmem:[#allocation5 + $0x22b0] sm:$0xff]
    %v1754 = vld [vmem:[#allocation5 + $0x22b8] sm:$0xff]
    %v1755 = vld [vmem:[#allocation5 + $0x22c0] sm:$0xff]
    %v1756 = vld [vmem:[#allocation5 + $0x22c8] sm:$0xff]
    %v1757 = vld [vmem:[#allocation5 + $0x22d0] sm:$0xff]
    %v1758 = vld [vmem:[#allocation5 + $0x22d8] sm:$0xff]
    %v1759 = vld [vmem:[#allocation5 + $0x22e0] sm:$0xff]
    %v1760 = vld [vmem:[#allocation5 + $0x22e8] sm:$0xff]
    %v1761 = vld [vmem:[#allocation5 + $0x22f0] sm:$0xff]
    %v1762 = vld [vmem:[#allocation5 + $0x22f8] sm:$0xff]
    %v1763 = vld [vmem:[#allocation5 + $0x2300] sm:$0xff]
    %v1764 = vld [vmem:[#allocation5 + $0x2308] sm:$0xff]
    %v1765 = vld [vmem:[#allocation5 + $0x2310] sm:$0xff]
    %v1766 = vld [vmem:[#allocation5 + $0x2318] sm:$0xff]
    %v1767 = vld [vmem:[#allocation5 + $0x2320] sm:$0xff]
    %v1768 = vld [vmem:[#allocation5 + $0x2328] sm:$0xff]
    %v1769 = vld [vmem:[#allocation5 + $0x2330] sm:$0xff]
    %v1770 = vld [vmem:[#allocation5 + $0x2338] sm:$0xff]
    %v1771 = vld [vmem:[#allocation5 + $0x2340] sm:$0xff]
    %v1772 = vld [vmem:[#allocation5 + $0x2348] sm:$0xff]
    %v1773 = vld [vmem:[#allocation5 + $0x2350] sm:$0xff]
    %v1774 = vld [vmem:[#allocation5 + $0x2358] sm:$0xff]
    %v1775 = vld [vmem:[#allocation5 + $0x2360] sm:$0xff]
    %v1776 = vld [vmem:[#allocation5 + $0x2368] sm:$0xff]
    %v1777 = vld [vmem:[#allocation5 + $0x2370] sm:$0xff]
    %v1778 = vld [vmem:[#allocation5 + $0x2378] sm:$0xff]
    %v1779 = vld [vmem:[#allocation5 + $0x2380] sm:$0xff]
    %v1780 = vld [vmem:[#allocation5 + $0x2388] sm:$0xff]
    %v1781 = vld [vmem:[#allocation5 + $0x2390] sm:$0xff]
    %v1782 = vld [vmem:[#allocation5 + $0x2398] sm:$0xff]
    %v1783 = vld [vmem:[#allocation5 + $0x23a0] sm:$0xff]
    %v1784 = vld [vmem:[#allocation5 + $0x23a8] sm:$0xff]
    %v1785 = vld [vmem:[#allocation5 + $0x23b0] sm:$0xff]
    %v1786 = vld [vmem:[#allocation5 + $0x23b8] sm:$0xff]
    %v1787 = vld [vmem:[#allocation5 + $0x23c0] sm:$0xff]
    %v1788 = vld [vmem:[#allocation5 + $0x23c8] sm:$0xff]
    %v1789 = vld [vmem:[#allocation5 + $0x23d0] sm:$0xff]
    %v1790 = vld [vmem:[#allocation5 + $0x23d8] sm:$0xff]
    %v1791 = vld [vmem:[#allocation5 + $0x23e0] sm:$0xff]
    %v1792 = vld [vmem:[#allocation5 + $0x23e8] sm:$0xff]
    %v1793 = vld [vmem:[#allocation5 + $0x23f0] sm:$0xff]
    %v1794 = vld [vmem:[#allocation5 + $0x23f8] sm:$0xff]
    %v1795 = vld [vmem:[#allocation5 + $0x2400] sm:$0xff]
    %v1796 = vld [vmem:[#allocation5 + $0x2408] sm:$0xff]
    %v1797 = vld [vmem:[#allocation5 + $0x2410] sm:$0xff]
    %v1798 = vld [vmem:[#allocation5 + $0x2418] sm:$0xff]
    %v1799 = vld [vmem:[#allocation5 + $0x2420] sm:$0xff]
    %v1800 = vld [vmem:[#allocation5 + $0x2428] sm:$0xff]
    %v1801 = vld [vmem:[#allocation5 + $0x2430] sm:$0xff]
    %v1802 = vld [vmem:[#allocation5 + $0x2438] sm:$0xff]
    %v1803 = vld [vmem:[#allocation5 + $0x2440] sm:$0xff]
    %v1804 = vld [vmem:[#allocation5 + $0x2448] sm:$0xff]
    %v1805 = vld [vmem:[#allocation5 + $0x2450] sm:$0xff]
    %v1806 = vld [vmem:[#allocation5 + $0x2458] sm:$0xff]
    %v1807 = vld [vmem:[#allocation5 + $0x2460] sm:$0xff]
    %v1808 = vld [vmem:[#allocation5 + $0x2468] sm:$0xff]
    %v1809 = vld [vmem:[#allocation5 + $0x2470] sm:$0xff]
    %v1810 = vld [vmem:[#allocation5 + $0x2478] sm:$0xff]
    %v1811 = vld [vmem:[#allocation5 + $0x2480] sm:$0xff]
    %v1812 = vld [vmem:[#allocation5 + $0x2488] sm:$0xff]
    %v1813 = vld [vmem:[#allocation5 + $0x2490] sm:$0xff]
    %v1814 = vld [vmem:[#allocation5 + $0x2498] sm:$0xff]
    %v1815 = vld [vmem:[#allocation5 + $0x24a0] sm:$0xff]
    %v1816 = vld [vmem:[#allocation5 + $0x24a8] sm:$0xff]
    %v1817 = vld [vmem:[#allocation5 + $0x24b0] sm:$0xff]
    %v1818 = vld [vmem:[#allocation5 + $0x24b8] sm:$0xff]
    %v1819 = vld [vmem:[#allocation5 + $0x24c0] sm:$0xff]
    %v1820 = vld [vmem:[#allocation5 + $0x24c8] sm:$0xff]
    %v1821 = vld [vmem:[#allocation5 + $0x24d0] sm:$0xff]
    %v1822 = vld [vmem:[#allocation5 + $0x24d8] sm:$0xff]
    %v1823 = vld [vmem:[#allocation5 + $0x24e0] sm:$0xff]
    %v1824 = vld [vmem:[#allocation5 + $0x24e8] sm:$0xff]
    %v1825 = vld [vmem:[#allocation5 + $0x24f0] sm:$0xff]
    %v1826 = vld [vmem:[#allocation5 + $0x24f8] sm:$0xff]
    %v1827 = vld [vmem:[#allocation5 + $0x2500] sm:$0xff]
    %v1828 = vld [vmem:[#allocation5 + $0x2508] sm:$0xff]
    %v1829 = vld [vmem:[#allocation5 + $0x2510] sm:$0xff]
    %v1830 = vld [vmem:[#allocation5 + $0x2518] sm:$0xff]
    %v1831 = vld [vmem:[#allocation5 + $0x2520] sm:$0xff]
    %v1832 = vld [vmem:[#allocation5 + $0x2528] sm:$0xff]
    %v1833 = vld [vmem:[#allocation5 + $0x2530] sm:$0xff]
    %v1834 = vld [vmem:[#allocation5 + $0x2538] sm:$0xff]
    %v1835 = vld [vmem:[#allocation5 + $0x2540] sm:$0xff]
    %v1836 = vld [vmem:[#allocation5 + $0x2548] sm:$0xff]
    %v1837 = vld [vmem:[#allocation5 + $0x2550] sm:$0xff]
    %v1838 = vld [vmem:[#allocation5 + $0x2558] sm:$0xff]
    %v1839 = vld [vmem:[#allocation5 + $0x2560] sm:$0xff]
    %v1840 = vld [vmem:[#allocation5 + $0x2568] sm:$0xff]
    %v1841 = vld [vmem:[#allocation5 + $0x2570] sm:$0xff]
    %v1842 = vld [vmem:[#allocation5 + $0x2578] sm:$0xff]
    %v1843 = vld [vmem:[#allocation5 + $0x2580] sm:$0xff]
    %v1844 = vld [vmem:[#allocation5 + $0x2588] sm:$0xff]
    %v1845 = vld [vmem:[#allocation5 + $0x2590] sm:$0xff]
    %v1846 = vld [vmem:[#allocation5 + $0x2598] sm:$0xff]
    %v1847 = vld [vmem:[#allocation5 + $0x25a0] sm:$0xff]
    %v1848 = vld [vmem:[#allocation5 + $0x25a8] sm:$0xff]
    %v1849 = vld [vmem:[#allocation5 + $0x25b0] sm:$0xff]
    %v1850 = vld [vmem:[#allocation5 + $0x25b8] sm:$0xff]
    %v1851 = vld [vmem:[#allocation5 + $0x25c0] sm:$0xff]
    %v1852 = vld [vmem:[#allocation5 + $0x25c8] sm:$0xff]
    %v1853 = vld [vmem:[#allocation5 + $0x25d0] sm:$0xff]
    %v1854 = vld [vmem:[#allocation5 + $0x25d8] sm:$0xff]
    %v1855 = vld [vmem:[#allocation5 + $0x25e0] sm:$0xff]
    %v1856 = vld [vmem:[#allocation5 + $0x25e8] sm:$0xff]
    %v1857 = vld [vmem:[#allocation5 + $0x25f0] sm:$0xff]
    %v1858 = vld [vmem:[#allocation5 + $0x25f8] sm:$0xff]
    %v1859 = vld [vmem:[#allocation5 + $0x2600] sm:$0xff]
    %v1860 = vld [vmem:[#allocation5 + $0x2608] sm:$0xff]
    %v1861 = vld [vmem:[#allocation5 + $0x2610] sm:$0xff]
    %v1862 = vld [vmem:[#allocation5 + $0x2618] sm:$0xff]
    %v1863 = vld [vmem:[#allocation5 + $0x2620] sm:$0xff]
    %v1864 = vld [vmem:[#allocation5 + $0x2628] sm:$0xff]
    %v1865 = vld [vmem:[#allocation5 + $0x2630] sm:$0xff]
    %v1866 = vld [vmem:[#allocation5 + $0x2638] sm:$0xff]
    %v1867 = vld [vmem:[#allocation5 + $0x2640] sm:$0xff]
    %v1868 = vld [vmem:[#allocation5 + $0x2648] sm:$0xff]
    %v1869 = vld [vmem:[#allocation5 + $0x2650] sm:$0xff]
    %v1870 = vld [vmem:[#allocation5 + $0x2658] sm:$0xff]
    %v1871 = vld [vmem:[#allocation5 + $0x2660] sm:$0xff]
    %v1872 = vld [vmem:[#allocation5 + $0x2668] sm:$0xff]
    %v1873 = vld [vmem:[#allocation5 + $0x2670] sm:$0xff]
    %v1874 = vld [vmem:[#allocation5 + $0x2678] sm:$0xff]
    %v1875 = vld [vmem:[#allocation5 + $0x2680] sm:$0xff]
    %v1876 = vld [vmem:[#allocation5 + $0x2688] sm:$0xff]
    %v1877 = vld [vmem:[#allocation5 + $0x2690] sm:$0xff]
    %v1878 = vld [vmem:[#allocation5 + $0x2698] sm:$0xff]
    %v1879 = vld [vmem:[#allocation5 + $0x26a0] sm:$0xff]
    %v1880 = vld [vmem:[#allocation5 + $0x26a8] sm:$0xff]
    %v1881 = vld [vmem:[#allocation5 + $0x26b0] sm:$0xff]
    %v1882 = vld [vmem:[#allocation5 + $0x26b8] sm:$0xff]
    %v1883 = vld [vmem:[#allocation5 + $0x26c0] sm:$0xff]
    %v1884 = vld [vmem:[#allocation5 + $0x26c8] sm:$0xff]
    %v1885 = vld [vmem:[#allocation5 + $0x26d0] sm:$0xff]
    %v1886 = vld [vmem:[#allocation5 + $0x26d8] sm:$0xff]
    %v1887 = vld [vmem:[#allocation5 + $0x26e0] sm:$0xff]
    %v1888 = vld [vmem:[#allocation5 + $0x26e8] sm:$0xff]
    %v1889 = vld [vmem:[#allocation5 + $0x26f0] sm:$0xff]
    %v1890 = vld [vmem:[#allocation5 + $0x26f8] sm:$0xff]
    %v1891 = vld [vmem:[#allocation5 + $0x2700] sm:$0xff]
    %v1892 = vld [vmem:[#allocation5 + $0x2708] sm:$0xff]
    %v1893 = vld [vmem:[#allocation5 + $0x2710] sm:$0xff]
    %v1894 = vld [vmem:[#allocation5 + $0x2718] sm:$0xff]
    %v1895 = vld [vmem:[#allocation5 + $0x2720] sm:$0xff]
    %v1896 = vld [vmem:[#allocation5 + $0x2728] sm:$0xff]
    %v1897 = vld [vmem:[#allocation5 + $0x2730] sm:$0xff]
    %v1898 = vld [vmem:[#allocation5 + $0x2738] sm:$0xff]
    %v1899 = vld [vmem:[#allocation5 + $0x2740] sm:$0xff]
    %v1900 = vld [vmem:[#allocation5 + $0x2748] sm:$0xff]
    %v1901 = vld [vmem:[#allocation5 + $0x2750] sm:$0xff]
    %v1902 = vld [vmem:[#allocation5 + $0x2758] sm:$0xff]
    %v1903 = vld [vmem:[#allocation5 + $0x2760] sm:$0xff]
    %v1904 = vld [vmem:[#allocation5 + $0x2768] sm:$0xff]
    %v1905 = vld [vmem:[#allocation5 + $0x2770] sm:$0xff]
    %v1906 = vld [vmem:[#allocation5 + $0x2778] sm:$0xff]
    %v1907 = vld [vmem:[#allocation5 + $0x2780] sm:$0xff]
    %v1908 = vld [vmem:[#allocation5 + $0x2788] sm:$0xff]
    %v1909 = vld [vmem:[#allocation5 + $0x2790] sm:$0xff]
    %v1910 = vld [vmem:[#allocation5 + $0x2798] sm:$0xff]
    %v1911 = vld [vmem:[#allocation5 + $0x27a0] sm:$0xff]
    %v1912 = vld [vmem:[#allocation5 + $0x27a8] sm:$0xff]
    %v1913 = vld [vmem:[#allocation5 + $0x27b0] sm:$0xff]
    %v1914 = vld [vmem:[#allocation5 + $0x27b8] sm:$0xff]
    %v1915 = vld [vmem:[#allocation5 + $0x27c0] sm:$0xff]
    %v1916 = vld [vmem:[#allocation5 + $0x27c8] sm:$0xff]
    %v1917 = vld [vmem:[#allocation5 + $0x27d0] sm:$0xff]
    %v1918 = vld [vmem:[#allocation5 + $0x27d8] sm:$0xff]
    %v1919 = vld [vmem:[#allocation5 + $0x27e0] sm:$0xff]
    %v1920 = vld [vmem:[#allocation5 + $0x27e8] sm:$0xff]
    %v1921 = vld [vmem:[#allocation5 + $0x27f0] sm:$0xff]
    %v1922 = vld [vmem:[#allocation5 + $0x27f8] sm:$0xff]
    %v1923 = vld [vmem:[#allocation5 + $0x2800] sm:$0xff]
    %v1924 = vld [vmem:[#allocation5 + $0x2808] sm:$0xff]
    %v1925 = vld [vmem:[#allocation5 + $0x2810] sm:$0xff]
    %v1926 = vld [vmem:[#allocation5 + $0x2818] sm:$0xff]
    %v1927 = vld [vmem:[#allocation5 + $0x2820] sm:$0xff]
    %v1928 = vld [vmem:[#allocation5 + $0x2828] sm:$0xff]
    %v1929 = vld [vmem:[#allocation5 + $0x2830] sm:$0xff]
    %v1930 = vld [vmem:[#allocation5 + $0x2838] sm:$0xff]
    %v1931 = vld [vmem:[#allocation5 + $0x2840] sm:$0xff]
    %v1932 = vld [vmem:[#allocation5 + $0x2848] sm:$0xff]
    %v1933 = vld [vmem:[#allocation5 + $0x2850] sm:$0xff]
    %v1934 = vld [vmem:[#allocation5 + $0x2858] sm:$0xff]
    %v1935 = vld [vmem:[#allocation5 + $0x2860] sm:$0xff]
    %v1936 = vld [vmem:[#allocation5 + $0x2868] sm:$0xff]
    %v1937 = vld [vmem:[#allocation5 + $0x2870] sm:$0xff]
    %v1938 = vld [vmem:[#allocation5 + $0x2878] sm:$0xff]
    %v1939 = vld [vmem:[#allocation5 + $0x2880] sm:$0xff]
    %v1940 = vld [vmem:[#allocation5 + $0x2888] sm:$0xff]
    %v1941 = vld [vmem:[#allocation5 + $0x2890] sm:$0xff]
    %v1942 = vld [vmem:[#allocation5 + $0x2898] sm:$0xff]
    %v1943 = vld [vmem:[#allocation5 + $0x28a0] sm:$0xff]
    %v1944 = vld [vmem:[#allocation5 + $0x28a8] sm:$0xff]
    %v1945 = vld [vmem:[#allocation5 + $0x28b0] sm:$0xff]
    %v1946 = vld [vmem:[#allocation5 + $0x28b8] sm:$0xff]
    %v1947 = vld [vmem:[#allocation5 + $0x28c0] sm:$0xff]
    %v1948 = vld [vmem:[#allocation5 + $0x28c8] sm:$0xff]
    %v1949 = vld [vmem:[#allocation5 + $0x28d0] sm:$0xff]
    %v1950 = vld [vmem:[#allocation5 + $0x28d8] sm:$0xff]
    %v1951 = vld [vmem:[#allocation5 + $0x28e0] sm:$0xff]
    %v1952 = vld [vmem:[#allocation5 + $0x28e8] sm:$0xff]
    %v1953 = vld [vmem:[#allocation5 + $0x28f0] sm:$0xff]
    %v1954 = vld [vmem:[#allocation5 + $0x28f8] sm:$0xff]
    %v1955 = vld [vmem:[#allocation5 + $0x2900] sm:$0xff]
    %v1956 = vld [vmem:[#allocation5 + $0x2908] sm:$0xff]
    %v1957 = vld [vmem:[#allocation5 + $0x2910] sm:$0xff]
    %v1958 = vld [vmem:[#allocation5 + $0x2918] sm:$0xff]
    %v1959 = vld [vmem:[#allocation5 + $0x2920] sm:$0xff]
    %v1960 = vld [vmem:[#allocation5 + $0x2928] sm:$0xff]
    %v1961 = vld [vmem:[#allocation5 + $0x2930] sm:$0xff]
    %v1962 = vld [vmem:[#allocation5 + $0x2938] sm:$0xff]
    %v1963 = vld [vmem:[#allocation5 + $0x2940] sm:$0xff]
    %v1964 = vld [vmem:[#allocation5 + $0x2948] sm:$0xff]
    %v1965 = vld [vmem:[#allocation5 + $0x2950] sm:$0xff]
    %v1966 = vld [vmem:[#allocation5 + $0x2958] sm:$0xff]
    %v1967 = vld [vmem:[#allocation5 + $0x2960] sm:$0xff]
    %v1968 = vld [vmem:[#allocation5 + $0x2968] sm:$0xff]
    %v1969 = vld [vmem:[#allocation5 + $0x2970] sm:$0xff]
    %v1970 = vld [vmem:[#allocation5 + $0x2978] sm:$0xff]
    %v1971 = vld [vmem:[#allocation5 + $0x2980] sm:$0xff]
    %v1972 = vld [vmem:[#allocation5 + $0x2988] sm:$0xff]
    %v1973 = vld [vmem:[#allocation5 + $0x2990] sm:$0xff]
    %v1974 = vld [vmem:[#allocation5 + $0x2998] sm:$0xff]
    %v1975 = vld [vmem:[#allocation5 + $0x29a0] sm:$0xff]
    %v1976 = vld [vmem:[#allocation5 + $0x29a8] sm:$0xff]
    %v1977 = vld [vmem:[#allocation5 + $0x29b0] sm:$0xff]
    %v1978 = vld [vmem:[#allocation5 + $0x29b8] sm:$0xff]
    %v1979 = vld [vmem:[#allocation5 + $0x29c0] sm:$0xff]
    %v1980 = vld [vmem:[#allocation5 + $0x29c8] sm:$0xff]
    %v1981 = vld [vmem:[#allocation5 + $0x29d0] sm:$0xff]
    %v1982 = vld [vmem:[#allocation5 + $0x29d8] sm:$0xff]
    %v1983 = vld [vmem:[#allocation5 + $0x29e0] sm:$0xff]
    %v1984 = vld [vmem:[#allocation5 + $0x29e8] sm:$0xff]
    %v1985 = vld [vmem:[#allocation5 + $0x29f0] sm:$0xff]
    %v1986 = vld [vmem:[#allocation5 + $0x29f8] sm:$0xff]
    %v1987 = vld [vmem:[#allocation5 + $0x2a00] sm:$0xff]
    %v1988 = vld [vmem:[#allocation5 + $0x2a08] sm:$0xff]
    %v1989 = vld [vmem:[#allocation5 + $0x2a10] sm:$0xff]
    %v1990 = vld [vmem:[#allocation5 + $0x2a18] sm:$0xff]
    %v1991 = vld [vmem:[#allocation5 + $0x2a20] sm:$0xff]
    %v1992 = vld [vmem:[#allocation5 + $0x2a28] sm:$0xff]
    %v1993 = vld [vmem:[#allocation5 + $0x2a30] sm:$0xff]
    %v1994 = vld [vmem:[#allocation5 + $0x2a38] sm:$0xff]
    %v1995 = vld [vmem:[#allocation5 + $0x2a40] sm:$0xff]
    %v1996 = vld [vmem:[#allocation5 + $0x2a48] sm:$0xff]
    %v1997 = vld [vmem:[#allocation5 + $0x2a50] sm:$0xff]
    %v1998 = vld [vmem:[#allocation5 + $0x2a58] sm:$0xff]
    %v1999 = vld [vmem:[#allocation5 + $0x2a60] sm:$0xff]
    %v2000 = vld [vmem:[#allocation5 + $0x2a68] sm:$0xff]
    %v2001 = vld [vmem:[#allocation5 + $0x2a70] sm:$0xff]
    %v2002 = vld [vmem:[#allocation5 + $0x2a78] sm:$0xff]
    %v2003 = vld [vmem:[#allocation5 + $0x2a80] sm:$0xff]
    %v2004 = vld [vmem:[#allocation5 + $0x2a88] sm:$0xff]
    %v2005 = vld [vmem:[#allocation5 + $0x2a90] sm:$0xff]
    %v2006 = vld [vmem:[#allocation5 + $0x2a98] sm:$0xff]
    %v2007 = vld [vmem:[#allocation5 + $0x2aa0] sm:$0xff]
    %v2008 = vld [vmem:[#allocation5 + $0x2aa8] sm:$0xff]
    %v2009 = vld [vmem:[#allocation5 + $0x2ab0] sm:$0xff]
    %v2010 = vld [vmem:[#allocation5 + $0x2ab8] sm:$0xff]
    %v2011 = vld [vmem:[#allocation5 + $0x2ac0] sm:$0xff]
    %v2012 = vld [vmem:[#allocation5 + $0x2ac8] sm:$0xff]
    %v2013 = vld [vmem:[#allocation5 + $0x2ad0] sm:$0xff]
    %v2014 = vld [vmem:[#allocation5 + $0x2ad8] sm:$0xff]
    %v2015 = vld [vmem:[#allocation5 + $0x2ae0] sm:$0xff]
    %v2016 = vld [vmem:[#allocation5 + $0x2ae8] sm:$0xff]
    %v2017 = vld [vmem:[#allocation5 + $0x2af0] sm:$0xff]
    %v2018 = vld [vmem:[#allocation5 + $0x2af8] sm:$0xff]
    %v2019 = vld [vmem:[#allocation5 + $0x2b00] sm:$0xff]
    %v2020 = vld [vmem:[#allocation5 + $0x2b08] sm:$0xff]
    %v2021 = vld [vmem:[#allocation5 + $0x2b10] sm:$0xff]
    %v2022 = vld [vmem:[#allocation5 + $0x2b18] sm:$0xff]
    %v2023 = vld [vmem:[#allocation5 + $0x2b20] sm:$0xff]
    %v2024 = vld [vmem:[#allocation5 + $0x2b28] sm:$0xff]
    %v2025 = vld [vmem:[#allocation5 + $0x2b30] sm:$0xff]
    %v2026 = vld [vmem:[#allocation5 + $0x2b38] sm:$0xff]
    %v2027 = vld [vmem:[#allocation5 + $0x2b40] sm:$0xff]
    %v2028 = vld [vmem:[#allocation5 + $0x2b48] sm:$0xff]
    %v2029 = vld [vmem:[#allocation5 + $0x2b50] sm:$0xff]
    %v2030 = vld [vmem:[#allocation5 + $0x2b58] sm:$0xff]
    %v2031 = vld [vmem:[#allocation5 + $0x2b60] sm:$0xff]
    %v2032 = vld [vmem:[#allocation5 + $0x2b68] sm:$0xff]
    %v2033 = vld [vmem:[#allocation5 + $0x2b70] sm:$0xff]
    %v2034 = vld [vmem:[#allocation5 + $0x2b78] sm:$0xff]
    %v2035 = vld [vmem:[#allocation5 + $0x2b80] sm:$0xff]
    %v2036 = vld [vmem:[#allocation5 + $0x2b88] sm:$0xff]
    %v2037 = vld [vmem:[#allocation5 + $0x2b90] sm:$0xff]
    %v2038 = vld [vmem:[#allocation5 + $0x2b98] sm:$0xff]
    %v2039 = vld [vmem:[#allocation5 + $0x2ba0] sm:$0xff]
    %v2040 = vld [vmem:[#allocation5 + $0x2ba8] sm:$0xff]
    %v2041 = vld [vmem:[#allocation5 + $0x2bb0] sm:$0xff]
    %v2042 = vld [vmem:[#allocation5 + $0x2bb8] sm:$0xff]
    %v2043 = vld [vmem:[#allocation5 + $0x2bc0] sm:$0xff]
    %v2044 = vld [vmem:[#allocation5 + $0x2bc8] sm:$0xff]
    %v2045 = vld [vmem:[#allocation5 + $0x2bd0] sm:$0xff]
    %v2046 = vld [vmem:[#allocation5 + $0x2bd8] sm:$0xff]
    %v2047 = vld [vmem:[#allocation5 + $0x2be0] sm:$0xff]
    %v2048 = vld [vmem:[#allocation5 + $0x2be8] sm:$0xff]
    %v2049 = vld [vmem:[#allocation5 + $0x2bf0] sm:$0xff]
    %v2050 = vld [vmem:[#allocation5 + $0x2bf8] sm:$0xff]
    %v2051 = vld [vmem:[#allocation5 + $0x2c00] sm:$0xff]
    %v2052 = vld [vmem:[#allocation5 + $0x2c08] sm:$0xff]
    %v2053 = vld [vmem:[#allocation5 + $0x2c10] sm:$0xff]
    %v2054 = vld [vmem:[#allocation5 + $0x2c18] sm:$0xff]
    %v2055 = vld [vmem:[#allocation5 + $0x2c20] sm:$0xff]
    %v2056 = vld [vmem:[#allocation5 + $0x2c28] sm:$0xff]
    %v2057 = vld [vmem:[#allocation5 + $0x2c30] sm:$0xff]
    %v2058 = vld [vmem:[#allocation5 + $0x2c38] sm:$0xff]
    %v2059 = vld [vmem:[#allocation5 + $0x2c40] sm:$0xff]
    %v2060 = vld [vmem:[#allocation5 + $0x2c48] sm:$0xff]
    %v2061 = vld [vmem:[#allocation5 + $0x2c50] sm:$0xff]
    %v2062 = vld [vmem:[#allocation5 + $0x2c58] sm:$0xff]
    %v2063 = vld [vmem:[#allocation5 + $0x2c60] sm:$0xff]
    %v2064 = vld [vmem:[#allocation5 + $0x2c68] sm:$0xff]
    %v2065 = vld [vmem:[#allocation5 + $0x2c70] sm:$0xff]
    %v2066 = vld [vmem:[#allocation5 + $0x2c78] sm:$0xff]
    %v2067 = vld [vmem:[#allocation5 + $0x2c80] sm:$0xff]
    %v2068 = vld [vmem:[#allocation5 + $0x2c88] sm:$0xff]
    %v2069 = vld [vmem:[#allocation5 + $0x2c90] sm:$0xff]
    %v2070 = vld [vmem:[#allocation5 + $0x2c98] sm:$0xff]
    %v2071 = vld [vmem:[#allocation5 + $0x2ca0] sm:$0xff]
    %v2072 = vld [vmem:[#allocation5 + $0x2ca8] sm:$0xff]
    %v2073 = vld [vmem:[#allocation5 + $0x2cb0] sm:$0xff]
    %v2074 = vld [vmem:[#allocation5 + $0x2cb8] sm:$0xff]
    %v2075 = vld [vmem:[#allocation5 + $0x2cc0] sm:$0xff]
    %v2076 = vld [vmem:[#allocation5 + $0x2cc8] sm:$0xff]
    %v2077 = vld [vmem:[#allocation5 + $0x2cd0] sm:$0xff]
    %v2078 = vld [vmem:[#allocation5 + $0x2cd8] sm:$0xff]
    %v2079 = vld [vmem:[#allocation5 + $0x2ce0] sm:$0xff]
    %v2080 = vld [vmem:[#allocation5 + $0x2ce8] sm:$0xff]
    %v2081 = vld [vmem:[#allocation5 + $0x2cf0] sm:$0xff]
    %v2082 = vld [vmem:[#allocation5 + $0x2cf8] sm:$0xff]
    %v2083 = vld [vmem:[#allocation5 + $0x2d00] sm:$0xff]
    %v2084 = vld [vmem:[#allocation5 + $0x2d08] sm:$0xff]
    %v2085 = vld [vmem:[#allocation5 + $0x2d10] sm:$0xff]
    %v2086 = vld [vmem:[#allocation5 + $0x2d18] sm:$0xff]
    %v2087 = vld [vmem:[#allocation5 + $0x2d20] sm:$0xff]
    %v2088 = vld [vmem:[#allocation5 + $0x2d28] sm:$0xff]
    %v2089 = vld [vmem:[#allocation5 + $0x2d30] sm:$0xff]
    %v2090 = vld [vmem:[#allocation5 + $0x2d38] sm:$0xff]
    %v2091 = vld [vmem:[#allocation5 + $0x2d40] sm:$0xff]
    %v2092 = vld [vmem:[#allocation5 + $0x2d48] sm:$0xff]
    %v2093 = vld [vmem:[#allocation5 + $0x2d50] sm:$0xff]
    %v2094 = vld [vmem:[#allocation5 + $0x2d58] sm:$0xff]
    %v2095 = vld [vmem:[#allocation5 + $0x2d60] sm:$0xff]
    %v2096 = vld [vmem:[#allocation5 + $0x2d68] sm:$0xff]
    %v2097 = vld [vmem:[#allocation5 + $0x2d70] sm:$0xff]
    %v2098 = vld [vmem:[#allocation5 + $0x2d78] sm:$0xff]
    %v2099 = vld [vmem:[#allocation5 + $0x2d80] sm:$0xff]
    %v2100 = vld [vmem:[#allocation5 + $0x2d88] sm:$0xff]
    %v2101 = vld [vmem:[#allocation5 + $0x2d90] sm:$0xff]
    %v2102 = vld [vmem:[#allocation5 + $0x2d98] sm:$0xff]
    %v2103 = vld [vmem:[#allocation5 + $0x2da0] sm:$0xff]
    %v2104 = vld [vmem:[#allocation5 + $0x2da8] sm:$0xff]
    %v2105 = vld [vmem:[#allocation5 + $0x2db0] sm:$0xff]
    %v2106 = vld [vmem:[#allocation5 + $0x2db8] sm:$0xff]
    %v2107 = vld [vmem:[#allocation5 + $0x2dc0] sm:$0xff]
    %v2108 = vld [vmem:[#allocation5 + $0x2dc8] sm:$0xff]
    %v2109 = vld [vmem:[#allocation5 + $0x2dd0] sm:$0xff]
    %v2110 = vld [vmem:[#allocation5 + $0x2dd8] sm:$0xff]
    %v2111 = vld [vmem:[#allocation5 + $0x2de0] sm:$0xff]
    %v2112 = vld [vmem:[#allocation5 + $0x2de8] sm:$0xff]
    %v2113 = vld [vmem:[#allocation5 + $0x2df0] sm:$0xff]
    %v2114 = vld [vmem:[#allocation5 + $0x2df8] sm:$0xff]
    %v2115 = vld [vmem:[#allocation5 + $0x2e00] sm:$0xff]
    %v2116 = vld [vmem:[#allocation5 + $0x2e08] sm:$0xff]
    %v2117 = vld [vmem:[#allocation5 + $0x2e10] sm:$0xff]
    %v2118 = vld [vmem:[#allocation5 + $0x2e18] sm:$0xff]
    %v2119 = vld [vmem:[#allocation5 + $0x2e20] sm:$0xff]
    %v2120 = vld [vmem:[#allocation5 + $0x2e28] sm:$0xff]
    %v2121 = vld [vmem:[#allocation5 + $0x2e30] sm:$0xff]
    %v2122 = vld [vmem:[#allocation5 + $0x2e38] sm:$0xff]
    %v2123 = vld [vmem:[#allocation5 + $0x2e40] sm:$0xff]
    %v2124 = vld [vmem:[#allocation5 + $0x2e48] sm:$0xff]
    %v2125 = vld [vmem:[#allocation5 + $0x2e50] sm:$0xff]
    %v2126 = vld [vmem:[#allocation5 + $0x2e58] sm:$0xff]
    %v2127 = vld [vmem:[#allocation5 + $0x2e60] sm:$0xff]
    %v2128 = vld [vmem:[#allocation5 + $0x2e68] sm:$0xff]
    %v2129 = vld [vmem:[#allocation5 + $0x2e70] sm:$0xff]
    %v2130 = vld [vmem:[#allocation5 + $0x2e78] sm:$0xff]
    %v2131 = vld [vmem:[#allocation5 + $0x2e80] sm:$0xff]
    %v2132 = vld [vmem:[#allocation5 + $0x2e88] sm:$0xff]
    %v2133 = vld [vmem:[#allocation5 + $0x2e90] sm:$0xff]
    %v2134 = vld [vmem:[#allocation5 + $0x2e98] sm:$0xff]
    %v2135 = vld [vmem:[#allocation5 + $0x2ea0] sm:$0xff]
    %v2136 = vld [vmem:[#allocation5 + $0x2ea8] sm:$0xff]
    %v2137 = vld [vmem:[#allocation5 + $0x2eb0] sm:$0xff]
    %v2138 = vld [vmem:[#allocation5 + $0x2eb8] sm:$0xff]
    %v2139 = vld [vmem:[#allocation5 + $0x2ec0] sm:$0xff]
    %v2140 = vld [vmem:[#allocation5 + $0x2ec8] sm:$0xff]
    %v2141 = vld [vmem:[#allocation5 + $0x2ed0] sm:$0xff]
    %v2142 = vld [vmem:[#allocation5 + $0x2ed8] sm:$0xff]
    %v2143 = vld [vmem:[#allocation5 + $0x2ee0] sm:$0xff]
    %v2144 = vld [vmem:[#allocation5 + $0x2ee8] sm:$0xff]
    %v2145 = vld [vmem:[#allocation5 + $0x2ef0] sm:$0xff]
    %v2146 = vld [vmem:[#allocation5 + $0x2ef8] sm:$0xff]
    %v2147 = vld [vmem:[#allocation5 + $0x2f00] sm:$0xff]
    %v2148 = vld [vmem:[#allocation5 + $0x2f08] sm:$0xff]
    %v2149 = vld [vmem:[#allocation5 + $0x2f10] sm:$0xff]
    %v2150 = vld [vmem:[#allocation5 + $0x2f18] sm:$0xff]
    %v2151 = vld [vmem:[#allocation5 + $0x2f20] sm:$0xff]
    %v2152 = vld [vmem:[#allocation5 + $0x2f28] sm:$0xff]
    %v2153 = vld [vmem:[#allocation5 + $0x2f30] sm:$0xff]
    %v2154 = vld [vmem:[#allocation5 + $0x2f38] sm:$0xff]
    %v2155 = vld [vmem:[#allocation5 + $0x2f40] sm:$0xff]
    %v2156 = vld [vmem:[#allocation5 + $0x2f48] sm:$0xff]
    %v2157 = vld [vmem:[#allocation5 + $0x2f50] sm:$0xff]
    %v2158 = vld [vmem:[#allocation5 + $0x2f58] sm:$0xff]
    %v2159 = vld [vmem:[#allocation5 + $0x2f60] sm:$0xff]
    %v2160 = vld [vmem:[#allocation5 + $0x2f68] sm:$0xff]
    %v2161 = vld [vmem:[#allocation5 + $0x2f70] sm:$0xff]
    %v2162 = vld [vmem:[#allocation5 + $0x2f78] sm:$0xff]
    %v2163 = vld [vmem:[#allocation5 + $0x2f80] sm:$0xff]
    %v2164 = vld [vmem:[#allocation5 + $0x2f88] sm:$0xff]
    %v2165 = vld [vmem:[#allocation5 + $0x2f90] sm:$0xff]
    %v2166 = vld [vmem:[#allocation5 + $0x2f98] sm:$0xff]
    %v2167 = vld [vmem:[#allocation5 + $0x2fa0] sm:$0xff]
    %v2168 = vld [vmem:[#allocation5 + $0x2fa8] sm:$0xff]
    %v2169 = vld [vmem:[#allocation5 + $0x2fb0] sm:$0xff]
    %v2170 = vld [vmem:[#allocation5 + $0x2fb8] sm:$0xff]
    %v2171 = vld [vmem:[#allocation5 + $0x2fc0] sm:$0xff]
    %v2172 = vld [vmem:[#allocation5 + $0x2fc8] sm:$0xff]
    %v2173 = vld [vmem:[#allocation5 + $0x2fd0] sm:$0xff]
    %v2174 = vld [vmem:[#allocation5 + $0x2fd8] sm:$0xff]
    %v2175 = vld [vmem:[#allocation5 + $0x2fe0] sm:$0xff]
    %v2176 = vld [vmem:[#allocation5 + $0x2fe8] sm:$0xff]
    %v2177 = vld [vmem:[#allocation5 + $0x2ff0] sm:$0xff]
    %v2178 = vld [vmem:[#allocation5 + $0x2ff8] sm:$0xff]
    %v2179 = vld [vmem:[#allocation5 + $0x3000] sm:$0xff]
    %v2180 = vld [vmem:[#allocation5 + $0x3008] sm:$0xff]
    %v2181 = vld [vmem:[#allocation5 + $0x3010] sm:$0xff]
    %v2182 = vld [vmem:[#allocation5 + $0x3018] sm:$0xff]
    %v2183 = vld [vmem:[#allocation5 + $0x3020] sm:$0xff]
    %v2184 = vld [vmem:[#allocation5 + $0x3028] sm:$0xff]
    %v2185 = vld [vmem:[#allocation5 + $0x3030] sm:$0xff]
    %v2186 = vld [vmem:[#allocation5 + $0x3038] sm:$0xff]
    %v2187 = vld [vmem:[#allocation5 + $0x3040] sm:$0xff]
    %v2188 = vld [vmem:[#allocation5 + $0x3048] sm:$0xff]
    %v2189 = vld [vmem:[#allocation5 + $0x3050] sm:$0xff]
    %v2190 = vld [vmem:[#allocation5 + $0x3058] sm:$0xff]
    %v2191 = vld [vmem:[#allocation5 + $0x3060] sm:$0xff]
    %v2192 = vld [vmem:[#allocation5 + $0x3068] sm:$0xff]
    %v2193 = vld [vmem:[#allocation5 + $0x3070] sm:$0xff]
    %v2194 = vld [vmem:[#allocation5 + $0x3078] sm:$0xff]
    %v2195 = vld [vmem:[#allocation5 + $0x3080] sm:$0xff]
    %v2196 = vld [vmem:[#allocation5 + $0x3088] sm:$0xff]
    %v2197 = vld [vmem:[#allocation5 + $0x3090] sm:$0xff]
    %v2198 = vld [vmem:[#allocation5 + $0x3098] sm:$0xff]
    %v2199 = vld [vmem:[#allocation5 + $0x30a0] sm:$0xff]
    %v2200 = vld [vmem:[#allocation5 + $0x30a8] sm:$0xff]
    %v2201 = vld [vmem:[#allocation5 + $0x30b0] sm:$0xff]
    %v2202 = vld [vmem:[#allocation5 + $0x30b8] sm:$0xff]
    %v2203 = vld [vmem:[#allocation5 + $0x30c0] sm:$0xff]
    %v2204 = vld [vmem:[#allocation5 + $0x30c8] sm:$0xff]
    %v2205 = vld [vmem:[#allocation5 + $0x30d0] sm:$0xff]
    %v2206 = vld [vmem:[#allocation5 + $0x30d8] sm:$0xff]
    %v2207 = vld [vmem:[#allocation5 + $0x30e0] sm:$0xff]
    %v2208 = vld [vmem:[#allocation5 + $0x30e8] sm:$0xff]
    %v2209 = vld [vmem:[#allocation5 + $0x30f0] sm:$0xff]
    %v2210 = vld [vmem:[#allocation5 + $0x30f8] sm:$0xff]
    %v2211 = vld [vmem:[#allocation7] sm:$0x1]
    %v2213 = vlaneseq
    %v2214 = vshrl.u32 %v2213, 7
    %v2215 = vsub.s32 0, %v2214
    %v2216 = vrot.slane %v2211, %v2215
    %v3786 = vunpack.c.l.b16 %v643
    %v3787 = vunpack.c.h.b16 %v643
    %v3788 = vunpack.c.l.b16 %v644
    %v3789 = vunpack.c.h.b16 %v644
    %v3790 = vunpack.c.l.b16 %v645
    %v3791 = vunpack.c.h.b16 %v645
    %v3792 = vunpack.c.l.b16 %v646
    %v3793 = vunpack.c.h.b16 %v646
    %v3794 = vunpack.c.l.b16 %v647
    %v3795 = vunpack.c.h.b16 %v647
    %v3796 = vunpack.c.l.b16 %v648
    %v3797 = vunpack.c.h.b16 %v648
    %v3798 = vunpack.c.l.b16 %v649
    %v3799 = vunpack.c.h.b16 %v649
    %v3800 = vunpack.c.l.b16 %v650
    %v3801 = vunpack.c.h.b16 %v650
    %v3802 = vunpack.c.l.b16 %v651
    %v3803 = vunpack.c.h.b16 %v651
    %v3804 = vunpack.c.l.b16 %v652
    %v3805 = vunpack.c.h.b16 %v652
    %v3806 = vunpack.c.l.b16 %v653
    %v3807 = vunpack.c.h.b16 %v653
    %v3808 = vunpack.c.l.b16 %v654
    %v3809 = vunpack.c.h.b16 %v654
    %v3810 = vunpack.c.l.b16 %v655
    %v3811 = vunpack.c.h.b16 %v655
    %v3812 = vunpack.c.l.b16 %v656
    %v3813 = vunpack.c.h.b16 %v656
    %v3814 = vunpack.c.l.b16 %v657
    %v3815 = vunpack.c.h.b16 %v657
    %v3816 = vunpack.c.l.b16 %v658
    %v3817 = vunpack.c.h.b16 %v658
    %v3818 = vunpack.c.l.b16 %v659
    %v3819 = vunpack.c.h.b16 %v659
    %v3820 = vunpack.c.l.b16 %v660
    %v3821 = vunpack.c.h.b16 %v660
    %v3822 = vunpack.c.l.b16 %v661
    %v3823 = vunpack.c.h.b16 %v661
    %v3824 = vunpack.c.l.b16 %v662
    %v3825 = vunpack.c.h.b16 %v662
    %v3826 = vunpack.c.l.b16 %v663
    %v3827 = vunpack.c.h.b16 %v663
    %v3828 = vunpack.c.l.b16 %v664
    %v3829 = vunpack.c.h.b16 %v664
    %v3830 = vunpack.c.l.b16 %v665
    %v3831 = vunpack.c.h.b16 %v665
    %v3832 = vunpack.c.l.b16 %v666
    %v3833 = vunpack.c.h.b16 %v666
    %v3834 = vunpack.c.l.b16 %v667
    %v3835 = vunpack.c.h.b16 %v667
    %v3836 = vunpack.c.l.b16 %v668
    %v3837 = vunpack.c.h.b16 %v668
    %v3838 = vunpack.c.l.b16 %v669
    %v3839 = vunpack.c.h.b16 %v669
    %v3840 = vunpack.c.l.b16 %v670
    %v3841 = vunpack.c.h.b16 %v670
    %v3842 = vunpack.c.l.b16 %v671
    %v3843 = vunpack.c.h.b16 %v671
    %v3844 = vunpack.c.l.b16 %v672
    %v3845 = vunpack.c.h.b16 %v672
    %v3846 = vunpack.c.l.b16 %v673
    %v3847 = vunpack.c.h.b16 %v673
    %v3848 = vunpack.c.l.b16 %v674
    %v3849 = vunpack.c.h.b16 %v674
    %v3850 = vunpack.c.l.b16 %v675
    %v3851 = vunpack.c.h.b16 %v675
    %v3852 = vunpack.c.l.b16 %v676
    %v3853 = vunpack.c.h.b16 %v676
    %v3854 = vunpack.c.l.b16 %v677
    %v3855 = vunpack.c.h.b16 %v677
    %v3856 = vunpack.c.l.b16 %v678
    %v3857 = vunpack.c.h.b16 %v678
    %v3858 = vunpack.c.l.b16 %v679
    %v3859 = vunpack.c.h.b16 %v679
    %v3860 = vunpack.c.l.b16 %v680
    %v3861 = vunpack.c.h.b16 %v680
    %v3862 = vunpack.c.l.b16 %v681
    %v3863 = vunpack.c.h.b16 %v681
    %v3864 = vunpack.c.l.b16 %v682
    %v3865 = vunpack.c.h.b16 %v682
    %v3866 = vunpack.c.l.b16 %v683
    %v3867 = vunpack.c.h.b16 %v683
    %v3868 = vunpack.c.l.b16 %v684
    %v3869 = vunpack.c.h.b16 %v684
    %v3870 = vunpack.c.l.b16 %v685
    %v3871 = vunpack.c.h.b16 %v685
    %v3872 = vunpack.c.l.b16 %v686
    %v3873 = vunpack.c.h.b16 %v686
    %v3874 = vunpack.c.l.b16 %v687
    %v3875 = vunpack.c.h.b16 %v687
    %v3876 = vunpack.c.l.b16 %v688
    %v3877 = vunpack.c.h.b16 %v688
    %v3878 = vunpack.c.l.b16 %v689
    %v3879 = vunpack.c.h.b16 %v689
    %v3880 = vunpack.c.l.b16 %v690
    %v3881 = vunpack.c.h.b16 %v690
    %v3882 = vunpack.c.l.b16 %v691
    %v3883 = vunpack.c.h.b16 %v691
    %v3884 = vunpack.c.l.b16 %v692
    %v3885 = vunpack.c.h.b16 %v692
    %v3886 = vunpack.c.l.b16 %v693
    %v3887 = vunpack.c.h.b16 %v693
    %v3888 = vunpack.c.l.b16 %v694
    %v3889 = vunpack.c.h.b16 %v694
    %v3890 = vunpack.c.l.b16 %v695
    %v3891 = vunpack.c.h.b16 %v695
    %v3892 = vunpack.c.l.b16 %v696
    %v3893 = vunpack.c.h.b16 %v696
    %v3894 = vunpack.c.l.b16 %v697
    %v3895 = vunpack.c.h.b16 %v697
    %v3896 = vunpack.c.l.b16 %v698
    %v3897 = vunpack.c.h.b16 %v698
    %v3898 = vunpack.c.l.b16 %v699
    %v3899 = vunpack.c.h.b16 %v699
    %v3900 = vunpack.c.l.b16 %v700
    %v3901 = vunpack.c.h.b16 %v700
    %v3902 = vunpack.c.l.b16 %v701
    %v3903 = vunpack.c.h.b16 %v701
    %v3904 = vunpack.c.l.b16 %v702
    %v3905 = vunpack.c.h.b16 %v702
    %v3906 = vunpack.c.l.b16 %v703
    %v3907 = vunpack.c.h.b16 %v703
    %v3908 = vunpack.c.l.b16 %v704
    %v3909 = vunpack.c.h.b16 %v704
    %v3910 = vunpack.c.l.b16 %v705
    %v3911 = vunpack.c.h.b16 %v705
    %v3912 = vunpack.c.l.b16 %v706
    %v3913 = vunpack.c.h.b16 %v706
    %v3914 = vunpack.c.l.b16 %v707
    %v3915 = vunpack.c.h.b16 %v707
    %v3916 = vunpack.c.l.b16 %v708
    %v3917 = vunpack.c.h.b16 %v708
    %v3918 = vunpack.c.l.b16 %v709
    %v3919 = vunpack.c.h.b16 %v709
    %v3920 = vunpack.c.l.b16 %v710
    %v3921 = vunpack.c.h.b16 %v710
    %v3922 = vunpack.c.l.b16 %v711
    %v3923 = vunpack.c.h.b16 %v711
    %v3924 = vunpack.c.l.b16 %v712
    %v3925 = vunpack.c.h.b16 %v712
    %v3926 = vunpack.c.l.b16 %v713
    %v3927 = vunpack.c.h.b16 %v713
    %v3928 = vunpack.c.l.b16 %v714
    %v3929 = vunpack.c.h.b16 %v714
    %v3930 = vunpack.c.l.b16 %v715
    %v3931 = vunpack.c.h.b16 %v715
    %v3932 = vunpack.c.l.b16 %v716
    %v3933 = vunpack.c.h.b16 %v716
    %v3934 = vunpack.c.l.b16 %v717
    %v3935 = vunpack.c.h.b16 %v717
    %v3936 = vunpack.c.l.b16 %v718
    %v3937 = vunpack.c.h.b16 %v718
    %v3938 = vunpack.c.l.b16 %v719
    %v3939 = vunpack.c.h.b16 %v719
    %v3940 = vunpack.c.l.b16 %v720
    %v3941 = vunpack.c.h.b16 %v720
    %v3942 = vunpack.c.l.b16 %v721
    %v3943 = vunpack.c.h.b16 %v721
    %v3944 = vunpack.c.l.b16 %v722
    %v3945 = vunpack.c.h.b16 %v722
    %v3946 = vunpack.c.l.b16 %v723
    %v3947 = vunpack.c.h.b16 %v723
    %v3948 = vunpack.c.l.b16 %v724
    %v3949 = vunpack.c.h.b16 %v724
    %v3950 = vunpack.c.l.b16 %v725
    %v3951 = vunpack.c.h.b16 %v725
    %v3952 = vunpack.c.l.b16 %v726
    %v3953 = vunpack.c.h.b16 %v726
    %v3954 = vunpack.c.l.b16 %v727
    %v3955 = vunpack.c.h.b16 %v727
    %v3956 = vunpack.c.l.b16 %v728
    %v3957 = vunpack.c.h.b16 %v728
    %v3958 = vunpack.c.l.b16 %v729
    %v3959 = vunpack.c.h.b16 %v729
    %v3960 = vunpack.c.l.b16 %v730
    %v3961 = vunpack.c.h.b16 %v730
    %v3962 = vunpack.c.l.b16 %v731
    %v3963 = vunpack.c.h.b16 %v731
    %v3964 = vunpack.c.l.b16 %v732
    %v3965 = vunpack.c.h.b16 %v732
    %v3966 = vunpack.c.l.b16 %v733
    %v3967 = vunpack.c.h.b16 %v733
    %v3968 = vunpack.c.l.b16 %v734
    %v3969 = vunpack.c.h.b16 %v734
    %v3970 = vunpack.c.l.b16 %v735
    %v3971 = vunpack.c.h.b16 %v735
    %v3972 = vunpack.c.l.b16 %v736
    %v3973 = vunpack.c.h.b16 %v736
    %v3974 = vunpack.c.l.b16 %v737
    %v3975 = vunpack.c.h.b16 %v737
    %v3976 = vunpack.c.l.b16 %v738
    %v3977 = vunpack.c.h.b16 %v738
    %v3978 = vunpack.c.l.b16 %v739
    %v3979 = vunpack.c.h.b16 %v739
    %v3980 = vunpack.c.l.b16 %v740
    %v3981 = vunpack.c.h.b16 %v740
    %v3982 = vunpack.c.l.b16 %v741
    %v3983 = vunpack.c.h.b16 %v741
    %v3984 = vunpack.c.l.b16 %v742
    %v3985 = vunpack.c.h.b16 %v742
    %v3986 = vunpack.c.l.b16 %v743
    %v3987 = vunpack.c.h.b16 %v743
    %v3988 = vunpack.c.l.b16 %v744
    %v3989 = vunpack.c.h.b16 %v744
    %v3990 = vunpack.c.l.b16 %v745
    %v3991 = vunpack.c.h.b16 %v745
    %v3992 = vunpack.c.l.b16 %v746
    %v3993 = vunpack.c.h.b16 %v746
    %v3994 = vunpack.c.l.b16 %v747
    %v3995 = vunpack.c.h.b16 %v747
    %v3996 = vunpack.c.l.b16 %v748
    %v3997 = vunpack.c.h.b16 %v748
    %v3998 = vunpack.c.l.b16 %v749
    %v3999 = vunpack.c.h.b16 %v749
    %v4000 = vunpack.c.l.b16 %v750
    %v4001 = vunpack.c.h.b16 %v750
    %v4002 = vunpack.c.l.b16 %v751
    %v4003 = vunpack.c.h.b16 %v751
    %v4004 = vunpack.c.l.b16 %v752
    %v4005 = vunpack.c.h.b16 %v752
    %v4006 = vunpack.c.l.b16 %v753
    %v4007 = vunpack.c.h.b16 %v753
    %v4008 = vunpack.c.l.b16 %v754
    %v4009 = vunpack.c.h.b16 %v754
    %v4010 = vunpack.c.l.b16 %v755
    %v4011 = vunpack.c.h.b16 %v755
    %v4012 = vunpack.c.l.b16 %v756
    %v4013 = vunpack.c.h.b16 %v756
    %v4014 = vunpack.c.l.b16 %v757
    %v4015 = vunpack.c.h.b16 %v757
    %v4016 = vunpack.c.l.b16 %v758
    %v4017 = vunpack.c.h.b16 %v758
    %v4018 = vunpack.c.l.b16 %v759
    %v4019 = vunpack.c.h.b16 %v759
    %v4020 = vunpack.c.l.b16 %v760
    %v4021 = vunpack.c.h.b16 %v760
    %v4022 = vunpack.c.l.b16 %v761
    %v4023 = vunpack.c.h.b16 %v761
    %v4024 = vunpack.c.l.b16 %v762
    %v4025 = vunpack.c.h.b16 %v762
    %v4026 = vunpack.c.l.b16 %v763
    %v4027 = vunpack.c.h.b16 %v763
    %v4028 = vunpack.c.l.b16 %v764
    %v4029 = vunpack.c.h.b16 %v764
    %v4030 = vunpack.c.l.b16 %v765
    %v4031 = vunpack.c.h.b16 %v765
    %v4032 = vunpack.c.l.b16 %v766
    %v4033 = vunpack.c.h.b16 %v766
    %v4034 = vunpack.c.l.b16 %v767
    %v4035 = vunpack.c.h.b16 %v767
    %v4036 = vunpack.c.l.b16 %v768
    %v4037 = vunpack.c.h.b16 %v768
    %v4038 = vunpack.c.l.b16 %v769
    %v4039 = vunpack.c.h.b16 %v769
    %v4040 = vunpack.c.l.b16 %v770
    %v4041 = vunpack.c.h.b16 %v770
    %v4042 = vunpack.c.l.b16 %v771
    %v4043 = vunpack.c.h.b16 %v771
    %v4044 = vunpack.c.l.b16 %v772
    %v4045 = vunpack.c.h.b16 %v772
    %v4046 = vunpack.c.l.b16 %v773
    %v4047 = vunpack.c.h.b16 %v773
    %v4048 = vunpack.c.l.b16 %v774
    %v4049 = vunpack.c.h.b16 %v774
    %v4050 = vunpack.c.l.b16 %v775
    %v4051 = vunpack.c.h.b16 %v775
    %v4052 = vunpack.c.l.b16 %v776
    %v4053 = vunpack.c.h.b16 %v776
    %v4054 = vunpack.c.l.b16 %v777
    %v4055 = vunpack.c.h.b16 %v777
    %v4056 = vunpack.c.l.b16 %v778
    %v4057 = vunpack.c.h.b16 %v778
    %v4058 = vunpack.c.l.b16 %v779
    %v4059 = vunpack.c.h.b16 %v779
    %v4060 = vunpack.c.l.b16 %v780
    %v4061 = vunpack.c.h.b16 %v780
    %v4062 = vunpack.c.l.b16 %v781
    %v4063 = vunpack.c.h.b16 %v781
    %v4064 = vunpack.c.l.b16 %v782
    %v4065 = vunpack.c.h.b16 %v782
    %v4066 = vunpack.c.l.b16 %v783
    %v4067 = vunpack.c.h.b16 %v783
    %v4068 = vunpack.c.l.b16 %v784
    %v4069 = vunpack.c.h.b16 %v784
    %v4070 = vunpack.c.l.b16 %v785
    %v4071 = vunpack.c.h.b16 %v785
    %v4072 = vunpack.c.l.b16 %v786
    %v4073 = vunpack.c.h.b16 %v786
    %v4074 = vunpack.c.l.b16 %v787
    %v4075 = vunpack.c.h.b16 %v787
    %v4076 = vunpack.c.l.b16 %v788
    %v4077 = vunpack.c.h.b16 %v788
    %v4078 = vunpack.c.l.b16 %v789
    %v4079 = vunpack.c.h.b16 %v789
    %v4080 = vunpack.c.l.b16 %v790
    %v4081 = vunpack.c.h.b16 %v790
    %v4082 = vunpack.c.l.b16 %v791
    %v4083 = vunpack.c.h.b16 %v791
    %v4084 = vunpack.c.l.b16 %v792
    %v4085 = vunpack.c.h.b16 %v792
    %v4086 = vunpack.c.l.b16 %v793
    %v4087 = vunpack.c.h.b16 %v793
    %v4088 = vunpack.c.l.b16 %v794
    %v4089 = vunpack.c.h.b16 %v794
    %v4090 = vunpack.c.l.b16 %v795
    %v4091 = vunpack.c.h.b16 %v795
    %v4092 = vunpack.c.l.b16 %v796
    %v4093 = vunpack.c.h.b16 %v796
    %v4094 = vunpack.c.l.b16 %v797
    %v4095 = vunpack.c.h.b16 %v797
    %v4096 = vunpack.c.l.b16 %v798
    %v4097 = vunpack.c.h.b16 %v798
    %v4098 = vunpack.c.l.b16 %v799
    %v4099 = vunpack.c.h.b16 %v799
    %v4100 = vunpack.c.l.b16 %v800
    %v4101 = vunpack.c.h.b16 %v800
    %v4102 = vunpack.c.l.b16 %v801
    %v4103 = vunpack.c.h.b16 %v801
    %v4104 = vunpack.c.l.b16 %v802
    %v4105 = vunpack.c.h.b16 %v802
    %v4106 = vunpack.c.l.b16 %v803
    %v4107 = vunpack.c.h.b16 %v803
    %v4108 = vunpack.c.l.b16 %v804
    %v4109 = vunpack.c.h.b16 %v804
    %v4110 = vunpack.c.l.b16 %v805
    %v4111 = vunpack.c.h.b16 %v805
    %v4112 = vunpack.c.l.b16 %v806
    %v4113 = vunpack.c.h.b16 %v806
    %v4114 = vunpack.c.l.b16 %v807
    %v4115 = vunpack.c.h.b16 %v807
    %v4116 = vunpack.c.l.b16 %v808
    %v4117 = vunpack.c.h.b16 %v808
    %v4118 = vunpack.c.l.b16 %v809
    %v4119 = vunpack.c.h.b16 %v809
    %v4120 = vunpack.c.l.b16 %v810
    %v4121 = vunpack.c.h.b16 %v810
    %v4122 = vunpack.c.l.b16 %v811
    %v4123 = vunpack.c.h.b16 %v811
    %v4124 = vunpack.c.l.b16 %v812
    %v4125 = vunpack.c.h.b16 %v812
    %v4126 = vunpack.c.l.b16 %v813
    %v4127 = vunpack.c.h.b16 %v813
    %v4128 = vunpack.c.l.b16 %v814
    %v4129 = vunpack.c.h.b16 %v814
    %v4130 = vunpack.c.l.b16 %v815
    %v4131 = vunpack.c.h.b16 %v815
    %v4132 = vunpack.c.l.b16 %v816
    %v4133 = vunpack.c.h.b16 %v816
    %v4134 = vunpack.c.l.b16 %v817
    %v4135 = vunpack.c.h.b16 %v817
    %v4136 = vunpack.c.l.b16 %v818
    %v4137 = vunpack.c.h.b16 %v818
    %v4138 = vunpack.c.l.b16 %v819
    %v4139 = vunpack.c.h.b16 %v819
    %v4140 = vunpack.c.l.b16 %v820
    %v4141 = vunpack.c.h.b16 %v820
    %v4142 = vunpack.c.l.b16 %v821
    %v4143 = vunpack.c.h.b16 %v821
    %v4144 = vunpack.c.l.b16 %v822
    %v4145 = vunpack.c.h.b16 %v822
    %v4146 = vunpack.c.l.b16 %v823
    %v4147 = vunpack.c.h.b16 %v823
    %v4148 = vunpack.c.l.b16 %v824
    %v4149 = vunpack.c.h.b16 %v824
    %v4150 = vunpack.c.l.b16 %v825
    %v4151 = vunpack.c.h.b16 %v825
    %v4152 = vunpack.c.l.b16 %v826
    %v4153 = vunpack.c.h.b16 %v826
    %v4154 = vunpack.c.l.b16 %v827
    %v4155 = vunpack.c.h.b16 %v827
    %v4156 = vunpack.c.l.b16 %v828
    %v4157 = vunpack.c.h.b16 %v828
    %v4158 = vunpack.c.l.b16 %v829
    %v4159 = vunpack.c.h.b16 %v829
    %v4160 = vunpack.c.l.b16 %v830
    %v4161 = vunpack.c.h.b16 %v830
    %v4162 = vunpack.c.l.b16 %v831
    %v4163 = vunpack.c.h.b16 %v831
    %v4164 = vunpack.c.l.b16 %v832
    %v4165 = vunpack.c.h.b16 %v832
    %v4166 = vunpack.c.l.b16 %v833
    %v4167 = vunpack.c.h.b16 %v833
    %v4168 = vunpack.c.l.b16 %v834
    %v4169 = vunpack.c.h.b16 %v834
    %v4170 = vunpack.c.l.b16 %v835
    %v4171 = vunpack.c.h.b16 %v835
    %v4172 = vunpack.c.l.b16 %v836
    %v4173 = vunpack.c.h.b16 %v836
    %v4174 = vunpack.c.l.b16 %v837
    %v4175 = vunpack.c.h.b16 %v837
    %v4176 = vunpack.c.l.b16 %v838
    %v4177 = vunpack.c.h.b16 %v838
    %v4178 = vunpack.c.l.b16 %v839
    %v4179 = vunpack.c.h.b16 %v839
    %v4180 = vunpack.c.l.b16 %v840
    %v4181 = vunpack.c.h.b16 %v840
    %v4182 = vunpack.c.l.b16 %v841
    %v4183 = vunpack.c.h.b16 %v841
    %v4184 = vunpack.c.l.b16 %v842
    %v4185 = vunpack.c.h.b16 %v842
    %v4186 = vunpack.c.l.b16 %v843
    %v4187 = vunpack.c.h.b16 %v843
    %v4188 = vunpack.c.l.b16 %v844
    %v4189 = vunpack.c.h.b16 %v844
    %v4190 = vunpack.c.l.b16 %v845
    %v4191 = vunpack.c.h.b16 %v845
    %v4192 = vunpack.c.l.b16 %v846
    %v4193 = vunpack.c.h.b16 %v846
    %v4194 = vunpack.c.l.b16 %v847
    %v4195 = vunpack.c.h.b16 %v847
    %v4196 = vunpack.c.l.b16 %v848
    %v4197 = vunpack.c.h.b16 %v848
    %v4198 = vunpack.c.l.b16 %v849
    %v4199 = vunpack.c.h.b16 %v849
    %v4200 = vunpack.c.l.b16 %v850
    %v4201 = vunpack.c.h.b16 %v850
    %v4202 = vunpack.c.l.b16 %v851
    %v4203 = vunpack.c.h.b16 %v851
    %v4204 = vunpack.c.l.b16 %v852
    %v4205 = vunpack.c.h.b16 %v852
    %v4206 = vunpack.c.l.b16 %v853
    %v4207 = vunpack.c.h.b16 %v853
    %v4208 = vunpack.c.l.b16 %v854
    %v4209 = vunpack.c.h.b16 %v854
    %v4210 = vunpack.c.l.b16 %v855
    %v4211 = vunpack.c.h.b16 %v855
    %v4212 = vunpack.c.l.b16 %v856
    %v4213 = vunpack.c.h.b16 %v856
    %v4214 = vunpack.c.l.b16 %v857
    %v4215 = vunpack.c.h.b16 %v857
    %v4216 = vunpack.c.l.b16 %v858
    %v4217 = vunpack.c.h.b16 %v858
    %v4218 = vunpack.c.l.b16 %v859
    %v4219 = vunpack.c.h.b16 %v859
    %v4220 = vunpack.c.l.b16 %v860
    %v4221 = vunpack.c.h.b16 %v860
    %v4222 = vunpack.c.l.b16 %v861
    %v4223 = vunpack.c.h.b16 %v861
    %v4224 = vunpack.c.l.b16 %v862
    %v4225 = vunpack.c.h.b16 %v862
    %v4226 = vunpack.c.l.b16 %v863
    %v4227 = vunpack.c.h.b16 %v863
    %v4228 = vunpack.c.l.b16 %v864
    %v4229 = vunpack.c.h.b16 %v864
    %v4230 = vunpack.c.l.b16 %v865
    %v4231 = vunpack.c.h.b16 %v865
    %v4232 = vunpack.c.l.b16 %v866
    %v4233 = vunpack.c.h.b16 %v866
    %v4234 = vunpack.c.l.b16 %v867
    %v4235 = vunpack.c.h.b16 %v867
    %v4236 = vunpack.c.l.b16 %v868
    %v4237 = vunpack.c.h.b16 %v868
    %v4238 = vunpack.c.l.b16 %v869
    %v4239 = vunpack.c.h.b16 %v869
    %v4240 = vunpack.c.l.b16 %v870
    %v4241 = vunpack.c.h.b16 %v870
    %v4242 = vunpack.c.l.b16 %v871
    %v4243 = vunpack.c.h.b16 %v871
    %v4244 = vunpack.c.l.b16 %v872
    %v4245 = vunpack.c.h.b16 %v872
    %v4246 = vunpack.c.l.b16 %v873
    %v4247 = vunpack.c.h.b16 %v873
    %v4248 = vunpack.c.l.b16 %v874
    %v4249 = vunpack.c.h.b16 %v874
    %v4250 = vunpack.c.l.b16 %v875
    %v4251 = vunpack.c.h.b16 %v875
    %v4252 = vunpack.c.l.b16 %v876
    %v4253 = vunpack.c.h.b16 %v876
    %v4254 = vunpack.c.l.b16 %v877
    %v4255 = vunpack.c.h.b16 %v877
    %v4256 = vunpack.c.l.b16 %v878
    %v4257 = vunpack.c.h.b16 %v878
    %v4258 = vunpack.c.l.b16 %v879
    %v4259 = vunpack.c.h.b16 %v879
    %v4260 = vunpack.c.l.b16 %v880
    %v4261 = vunpack.c.h.b16 %v880
    %v4262 = vunpack.c.l.b16 %v881
    %v4263 = vunpack.c.h.b16 %v881
    %v4264 = vunpack.c.l.b16 %v882
    %v4265 = vunpack.c.h.b16 %v882
    %v4266 = vunpack.c.l.b16 %v883
    %v4267 = vunpack.c.h.b16 %v883
    %v4268 = vunpack.c.l.b16 %v884
    %v4269 = vunpack.c.h.b16 %v884
    %v4270 = vunpack.c.l.b16 %v885
    %v4271 = vunpack.c.h.b16 %v885
    %v4272 = vunpack.c.l.b16 %v886
    %v4273 = vunpack.c.h.b16 %v886
    %v4274 = vunpack.c.l.b16 %v887
    %v4275 = vunpack.c.h.b16 %v887
    %v4276 = vunpack.c.l.b16 %v888
    %v4277 = vunpack.c.h.b16 %v888
    %v4278 = vunpack.c.l.b16 %v889
    %v4279 = vunpack.c.h.b16 %v889
    %v4280 = vunpack.c.l.b16 %v890
    %v4281 = vunpack.c.h.b16 %v890
    %v4282 = vunpack.c.l.b16 %v891
    %v4283 = vunpack.c.h.b16 %v891
    %v4284 = vunpack.c.l.b16 %v892
    %v4285 = vunpack.c.h.b16 %v892
    %v4286 = vunpack.c.l.b16 %v893
    %v4287 = vunpack.c.h.b16 %v893
    %v4288 = vunpack.c.l.b16 %v894
    %v4289 = vunpack.c.h.b16 %v894
    %v4290 = vunpack.c.l.b16 %v895
    %v4291 = vunpack.c.h.b16 %v895
    %v4292 = vunpack.c.l.b16 %v896
    %v4293 = vunpack.c.h.b16 %v896
    %v4294 = vunpack.c.l.b16 %v897
    %v4295 = vunpack.c.h.b16 %v897
    %v4296 = vunpack.c.l.b16 %v898
    %v4297 = vunpack.c.h.b16 %v898
    %v4298 = vunpack.c.l.b16 %v899
    %v4299 = vunpack.c.h.b16 %v899
    %v4300 = vunpack.c.l.b16 %v900
    %v4301 = vunpack.c.h.b16 %v900
    %v4302 = vunpack.c.l.b16 %v901
    %v4303 = vunpack.c.h.b16 %v901
    %v4304 = vunpack.c.l.b16 %v902
    %v4305 = vunpack.c.h.b16 %v902
    %v4306 = vunpack.c.l.b16 %v903
    %v4307 = vunpack.c.h.b16 %v903
    %v4308 = vunpack.c.l.b16 %v904
    %v4309 = vunpack.c.h.b16 %v904
    %v4310 = vunpack.c.l.b16 %v905
    %v4311 = vunpack.c.h.b16 %v905
    %v4312 = vunpack.c.l.b16 %v906
    %v4313 = vunpack.c.h.b16 %v906
    %v4314 = vunpack.c.l.b16 %v907
    %v4315 = vunpack.c.h.b16 %v907
    %v4316 = vunpack.c.l.b16 %v908
    %v4317 = vunpack.c.h.b16 %v908
    %v4318 = vunpack.c.l.b16 %v909
    %v4319 = vunpack.c.h.b16 %v909
    %v4320 = vunpack.c.l.b16 %v910
    %v4321 = vunpack.c.h.b16 %v910
    %v4322 = vunpack.c.l.b16 %v911
    %v4323 = vunpack.c.h.b16 %v911
    %v4324 = vunpack.c.l.b16 %v912
    %v4325 = vunpack.c.h.b16 %v912
    %v4326 = vunpack.c.l.b16 %v913
    %v4327 = vunpack.c.h.b16 %v913
    %v4328 = vunpack.c.l.b16 %v914
    %v4329 = vunpack.c.h.b16 %v914
    %v4330 = vunpack.c.l.b16 %v915
    %v4331 = vunpack.c.h.b16 %v915
    %v4332 = vunpack.c.l.b16 %v916
    %v4333 = vunpack.c.h.b16 %v916
    %v4334 = vunpack.c.l.b16 %v917
    %v4335 = vunpack.c.h.b16 %v917
    %v4336 = vunpack.c.l.b16 %v918
    %v4337 = vunpack.c.h.b16 %v918
    %v4338 = vunpack.c.l.b16 %v919
    %v4339 = vunpack.c.h.b16 %v919
    %v4340 = vunpack.c.l.b16 %v920
    %v4341 = vunpack.c.h.b16 %v920
    %v4342 = vunpack.c.l.b16 %v921
    %v4343 = vunpack.c.h.b16 %v921
    %v4344 = vunpack.c.l.b16 %v922
    %v4345 = vunpack.c.h.b16 %v922
    %v4346 = vunpack.c.l.b16 %v923
    %v4347 = vunpack.c.h.b16 %v923
    %v4348 = vunpack.c.l.b16 %v924
    %v4349 = vunpack.c.h.b16 %v924
    %v4350 = vunpack.c.l.b16 %v925
    %v4351 = vunpack.c.h.b16 %v925
    %v4352 = vunpack.c.l.b16 %v926
    %v4353 = vunpack.c.h.b16 %v926
    %v4354 = vunpack.c.l.b16 %v927
    %v4355 = vunpack.c.h.b16 %v927
    %v4356 = vunpack.c.l.b16 %v928
    %v4357 = vunpack.c.h.b16 %v928
    %v4358 = vunpack.c.l.b16 %v929
    %v4359 = vunpack.c.h.b16 %v929
    %v4360 = vunpack.c.l.b16 %v930
    %v4361 = vunpack.c.h.b16 %v930
    %v4362 = vunpack.c.l.b16 %v931
    %v4363 = vunpack.c.h.b16 %v931
    %v4364 = vunpack.c.l.b16 %v932
    %v4365 = vunpack.c.h.b16 %v932
    %v4366 = vunpack.c.l.b16 %v933
    %v4367 = vunpack.c.h.b16 %v933
    %v4368 = vunpack.c.l.b16 %v934
    %v4369 = vunpack.c.h.b16 %v934
    %v4370 = vunpack.c.l.b16 %v935
    %v4371 = vunpack.c.h.b16 %v935
    %v4372 = vunpack.c.l.b16 %v936
    %v4373 = vunpack.c.h.b16 %v936
    %v4374 = vunpack.c.l.b16 %v937
    %v4375 = vunpack.c.h.b16 %v937
    %v4376 = vunpack.c.l.b16 %v938
    %v4377 = vunpack.c.h.b16 %v938
    %v4378 = vunpack.c.l.b16 %v939
    %v4379 = vunpack.c.h.b16 %v939
    %v4380 = vunpack.c.l.b16 %v940
    %v4381 = vunpack.c.h.b16 %v940
    %v4382 = vunpack.c.l.b16 %v941
    %v4383 = vunpack.c.h.b16 %v941
    %v4384 = vunpack.c.l.b16 %v942
    %v4385 = vunpack.c.h.b16 %v942
    %v4386 = vunpack.c.l.b16 %v943
    %v4387 = vunpack.c.h.b16 %v943
    %v4388 = vunpack.c.l.b16 %v944
    %v4389 = vunpack.c.h.b16 %v944
    %v4390 = vunpack.c.l.b16 %v945
    %v4391 = vunpack.c.h.b16 %v945
    %v4392 = vunpack.c.l.b16 %v946
    %v4393 = vunpack.c.h.b16 %v946
    %v4394 = vunpack.c.l.b16 %v947
    %v4395 = vunpack.c.h.b16 %v947
    %v4396 = vunpack.c.l.b16 %v948
    %v4397 = vunpack.c.h.b16 %v948
    %v4398 = vunpack.c.l.b16 %v949
    %v4399 = vunpack.c.h.b16 %v949
    %v4400 = vunpack.c.l.b16 %v950
    %v4401 = vunpack.c.h.b16 %v950
    %v4402 = vunpack.c.l.b16 %v951
    %v4403 = vunpack.c.h.b16 %v951
    %v4404 = vunpack.c.l.b16 %v952
    %v4405 = vunpack.c.h.b16 %v952
    %v4406 = vunpack.c.l.b16 %v953
    %v4407 = vunpack.c.h.b16 %v953
    %v4408 = vunpack.c.l.b16 %v954
    %v4409 = vunpack.c.h.b16 %v954
    %v4410 = vunpack.c.l.b16 %v955
    %v4411 = vunpack.c.h.b16 %v955
    %v4412 = vunpack.c.l.b16 %v956
    %v4413 = vunpack.c.h.b16 %v956
    %v4414 = vunpack.c.l.b16 %v957
    %v4415 = vunpack.c.h.b16 %v957
    %v4416 = vunpack.c.l.b16 %v958
    %v4417 = vunpack.c.h.b16 %v958
    %v4418 = vunpack.c.l.b16 %v959
    %v4419 = vunpack.c.h.b16 %v959
    %v4420 = vunpack.c.l.b16 %v960
    %v4421 = vunpack.c.h.b16 %v960
    %v4422 = vunpack.c.l.b16 %v961
    %v4423 = vunpack.c.h.b16 %v961
    %v4424 = vunpack.c.l.b16 %v962
    %v4425 = vunpack.c.h.b16 %v962
    %v4426 = vunpack.c.l.b16 %v963
    %v4427 = vunpack.c.h.b16 %v963
    %v4428 = vunpack.c.l.b16 %v964
    %v4429 = vunpack.c.h.b16 %v964
    %v4430 = vunpack.c.l.b16 %v965
    %v4431 = vunpack.c.h.b16 %v965
    %v4432 = vunpack.c.l.b16 %v966
    %v4433 = vunpack.c.h.b16 %v966
    %v4434 = vunpack.c.l.b16 %v967
    %v4435 = vunpack.c.h.b16 %v967
    %v4436 = vunpack.c.l.b16 %v968
    %v4437 = vunpack.c.h.b16 %v968
    %v4438 = vunpack.c.l.b16 %v969
    %v4439 = vunpack.c.h.b16 %v969
    %v4440 = vunpack.c.l.b16 %v970
    %v4441 = vunpack.c.h.b16 %v970
    %v4442 = vunpack.c.l.b16 %v971
    %v4443 = vunpack.c.h.b16 %v971
    %v4444 = vunpack.c.l.b16 %v972
    %v4445 = vunpack.c.h.b16 %v972
    %v4446 = vunpack.c.l.b16 %v973
    %v4447 = vunpack.c.h.b16 %v973
    %v4448 = vunpack.c.l.b16 %v974
    %v4449 = vunpack.c.h.b16 %v974
    %v4450 = vunpack.c.l.b16 %v975
    %v4451 = vunpack.c.h.b16 %v975
    %v4452 = vunpack.c.l.b16 %v976
    %v4453 = vunpack.c.h.b16 %v976
    %v4454 = vunpack.c.l.b16 %v977
    %v4455 = vunpack.c.h.b16 %v977
    %v4456 = vunpack.c.l.b16 %v978
    %v4457 = vunpack.c.h.b16 %v978
    %v4458 = vunpack.c.l.b16 %v979
    %v4459 = vunpack.c.h.b16 %v979
    %v4460 = vunpack.c.l.b16 %v980
    %v4461 = vunpack.c.h.b16 %v980
    %v4462 = vunpack.c.l.b16 %v981
    %v4463 = vunpack.c.h.b16 %v981
    %v4464 = vunpack.c.l.b16 %v982
    %v4465 = vunpack.c.h.b16 %v982
    %v4466 = vunpack.c.l.b16 %v983
    %v4467 = vunpack.c.h.b16 %v983
    %v4468 = vunpack.c.l.b16 %v984
    %v4469 = vunpack.c.h.b16 %v984
    %v4470 = vunpack.c.l.b16 %v985
    %v4471 = vunpack.c.h.b16 %v985
    %v4472 = vunpack.c.l.b16 %v986
    %v4473 = vunpack.c.h.b16 %v986
    %v4474 = vunpack.c.l.b16 %v987
    %v4475 = vunpack.c.h.b16 %v987
    %v4476 = vunpack.c.l.b16 %v988
    %v4477 = vunpack.c.h.b16 %v988
    %v4478 = vunpack.c.l.b16 %v989
    %v4479 = vunpack.c.h.b16 %v989
    %v4480 = vunpack.c.l.b16 %v990
    %v4481 = vunpack.c.h.b16 %v990
    %v4482 = vunpack.c.l.b16 %v991
    %v4483 = vunpack.c.h.b16 %v991
    %v4484 = vunpack.c.l.b16 %v992
    %v4485 = vunpack.c.h.b16 %v992
    %v4486 = vunpack.c.l.b16 %v993
    %v4487 = vunpack.c.h.b16 %v993
    %v4488 = vunpack.c.l.b16 %v994
    %v4489 = vunpack.c.h.b16 %v994
    %v4490 = vunpack.c.l.b16 %v995
    %v4491 = vunpack.c.h.b16 %v995
    %v4492 = vunpack.c.l.b16 %v996
    %v4493 = vunpack.c.h.b16 %v996
    %v4494 = vunpack.c.l.b16 %v997
    %v4495 = vunpack.c.h.b16 %v997
    %v4496 = vunpack.c.l.b16 %v998
    %v4497 = vunpack.c.h.b16 %v998
    %v4498 = vunpack.c.l.b16 %v999
    %v4499 = vunpack.c.h.b16 %v999
    %v4500 = vunpack.c.l.b16 %v1000
    %v4501 = vunpack.c.h.b16 %v1000
    %v4502 = vunpack.c.l.b16 %v1001
    %v4503 = vunpack.c.h.b16 %v1001
    %v4504 = vunpack.c.l.b16 %v1002
    %v4505 = vunpack.c.h.b16 %v1002
    %v4506 = vunpack.c.l.b16 %v1003
    %v4507 = vunpack.c.h.b16 %v1003
    %v4508 = vunpack.c.l.b16 %v1004
    %v4509 = vunpack.c.h.b16 %v1004
    %v4510 = vunpack.c.l.b16 %v1005
    %v4511 = vunpack.c.h.b16 %v1005
    %v4512 = vunpack.c.l.b16 %v1006
    %v4513 = vunpack.c.h.b16 %v1006
    %v4514 = vunpack.c.l.b16 %v1007
    %v4515 = vunpack.c.h.b16 %v1007
    %v4516 = vunpack.c.l.b16 %v1008
    %v4517 = vunpack.c.h.b16 %v1008
    %v4518 = vunpack.c.l.b16 %v1009
    %v4519 = vunpack.c.h.b16 %v1009
    %v4520 = vunpack.c.l.b16 %v1010
    %v4521 = vunpack.c.h.b16 %v1010
    %v4522 = vunpack.c.l.b16 %v1011
    %v4523 = vunpack.c.h.b16 %v1011
    %v4524 = vunpack.c.l.b16 %v1012
    %v4525 = vunpack.c.h.b16 %v1012
    %v4526 = vunpack.c.l.b16 %v1013
    %v4527 = vunpack.c.h.b16 %v1013
    %v4528 = vunpack.c.l.b16 %v1014
    %v4529 = vunpack.c.h.b16 %v1014
    %v4530 = vunpack.c.l.b16 %v1015
    %v4531 = vunpack.c.h.b16 %v1015
    %v4532 = vunpack.c.l.b16 %v1016
    %v4533 = vunpack.c.h.b16 %v1016
    %v4534 = vunpack.c.l.b16 %v1017
    %v4535 = vunpack.c.h.b16 %v1017
    %v4536 = vunpack.c.l.b16 %v1018
    %v4537 = vunpack.c.h.b16 %v1018
    %v4538 = vunpack.c.l.b16 %v1019
    %v4539 = vunpack.c.h.b16 %v1019
    %v4540 = vunpack.c.l.b16 %v1020
    %v4541 = vunpack.c.h.b16 %v1020
    %v4542 = vunpack.c.l.b16 %v1021
    %v4543 = vunpack.c.h.b16 %v1021
    %v4544 = vunpack.c.l.b16 %v1022
    %v4545 = vunpack.c.h.b16 %v1022
    %v4546 = vunpack.c.l.b16 %v1023
    %v4547 = vunpack.c.h.b16 %v1023
    %v4548 = vunpack.c.l.b16 %v1024
    %v4549 = vunpack.c.h.b16 %v1024
    %v4550 = vunpack.c.l.b16 %v1025
    %v4551 = vunpack.c.h.b16 %v1025
    %v4552 = vunpack.c.l.b16 %v1026
    %v4553 = vunpack.c.h.b16 %v1026
    %v4554 = vunpack.c.l.b16 %v1027
    %v4555 = vunpack.c.h.b16 %v1027
    %v4556 = vunpack.c.l.b16 %v1028
    %v4557 = vunpack.c.h.b16 %v1028
    %v4558 = vunpack.c.l.b16 %v1029
    %v4559 = vunpack.c.h.b16 %v1029
    %v4560 = vunpack.c.l.b16 %v1030
    %v4561 = vunpack.c.h.b16 %v1030
    %v4562 = vunpack.c.l.b16 %v1031
    %v4563 = vunpack.c.h.b16 %v1031
    %v4564 = vunpack.c.l.b16 %v1032
    %v4565 = vunpack.c.h.b16 %v1032
    %v4566 = vunpack.c.l.b16 %v1033
    %v4567 = vunpack.c.h.b16 %v1033
    %v4568 = vunpack.c.l.b16 %v1034
    %v4569 = vunpack.c.h.b16 %v1034
    %v4570 = vunpack.c.l.b16 %v1035
    %v4571 = vunpack.c.h.b16 %v1035
    %v4572 = vunpack.c.l.b16 %v1036
    %v4573 = vunpack.c.h.b16 %v1036
    %v4574 = vunpack.c.l.b16 %v1037
    %v4575 = vunpack.c.h.b16 %v1037
    %v4576 = vunpack.c.l.b16 %v1038
    %v4577 = vunpack.c.h.b16 %v1038
    %v4578 = vunpack.c.l.b16 %v1039
    %v4579 = vunpack.c.h.b16 %v1039
    %v4580 = vunpack.c.l.b16 %v1040
    %v4581 = vunpack.c.h.b16 %v1040
    %v4582 = vunpack.c.l.b16 %v1041
    %v4583 = vunpack.c.h.b16 %v1041
    %v4584 = vunpack.c.l.b16 %v1042
    %v4585 = vunpack.c.h.b16 %v1042
    %v4586 = vunpack.c.l.b16 %v1043
    %v4587 = vunpack.c.h.b16 %v1043
    %v4588 = vunpack.c.l.b16 %v1044
    %v4589 = vunpack.c.h.b16 %v1044
    %v4590 = vunpack.c.l.b16 %v1045
    %v4591 = vunpack.c.h.b16 %v1045
    %v4592 = vunpack.c.l.b16 %v1046
    %v4593 = vunpack.c.h.b16 %v1046
    %v4594 = vunpack.c.l.b16 %v1047
    %v4595 = vunpack.c.h.b16 %v1047
    %v4596 = vunpack.c.l.b16 %v1048
    %v4597 = vunpack.c.h.b16 %v1048
    %v4598 = vunpack.c.l.b16 %v1049
    %v4599 = vunpack.c.h.b16 %v1049
    %v4600 = vunpack.c.l.b16 %v1050
    %v4601 = vunpack.c.h.b16 %v1050
    %v4602 = vunpack.c.l.b16 %v1051
    %v4603 = vunpack.c.h.b16 %v1051
    %v4604 = vunpack.c.l.b16 %v1052
    %v4605 = vunpack.c.h.b16 %v1052
    %v4606 = vunpack.c.l.b16 %v1053
    %v4607 = vunpack.c.h.b16 %v1053
    %v4608 = vunpack.c.l.b16 %v1054
    %v4609 = vunpack.c.h.b16 %v1054
    %v4610 = vunpack.c.l.b16 %v1055
    %v4611 = vunpack.c.h.b16 %v1055
    %v4612 = vunpack.c.l.b16 %v1056
    %v4613 = vunpack.c.h.b16 %v1056
    %v4614 = vunpack.c.l.b16 %v1057
    %v4615 = vunpack.c.h.b16 %v1057
    %v4616 = vunpack.c.l.b16 %v1058
    %v4617 = vunpack.c.h.b16 %v1058
    %v4618 = vunpack.c.l.b16 %v1059
    %v4619 = vunpack.c.h.b16 %v1059
    %v4620 = vunpack.c.l.b16 %v1060
    %v4621 = vunpack.c.h.b16 %v1060
    %v4622 = vunpack.c.l.b16 %v1061
    %v4623 = vunpack.c.h.b16 %v1061
    %v4624 = vunpack.c.l.b16 %v1062
    %v4625 = vunpack.c.h.b16 %v1062
    %v4626 = vunpack.c.l.b16 %v1063
    %v4627 = vunpack.c.h.b16 %v1063
    %v4628 = vunpack.c.l.b16 %v1064
    %v4629 = vunpack.c.h.b16 %v1064
    %v4630 = vunpack.c.l.b16 %v1065
    %v4631 = vunpack.c.h.b16 %v1065
    %v4632 = vunpack.c.l.b16 %v1066
    %v4633 = vunpack.c.h.b16 %v1066
    %v4634 = vunpack.c.l.b16 %v1067
    %v4635 = vunpack.c.h.b16 %v1067
    %v4636 = vunpack.c.l.b16 %v1068
    %v4637 = vunpack.c.h.b16 %v1068
    %v4638 = vunpack.c.l.b16 %v1069
    %v4639 = vunpack.c.h.b16 %v1069
    %v4640 = vunpack.c.l.b16 %v1070
    %v4641 = vunpack.c.h.b16 %v1070
    %v4642 = vunpack.c.l.b16 %v1071
    %v4643 = vunpack.c.h.b16 %v1071
    %v4644 = vunpack.c.l.b16 %v1072
    %v4645 = vunpack.c.h.b16 %v1072
    %v4646 = vunpack.c.l.b16 %v1073
    %v4647 = vunpack.c.h.b16 %v1073
    %v4648 = vunpack.c.l.b16 %v1074
    %v4649 = vunpack.c.h.b16 %v1074
    %v4650 = vunpack.c.l.b16 %v1075
    %v4651 = vunpack.c.h.b16 %v1075
    %v4652 = vunpack.c.l.b16 %v1076
    %v4653 = vunpack.c.h.b16 %v1076
    %v4654 = vunpack.c.l.b16 %v1077
    %v4655 = vunpack.c.h.b16 %v1077
    %v4656 = vunpack.c.l.b16 %v1078
    %v4657 = vunpack.c.h.b16 %v1078
    %v4658 = vunpack.c.l.b16 %v1079
    %v4659 = vunpack.c.h.b16 %v1079
    %v4660 = vunpack.c.l.b16 %v1080
    %v4661 = vunpack.c.h.b16 %v1080
    %v4662 = vunpack.c.l.b16 %v1081
    %v4663 = vunpack.c.h.b16 %v1081
    %v4664 = vunpack.c.l.b16 %v1082
    %v4665 = vunpack.c.h.b16 %v1082
    %v4666 = vunpack.c.l.b16 %v1083
    %v4667 = vunpack.c.h.b16 %v1083
    %v4668 = vunpack.c.l.b16 %v1084
    %v4669 = vunpack.c.h.b16 %v1084
    %v4670 = vunpack.c.l.b16 %v1085
    %v4671 = vunpack.c.h.b16 %v1085
    %v4672 = vunpack.c.l.b16 %v1086
    %v4673 = vunpack.c.h.b16 %v1086
    %v4674 = vunpack.c.l.b16 %v1087
    %v4675 = vunpack.c.h.b16 %v1087
    %v4676 = vunpack.c.l.b16 %v1088
    %v4677 = vunpack.c.h.b16 %v1088
    %v4678 = vunpack.c.l.b16 %v1089
    %v4679 = vunpack.c.h.b16 %v1089
    %v4680 = vunpack.c.l.b16 %v1090
    %v4681 = vunpack.c.h.b16 %v1090
    %v4682 = vunpack.c.l.b16 %v1091
    %v4683 = vunpack.c.h.b16 %v1091
    %v4684 = vunpack.c.l.b16 %v1092
    %v4685 = vunpack.c.h.b16 %v1092
    %v4686 = vunpack.c.l.b16 %v1093
    %v4687 = vunpack.c.h.b16 %v1093
    %v4688 = vunpack.c.l.b16 %v1094
    %v4689 = vunpack.c.h.b16 %v1094
    %v4690 = vunpack.c.l.b16 %v1095
    %v4691 = vunpack.c.h.b16 %v1095
    %v4692 = vunpack.c.l.b16 %v1096
    %v4693 = vunpack.c.h.b16 %v1096
    %v4694 = vunpack.c.l.b16 %v1097
    %v4695 = vunpack.c.h.b16 %v1097
    %v4696 = vunpack.c.l.b16 %v1098
    %v4697 = vunpack.c.h.b16 %v1098
    %v4698 = vunpack.c.l.b16 %v1099
    %v4699 = vunpack.c.h.b16 %v1099
    %v4700 = vunpack.c.l.b16 %v1100
    %v4701 = vunpack.c.h.b16 %v1100
    %v4702 = vunpack.c.l.b16 %v1101
    %v4703 = vunpack.c.h.b16 %v1101
    %v4704 = vunpack.c.l.b16 %v1102
    %v4705 = vunpack.c.h.b16 %v1102
    %v4706 = vunpack.c.l.b16 %v1103
    %v4707 = vunpack.c.h.b16 %v1103
    %v4708 = vunpack.c.l.b16 %v1104
    %v4709 = vunpack.c.h.b16 %v1104
    %v4710 = vunpack.c.l.b16 %v1105
    %v4711 = vunpack.c.h.b16 %v1105
    %v4712 = vunpack.c.l.b16 %v1106
    %v4713 = vunpack.c.h.b16 %v1106
    %v4714 = vunpack.c.l.b16 %v1107
    %v4715 = vunpack.c.h.b16 %v1107
    %v4716 = vunpack.c.l.b16 %v1108
    %v4717 = vunpack.c.h.b16 %v1108
    %v4718 = vunpack.c.l.b16 %v1109
    %v4719 = vunpack.c.h.b16 %v1109
    %v4720 = vunpack.c.l.b16 %v1110
    %v4721 = vunpack.c.h.b16 %v1110
    %v4722 = vunpack.c.l.b16 %v1111
    %v4723 = vunpack.c.h.b16 %v1111
    %v4724 = vunpack.c.l.b16 %v1112
    %v4725 = vunpack.c.h.b16 %v1112
    %v4726 = vunpack.c.l.b16 %v1113
    %v4727 = vunpack.c.h.b16 %v1113
    %v4728 = vunpack.c.l.b16 %v1114
    %v4729 = vunpack.c.h.b16 %v1114
    %v4730 = vunpack.c.l.b16 %v1115
    %v4731 = vunpack.c.h.b16 %v1115
    %v4732 = vunpack.c.l.b16 %v1116
    %v4733 = vunpack.c.h.b16 %v1116
    %v4734 = vunpack.c.l.b16 %v1117
    %v4735 = vunpack.c.h.b16 %v1117
    %v4736 = vunpack.c.l.b16 %v1118
    %v4737 = vunpack.c.h.b16 %v1118
    %v4738 = vunpack.c.l.b16 %v1119
    %v4739 = vunpack.c.h.b16 %v1119
    %v4740 = vunpack.c.l.b16 %v1120
    %v4741 = vunpack.c.h.b16 %v1120
    %v4742 = vunpack.c.l.b16 %v1121
    %v4743 = vunpack.c.h.b16 %v1121
    %v4744 = vunpack.c.l.b16 %v1122
    %v4745 = vunpack.c.h.b16 %v1122
    %v4746 = vunpack.c.l.b16 %v1123
    %v4747 = vunpack.c.h.b16 %v1123
    %v4748 = vunpack.c.l.b16 %v1124
    %v4749 = vunpack.c.h.b16 %v1124
    %v4750 = vunpack.c.l.b16 %v1125
    %v4751 = vunpack.c.h.b16 %v1125
    %v4752 = vunpack.c.l.b16 %v1126
    %v4753 = vunpack.c.h.b16 %v1126
    %v4754 = vunpack.c.l.b16 %v1127
    %v4755 = vunpack.c.h.b16 %v1127
    %v4756 = vunpack.c.l.b16 %v1128
    %v4757 = vunpack.c.h.b16 %v1128
    %v4758 = vunpack.c.l.b16 %v1129
    %v4759 = vunpack.c.h.b16 %v1129
    %v4760 = vunpack.c.l.b16 %v1130
    %v4761 = vunpack.c.h.b16 %v1130
    %v4762 = vunpack.c.l.b16 %v1131
    %v4763 = vunpack.c.h.b16 %v1131
    %v4764 = vunpack.c.l.b16 %v1132
    %v4765 = vunpack.c.h.b16 %v1132
    %v4766 = vunpack.c.l.b16 %v1133
    %v4767 = vunpack.c.h.b16 %v1133
    %v4768 = vunpack.c.l.b16 %v1134
    %v4769 = vunpack.c.h.b16 %v1134
    %v4770 = vunpack.c.l.b16 %v1135
    %v4771 = vunpack.c.h.b16 %v1135
    %v4772 = vunpack.c.l.b16 %v1136
    %v4773 = vunpack.c.h.b16 %v1136
    %v4774 = vunpack.c.l.b16 %v1137
    %v4775 = vunpack.c.h.b16 %v1137
    %v4776 = vunpack.c.l.b16 %v1138
    %v4777 = vunpack.c.h.b16 %v1138
    %v4778 = vunpack.c.l.b16 %v1139
    %v4779 = vunpack.c.h.b16 %v1139
    %v4780 = vunpack.c.l.b16 %v1140
    %v4781 = vunpack.c.h.b16 %v1140
    %v4782 = vunpack.c.l.b16 %v1141
    %v4783 = vunpack.c.h.b16 %v1141
    %v4784 = vunpack.c.l.b16 %v1142
    %v4785 = vunpack.c.h.b16 %v1142
    %v4786 = vunpack.c.l.b16 %v1143
    %v4787 = vunpack.c.h.b16 %v1143
    %v4788 = vunpack.c.l.b16 %v1144
    %v4789 = vunpack.c.h.b16 %v1144
    %v4790 = vunpack.c.l.b16 %v1145
    %v4791 = vunpack.c.h.b16 %v1145
    %v4792 = vunpack.c.l.b16 %v1146
    %v4793 = vunpack.c.h.b16 %v1146
    %v4794 = vunpack.c.l.b16 %v1147
    %v4795 = vunpack.c.h.b16 %v1147
    %v4796 = vunpack.c.l.b16 %v1148
    %v4797 = vunpack.c.h.b16 %v1148
    %v4798 = vunpack.c.l.b16 %v1149
    %v4799 = vunpack.c.h.b16 %v1149
    %v4800 = vunpack.c.l.b16 %v1150
    %v4801 = vunpack.c.h.b16 %v1150
    %v4802 = vunpack.c.l.b16 %v1151
    %v4803 = vunpack.c.h.b16 %v1151
    %v4804 = vunpack.c.l.b16 %v1152
    %v4805 = vunpack.c.h.b16 %v1152
    %v4806 = vunpack.c.l.b16 %v1153
    %v4807 = vunpack.c.h.b16 %v1153
    %v4808 = vunpack.c.l.b16 %v1154
    %v4809 = vunpack.c.h.b16 %v1154
    %v4810 = vunpack.c.l.b16 %v1155
    %v4811 = vunpack.c.h.b16 %v1155
    %v4812 = vunpack.c.l.b16 %v1156
    %v4813 = vunpack.c.h.b16 %v1156
    %v4814 = vunpack.c.l.b16 %v1157
    %v4815 = vunpack.c.h.b16 %v1157
    %v4816 = vunpack.c.l.b16 %v1158
    %v4817 = vunpack.c.h.b16 %v1158
    %v4818 = vunpack.c.l.b16 %v1159
    %v4819 = vunpack.c.h.b16 %v1159
    %v4820 = vunpack.c.l.b16 %v1160
    %v4821 = vunpack.c.h.b16 %v1160
    %v4822 = vunpack.c.l.b16 %v1161
    %v4823 = vunpack.c.h.b16 %v1161
    %v4824 = vunpack.c.l.b16 %v1162
    %v4825 = vunpack.c.h.b16 %v1162
    %v4826 = vunpack.c.l.b16 %v1163
    %v4827 = vunpack.c.h.b16 %v1163
    %v4828 = vunpack.c.l.b16 %v1164
    %v4829 = vunpack.c.h.b16 %v1164
    %v4830 = vunpack.c.l.b16 %v1165
    %v4831 = vunpack.c.h.b16 %v1165
    %v4832 = vunpack.c.l.b16 %v1166
    %v4833 = vunpack.c.h.b16 %v1166
    %v4834 = vunpack.c.l.b16 %v1167
    %v4835 = vunpack.c.h.b16 %v1167
    %v4836 = vunpack.c.l.b16 %v1168
    %v4837 = vunpack.c.h.b16 %v1168
    %v4838 = vunpack.c.l.b16 %v1169
    %v4839 = vunpack.c.h.b16 %v1169
    %v4840 = vunpack.c.l.b16 %v1170
    %v4841 = vunpack.c.h.b16 %v1170
    %v4842 = vunpack.c.l.b16 %v1171
    %v4843 = vunpack.c.h.b16 %v1171
    %v4844 = vunpack.c.l.b16 %v1172
    %v4845 = vunpack.c.h.b16 %v1172
    %v4846 = vunpack.c.l.b16 %v1173
    %v4847 = vunpack.c.h.b16 %v1173
    %v4848 = vunpack.c.l.b16 %v1174
    %v4849 = vunpack.c.h.b16 %v1174
    %v4850 = vunpack.c.l.b16 %v1175
    %v4851 = vunpack.c.h.b16 %v1175
    %v4852 = vunpack.c.l.b16 %v1176
    %v4853 = vunpack.c.h.b16 %v1176
    %v4854 = vunpack.c.l.b16 %v1177
    %v4855 = vunpack.c.h.b16 %v1177
    %v4856 = vunpack.c.l.b16 %v1178
    %v4857 = vunpack.c.h.b16 %v1178
    %v4858 = vunpack.c.l.b16 %v1179
    %v4859 = vunpack.c.h.b16 %v1179
    %v4860 = vunpack.c.l.b16 %v1180
    %v4861 = vunpack.c.h.b16 %v1180
    %v4862 = vunpack.c.l.b16 %v1181
    %v4863 = vunpack.c.h.b16 %v1181
    %v4864 = vunpack.c.l.b16 %v1182
    %v4865 = vunpack.c.h.b16 %v1182
    %v4866 = vunpack.c.l.b16 %v1183
    %v4867 = vunpack.c.h.b16 %v1183
    %v4868 = vunpack.c.l.b16 %v1184
    %v4869 = vunpack.c.h.b16 %v1184
    %v4870 = vunpack.c.l.b16 %v1185
    %v4871 = vunpack.c.h.b16 %v1185
    %v4872 = vunpack.c.l.b16 %v1186
    %v4873 = vunpack.c.h.b16 %v1186
    %v4874 = vunpack.c.l.b16 %v1187
    %v4875 = vunpack.c.h.b16 %v1187
    %v4876 = vunpack.c.l.b16 %v1188
    %v4877 = vunpack.c.h.b16 %v1188
    %v4878 = vunpack.c.l.b16 %v1189
    %v4879 = vunpack.c.h.b16 %v1189
    %v4880 = vunpack.c.l.b16 %v1190
    %v4881 = vunpack.c.h.b16 %v1190
    %v4882 = vunpack.c.l.b16 %v1191
    %v4883 = vunpack.c.h.b16 %v1191
    %v4884 = vunpack.c.l.b16 %v1192
    %v4885 = vunpack.c.h.b16 %v1192
    %v4886 = vunpack.c.l.b16 %v1193
    %v4887 = vunpack.c.h.b16 %v1193
    %v4888 = vunpack.c.l.b16 %v1194
    %v4889 = vunpack.c.h.b16 %v1194
    %v4890 = vunpack.c.l.b16 %v1195
    %v4891 = vunpack.c.h.b16 %v1195
    %v4892 = vunpack.c.l.b16 %v1196
    %v4893 = vunpack.c.h.b16 %v1196
    %v4894 = vunpack.c.l.b16 %v1197
    %v4895 = vunpack.c.h.b16 %v1197
    %v4896 = vunpack.c.l.b16 %v1198
    %v4897 = vunpack.c.h.b16 %v1198
    %v4898 = vunpack.c.l.b16 %v1199
    %v4899 = vunpack.c.h.b16 %v1199
    %v4900 = vunpack.c.l.b16 %v1200
    %v4901 = vunpack.c.h.b16 %v1200
    %v4902 = vunpack.c.l.b16 %v1201
    %v4903 = vunpack.c.h.b16 %v1201
    %v4904 = vunpack.c.l.b16 %v1202
    %v4905 = vunpack.c.h.b16 %v1202
    %v4906 = vunpack.c.l.b16 %v1203
    %v4907 = vunpack.c.h.b16 %v1203
    %v4908 = vunpack.c.l.b16 %v1204
    %v4909 = vunpack.c.h.b16 %v1204
    %v4910 = vunpack.c.l.b16 %v1205
    %v4911 = vunpack.c.h.b16 %v1205
    %v4912 = vunpack.c.l.b16 %v1206
    %v4913 = vunpack.c.h.b16 %v1206
    %v4914 = vunpack.c.l.b16 %v1207
    %v4915 = vunpack.c.h.b16 %v1207
    %v4916 = vunpack.c.l.b16 %v1208
    %v4917 = vunpack.c.h.b16 %v1208
    %v4918 = vunpack.c.l.b16 %v1209
    %v4919 = vunpack.c.h.b16 %v1209
    %v4920 = vunpack.c.l.b16 %v1210
    %v4921 = vunpack.c.h.b16 %v1210
    %v4922 = vunpack.c.l.b16 %v1211
    %v4923 = vunpack.c.h.b16 %v1211
    %v4924 = vunpack.c.l.b16 %v1212
    %v4925 = vunpack.c.h.b16 %v1212
    %v4926 = vunpack.c.l.b16 %v1213
    %v4927 = vunpack.c.h.b16 %v1213
    %v4928 = vunpack.c.l.b16 %v1214
    %v4929 = vunpack.c.h.b16 %v1214
    %v4930 = vunpack.c.l.b16 %v1215
    %v4931 = vunpack.c.h.b16 %v1215
    %v4932 = vunpack.c.l.b16 %v1216
    %v4933 = vunpack.c.h.b16 %v1216
    %v4934 = vunpack.c.l.b16 %v1217
    %v4935 = vunpack.c.h.b16 %v1217
    %v4936 = vunpack.c.l.b16 %v1218
    %v4937 = vunpack.c.h.b16 %v1218
    %v4938 = vunpack.c.l.b16 %v1219
    %v4939 = vunpack.c.h.b16 %v1219
    %v4940 = vunpack.c.l.b16 %v1220
    %v4941 = vunpack.c.h.b16 %v1220
    %v4942 = vunpack.c.l.b16 %v1221
    %v4943 = vunpack.c.h.b16 %v1221
    %v4944 = vunpack.c.l.b16 %v1222
    %v4945 = vunpack.c.h.b16 %v1222
    %v4946 = vunpack.c.l.b16 %v1223
    %v4947 = vunpack.c.h.b16 %v1223
    %v4948 = vunpack.c.l.b16 %v1224
    %v4949 = vunpack.c.h.b16 %v1224
    %v4950 = vunpack.c.l.b16 %v1225
    %v4951 = vunpack.c.h.b16 %v1225
    %v4952 = vunpack.c.l.b16 %v1226
    %v4953 = vunpack.c.h.b16 %v1226
    %v4954 = vunpack.c.l.b16 %v1227
    %v4955 = vunpack.c.h.b16 %v1227
    %v4956 = vunpack.c.l.b16 %v1228
    %v4957 = vunpack.c.h.b16 %v1228
    %v4958 = vunpack.c.l.b16 %v1229
    %v4959 = vunpack.c.h.b16 %v1229
    %v4960 = vunpack.c.l.b16 %v1230
    %v4961 = vunpack.c.h.b16 %v1230
    %v4962 = vunpack.c.l.b16 %v1231
    %v4963 = vunpack.c.h.b16 %v1231
    %v4964 = vunpack.c.l.b16 %v1232
    %v4965 = vunpack.c.h.b16 %v1232
    %v4966 = vunpack.c.l.b16 %v1233
    %v4967 = vunpack.c.h.b16 %v1233
    %v4968 = vunpack.c.l.b16 %v1234
    %v4969 = vunpack.c.h.b16 %v1234
    %v4970 = vunpack.c.l.b16 %v1235
    %v4971 = vunpack.c.h.b16 %v1235
    %v4972 = vunpack.c.l.b16 %v1236
    %v4973 = vunpack.c.h.b16 %v1236
    %v4974 = vunpack.c.l.b16 %v1237
    %v4975 = vunpack.c.h.b16 %v1237
    %v4976 = vunpack.c.l.b16 %v1238
    %v4977 = vunpack.c.h.b16 %v1238
    %v4978 = vunpack.c.l.b16 %v1239
    %v4979 = vunpack.c.h.b16 %v1239
    %v4980 = vunpack.c.l.b16 %v1240
    %v4981 = vunpack.c.h.b16 %v1240
    %v4982 = vunpack.c.l.b16 %v1241
    %v4983 = vunpack.c.h.b16 %v1241
    %v4984 = vunpack.c.l.b16 %v1242
    %v4985 = vunpack.c.h.b16 %v1242
    %v4986 = vunpack.c.l.b16 %v1243
    %v4987 = vunpack.c.h.b16 %v1243
    %v4988 = vunpack.c.l.b16 %v1244
    %v4989 = vunpack.c.h.b16 %v1244
    %v4990 = vunpack.c.l.b16 %v1245
    %v4991 = vunpack.c.h.b16 %v1245
    %v4992 = vunpack.c.l.b16 %v1246
    %v4993 = vunpack.c.h.b16 %v1246
    %v4994 = vunpack.c.l.b16 %v1247
    %v4995 = vunpack.c.h.b16 %v1247
    %v4996 = vunpack.c.l.b16 %v1248
    %v4997 = vunpack.c.h.b16 %v1248
    %v4998 = vunpack.c.l.b16 %v1249
    %v4999 = vunpack.c.h.b16 %v1249
    %v5000 = vunpack.c.l.b16 %v1250
    %v5001 = vunpack.c.h.b16 %v1250
    %v5002 = vunpack.c.l.b16 %v1251
    %v5003 = vunpack.c.h.b16 %v1251
    %v5004 = vunpack.c.l.b16 %v1252
    %v5005 = vunpack.c.h.b16 %v1252
    %v5006 = vunpack.c.l.b16 %v1253
    %v5007 = vunpack.c.h.b16 %v1253
    %v5008 = vunpack.c.l.b16 %v1254
    %v5009 = vunpack.c.h.b16 %v1254
    %v5010 = vunpack.c.l.b16 %v1255
    %v5011 = vunpack.c.h.b16 %v1255
    %v5012 = vunpack.c.l.b16 %v1256
    %v5013 = vunpack.c.h.b16 %v1256
    %v5014 = vunpack.c.l.b16 %v1257
    %v5015 = vunpack.c.h.b16 %v1257
    %v5016 = vunpack.c.l.b16 %v1258
    %v5017 = vunpack.c.h.b16 %v1258
    %v5018 = vunpack.c.l.b16 %v1259
    %v5019 = vunpack.c.h.b16 %v1259
    %v5020 = vunpack.c.l.b16 %v1260
    %v5021 = vunpack.c.h.b16 %v1260
    %v5022 = vunpack.c.l.b16 %v1261
    %v5023 = vunpack.c.h.b16 %v1261
    %v5024 = vunpack.c.l.b16 %v1262
    %v5025 = vunpack.c.h.b16 %v1262
    %v5026 = vunpack.c.l.b16 %v1263
    %v5027 = vunpack.c.h.b16 %v1263
    %v5028 = vunpack.c.l.b16 %v1264
    %v5029 = vunpack.c.h.b16 %v1264
    %v5030 = vunpack.c.l.b16 %v1265
    %v5031 = vunpack.c.h.b16 %v1265
    %v5032 = vunpack.c.l.b16 %v1266
    %v5033 = vunpack.c.h.b16 %v1266
    %v5034 = vunpack.c.l.b16 %v1267
    %v5035 = vunpack.c.h.b16 %v1267
    %v5036 = vunpack.c.l.b16 %v1268
    %v5037 = vunpack.c.h.b16 %v1268
    %v5038 = vunpack.c.l.b16 %v1269
    %v5039 = vunpack.c.h.b16 %v1269
    %v5040 = vunpack.c.l.b16 %v1270
    %v5041 = vunpack.c.h.b16 %v1270
    %v5042 = vunpack.c.l.b16 %v1271
    %v5043 = vunpack.c.h.b16 %v1271
    %v5044 = vunpack.c.l.b16 %v1272
    %v5045 = vunpack.c.h.b16 %v1272
    %v5046 = vunpack.c.l.b16 %v1273
    %v5047 = vunpack.c.h.b16 %v1273
    %v5048 = vunpack.c.l.b16 %v1274
    %v5049 = vunpack.c.h.b16 %v1274
    %v5050 = vunpack.c.l.b16 %v1275
    %v5051 = vunpack.c.h.b16 %v1275
    %v5052 = vunpack.c.l.b16 %v1276
    %v5053 = vunpack.c.h.b16 %v1276
    %v5054 = vunpack.c.l.b16 %v1277
    %v5055 = vunpack.c.h.b16 %v1277
    %v5056 = vunpack.c.l.b16 %v1278
    %v5057 = vunpack.c.h.b16 %v1278
    %v5058 = vunpack.c.l.b16 %v1279
    %v5059 = vunpack.c.h.b16 %v1279
    %v5060 = vunpack.c.l.b16 %v1280
    %v5061 = vunpack.c.h.b16 %v1280
    %v5062 = vunpack.c.l.b16 %v1281
    %v5063 = vunpack.c.h.b16 %v1281
    %v5064 = vunpack.c.l.b16 %v1282
    %v5065 = vunpack.c.h.b16 %v1282
    %v5066 = vunpack.c.l.b16 %v1283
    %v5067 = vunpack.c.h.b16 %v1283
    %v5068 = vunpack.c.l.b16 %v1284
    %v5069 = vunpack.c.h.b16 %v1284
    %v5070 = vunpack.c.l.b16 %v1285
    %v5071 = vunpack.c.h.b16 %v1285
    %v5072 = vunpack.c.l.b16 %v1286
    %v5073 = vunpack.c.h.b16 %v1286
    %v5074 = vunpack.c.l.b16 %v1287
    %v5075 = vunpack.c.h.b16 %v1287
    %v5076 = vunpack.c.l.b16 %v1288
    %v5077 = vunpack.c.h.b16 %v1288
    %v5078 = vunpack.c.l.b16 %v1289
    %v5079 = vunpack.c.h.b16 %v1289
    %v5080 = vunpack.c.l.b16 %v1290
    %v5081 = vunpack.c.h.b16 %v1290
    %v5082 = vunpack.c.l.b16 %v1291
    %v5083 = vunpack.c.h.b16 %v1291
    %v5084 = vunpack.c.l.b16 %v1292
    %v5085 = vunpack.c.h.b16 %v1292
    %v5086 = vunpack.c.l.b16 %v1293
    %v5087 = vunpack.c.h.b16 %v1293
    %v5088 = vunpack.c.l.b16 %v1294
    %v5089 = vunpack.c.h.b16 %v1294
    %v5090 = vunpack.c.l.b16 %v1295
    %v5091 = vunpack.c.h.b16 %v1295
    %v5092 = vunpack.c.l.b16 %v1296
    %v5093 = vunpack.c.h.b16 %v1296
    %v5094 = vunpack.c.l.b16 %v1297
    %v5095 = vunpack.c.h.b16 %v1297
    %v5096 = vunpack.c.l.b16 %v1298
    %v5097 = vunpack.c.h.b16 %v1298
    %v5098 = vunpack.c.l.b16 %v1299
    %v5099 = vunpack.c.h.b16 %v1299
    %v5100 = vunpack.c.l.b16 %v1300
    %v5101 = vunpack.c.h.b16 %v1300
    %v5102 = vunpack.c.l.b16 %v1301
    %v5103 = vunpack.c.h.b16 %v1301
    %v5104 = vunpack.c.l.b16 %v1302
    %v5105 = vunpack.c.h.b16 %v1302
    %v5106 = vunpack.c.l.b16 %v1303
    %v5107 = vunpack.c.h.b16 %v1303
    %v5108 = vunpack.c.l.b16 %v1304
    %v5109 = vunpack.c.h.b16 %v1304
    %v5110 = vunpack.c.l.b16 %v1305
    %v5111 = vunpack.c.h.b16 %v1305
    %v5112 = vunpack.c.l.b16 %v1306
    %v5113 = vunpack.c.h.b16 %v1306
    %v5114 = vunpack.c.l.b16 %v1307
    %v5115 = vunpack.c.h.b16 %v1307
    %v5116 = vunpack.c.l.b16 %v1308
    %v5117 = vunpack.c.h.b16 %v1308
    %v5118 = vunpack.c.l.b16 %v1309
    %v5119 = vunpack.c.h.b16 %v1309
    %v5120 = vunpack.c.l.b16 %v1310
    %v5121 = vunpack.c.h.b16 %v1310
    %v5122 = vunpack.c.l.b16 %v1311
    %v5123 = vunpack.c.h.b16 %v1311
    %v5124 = vunpack.c.l.b16 %v1312
    %v5125 = vunpack.c.h.b16 %v1312
    %v5126 = vunpack.c.l.b16 %v1313
    %v5127 = vunpack.c.h.b16 %v1313
    %v5128 = vunpack.c.l.b16 %v1314
    %v5129 = vunpack.c.h.b16 %v1314
    %v5130 = vunpack.c.l.b16 %v1315
    %v5131 = vunpack.c.h.b16 %v1315
    %v5132 = vunpack.c.l.b16 %v1316
    %v5133 = vunpack.c.h.b16 %v1316
    %v5134 = vunpack.c.l.b16 %v1317
    %v5135 = vunpack.c.h.b16 %v1317
    %v5136 = vunpack.c.l.b16 %v1318
    %v5137 = vunpack.c.h.b16 %v1318
    %v5138 = vunpack.c.l.b16 %v1319
    %v5139 = vunpack.c.h.b16 %v1319
    %v5140 = vunpack.c.l.b16 %v1320
    %v5141 = vunpack.c.h.b16 %v1320
    %v5142 = vunpack.c.l.b16 %v1321
    %v5143 = vunpack.c.h.b16 %v1321
    %v5144 = vunpack.c.l.b16 %v1322
    %v5145 = vunpack.c.h.b16 %v1322
    %v5146 = vunpack.c.l.b16 %v1323
    %v5147 = vunpack.c.h.b16 %v1323
    %v5148 = vunpack.c.l.b16 %v1324
    %v5149 = vunpack.c.h.b16 %v1324
    %v5150 = vunpack.c.l.b16 %v1325
    %v5151 = vunpack.c.h.b16 %v1325
    %v5152 = vunpack.c.l.b16 %v1326
    %v5153 = vunpack.c.h.b16 %v1326
    %v5154 = vunpack.c.l.b16 %v1327
    %v5155 = vunpack.c.h.b16 %v1327
    %v5156 = vunpack.c.l.b16 %v1328
    %v5157 = vunpack.c.h.b16 %v1328
    %v5158 = vunpack.c.l.b16 %v1329
    %v5159 = vunpack.c.h.b16 %v1329
    %v5160 = vunpack.c.l.b16 %v1330
    %v5161 = vunpack.c.h.b16 %v1330
    %v5162 = vunpack.c.l.b16 %v1331
    %v5163 = vunpack.c.h.b16 %v1331
    %v5164 = vunpack.c.l.b16 %v1332
    %v5165 = vunpack.c.h.b16 %v1332
    %v5166 = vunpack.c.l.b16 %v1333
    %v5167 = vunpack.c.h.b16 %v1333
    %v5168 = vunpack.c.l.b16 %v1334
    %v5169 = vunpack.c.h.b16 %v1334
    %v5170 = vunpack.c.l.b16 %v1335
    %v5171 = vunpack.c.h.b16 %v1335
    %v5172 = vunpack.c.l.b16 %v1336
    %v5173 = vunpack.c.h.b16 %v1336
    %v5174 = vunpack.c.l.b16 %v1337
    %v5175 = vunpack.c.h.b16 %v1337
    %v5176 = vunpack.c.l.b16 %v1338
    %v5177 = vunpack.c.h.b16 %v1338
    %v5178 = vunpack.c.l.b16 %v1339
    %v5179 = vunpack.c.h.b16 %v1339
    %v5180 = vunpack.c.l.b16 %v1340
    %v5181 = vunpack.c.h.b16 %v1340
    %v5182 = vunpack.c.l.b16 %v1341
    %v5183 = vunpack.c.h.b16 %v1341
    %v5184 = vunpack.c.l.b16 %v1342
    %v5185 = vunpack.c.h.b16 %v1342
    %v5186 = vunpack.c.l.b16 %v1343
    %v5187 = vunpack.c.h.b16 %v1343
    %v5188 = vunpack.c.l.b16 %v1344
    %v5189 = vunpack.c.h.b16 %v1344
    %v5190 = vunpack.c.l.b16 %v1345
    %v5191 = vunpack.c.h.b16 %v1345
    %v5192 = vunpack.c.l.b16 %v1346
    %v5193 = vunpack.c.h.b16 %v1346
    %v5194 = vunpack.c.l.b16 %v1347
    %v5195 = vunpack.c.h.b16 %v1347
    %v5196 = vunpack.c.l.b16 %v1348
    %v5197 = vunpack.c.h.b16 %v1348
    %v5198 = vunpack.c.l.b16 %v1349
    %v5199 = vunpack.c.h.b16 %v1349
    %v5200 = vunpack.c.l.b16 %v1350
    %v5201 = vunpack.c.h.b16 %v1350
    %v5202 = vunpack.c.l.b16 %v1351
    %v5203 = vunpack.c.h.b16 %v1351
    %v5204 = vunpack.c.l.b16 %v1352
    %v5205 = vunpack.c.h.b16 %v1352
    %v5206 = vunpack.c.l.b16 %v1353
    %v5207 = vunpack.c.h.b16 %v1353
    %v5208 = vunpack.c.l.b16 %v1354
    %v5209 = vunpack.c.h.b16 %v1354
    %v5210 = vunpack.c.l.b16 %v1355
    %v5211 = vunpack.c.h.b16 %v1355
    %v5212 = vunpack.c.l.b16 %v1356
    %v5213 = vunpack.c.h.b16 %v1356
    %v5214 = vunpack.c.l.b16 %v1357
    %v5215 = vunpack.c.h.b16 %v1357
    %v5216 = vunpack.c.l.b16 %v1358
    %v5217 = vunpack.c.h.b16 %v1358
    %v5218 = vunpack.c.l.b16 %v1359
    %v5219 = vunpack.c.h.b16 %v1359
    %v5220 = vunpack.c.l.b16 %v1360
    %v5221 = vunpack.c.h.b16 %v1360
    %v5222 = vunpack.c.l.b16 %v1361
    %v5223 = vunpack.c.h.b16 %v1361
    %v5224 = vunpack.c.l.b16 %v1362
    %v5225 = vunpack.c.h.b16 %v1362
    %v5226 = vunpack.c.l.b16 %v1363
    %v5227 = vunpack.c.h.b16 %v1363
    %v5228 = vunpack.c.l.b16 %v1364
    %v5229 = vunpack.c.h.b16 %v1364
    %v5230 = vunpack.c.l.b16 %v1365
    %v5231 = vunpack.c.h.b16 %v1365
    %v5232 = vunpack.c.l.b16 %v1366
    %v5233 = vunpack.c.h.b16 %v1366
    %v5234 = vunpack.c.l.b16 %v1367
    %v5235 = vunpack.c.h.b16 %v1367
    %v5236 = vunpack.c.l.b16 %v1368
    %v5237 = vunpack.c.h.b16 %v1368
    %v5238 = vunpack.c.l.b16 %v1369
    %v5239 = vunpack.c.h.b16 %v1369
    %v5240 = vunpack.c.l.b16 %v1370
    %v5241 = vunpack.c.h.b16 %v1370
    %v5242 = vunpack.c.l.b16 %v1371
    %v5243 = vunpack.c.h.b16 %v1371
    %v5244 = vunpack.c.l.b16 %v1372
    %v5245 = vunpack.c.h.b16 %v1372
    %v5246 = vunpack.c.l.b16 %v1373
    %v5247 = vunpack.c.h.b16 %v1373
    %v5248 = vunpack.c.l.b16 %v1374
    %v5249 = vunpack.c.h.b16 %v1374
    %v5250 = vunpack.c.l.b16 %v1375
    %v5251 = vunpack.c.h.b16 %v1375
    %v5252 = vunpack.c.l.b16 %v1376
    %v5253 = vunpack.c.h.b16 %v1376
    %v5254 = vunpack.c.l.b16 %v1377
    %v5255 = vunpack.c.h.b16 %v1377
    %v5256 = vunpack.c.l.b16 %v1378
    %v5257 = vunpack.c.h.b16 %v1378
    %v5258 = vunpack.c.l.b16 %v1379
    %v5259 = vunpack.c.h.b16 %v1379
    %v5260 = vunpack.c.l.b16 %v1380
    %v5261 = vunpack.c.h.b16 %v1380
    %v5262 = vunpack.c.l.b16 %v1381
    %v5263 = vunpack.c.h.b16 %v1381
    %v5264 = vunpack.c.l.b16 %v1382
    %v5265 = vunpack.c.h.b16 %v1382
    %v5266 = vunpack.c.l.b16 %v1383
    %v5267 = vunpack.c.h.b16 %v1383
    %v5268 = vunpack.c.l.b16 %v1384
    %v5269 = vunpack.c.h.b16 %v1384
    %v5270 = vunpack.c.l.b16 %v1385
    %v5271 = vunpack.c.h.b16 %v1385
    %v5272 = vunpack.c.l.b16 %v1386
    %v5273 = vunpack.c.h.b16 %v1386
    %v5274 = vunpack.c.l.b16 %v1387
    %v5275 = vunpack.c.h.b16 %v1387
    %v5276 = vunpack.c.l.b16 %v1388
    %v5277 = vunpack.c.h.b16 %v1388
    %v5278 = vunpack.c.l.b16 %v1389
    %v5279 = vunpack.c.h.b16 %v1389
    %v5280 = vunpack.c.l.b16 %v1390
    %v5281 = vunpack.c.h.b16 %v1390
    %v5282 = vunpack.c.l.b16 %v1391
    %v5283 = vunpack.c.h.b16 %v1391
    %v5284 = vunpack.c.l.b16 %v1392
    %v5285 = vunpack.c.h.b16 %v1392
    %v5286 = vunpack.c.l.b16 %v1393
    %v5287 = vunpack.c.h.b16 %v1393
    %v5288 = vunpack.c.l.b16 %v1394
    %v5289 = vunpack.c.h.b16 %v1394
    %v5290 = vunpack.c.l.b16 %v1395
    %v5291 = vunpack.c.h.b16 %v1395
    %v5292 = vunpack.c.l.b16 %v1396
    %v5293 = vunpack.c.h.b16 %v1396
    %v5294 = vunpack.c.l.b16 %v1397
    %v5295 = vunpack.c.h.b16 %v1397
    %v5296 = vunpack.c.l.b16 %v1398
    %v5297 = vunpack.c.h.b16 %v1398
    %v5298 = vunpack.c.l.b16 %v1399
    %v5299 = vunpack.c.h.b16 %v1399
    %v5300 = vunpack.c.l.b16 %v1400
    %v5301 = vunpack.c.h.b16 %v1400
    %v5302 = vunpack.c.l.b16 %v1401
    %v5303 = vunpack.c.h.b16 %v1401
    %v5304 = vunpack.c.l.b16 %v1402
    %v5305 = vunpack.c.h.b16 %v1402
    %v5306 = vunpack.c.l.b16 %v1403
    %v5307 = vunpack.c.h.b16 %v1403
    %v5308 = vunpack.c.l.b16 %v1404
    %v5309 = vunpack.c.h.b16 %v1404
    %v5310 = vunpack.c.l.b16 %v1405
    %v5311 = vunpack.c.h.b16 %v1405
    %v5312 = vunpack.c.l.b16 %v1406
    %v5313 = vunpack.c.h.b16 %v1406
    %v5314 = vunpack.c.l.b16 %v1407
    %v5315 = vunpack.c.h.b16 %v1407
    %v5316 = vunpack.c.l.b16 %v1408
    %v5317 = vunpack.c.h.b16 %v1408
    %v5318 = vunpack.c.l.b16 %v1409
    %v5319 = vunpack.c.h.b16 %v1409
    %v5320 = vunpack.c.l.b16 %v1410
    %v5321 = vunpack.c.h.b16 %v1410
    %v5322 = vunpack.c.l.b16 %v1411
    %v5323 = vunpack.c.h.b16 %v1411
    %v5324 = vunpack.c.l.b16 %v1412
    %v5325 = vunpack.c.h.b16 %v1412
    %v5326 = vunpack.c.l.b16 %v1413
    %v5327 = vunpack.c.h.b16 %v1413
    %v5328 = vunpack.c.l.b16 %v1414
    %v5329 = vunpack.c.h.b16 %v1414
    %v5330 = vunpack.c.l.b16 %v1415
    %v5331 = vunpack.c.h.b16 %v1415
    %v5332 = vunpack.c.l.b16 %v1416
    %v5333 = vunpack.c.h.b16 %v1416
    %v5334 = vunpack.c.l.b16 %v1417
    %v5335 = vunpack.c.h.b16 %v1417
    %v5336 = vunpack.c.l.b16 %v1418
    %v5337 = vunpack.c.h.b16 %v1418
    %v5338 = vunpack.c.l.b16 %v1419
    %v5339 = vunpack.c.h.b16 %v1419
    %v5340 = vunpack.c.l.b16 %v1420
    %v5341 = vunpack.c.h.b16 %v1420
    %v5342 = vunpack.c.l.b16 %v1421
    %v5343 = vunpack.c.h.b16 %v1421
    %v5344 = vunpack.c.l.b16 %v1422
    %v5345 = vunpack.c.h.b16 %v1422
    %v5346 = vunpack.c.l.b16 %v1423
    %v5347 = vunpack.c.h.b16 %v1423
    %v5348 = vunpack.c.l.b16 %v1424
    %v5349 = vunpack.c.h.b16 %v1424
    %v5350 = vunpack.c.l.b16 %v1425
    %v5351 = vunpack.c.h.b16 %v1425
    %v5352 = vunpack.c.l.b16 %v1426
    %v5353 = vunpack.c.h.b16 %v1426
    %v5354 = vunpack.c.l.b16 %v1427
    %v5355 = vunpack.c.h.b16 %v1427
    %v5356 = vunpack.c.l.b16 %v1428
    %v5357 = vunpack.c.h.b16 %v1428
    %v5358 = vunpack.c.l.b16 %v1429
    %v5359 = vunpack.c.h.b16 %v1429
    %v5360 = vunpack.c.l.b16 %v1430
    %v5361 = vunpack.c.h.b16 %v1430
    %v5362 = vunpack.c.l.b16 %v1431
    %v5363 = vunpack.c.h.b16 %v1431
    %v5364 = vunpack.c.l.b16 %v1432
    %v5365 = vunpack.c.h.b16 %v1432
    %v5366 = vunpack.c.l.b16 %v1433
    %v5367 = vunpack.c.h.b16 %v1433
    %v5368 = vunpack.c.l.b16 %v1434
    %v5369 = vunpack.c.h.b16 %v1434
    %v5370 = vunpack.c.l.b16 %v1435
    %v5371 = vunpack.c.h.b16 %v1435
    %v5372 = vunpack.c.l.b16 %v1436
    %v5373 = vunpack.c.h.b16 %v1436
    %v5374 = vunpack.c.l.b16 %v1437
    %v5375 = vunpack.c.h.b16 %v1437
    %v5376 = vunpack.c.l.b16 %v1438
    %v5377 = vunpack.c.h.b16 %v1438
    %v5378 = vunpack.c.l.b16 %v1439
    %v5379 = vunpack.c.h.b16 %v1439
    %v5380 = vunpack.c.l.b16 %v1440
    %v5381 = vunpack.c.h.b16 %v1440
    %v5382 = vunpack.c.l.b16 %v1441
    %v5383 = vunpack.c.h.b16 %v1441
    %v5384 = vunpack.c.l.b16 %v1442
    %v5385 = vunpack.c.h.b16 %v1442
    %v5386 = vunpack.c.l.b16 %v1443
    %v5387 = vunpack.c.h.b16 %v1443
    %v5388 = vunpack.c.l.b16 %v1444
    %v5389 = vunpack.c.h.b16 %v1444
    %v5390 = vunpack.c.l.b16 %v1445
    %v5391 = vunpack.c.h.b16 %v1445
    %v5392 = vunpack.c.l.b16 %v1446
    %v5393 = vunpack.c.h.b16 %v1446
    %v5394 = vunpack.c.l.b16 %v1447
    %v5395 = vunpack.c.h.b16 %v1447
    %v5396 = vunpack.c.l.b16 %v1448
    %v5397 = vunpack.c.h.b16 %v1448
    %v5398 = vunpack.c.l.b16 %v1449
    %v5399 = vunpack.c.h.b16 %v1449
    %v5400 = vunpack.c.l.b16 %v1450
    %v5401 = vunpack.c.h.b16 %v1450
    %v5402 = vunpack.c.l.b16 %v1451
    %v5403 = vunpack.c.h.b16 %v1451
    %v5404 = vunpack.c.l.b16 %v1452
    %v5405 = vunpack.c.h.b16 %v1452
    %v5406 = vunpack.c.l.b16 %v1453
    %v5407 = vunpack.c.h.b16 %v1453
    %v5408 = vunpack.c.l.b16 %v1454
    %v5409 = vunpack.c.h.b16 %v1454
    %v5410 = vunpack.c.l.b16 %v1455
    %v5411 = vunpack.c.h.b16 %v1455
    %v5412 = vunpack.c.l.b16 %v1456
    %v5413 = vunpack.c.h.b16 %v1456
    %v5414 = vunpack.c.l.b16 %v1457
    %v5415 = vunpack.c.h.b16 %v1457
    %v5416 = vunpack.c.l.b16 %v1458
    %v5417 = vunpack.c.h.b16 %v1458
    %v5418 = vunpack.c.l.b16 %v1459
    %v5419 = vunpack.c.h.b16 %v1459
    %v5420 = vunpack.c.l.b16 %v1460
    %v5421 = vunpack.c.h.b16 %v1460
    %v5422 = vunpack.c.l.b16 %v1461
    %v5423 = vunpack.c.h.b16 %v1461
    %v5424 = vunpack.c.l.b16 %v1462
    %v5425 = vunpack.c.h.b16 %v1462
    %v5426 = vunpack.c.l.b16 %v1463
    %v5427 = vunpack.c.h.b16 %v1463
    %v5428 = vunpack.c.l.b16 %v1464
    %v5429 = vunpack.c.h.b16 %v1464
    %v5430 = vunpack.c.l.b16 %v1465
    %v5431 = vunpack.c.h.b16 %v1465
    %v5432 = vunpack.c.l.b16 %v1466
    %v5433 = vunpack.c.h.b16 %v1466
    %v5434 = vunpack.c.l.b16 %v1467
    %v5435 = vunpack.c.h.b16 %v1467
    %v5436 = vunpack.c.l.b16 %v1468
    %v5437 = vunpack.c.h.b16 %v1468
    %v5438 = vunpack.c.l.b16 %v1469
    %v5439 = vunpack.c.h.b16 %v1469
    %v5440 = vunpack.c.l.b16 %v1470
    %v5441 = vunpack.c.h.b16 %v1470
    %v5442 = vunpack.c.l.b16 %v1471
    %v5443 = vunpack.c.h.b16 %v1471
    %v5444 = vunpack.c.l.b16 %v1472
    %v5445 = vunpack.c.h.b16 %v1472
    %v5446 = vunpack.c.l.b16 %v1473
    %v5447 = vunpack.c.h.b16 %v1473
    %v5448 = vunpack.c.l.b16 %v1474
    %v5449 = vunpack.c.h.b16 %v1474
    %v5450 = vunpack.c.l.b16 %v1475
    %v5451 = vunpack.c.h.b16 %v1475
    %v5452 = vunpack.c.l.b16 %v1476
    %v5453 = vunpack.c.h.b16 %v1476
    %v5454 = vunpack.c.l.b16 %v1477
    %v5455 = vunpack.c.h.b16 %v1477
    %v5456 = vunpack.c.l.b16 %v1478
    %v5457 = vunpack.c.h.b16 %v1478
    %v5458 = vunpack.c.l.b16 %v1479
    %v5459 = vunpack.c.h.b16 %v1479
    %v5460 = vunpack.c.l.b16 %v1480
    %v5461 = vunpack.c.h.b16 %v1480
    %v5462 = vunpack.c.l.b16 %v1481
    %v5463 = vunpack.c.h.b16 %v1481
    %v5464 = vunpack.c.l.b16 %v1482
    %v5465 = vunpack.c.h.b16 %v1482
    %v5466 = vunpack.c.l.b16 %v1483
    %v5467 = vunpack.c.h.b16 %v1483
    %v5468 = vunpack.c.l.b16 %v1484
    %v5469 = vunpack.c.h.b16 %v1484
    %v5470 = vunpack.c.l.b16 %v1485
    %v5471 = vunpack.c.h.b16 %v1485
    %v5472 = vunpack.c.l.b16 %v1486
    %v5473 = vunpack.c.h.b16 %v1486
    %v5474 = vunpack.c.l.b16 %v1487
    %v5475 = vunpack.c.h.b16 %v1487
    %v5476 = vunpack.c.l.b16 %v1488
    %v5477 = vunpack.c.h.b16 %v1488
    %v5478 = vunpack.c.l.b16 %v1489
    %v5479 = vunpack.c.h.b16 %v1489
    %v5480 = vunpack.c.l.b16 %v1490
    %v5481 = vunpack.c.h.b16 %v1490
    %v5482 = vunpack.c.l.b16 %v1491
    %v5483 = vunpack.c.h.b16 %v1491
    %v5484 = vunpack.c.l.b16 %v1492
    %v5485 = vunpack.c.h.b16 %v1492
    %v5486 = vunpack.c.l.b16 %v1493
    %v5487 = vunpack.c.h.b16 %v1493
    %v5488 = vunpack.c.l.b16 %v1494
    %v5489 = vunpack.c.h.b16 %v1494
    %v5490 = vunpack.c.l.b16 %v1495
    %v5491 = vunpack.c.h.b16 %v1495
    %v5492 = vunpack.c.l.b16 %v1496
    %v5493 = vunpack.c.h.b16 %v1496
    %v5494 = vunpack.c.l.b16 %v1497
    %v5495 = vunpack.c.h.b16 %v1497
    %v5496 = vunpack.c.l.b16 %v1498
    %v5497 = vunpack.c.h.b16 %v1498
    %v5498 = vunpack.c.l.b16 %v1499
    %v5499 = vunpack.c.h.b16 %v1499
    %v5500 = vunpack.c.l.b16 %v1500
    %v5501 = vunpack.c.h.b16 %v1500
    %v5502 = vunpack.c.l.b16 %v1501
    %v5503 = vunpack.c.h.b16 %v1501
    %v5504 = vunpack.c.l.b16 %v1502
    %v5505 = vunpack.c.h.b16 %v1502
    %v5506 = vunpack.c.l.b16 %v1503
    %v5507 = vunpack.c.h.b16 %v1503
    %v5508 = vunpack.c.l.b16 %v1504
    %v5509 = vunpack.c.h.b16 %v1504
    %v5510 = vunpack.c.l.b16 %v1505
    %v5511 = vunpack.c.h.b16 %v1505
    %v5512 = vunpack.c.l.b16 %v1506
    %v5513 = vunpack.c.h.b16 %v1506
    %v5514 = vunpack.c.l.b16 %v1507
    %v5515 = vunpack.c.h.b16 %v1507
    %v5516 = vunpack.c.l.b16 %v1508
    %v5517 = vunpack.c.h.b16 %v1508
    %v5518 = vunpack.c.l.b16 %v1509
    %v5519 = vunpack.c.h.b16 %v1509
    %v5520 = vunpack.c.l.b16 %v1510
    %v5521 = vunpack.c.h.b16 %v1510
    %v5522 = vunpack.c.l.b16 %v1511
    %v5523 = vunpack.c.h.b16 %v1511
    %v5524 = vunpack.c.l.b16 %v1512
    %v5525 = vunpack.c.h.b16 %v1512
    %v5526 = vunpack.c.l.b16 %v1513
    %v5527 = vunpack.c.h.b16 %v1513
    %v5528 = vunpack.c.l.b16 %v1514
    %v5529 = vunpack.c.h.b16 %v1514
    %v5530 = vunpack.c.l.b16 %v1515
    %v5531 = vunpack.c.h.b16 %v1515
    %v5532 = vunpack.c.l.b16 %v1516
    %v5533 = vunpack.c.h.b16 %v1516
    %v5534 = vunpack.c.l.b16 %v1517
    %v5535 = vunpack.c.h.b16 %v1517
    %v5536 = vunpack.c.l.b16 %v1518
    %v5537 = vunpack.c.h.b16 %v1518
    %v5538 = vunpack.c.l.b16 %v1519
    %v5539 = vunpack.c.h.b16 %v1519
    %v5540 = vunpack.c.l.b16 %v1520
    %v5541 = vunpack.c.h.b16 %v1520
    %v5542 = vunpack.c.l.b16 %v1521
    %v5543 = vunpack.c.h.b16 %v1521
    %v5544 = vunpack.c.l.b16 %v1522
    %v5545 = vunpack.c.h.b16 %v1522
    %v5546 = vunpack.c.l.b16 %v1523
    %v5547 = vunpack.c.h.b16 %v1523
    %v5548 = vunpack.c.l.b16 %v1524
    %v5549 = vunpack.c.h.b16 %v1524
    %v5550 = vunpack.c.l.b16 %v1525
    %v5551 = vunpack.c.h.b16 %v1525
    %v5552 = vunpack.c.l.b16 %v1526
    %v5553 = vunpack.c.h.b16 %v1526
    %v5554 = vunpack.c.l.b16 %v1527
    %v5555 = vunpack.c.h.b16 %v1527
    %v5556 = vunpack.c.l.b16 %v1528
    %v5557 = vunpack.c.h.b16 %v1528
    %v5558 = vunpack.c.l.b16 %v1529
    %v5559 = vunpack.c.h.b16 %v1529
    %v5560 = vunpack.c.l.b16 %v1530
    %v5561 = vunpack.c.h.b16 %v1530
    %v5562 = vunpack.c.l.b16 %v1531
    %v5563 = vunpack.c.h.b16 %v1531
    %v5564 = vunpack.c.l.b16 %v1532
    %v5565 = vunpack.c.h.b16 %v1532
    %v5566 = vunpack.c.l.b16 %v1533
    %v5567 = vunpack.c.h.b16 %v1533
    %v5568 = vunpack.c.l.b16 %v1534
    %v5569 = vunpack.c.h.b16 %v1534
    %v5570 = vunpack.c.l.b16 %v1535
    %v5571 = vunpack.c.h.b16 %v1535
    %v5572 = vunpack.c.l.b16 %v1536
    %v5573 = vunpack.c.h.b16 %v1536
    %v5574 = vunpack.c.l.b16 %v1537
    %v5575 = vunpack.c.h.b16 %v1537
    %v5576 = vunpack.c.l.b16 %v1538
    %v5577 = vunpack.c.h.b16 %v1538
    %v5578 = vunpack.c.l.b16 %v1539
    %v5579 = vunpack.c.h.b16 %v1539
    %v5580 = vunpack.c.l.b16 %v1540
    %v5581 = vunpack.c.h.b16 %v1540
    %v5582 = vunpack.c.l.b16 %v1541
    %v5583 = vunpack.c.h.b16 %v1541
    %v5584 = vunpack.c.l.b16 %v1542
    %v5585 = vunpack.c.h.b16 %v1542
    %v5586 = vunpack.c.l.b16 %v1543
    %v5587 = vunpack.c.h.b16 %v1543
    %v5588 = vunpack.c.l.b16 %v1544
    %v5589 = vunpack.c.h.b16 %v1544
    %v5590 = vunpack.c.l.b16 %v1545
    %v5591 = vunpack.c.h.b16 %v1545
    %v5592 = vunpack.c.l.b16 %v1546
    %v5593 = vunpack.c.h.b16 %v1546
    %v5594 = vunpack.c.l.b16 %v1547
    %v5595 = vunpack.c.h.b16 %v1547
    %v5596 = vunpack.c.l.b16 %v1548
    %v5597 = vunpack.c.h.b16 %v1548
    %v5598 = vunpack.c.l.b16 %v1549
    %v5599 = vunpack.c.h.b16 %v1549
    %v5600 = vunpack.c.l.b16 %v1550
    %v5601 = vunpack.c.h.b16 %v1550
    %v5602 = vunpack.c.l.b16 %v1551
    %v5603 = vunpack.c.h.b16 %v1551
    %v5604 = vunpack.c.l.b16 %v1552
    %v5605 = vunpack.c.h.b16 %v1552
    %v5606 = vunpack.c.l.b16 %v1553
    %v5607 = vunpack.c.h.b16 %v1553
    %v5608 = vunpack.c.l.b16 %v1554
    %v5609 = vunpack.c.h.b16 %v1554
    %v5610 = vunpack.c.l.b16 %v1555
    %v5611 = vunpack.c.h.b16 %v1555
    %v5612 = vunpack.c.l.b16 %v1556
    %v5613 = vunpack.c.h.b16 %v1556
    %v5614 = vunpack.c.l.b16 %v1557
    %v5615 = vunpack.c.h.b16 %v1557
    %v5616 = vunpack.c.l.b16 %v1558
    %v5617 = vunpack.c.h.b16 %v1558
    %v5618 = vunpack.c.l.b16 %v1559
    %v5619 = vunpack.c.h.b16 %v1559
    %v5620 = vunpack.c.l.b16 %v1560
    %v5621 = vunpack.c.h.b16 %v1560
    %v5622 = vunpack.c.l.b16 %v1561
    %v5623 = vunpack.c.h.b16 %v1561
    %v5624 = vunpack.c.l.b16 %v1562
    %v5625 = vunpack.c.h.b16 %v1562
    %v5626 = vunpack.c.l.b16 %v1563
    %v5627 = vunpack.c.h.b16 %v1563
    %v5628 = vunpack.c.l.b16 %v1564
    %v5629 = vunpack.c.h.b16 %v1564
    %v5630 = vunpack.c.l.b16 %v1565
    %v5631 = vunpack.c.h.b16 %v1565
    %v5632 = vunpack.c.l.b16 %v1566
    %v5633 = vunpack.c.h.b16 %v1566
    %v5634 = vunpack.c.l.b16 %v1567
    %v5635 = vunpack.c.h.b16 %v1567
    %v5636 = vunpack.c.l.b16 %v1568
    %v5637 = vunpack.c.h.b16 %v1568
    %v5638 = vunpack.c.l.b16 %v1569
    %v5639 = vunpack.c.h.b16 %v1569
    %v5640 = vunpack.c.l.b16 %v1570
    %v5641 = vunpack.c.h.b16 %v1570
    %v5642 = vunpack.c.l.b16 %v1571
    %v5643 = vunpack.c.h.b16 %v1571
    %v5644 = vunpack.c.l.b16 %v1572
    %v5645 = vunpack.c.h.b16 %v1572
    %v5646 = vunpack.c.l.b16 %v1573
    %v5647 = vunpack.c.h.b16 %v1573
    %v5648 = vunpack.c.l.b16 %v1574
    %v5649 = vunpack.c.h.b16 %v1574
    %v5650 = vunpack.c.l.b16 %v1575
    %v5651 = vunpack.c.h.b16 %v1575
    %v5652 = vunpack.c.l.b16 %v1576
    %v5653 = vunpack.c.h.b16 %v1576
    %v5654 = vunpack.c.l.b16 %v1577
    %v5655 = vunpack.c.h.b16 %v1577
    %v5656 = vunpack.c.l.b16 %v1578
    %v5657 = vunpack.c.h.b16 %v1578
    %v5658 = vunpack.c.l.b16 %v1579
    %v5659 = vunpack.c.h.b16 %v1579
    %v5660 = vunpack.c.l.b16 %v1580
    %v5661 = vunpack.c.h.b16 %v1580
    %v5662 = vunpack.c.l.b16 %v1581
    %v5663 = vunpack.c.h.b16 %v1581
    %v5664 = vunpack.c.l.b16 %v1582
    %v5665 = vunpack.c.h.b16 %v1582
    %v5666 = vunpack.c.l.b16 %v1583
    %v5667 = vunpack.c.h.b16 %v1583
    %v5668 = vunpack.c.l.b16 %v1584
    %v5669 = vunpack.c.h.b16 %v1584
    %v5670 = vunpack.c.l.b16 %v1585
    %v5671 = vunpack.c.h.b16 %v1585
    %v5672 = vunpack.c.l.b16 %v1586
    %v5673 = vunpack.c.h.b16 %v1586
    %v5674 = vunpack.c.l.b16 %v1587
    %v5675 = vunpack.c.h.b16 %v1587
    %v5676 = vunpack.c.l.b16 %v1588
    %v5677 = vunpack.c.h.b16 %v1588
    %v5678 = vunpack.c.l.b16 %v1589
    %v5679 = vunpack.c.h.b16 %v1589
    %v5680 = vunpack.c.l.b16 %v1590
    %v5681 = vunpack.c.h.b16 %v1590
    %v5682 = vunpack.c.l.b16 %v1591
    %v5683 = vunpack.c.h.b16 %v1591
    %v5684 = vunpack.c.l.b16 %v1592
    %v5685 = vunpack.c.h.b16 %v1592
    %v5686 = vunpack.c.l.b16 %v1593
    %v5687 = vunpack.c.h.b16 %v1593
    %v5688 = vunpack.c.l.b16 %v1594
    %v5689 = vunpack.c.h.b16 %v1594
    %v5690 = vunpack.c.l.b16 %v1595
    %v5691 = vunpack.c.h.b16 %v1595
    %v5692 = vunpack.c.l.b16 %v1596
    %v5693 = vunpack.c.h.b16 %v1596
    %v5694 = vunpack.c.l.b16 %v1597
    %v5695 = vunpack.c.h.b16 %v1597
    %v5696 = vunpack.c.l.b16 %v1598
    %v5697 = vunpack.c.h.b16 %v1598
    %v5698 = vunpack.c.l.b16 %v1599
    %v5699 = vunpack.c.h.b16 %v1599
    %v5700 = vunpack.c.l.b16 %v1600
    %v5701 = vunpack.c.h.b16 %v1600
    %v5702 = vunpack.c.l.b16 %v1601
    %v5703 = vunpack.c.h.b16 %v1601
    %v5704 = vunpack.c.l.b16 %v1602
    %v5705 = vunpack.c.h.b16 %v1602
    %v5706 = vunpack.c.l.b16 %v1603
    %v5707 = vunpack.c.h.b16 %v1603
    %v5708 = vunpack.c.l.b16 %v1604
    %v5709 = vunpack.c.h.b16 %v1604
    %v5710 = vunpack.c.l.b16 %v1605
    %v5711 = vunpack.c.h.b16 %v1605
    %v5712 = vunpack.c.l.b16 %v1606
    %v5713 = vunpack.c.h.b16 %v1606
    %v5714 = vunpack.c.l.b16 %v1607
    %v5715 = vunpack.c.h.b16 %v1607
    %v5716 = vunpack.c.l.b16 %v1608
    %v5717 = vunpack.c.h.b16 %v1608
    %v5718 = vunpack.c.l.b16 %v1609
    %v5719 = vunpack.c.h.b16 %v1609
    %v5720 = vunpack.c.l.b16 %v1610
    %v5721 = vunpack.c.h.b16 %v1610
    %v5722 = vunpack.c.l.b16 %v1611
    %v5723 = vunpack.c.h.b16 %v1611
    %v5724 = vunpack.c.l.b16 %v1612
    %v5725 = vunpack.c.h.b16 %v1612
    %v5726 = vunpack.c.l.b16 %v1613
    %v5727 = vunpack.c.h.b16 %v1613
    %v5728 = vunpack.c.l.b16 %v1614
    %v5729 = vunpack.c.h.b16 %v1614
    %v5730 = vunpack.c.l.b16 %v1615
    %v5731 = vunpack.c.h.b16 %v1615
    %v5732 = vunpack.c.l.b16 %v1616
    %v5733 = vunpack.c.h.b16 %v1616
    %v5734 = vunpack.c.l.b16 %v1617
    %v5735 = vunpack.c.h.b16 %v1617
    %v5736 = vunpack.c.l.b16 %v1618
    %v5737 = vunpack.c.h.b16 %v1618
    %v5738 = vunpack.c.l.b16 %v1619
    %v5739 = vunpack.c.h.b16 %v1619
    %v5740 = vunpack.c.l.b16 %v1620
    %v5741 = vunpack.c.h.b16 %v1620
    %v5742 = vunpack.c.l.b16 %v1621
    %v5743 = vunpack.c.h.b16 %v1621
    %v5744 = vunpack.c.l.b16 %v1622
    %v5745 = vunpack.c.h.b16 %v1622
    %v5746 = vunpack.c.l.b16 %v1623
    %v5747 = vunpack.c.h.b16 %v1623
    %v5748 = vunpack.c.l.b16 %v1624
    %v5749 = vunpack.c.h.b16 %v1624
    %v5750 = vunpack.c.l.b16 %v1625
    %v5751 = vunpack.c.h.b16 %v1625
    %v5752 = vunpack.c.l.b16 %v1626
    %v5753 = vunpack.c.h.b16 %v1626
    %v5754 = vunpack.c.l.b16 %v1627
    %v5755 = vunpack.c.h.b16 %v1627
    %v5756 = vunpack.c.l.b16 %v1628
    %v5757 = vunpack.c.h.b16 %v1628
    %v5758 = vunpack.c.l.b16 %v1629
    %v5759 = vunpack.c.h.b16 %v1629
    %v5760 = vunpack.c.l.b16 %v1630
    %v5761 = vunpack.c.h.b16 %v1630
    %v5762 = vunpack.c.l.b16 %v1631
    %v5763 = vunpack.c.h.b16 %v1631
    %v5764 = vunpack.c.l.b16 %v1632
    %v5765 = vunpack.c.h.b16 %v1632
    %v5766 = vunpack.c.l.b16 %v1633
    %v5767 = vunpack.c.h.b16 %v1633
    %v5768 = vunpack.c.l.b16 %v1634
    %v5769 = vunpack.c.h.b16 %v1634
    %v5770 = vunpack.c.l.b16 %v1635
    %v5771 = vunpack.c.h.b16 %v1635
    %v5772 = vunpack.c.l.b16 %v1636
    %v5773 = vunpack.c.h.b16 %v1636
    %v5774 = vunpack.c.l.b16 %v1637
    %v5775 = vunpack.c.h.b16 %v1637
    %v5776 = vunpack.c.l.b16 %v1638
    %v5777 = vunpack.c.h.b16 %v1638
    %v5778 = vunpack.c.l.b16 %v1639
    %v5779 = vunpack.c.h.b16 %v1639
    %v5780 = vunpack.c.l.b16 %v1640
    %v5781 = vunpack.c.h.b16 %v1640
    %v5782 = vunpack.c.l.b16 %v1641
    %v5783 = vunpack.c.h.b16 %v1641
    %v5784 = vunpack.c.l.b16 %v1642
    %v5785 = vunpack.c.h.b16 %v1642
    %v5786 = vunpack.c.l.b16 %v1643
    %v5787 = vunpack.c.h.b16 %v1643
    %v5788 = vunpack.c.l.b16 %v1644
    %v5789 = vunpack.c.h.b16 %v1644
    %v5790 = vunpack.c.l.b16 %v1645
    %v5791 = vunpack.c.h.b16 %v1645
    %v5792 = vunpack.c.l.b16 %v1646
    %v5793 = vunpack.c.h.b16 %v1646
    %v5794 = vunpack.c.l.b16 %v1647
    %v5795 = vunpack.c.h.b16 %v1647
    %v5796 = vunpack.c.l.b16 %v1648
    %v5797 = vunpack.c.h.b16 %v1648
    %v5798 = vunpack.c.l.b16 %v1649
    %v5799 = vunpack.c.h.b16 %v1649
    %v5800 = vunpack.c.l.b16 %v1650
    %v5801 = vunpack.c.h.b16 %v1650
    %v5802 = vunpack.c.l.b16 %v1651
    %v5803 = vunpack.c.h.b16 %v1651
    %v5804 = vunpack.c.l.b16 %v1652
    %v5805 = vunpack.c.h.b16 %v1652
    %v5806 = vunpack.c.l.b16 %v1653
    %v5807 = vunpack.c.h.b16 %v1653
    %v5808 = vunpack.c.l.b16 %v1654
    %v5809 = vunpack.c.h.b16 %v1654
    %v5810 = vunpack.c.l.b16 %v1655
    %v5811 = vunpack.c.h.b16 %v1655
    %v5812 = vunpack.c.l.b16 %v1656
    %v5813 = vunpack.c.h.b16 %v1656
    %v5814 = vunpack.c.l.b16 %v1657
    %v5815 = vunpack.c.h.b16 %v1657
    %v5816 = vunpack.c.l.b16 %v1658
    %v5817 = vunpack.c.h.b16 %v1658
    %v5818 = vunpack.c.l.b16 %v1659
    %v5819 = vunpack.c.h.b16 %v1659
    %v5820 = vunpack.c.l.b16 %v1660
    %v5821 = vunpack.c.h.b16 %v1660
    %v5822 = vunpack.c.l.b16 %v1661
    %v5823 = vunpack.c.h.b16 %v1661
    %v5824 = vunpack.c.l.b16 %v1662
    %v5825 = vunpack.c.h.b16 %v1662
    %v5826 = vunpack.c.l.b16 %v1663
    %v5827 = vunpack.c.h.b16 %v1663
    %v5828 = vunpack.c.l.b16 %v1664
    %v5829 = vunpack.c.h.b16 %v1664
    %v5830 = vunpack.c.l.b16 %v1665
    %v5831 = vunpack.c.h.b16 %v1665
    %v5832 = vunpack.c.l.b16 %v1666
    %v5833 = vunpack.c.h.b16 %v1666
    %v5834 = vunpack.c.l.b16 %v1667
    %v5835 = vunpack.c.h.b16 %v1667
    %v5836 = vunpack.c.l.b16 %v1668
    %v5837 = vunpack.c.h.b16 %v1668
    %v5838 = vunpack.c.l.b16 %v1669
    %v5839 = vunpack.c.h.b16 %v1669
    %v5840 = vunpack.c.l.b16 %v1670
    %v5841 = vunpack.c.h.b16 %v1670
    %v5842 = vunpack.c.l.b16 %v1671
    %v5843 = vunpack.c.h.b16 %v1671
    %v5844 = vunpack.c.l.b16 %v1672
    %v5845 = vunpack.c.h.b16 %v1672
    %v5846 = vunpack.c.l.b16 %v1673
    %v5847 = vunpack.c.h.b16 %v1673
    %v5848 = vunpack.c.l.b16 %v1674
    %v5849 = vunpack.c.h.b16 %v1674
    %v5850 = vunpack.c.l.b16 %v1675
    %v5851 = vunpack.c.h.b16 %v1675
    %v5852 = vunpack.c.l.b16 %v1676
    %v5853 = vunpack.c.h.b16 %v1676
    %v5854 = vunpack.c.l.b16 %v1677
    %v5855 = vunpack.c.h.b16 %v1677
    %v5856 = vunpack.c.l.b16 %v1678
    %v5857 = vunpack.c.h.b16 %v1678
    %v5858 = vunpack.c.l.b16 %v1679
    %v5859 = vunpack.c.h.b16 %v1679
    %v5860 = vunpack.c.l.b16 %v1680
    %v5861 = vunpack.c.h.b16 %v1680
    %v5862 = vunpack.c.l.b16 %v1681
    %v5863 = vunpack.c.h.b16 %v1681
    %v5864 = vunpack.c.l.b16 %v1682
    %v5865 = vunpack.c.h.b16 %v1682
    %v5866 = vunpack.c.l.b16 %v1683
    %v5867 = vunpack.c.h.b16 %v1683
    %v5868 = vunpack.c.l.b16 %v1684
    %v5869 = vunpack.c.h.b16 %v1684
    %v5870 = vunpack.c.l.b16 %v1685
    %v5871 = vunpack.c.h.b16 %v1685
    %v5872 = vunpack.c.l.b16 %v1686
    %v5873 = vunpack.c.h.b16 %v1686
    %v5874 = vunpack.c.l.b16 %v1687
    %v5875 = vunpack.c.h.b16 %v1687
    %v5876 = vunpack.c.l.b16 %v1688
    %v5877 = vunpack.c.h.b16 %v1688
    %v5878 = vunpack.c.l.b16 %v1689
    %v5879 = vunpack.c.h.b16 %v1689
    %v5880 = vunpack.c.l.b16 %v1690
    %v5881 = vunpack.c.h.b16 %v1690
    %v5882 = vunpack.c.l.b16 %v1691
    %v5883 = vunpack.c.h.b16 %v1691
    %v5884 = vunpack.c.l.b16 %v1692
    %v5885 = vunpack.c.h.b16 %v1692
    %v5886 = vunpack.c.l.b16 %v1693
    %v5887 = vunpack.c.h.b16 %v1693
    %v5888 = vunpack.c.l.b16 %v1694
    %v5889 = vunpack.c.h.b16 %v1694
    %v5890 = vunpack.c.l.b16 %v1695
    %v5891 = vunpack.c.h.b16 %v1695
    %v5892 = vunpack.c.l.b16 %v1696
    %v5893 = vunpack.c.h.b16 %v1696
    %v5894 = vunpack.c.l.b16 %v1697
    %v5895 = vunpack.c.h.b16 %v1697
    %v5896 = vunpack.c.l.b16 %v1698
    %v5897 = vunpack.c.h.b16 %v1698
    %v5898 = vunpack.c.l.b16 %v1699
    %v5899 = vunpack.c.h.b16 %v1699
    %v5900 = vunpack.c.l.b16 %v1700
    %v5901 = vunpack.c.h.b16 %v1700
    %v5902 = vunpack.c.l.b16 %v1701
    %v5903 = vunpack.c.h.b16 %v1701
    %v5904 = vunpack.c.l.b16 %v1702
    %v5905 = vunpack.c.h.b16 %v1702
    %v5906 = vunpack.c.l.b16 %v1703
    %v5907 = vunpack.c.h.b16 %v1703
    %v5908 = vunpack.c.l.b16 %v1704
    %v5909 = vunpack.c.h.b16 %v1704
    %v5910 = vunpack.c.l.b16 %v1705
    %v5911 = vunpack.c.h.b16 %v1705
    %v5912 = vunpack.c.l.b16 %v1706
    %v5913 = vunpack.c.h.b16 %v1706
    %v5914 = vunpack.c.l.b16 %v1707
    %v5915 = vunpack.c.h.b16 %v1707
    %v5916 = vunpack.c.l.b16 %v1708
    %v5917 = vunpack.c.h.b16 %v1708
    %v5918 = vunpack.c.l.b16 %v1709
    %v5919 = vunpack.c.h.b16 %v1709
    %v5920 = vunpack.c.l.b16 %v1710
    %v5921 = vunpack.c.h.b16 %v1710
    %v5922 = vunpack.c.l.b16 %v1711
    %v5923 = vunpack.c.h.b16 %v1711
    %v5924 = vunpack.c.l.b16 %v1712
    %v5925 = vunpack.c.h.b16 %v1712
    %v5926 = vunpack.c.l.b16 %v1713
    %v5927 = vunpack.c.h.b16 %v1713
    %v5928 = vunpack.c.l.b16 %v1714
    %v5929 = vunpack.c.h.b16 %v1714
    %v5930 = vunpack.c.l.b16 %v1715
    %v5931 = vunpack.c.h.b16 %v1715
    %v5932 = vunpack.c.l.b16 %v1716
    %v5933 = vunpack.c.h.b16 %v1716
    %v5934 = vunpack.c.l.b16 %v1717
    %v5935 = vunpack.c.h.b16 %v1717
    %v5936 = vunpack.c.l.b16 %v1718
    %v5937 = vunpack.c.h.b16 %v1718
    %v5938 = vunpack.c.l.b16 %v1719
    %v5939 = vunpack.c.h.b16 %v1719
    %v5940 = vunpack.c.l.b16 %v1720
    %v5941 = vunpack.c.h.b16 %v1720
    %v5942 = vunpack.c.l.b16 %v1721
    %v5943 = vunpack.c.h.b16 %v1721
    %v5944 = vunpack.c.l.b16 %v1722
    %v5945 = vunpack.c.h.b16 %v1722
    %v5946 = vunpack.c.l.b16 %v1723
    %v5947 = vunpack.c.h.b16 %v1723
    %v5948 = vunpack.c.l.b16 %v1724
    %v5949 = vunpack.c.h.b16 %v1724
    %v5950 = vunpack.c.l.b16 %v1725
    %v5951 = vunpack.c.h.b16 %v1725
    %v5952 = vunpack.c.l.b16 %v1726
    %v5953 = vunpack.c.h.b16 %v1726
    %v5954 = vunpack.c.l.b16 %v1727
    %v5955 = vunpack.c.h.b16 %v1727
    %v5956 = vunpack.c.l.b16 %v1728
    %v5957 = vunpack.c.h.b16 %v1728
    %v5958 = vunpack.c.l.b16 %v1729
    %v5959 = vunpack.c.h.b16 %v1729
    %v5960 = vunpack.c.l.b16 %v1730
    %v5961 = vunpack.c.h.b16 %v1730
    %v5962 = vunpack.c.l.b16 %v1731
    %v5963 = vunpack.c.h.b16 %v1731
    %v5964 = vunpack.c.l.b16 %v1732
    %v5965 = vunpack.c.h.b16 %v1732
    %v5966 = vunpack.c.l.b16 %v1733
    %v5967 = vunpack.c.h.b16 %v1733
    %v5968 = vunpack.c.l.b16 %v1734
    %v5969 = vunpack.c.h.b16 %v1734
    %v5970 = vunpack.c.l.b16 %v1735
    %v5971 = vunpack.c.h.b16 %v1735
    %v5972 = vunpack.c.l.b16 %v1736
    %v5973 = vunpack.c.h.b16 %v1736
    %v5974 = vunpack.c.l.b16 %v1737
    %v5975 = vunpack.c.h.b16 %v1737
    %v5976 = vunpack.c.l.b16 %v1738
    %v5977 = vunpack.c.h.b16 %v1738
    %v5978 = vunpack.c.l.b16 %v1739
    %v5979 = vunpack.c.h.b16 %v1739
    %v5980 = vunpack.c.l.b16 %v1740
    %v5981 = vunpack.c.h.b16 %v1740
    %v5982 = vunpack.c.l.b16 %v1741
    %v5983 = vunpack.c.h.b16 %v1741
    %v5984 = vunpack.c.l.b16 %v1742
    %v5985 = vunpack.c.h.b16 %v1742
    %v5986 = vunpack.c.l.b16 %v1743
    %v5987 = vunpack.c.h.b16 %v1743
    %v5988 = vunpack.c.l.b16 %v1744
    %v5989 = vunpack.c.h.b16 %v1744
    %v5990 = vunpack.c.l.b16 %v1745
    %v5991 = vunpack.c.h.b16 %v1745
    %v5992 = vunpack.c.l.b16 %v1746
    %v5993 = vunpack.c.h.b16 %v1746
    %v5994 = vunpack.c.l.b16 %v1747
    %v5995 = vunpack.c.h.b16 %v1747
    %v5996 = vunpack.c.l.b16 %v1748
    %v5997 = vunpack.c.h.b16 %v1748
    %v5998 = vunpack.c.l.b16 %v1749
    %v5999 = vunpack.c.h.b16 %v1749
    %v6000 = vunpack.c.l.b16 %v1750
    %v6001 = vunpack.c.h.b16 %v1750
    %v6002 = vunpack.c.l.b16 %v1751
    %v6003 = vunpack.c.h.b16 %v1751
    %v6004 = vunpack.c.l.b16 %v1752
    %v6005 = vunpack.c.h.b16 %v1752
    %v6006 = vunpack.c.l.b16 %v1753
    %v6007 = vunpack.c.h.b16 %v1753
    %v6008 = vunpack.c.l.b16 %v1754
    %v6009 = vunpack.c.h.b16 %v1754
    %v6010 = vunpack.c.l.b16 %v1755
    %v6011 = vunpack.c.h.b16 %v1755
    %v6012 = vunpack.c.l.b16 %v1756
    %v6013 = vunpack.c.h.b16 %v1756
    %v6014 = vunpack.c.l.b16 %v1757
    %v6015 = vunpack.c.h.b16 %v1757
    %v6016 = vunpack.c.l.b16 %v1758
    %v6017 = vunpack.c.h.b16 %v1758
    %v6018 = vunpack.c.l.b16 %v1759
    %v6019 = vunpack.c.h.b16 %v1759
    %v6020 = vunpack.c.l.b16 %v1760
    %v6021 = vunpack.c.h.b16 %v1760
    %v6022 = vunpack.c.l.b16 %v1761
    %v6023 = vunpack.c.h.b16 %v1761
    %v6024 = vunpack.c.l.b16 %v1762
    %v6025 = vunpack.c.h.b16 %v1762
    %v6026 = vunpack.c.l.b16 %v1763
    %v6027 = vunpack.c.h.b16 %v1763
    %v6028 = vunpack.c.l.b16 %v1764
    %v6029 = vunpack.c.h.b16 %v1764
    %v6030 = vunpack.c.l.b16 %v1765
    %v6031 = vunpack.c.h.b16 %v1765
    %v6032 = vunpack.c.l.b16 %v1766
    %v6033 = vunpack.c.h.b16 %v1766
    %v6034 = vunpack.c.l.b16 %v1767
    %v6035 = vunpack.c.h.b16 %v1767
    %v6036 = vunpack.c.l.b16 %v1768
    %v6037 = vunpack.c.h.b16 %v1768
    %v6038 = vunpack.c.l.b16 %v1769
    %v6039 = vunpack.c.h.b16 %v1769
    %v6040 = vunpack.c.l.b16 %v1770
    %v6041 = vunpack.c.h.b16 %v1770
    %v6042 = vunpack.c.l.b16 %v1771
    %v6043 = vunpack.c.h.b16 %v1771
    %v6044 = vunpack.c.l.b16 %v1772
    %v6045 = vunpack.c.h.b16 %v1772
    %v6046 = vunpack.c.l.b16 %v1773
    %v6047 = vunpack.c.h.b16 %v1773
    %v6048 = vunpack.c.l.b16 %v1774
    %v6049 = vunpack.c.h.b16 %v1774
    %v6050 = vunpack.c.l.b16 %v1775
    %v6051 = vunpack.c.h.b16 %v1775
    %v6052 = vunpack.c.l.b16 %v1776
    %v6053 = vunpack.c.h.b16 %v1776
    %v6054 = vunpack.c.l.b16 %v1777
    %v6055 = vunpack.c.h.b16 %v1777
    %v6056 = vunpack.c.l.b16 %v1778
    %v6057 = vunpack.c.h.b16 %v1778
    %v6058 = vunpack.c.l.b16 %v1779
    %v6059 = vunpack.c.h.b16 %v1779
    %v6060 = vunpack.c.l.b16 %v1780
    %v6061 = vunpack.c.h.b16 %v1780
    %v6062 = vunpack.c.l.b16 %v1781
    %v6063 = vunpack.c.h.b16 %v1781
    %v6064 = vunpack.c.l.b16 %v1782
    %v6065 = vunpack.c.h.b16 %v1782
    %v6066 = vunpack.c.l.b16 %v1783
    %v6067 = vunpack.c.h.b16 %v1783
    %v6068 = vunpack.c.l.b16 %v1784
    %v6069 = vunpack.c.h.b16 %v1784
    %v6070 = vunpack.c.l.b16 %v1785
    %v6071 = vunpack.c.h.b16 %v1785
    %v6072 = vunpack.c.l.b16 %v1786
    %v6073 = vunpack.c.h.b16 %v1786
    %v6074 = vunpack.c.l.b16 %v1787
    %v6075 = vunpack.c.h.b16 %v1787
    %v6076 = vunpack.c.l.b16 %v1788
    %v6077 = vunpack.c.h.b16 %v1788
    %v6078 = vunpack.c.l.b16 %v1789
    %v6079 = vunpack.c.h.b16 %v1789
    %v6080 = vunpack.c.l.b16 %v1790
    %v6081 = vunpack.c.h.b16 %v1790
    %v6082 = vunpack.c.l.b16 %v1791
    %v6083 = vunpack.c.h.b16 %v1791
    %v6084 = vunpack.c.l.b16 %v1792
    %v6085 = vunpack.c.h.b16 %v1792
    %v6086 = vunpack.c.l.b16 %v1793
    %v6087 = vunpack.c.h.b16 %v1793
    %v6088 = vunpack.c.l.b16 %v1794
    %v6089 = vunpack.c.h.b16 %v1794
    %v6090 = vunpack.c.l.b16 %v1795
    %v6091 = vunpack.c.h.b16 %v1795
    %v6092 = vunpack.c.l.b16 %v1796
    %v6093 = vunpack.c.h.b16 %v1796
    %v6094 = vunpack.c.l.b16 %v1797
    %v6095 = vunpack.c.h.b16 %v1797
    %v6096 = vunpack.c.l.b16 %v1798
    %v6097 = vunpack.c.h.b16 %v1798
    %v6098 = vunpack.c.l.b16 %v1799
    %v6099 = vunpack.c.h.b16 %v1799
    %v6100 = vunpack.c.l.b16 %v1800
    %v6101 = vunpack.c.h.b16 %v1800
    %v6102 = vunpack.c.l.b16 %v1801
    %v6103 = vunpack.c.h.b16 %v1801
    %v6104 = vunpack.c.l.b16 %v1802
    %v6105 = vunpack.c.h.b16 %v1802
    %v6106 = vunpack.c.l.b16 %v1803
    %v6107 = vunpack.c.h.b16 %v1803
    %v6108 = vunpack.c.l.b16 %v1804
    %v6109 = vunpack.c.h.b16 %v1804
    %v6110 = vunpack.c.l.b16 %v1805
    %v6111 = vunpack.c.h.b16 %v1805
    %v6112 = vunpack.c.l.b16 %v1806
    %v6113 = vunpack.c.h.b16 %v1806
    %v6114 = vunpack.c.l.b16 %v1807
    %v6115 = vunpack.c.h.b16 %v1807
    %v6116 = vunpack.c.l.b16 %v1808
    %v6117 = vunpack.c.h.b16 %v1808
    %v6118 = vunpack.c.l.b16 %v1809
    %v6119 = vunpack.c.h.b16 %v1809
    %v6120 = vunpack.c.l.b16 %v1810
    %v6121 = vunpack.c.h.b16 %v1810
    %v6122 = vunpack.c.l.b16 %v1811
    %v6123 = vunpack.c.h.b16 %v1811
    %v6124 = vunpack.c.l.b16 %v1812
    %v6125 = vunpack.c.h.b16 %v1812
    %v6126 = vunpack.c.l.b16 %v1813
    %v6127 = vunpack.c.h.b16 %v1813
    %v6128 = vunpack.c.l.b16 %v1814
    %v6129 = vunpack.c.h.b16 %v1814
    %v6130 = vunpack.c.l.b16 %v1815
    %v6131 = vunpack.c.h.b16 %v1815
    %v6132 = vunpack.c.l.b16 %v1816
    %v6133 = vunpack.c.h.b16 %v1816
    %v6134 = vunpack.c.l.b16 %v1817
    %v6135 = vunpack.c.h.b16 %v1817
    %v6136 = vunpack.c.l.b16 %v1818
    %v6137 = vunpack.c.h.b16 %v1818
    %v6138 = vunpack.c.l.b16 %v1819
    %v6139 = vunpack.c.h.b16 %v1819
    %v6140 = vunpack.c.l.b16 %v1820
    %v6141 = vunpack.c.h.b16 %v1820
    %v6142 = vunpack.c.l.b16 %v1821
    %v6143 = vunpack.c.h.b16 %v1821
    %v6144 = vunpack.c.l.b16 %v1822
    %v6145 = vunpack.c.h.b16 %v1822
    %v6146 = vunpack.c.l.b16 %v1823
    %v6147 = vunpack.c.h.b16 %v1823
    %v6148 = vunpack.c.l.b16 %v1824
    %v6149 = vunpack.c.h.b16 %v1824
    %v6150 = vunpack.c.l.b16 %v1825
    %v6151 = vunpack.c.h.b16 %v1825
    %v6152 = vunpack.c.l.b16 %v1826
    %v6153 = vunpack.c.h.b16 %v1826
    %v6154 = vunpack.c.l.b16 %v1827
    %v6155 = vunpack.c.h.b16 %v1827
    %v6156 = vunpack.c.l.b16 %v1828
    %v6157 = vunpack.c.h.b16 %v1828
    %v6158 = vunpack.c.l.b16 %v1829
    %v6159 = vunpack.c.h.b16 %v1829
    %v6160 = vunpack.c.l.b16 %v1830
    %v6161 = vunpack.c.h.b16 %v1830
    %v6162 = vunpack.c.l.b16 %v1831
    %v6163 = vunpack.c.h.b16 %v1831
    %v6164 = vunpack.c.l.b16 %v1832
    %v6165 = vunpack.c.h.b16 %v1832
    %v6166 = vunpack.c.l.b16 %v1833
    %v6167 = vunpack.c.h.b16 %v1833
    %v6168 = vunpack.c.l.b16 %v1834
    %v6169 = vunpack.c.h.b16 %v1834
    %v6170 = vunpack.c.l.b16 %v1835
    %v6171 = vunpack.c.h.b16 %v1835
    %v6172 = vunpack.c.l.b16 %v1836
    %v6173 = vunpack.c.h.b16 %v1836
    %v6174 = vunpack.c.l.b16 %v1837
    %v6175 = vunpack.c.h.b16 %v1837
    %v6176 = vunpack.c.l.b16 %v1838
    %v6177 = vunpack.c.h.b16 %v1838
    %v6178 = vunpack.c.l.b16 %v1839
    %v6179 = vunpack.c.h.b16 %v1839
    %v6180 = vunpack.c.l.b16 %v1840
    %v6181 = vunpack.c.h.b16 %v1840
    %v6182 = vunpack.c.l.b16 %v1841
    %v6183 = vunpack.c.h.b16 %v1841
    %v6184 = vunpack.c.l.b16 %v1842
    %v6185 = vunpack.c.h.b16 %v1842
    %v6186 = vunpack.c.l.b16 %v1843
    %v6187 = vunpack.c.h.b16 %v1843
    %v6188 = vunpack.c.l.b16 %v1844
    %v6189 = vunpack.c.h.b16 %v1844
    %v6190 = vunpack.c.l.b16 %v1845
    %v6191 = vunpack.c.h.b16 %v1845
    %v6192 = vunpack.c.l.b16 %v1846
    %v6193 = vunpack.c.h.b16 %v1846
    %v6194 = vunpack.c.l.b16 %v1847
    %v6195 = vunpack.c.h.b16 %v1847
    %v6196 = vunpack.c.l.b16 %v1848
    %v6197 = vunpack.c.h.b16 %v1848
    %v6198 = vunpack.c.l.b16 %v1849
    %v6199 = vunpack.c.h.b16 %v1849
    %v6200 = vunpack.c.l.b16 %v1850
    %v6201 = vunpack.c.h.b16 %v1850
    %v6202 = vunpack.c.l.b16 %v1851
    %v6203 = vunpack.c.h.b16 %v1851
    %v6204 = vunpack.c.l.b16 %v1852
    %v6205 = vunpack.c.h.b16 %v1852
    %v6206 = vunpack.c.l.b16 %v1853
    %v6207 = vunpack.c.h.b16 %v1853
    %v6208 = vunpack.c.l.b16 %v1854
    %v6209 = vunpack.c.h.b16 %v1854
    %v6210 = vunpack.c.l.b16 %v1855
    %v6211 = vunpack.c.h.b16 %v1855
    %v6212 = vunpack.c.l.b16 %v1856
    %v6213 = vunpack.c.h.b16 %v1856
    %v6214 = vunpack.c.l.b16 %v1857
    %v6215 = vunpack.c.h.b16 %v1857
    %v6216 = vunpack.c.l.b16 %v1858
    %v6217 = vunpack.c.h.b16 %v1858
    %v6218 = vunpack.c.l.b16 %v1859
    %v6219 = vunpack.c.h.b16 %v1859
    %v6220 = vunpack.c.l.b16 %v1860
    %v6221 = vunpack.c.h.b16 %v1860
    %v6222 = vunpack.c.l.b16 %v1861
    %v6223 = vunpack.c.h.b16 %v1861
    %v6224 = vunpack.c.l.b16 %v1862
    %v6225 = vunpack.c.h.b16 %v1862
    %v6226 = vunpack.c.l.b16 %v1863
    %v6227 = vunpack.c.h.b16 %v1863
    %v6228 = vunpack.c.l.b16 %v1864
    %v6229 = vunpack.c.h.b16 %v1864
    %v6230 = vunpack.c.l.b16 %v1865
    %v6231 = vunpack.c.h.b16 %v1865
    %v6232 = vunpack.c.l.b16 %v1866
    %v6233 = vunpack.c.h.b16 %v1866
    %v6234 = vunpack.c.l.b16 %v1867
    %v6235 = vunpack.c.h.b16 %v1867
    %v6236 = vunpack.c.l.b16 %v1868
    %v6237 = vunpack.c.h.b16 %v1868
    %v6238 = vunpack.c.l.b16 %v1869
    %v6239 = vunpack.c.h.b16 %v1869
    %v6240 = vunpack.c.l.b16 %v1870
    %v6241 = vunpack.c.h.b16 %v1870
    %v6242 = vunpack.c.l.b16 %v1871
    %v6243 = vunpack.c.h.b16 %v1871
    %v6244 = vunpack.c.l.b16 %v1872
    %v6245 = vunpack.c.h.b16 %v1872
    %v6246 = vunpack.c.l.b16 %v1873
    %v6247 = vunpack.c.h.b16 %v1873
    %v6248 = vunpack.c.l.b16 %v1874
    %v6249 = vunpack.c.h.b16 %v1874
    %v6250 = vunpack.c.l.b16 %v1875
    %v6251 = vunpack.c.h.b16 %v1875
    %v6252 = vunpack.c.l.b16 %v1876
    %v6253 = vunpack.c.h.b16 %v1876
    %v6254 = vunpack.c.l.b16 %v1877
    %v6255 = vunpack.c.h.b16 %v1877
    %v6256 = vunpack.c.l.b16 %v1878
    %v6257 = vunpack.c.h.b16 %v1878
    %v6258 = vunpack.c.l.b16 %v1879
    %v6259 = vunpack.c.h.b16 %v1879
    %v6260 = vunpack.c.l.b16 %v1880
    %v6261 = vunpack.c.h.b16 %v1880
    %v6262 = vunpack.c.l.b16 %v1881
    %v6263 = vunpack.c.h.b16 %v1881
    %v6264 = vunpack.c.l.b16 %v1882
    %v6265 = vunpack.c.h.b16 %v1882
    %v6266 = vunpack.c.l.b16 %v1883
    %v6267 = vunpack.c.h.b16 %v1883
    %v6268 = vunpack.c.l.b16 %v1884
    %v6269 = vunpack.c.h.b16 %v1884
    %v6270 = vunpack.c.l.b16 %v1885
    %v6271 = vunpack.c.h.b16 %v1885
    %v6272 = vunpack.c.l.b16 %v1886
    %v6273 = vunpack.c.h.b16 %v1886
    %v6274 = vunpack.c.l.b16 %v1887
    %v6275 = vunpack.c.h.b16 %v1887
    %v6276 = vunpack.c.l.b16 %v1888
    %v6277 = vunpack.c.h.b16 %v1888
    %v6278 = vunpack.c.l.b16 %v1889
    %v6279 = vunpack.c.h.b16 %v1889
    %v6280 = vunpack.c.l.b16 %v1890
    %v6281 = vunpack.c.h.b16 %v1890
    %v6282 = vunpack.c.l.b16 %v1891
    %v6283 = vunpack.c.h.b16 %v1891
    %v6284 = vunpack.c.l.b16 %v1892
    %v6285 = vunpack.c.h.b16 %v1892
    %v6286 = vunpack.c.l.b16 %v1893
    %v6287 = vunpack.c.h.b16 %v1893
    %v6288 = vunpack.c.l.b16 %v1894
    %v6289 = vunpack.c.h.b16 %v1894
    %v6290 = vunpack.c.l.b16 %v1895
    %v6291 = vunpack.c.h.b16 %v1895
    %v6292 = vunpack.c.l.b16 %v1896
    %v6293 = vunpack.c.h.b16 %v1896
    %v6294 = vunpack.c.l.b16 %v1897
    %v6295 = vunpack.c.h.b16 %v1897
    %v6296 = vunpack.c.l.b16 %v1898
    %v6297 = vunpack.c.h.b16 %v1898
    %v6298 = vunpack.c.l.b16 %v1899
    %v6299 = vunpack.c.h.b16 %v1899
    %v6300 = vunpack.c.l.b16 %v1900
    %v6301 = vunpack.c.h.b16 %v1900
    %v6302 = vunpack.c.l.b16 %v1901
    %v6303 = vunpack.c.h.b16 %v1901
    %v6304 = vunpack.c.l.b16 %v1902
    %v6305 = vunpack.c.h.b16 %v1902
    %v6306 = vunpack.c.l.b16 %v1903
    %v6307 = vunpack.c.h.b16 %v1903
    %v6308 = vunpack.c.l.b16 %v1904
    %v6309 = vunpack.c.h.b16 %v1904
    %v6310 = vunpack.c.l.b16 %v1905
    %v6311 = vunpack.c.h.b16 %v1905
    %v6312 = vunpack.c.l.b16 %v1906
    %v6313 = vunpack.c.h.b16 %v1906
    %v6314 = vunpack.c.l.b16 %v1907
    %v6315 = vunpack.c.h.b16 %v1907
    %v6316 = vunpack.c.l.b16 %v1908
    %v6317 = vunpack.c.h.b16 %v1908
    %v6318 = vunpack.c.l.b16 %v1909
    %v6319 = vunpack.c.h.b16 %v1909
    %v6320 = vunpack.c.l.b16 %v1910
    %v6321 = vunpack.c.h.b16 %v1910
    %v6322 = vunpack.c.l.b16 %v1911
    %v6323 = vunpack.c.h.b16 %v1911
    %v6324 = vunpack.c.l.b16 %v1912
    %v6325 = vunpack.c.h.b16 %v1912
    %v6326 = vunpack.c.l.b16 %v1913
    %v6327 = vunpack.c.h.b16 %v1913
    %v6328 = vunpack.c.l.b16 %v1914
    %v6329 = vunpack.c.h.b16 %v1914
    %v6330 = vunpack.c.l.b16 %v1915
    %v6331 = vunpack.c.h.b16 %v1915
    %v6332 = vunpack.c.l.b16 %v1916
    %v6333 = vunpack.c.h.b16 %v1916
    %v6334 = vunpack.c.l.b16 %v1917
    %v6335 = vunpack.c.h.b16 %v1917
    %v6336 = vunpack.c.l.b16 %v1918
    %v6337 = vunpack.c.h.b16 %v1918
    %v6338 = vunpack.c.l.b16 %v1919
    %v6339 = vunpack.c.h.b16 %v1919
    %v6340 = vunpack.c.l.b16 %v1920
    %v6341 = vunpack.c.h.b16 %v1920
    %v6342 = vunpack.c.l.b16 %v1921
    %v6343 = vunpack.c.h.b16 %v1921
    %v6344 = vunpack.c.l.b16 %v1922
    %v6345 = vunpack.c.h.b16 %v1922
    %v6346 = vunpack.c.l.b16 %v1923
    %v6347 = vunpack.c.h.b16 %v1923
    %v6348 = vunpack.c.l.b16 %v1924
    %v6349 = vunpack.c.h.b16 %v1924
    %v6350 = vunpack.c.l.b16 %v1925
    %v6351 = vunpack.c.h.b16 %v1925
    %v6352 = vunpack.c.l.b16 %v1926
    %v6353 = vunpack.c.h.b16 %v1926
    %v6354 = vunpack.c.l.b16 %v1927
    %v6355 = vunpack.c.h.b16 %v1927
    %v6356 = vunpack.c.l.b16 %v1928
    %v6357 = vunpack.c.h.b16 %v1928
    %v6358 = vunpack.c.l.b16 %v1929
    %v6359 = vunpack.c.h.b16 %v1929
    %v6360 = vunpack.c.l.b16 %v1930
    %v6361 = vunpack.c.h.b16 %v1930
    %v6362 = vunpack.c.l.b16 %v1931
    %v6363 = vunpack.c.h.b16 %v1931
    %v6364 = vunpack.c.l.b16 %v1932
    %v6365 = vunpack.c.h.b16 %v1932
    %v6366 = vunpack.c.l.b16 %v1933
    %v6367 = vunpack.c.h.b16 %v1933
    %v6368 = vunpack.c.l.b16 %v1934
    %v6369 = vunpack.c.h.b16 %v1934
    %v6370 = vunpack.c.l.b16 %v1935
    %v6371 = vunpack.c.h.b16 %v1935
    %v6372 = vunpack.c.l.b16 %v1936
    %v6373 = vunpack.c.h.b16 %v1936
    %v6374 = vunpack.c.l.b16 %v1937
    %v6375 = vunpack.c.h.b16 %v1937
    %v6376 = vunpack.c.l.b16 %v1938
    %v6377 = vunpack.c.h.b16 %v1938
    %v6378 = vunpack.c.l.b16 %v1939
    %v6379 = vunpack.c.h.b16 %v1939
    %v6380 = vunpack.c.l.b16 %v1940
    %v6381 = vunpack.c.h.b16 %v1940
    %v6382 = vunpack.c.l.b16 %v1941
    %v6383 = vunpack.c.h.b16 %v1941
    %v6384 = vunpack.c.l.b16 %v1942
    %v6385 = vunpack.c.h.b16 %v1942
    %v6386 = vunpack.c.l.b16 %v1943
    %v6387 = vunpack.c.h.b16 %v1943
    %v6388 = vunpack.c.l.b16 %v1944
    %v6389 = vunpack.c.h.b16 %v1944
    %v6390 = vunpack.c.l.b16 %v1945
    %v6391 = vunpack.c.h.b16 %v1945
    %v6392 = vunpack.c.l.b16 %v1946
    %v6393 = vunpack.c.h.b16 %v1946
    %v6394 = vunpack.c.l.b16 %v1947
    %v6395 = vunpack.c.h.b16 %v1947
    %v6396 = vunpack.c.l.b16 %v1948
    %v6397 = vunpack.c.h.b16 %v1948
    %v6398 = vunpack.c.l.b16 %v1949
    %v6399 = vunpack.c.h.b16 %v1949
    %v6400 = vunpack.c.l.b16 %v1950
    %v6401 = vunpack.c.h.b16 %v1950
    %v6402 = vunpack.c.l.b16 %v1951
    %v6403 = vunpack.c.h.b16 %v1951
    %v6404 = vunpack.c.l.b16 %v1952
    %v6405 = vunpack.c.h.b16 %v1952
    %v6406 = vunpack.c.l.b16 %v1953
    %v6407 = vunpack.c.h.b16 %v1953
    %v6408 = vunpack.c.l.b16 %v1954
    %v6409 = vunpack.c.h.b16 %v1954
    %v6410 = vunpack.c.l.b16 %v1955
    %v6411 = vunpack.c.h.b16 %v1955
    %v6412 = vunpack.c.l.b16 %v1956
    %v6413 = vunpack.c.h.b16 %v1956
    %v6414 = vunpack.c.l.b16 %v1957
    %v6415 = vunpack.c.h.b16 %v1957
    %v6416 = vunpack.c.l.b16 %v1958
    %v6417 = vunpack.c.h.b16 %v1958
    %v6418 = vunpack.c.l.b16 %v1959
    %v6419 = vunpack.c.h.b16 %v1959
    %v6420 = vunpack.c.l.b16 %v1960
    %v6421 = vunpack.c.h.b16 %v1960
    %v6422 = vunpack.c.l.b16 %v1961
    %v6423 = vunpack.c.h.b16 %v1961
    %v6424 = vunpack.c.l.b16 %v1962
    %v6425 = vunpack.c.h.b16 %v1962
    %v6426 = vunpack.c.l.b16 %v1963
    %v6427 = vunpack.c.h.b16 %v1963
    %v6428 = vunpack.c.l.b16 %v1964
    %v6429 = vunpack.c.h.b16 %v1964
    %v6430 = vunpack.c.l.b16 %v1965
    %v6431 = vunpack.c.h.b16 %v1965
    %v6432 = vunpack.c.l.b16 %v1966
    %v6433 = vunpack.c.h.b16 %v1966
    %v6434 = vunpack.c.l.b16 %v1967
    %v6435 = vunpack.c.h.b16 %v1967
    %v6436 = vunpack.c.l.b16 %v1968
    %v6437 = vunpack.c.h.b16 %v1968
    %v6438 = vunpack.c.l.b16 %v1969
    %v6439 = vunpack.c.h.b16 %v1969
    %v6440 = vunpack.c.l.b16 %v1970
    %v6441 = vunpack.c.h.b16 %v1970
    %v6442 = vunpack.c.l.b16 %v1971
    %v6443 = vunpack.c.h.b16 %v1971
    %v6444 = vunpack.c.l.b16 %v1972
    %v6445 = vunpack.c.h.b16 %v1972
    %v6446 = vunpack.c.l.b16 %v1973
    %v6447 = vunpack.c.h.b16 %v1973
    %v6448 = vunpack.c.l.b16 %v1974
    %v6449 = vunpack.c.h.b16 %v1974
    %v6450 = vunpack.c.l.b16 %v1975
    %v6451 = vunpack.c.h.b16 %v1975
    %v6452 = vunpack.c.l.b16 %v1976
    %v6453 = vunpack.c.h.b16 %v1976
    %v6454 = vunpack.c.l.b16 %v1977
    %v6455 = vunpack.c.h.b16 %v1977
    %v6456 = vunpack.c.l.b16 %v1978
    %v6457 = vunpack.c.h.b16 %v1978
    %v6458 = vunpack.c.l.b16 %v1979
    %v6459 = vunpack.c.h.b16 %v1979
    %v6460 = vunpack.c.l.b16 %v1980
    %v6461 = vunpack.c.h.b16 %v1980
    %v6462 = vunpack.c.l.b16 %v1981
    %v6463 = vunpack.c.h.b16 %v1981
    %v6464 = vunpack.c.l.b16 %v1982
    %v6465 = vunpack.c.h.b16 %v1982
    %v6466 = vunpack.c.l.b16 %v1983
    %v6467 = vunpack.c.h.b16 %v1983
    %v6468 = vunpack.c.l.b16 %v1984
    %v6469 = vunpack.c.h.b16 %v1984
    %v6470 = vunpack.c.l.b16 %v1985
    %v6471 = vunpack.c.h.b16 %v1985
    %v6472 = vunpack.c.l.b16 %v1986
    %v6473 = vunpack.c.h.b16 %v1986
    %v6474 = vunpack.c.l.b16 %v1987
    %v6475 = vunpack.c.h.b16 %v1987
    %v6476 = vunpack.c.l.b16 %v1988
    %v6477 = vunpack.c.h.b16 %v1988
    %v6478 = vunpack.c.l.b16 %v1989
    %v6479 = vunpack.c.h.b16 %v1989
    %v6480 = vunpack.c.l.b16 %v1990
    %v6481 = vunpack.c.h.b16 %v1990
    %v6482 = vunpack.c.l.b16 %v1991
    %v6483 = vunpack.c.h.b16 %v1991
    %v6484 = vunpack.c.l.b16 %v1992
    %v6485 = vunpack.c.h.b16 %v1992
    %v6486 = vunpack.c.l.b16 %v1993
    %v6487 = vunpack.c.h.b16 %v1993
    %v6488 = vunpack.c.l.b16 %v1994
    %v6489 = vunpack.c.h.b16 %v1994
    %v6490 = vunpack.c.l.b16 %v1995
    %v6491 = vunpack.c.h.b16 %v1995
    %v6492 = vunpack.c.l.b16 %v1996
    %v6493 = vunpack.c.h.b16 %v1996
    %v6494 = vunpack.c.l.b16 %v1997
    %v6495 = vunpack.c.h.b16 %v1997
    %v6496 = vunpack.c.l.b16 %v1998
    %v6497 = vunpack.c.h.b16 %v1998
    %v6498 = vunpack.c.l.b16 %v1999
    %v6499 = vunpack.c.h.b16 %v1999
    %v6500 = vunpack.c.l.b16 %v2000
    %v6501 = vunpack.c.h.b16 %v2000
    %v6502 = vunpack.c.l.b16 %v2001
    %v6503 = vunpack.c.h.b16 %v2001
    %v6504 = vunpack.c.l.b16 %v2002
    %v6505 = vunpack.c.h.b16 %v2002
    %v6506 = vunpack.c.l.b16 %v2003
    %v6507 = vunpack.c.h.b16 %v2003
    %v6508 = vunpack.c.l.b16 %v2004
    %v6509 = vunpack.c.h.b16 %v2004
    %v6510 = vunpack.c.l.b16 %v2005
    %v6511 = vunpack.c.h.b16 %v2005
    %v6512 = vunpack.c.l.b16 %v2006
    %v6513 = vunpack.c.h.b16 %v2006
    %v6514 = vunpack.c.l.b16 %v2007
    %v6515 = vunpack.c.h.b16 %v2007
    %v6516 = vunpack.c.l.b16 %v2008
    %v6517 = vunpack.c.h.b16 %v2008
    %v6518 = vunpack.c.l.b16 %v2009
    %v6519 = vunpack.c.h.b16 %v2009
    %v6520 = vunpack.c.l.b16 %v2010
    %v6521 = vunpack.c.h.b16 %v2010
    %v6522 = vunpack.c.l.b16 %v2011
    %v6523 = vunpack.c.h.b16 %v2011
    %v6524 = vunpack.c.l.b16 %v2012
    %v6525 = vunpack.c.h.b16 %v2012
    %v6526 = vunpack.c.l.b16 %v2013
    %v6527 = vunpack.c.h.b16 %v2013
    %v6528 = vunpack.c.l.b16 %v2014
    %v6529 = vunpack.c.h.b16 %v2014
    %v6530 = vunpack.c.l.b16 %v2015
    %v6531 = vunpack.c.h.b16 %v2015
    %v6532 = vunpack.c.l.b16 %v2016
    %v6533 = vunpack.c.h.b16 %v2016
    %v6534 = vunpack.c.l.b16 %v2017
    %v6535 = vunpack.c.h.b16 %v2017
    %v6536 = vunpack.c.l.b16 %v2018
    %v6537 = vunpack.c.h.b16 %v2018
    %v6538 = vunpack.c.l.b16 %v2019
    %v6539 = vunpack.c.h.b16 %v2019
    %v6540 = vunpack.c.l.b16 %v2020
    %v6541 = vunpack.c.h.b16 %v2020
    %v6542 = vunpack.c.l.b16 %v2021
    %v6543 = vunpack.c.h.b16 %v2021
    %v6544 = vunpack.c.l.b16 %v2022
    %v6545 = vunpack.c.h.b16 %v2022
    %v6546 = vunpack.c.l.b16 %v2023
    %v6547 = vunpack.c.h.b16 %v2023
    %v6548 = vunpack.c.l.b16 %v2024
    %v6549 = vunpack.c.h.b16 %v2024
    %v6550 = vunpack.c.l.b16 %v2025
    %v6551 = vunpack.c.h.b16 %v2025
    %v6552 = vunpack.c.l.b16 %v2026
    %v6553 = vunpack.c.h.b16 %v2026
    %v6554 = vunpack.c.l.b16 %v2027
    %v6555 = vunpack.c.h.b16 %v2027
    %v6556 = vunpack.c.l.b16 %v2028
    %v6557 = vunpack.c.h.b16 %v2028
    %v6558 = vunpack.c.l.b16 %v2029
    %v6559 = vunpack.c.h.b16 %v2029
    %v6560 = vunpack.c.l.b16 %v2030
    %v6561 = vunpack.c.h.b16 %v2030
    %v6562 = vunpack.c.l.b16 %v2031
    %v6563 = vunpack.c.h.b16 %v2031
    %v6564 = vunpack.c.l.b16 %v2032
    %v6565 = vunpack.c.h.b16 %v2032
    %v6566 = vunpack.c.l.b16 %v2033
    %v6567 = vunpack.c.h.b16 %v2033
    %v6568 = vunpack.c.l.b16 %v2034
    %v6569 = vunpack.c.h.b16 %v2034
    %v6570 = vunpack.c.l.b16 %v2035
    %v6571 = vunpack.c.h.b16 %v2035
    %v6572 = vunpack.c.l.b16 %v2036
    %v6573 = vunpack.c.h.b16 %v2036
    %v6574 = vunpack.c.l.b16 %v2037
    %v6575 = vunpack.c.h.b16 %v2037
    %v6576 = vunpack.c.l.b16 %v2038
    %v6577 = vunpack.c.h.b16 %v2038
    %v6578 = vunpack.c.l.b16 %v2039
    %v6579 = vunpack.c.h.b16 %v2039
    %v6580 = vunpack.c.l.b16 %v2040
    %v6581 = vunpack.c.h.b16 %v2040
    %v6582 = vunpack.c.l.b16 %v2041
    %v6583 = vunpack.c.h.b16 %v2041
    %v6584 = vunpack.c.l.b16 %v2042
    %v6585 = vunpack.c.h.b16 %v2042
    %v6586 = vunpack.c.l.b16 %v2043
    %v6587 = vunpack.c.h.b16 %v2043
    %v6588 = vunpack.c.l.b16 %v2044
    %v6589 = vunpack.c.h.b16 %v2044
    %v6590 = vunpack.c.l.b16 %v2045
    %v6591 = vunpack.c.h.b16 %v2045
    %v6592 = vunpack.c.l.b16 %v2046
    %v6593 = vunpack.c.h.b16 %v2046
    %v6594 = vunpack.c.l.b16 %v2047
    %v6595 = vunpack.c.h.b16 %v2047
    %v6596 = vunpack.c.l.b16 %v2048
    %v6597 = vunpack.c.h.b16 %v2048
    %v6598 = vunpack.c.l.b16 %v2049
    %v6599 = vunpack.c.h.b16 %v2049
    %v6600 = vunpack.c.l.b16 %v2050
    %v6601 = vunpack.c.h.b16 %v2050
    %v6602 = vunpack.c.l.b16 %v2051
    %v6603 = vunpack.c.h.b16 %v2051
    %v6604 = vunpack.c.l.b16 %v2052
    %v6605 = vunpack.c.h.b16 %v2052
    %v6606 = vunpack.c.l.b16 %v2053
    %v6607 = vunpack.c.h.b16 %v2053
    %v6608 = vunpack.c.l.b16 %v2054
    %v6609 = vunpack.c.h.b16 %v2054
    %v6610 = vunpack.c.l.b16 %v2055
    %v6611 = vunpack.c.h.b16 %v2055
    %v6612 = vunpack.c.l.b16 %v2056
    %v6613 = vunpack.c.h.b16 %v2056
    %v6614 = vunpack.c.l.b16 %v2057
    %v6615 = vunpack.c.h.b16 %v2057
    %v6616 = vunpack.c.l.b16 %v2058
    %v6617 = vunpack.c.h.b16 %v2058
    %v6618 = vunpack.c.l.b16 %v2059
    %v6619 = vunpack.c.h.b16 %v2059
    %v6620 = vunpack.c.l.b16 %v2060
    %v6621 = vunpack.c.h.b16 %v2060
    %v6622 = vunpack.c.l.b16 %v2061
    %v6623 = vunpack.c.h.b16 %v2061
    %v6624 = vunpack.c.l.b16 %v2062
    %v6625 = vunpack.c.h.b16 %v2062
    %v6626 = vunpack.c.l.b16 %v2063
    %v6627 = vunpack.c.h.b16 %v2063
    %v6628 = vunpack.c.l.b16 %v2064
    %v6629 = vunpack.c.h.b16 %v2064
    %v6630 = vunpack.c.l.b16 %v2065
    %v6631 = vunpack.c.h.b16 %v2065
    %v6632 = vunpack.c.l.b16 %v2066
    %v6633 = vunpack.c.h.b16 %v2066
    %v6634 = vunpack.c.l.b16 %v2067
    %v6635 = vunpack.c.h.b16 %v2067
    %v6636 = vunpack.c.l.b16 %v2068
    %v6637 = vunpack.c.h.b16 %v2068
    %v6638 = vunpack.c.l.b16 %v2069
    %v6639 = vunpack.c.h.b16 %v2069
    %v6640 = vunpack.c.l.b16 %v2070
    %v6641 = vunpack.c.h.b16 %v2070
    %v6642 = vunpack.c.l.b16 %v2071
    %v6643 = vunpack.c.h.b16 %v2071
    %v6644 = vunpack.c.l.b16 %v2072
    %v6645 = vunpack.c.h.b16 %v2072
    %v6646 = vunpack.c.l.b16 %v2073
    %v6647 = vunpack.c.h.b16 %v2073
    %v6648 = vunpack.c.l.b16 %v2074
    %v6649 = vunpack.c.h.b16 %v2074
    %v6650 = vunpack.c.l.b16 %v2075
    %v6651 = vunpack.c.h.b16 %v2075
    %v6652 = vunpack.c.l.b16 %v2076
    %v6653 = vunpack.c.h.b16 %v2076
    %v6654 = vunpack.c.l.b16 %v2077
    %v6655 = vunpack.c.h.b16 %v2077
    %v6656 = vunpack.c.l.b16 %v2078
    %v6657 = vunpack.c.h.b16 %v2078
    %v6658 = vunpack.c.l.b16 %v2079
    %v6659 = vunpack.c.h.b16 %v2079
    %v6660 = vunpack.c.l.b16 %v2080
    %v6661 = vunpack.c.h.b16 %v2080
    %v6662 = vunpack.c.l.b16 %v2081
    %v6663 = vunpack.c.h.b16 %v2081
    %v6664 = vunpack.c.l.b16 %v2082
    %v6665 = vunpack.c.h.b16 %v2082
    %v6666 = vunpack.c.l.b16 %v2083
    %v6667 = vunpack.c.h.b16 %v2083
    %v6668 = vunpack.c.l.b16 %v2084
    %v6669 = vunpack.c.h.b16 %v2084
    %v6670 = vunpack.c.l.b16 %v2085
    %v6671 = vunpack.c.h.b16 %v2085
    %v6672 = vunpack.c.l.b16 %v2086
    %v6673 = vunpack.c.h.b16 %v2086
    %v6674 = vunpack.c.l.b16 %v2087
    %v6675 = vunpack.c.h.b16 %v2087
    %v6676 = vunpack.c.l.b16 %v2088
    %v6677 = vunpack.c.h.b16 %v2088
    %v6678 = vunpack.c.l.b16 %v2089
    %v6679 = vunpack.c.h.b16 %v2089
    %v6680 = vunpack.c.l.b16 %v2090
    %v6681 = vunpack.c.h.b16 %v2090
    %v6682 = vunpack.c.l.b16 %v2091
    %v6683 = vunpack.c.h.b16 %v2091
    %v6684 = vunpack.c.l.b16 %v2092
    %v6685 = vunpack.c.h.b16 %v2092
    %v6686 = vunpack.c.l.b16 %v2093
    %v6687 = vunpack.c.h.b16 %v2093
    %v6688 = vunpack.c.l.b16 %v2094
    %v6689 = vunpack.c.h.b16 %v2094
    %v6690 = vunpack.c.l.b16 %v2095
    %v6691 = vunpack.c.h.b16 %v2095
    %v6692 = vunpack.c.l.b16 %v2096
    %v6693 = vunpack.c.h.b16 %v2096
    %v6694 = vunpack.c.l.b16 %v2097
    %v6695 = vunpack.c.h.b16 %v2097
    %v6696 = vunpack.c.l.b16 %v2098
    %v6697 = vunpack.c.h.b16 %v2098
    %v6698 = vunpack.c.l.b16 %v2099
    %v6699 = vunpack.c.h.b16 %v2099
    %v6700 = vunpack.c.l.b16 %v2100
    %v6701 = vunpack.c.h.b16 %v2100
    %v6702 = vunpack.c.l.b16 %v2101
    %v6703 = vunpack.c.h.b16 %v2101
    %v6704 = vunpack.c.l.b16 %v2102
    %v6705 = vunpack.c.h.b16 %v2102
    %v6706 = vunpack.c.l.b16 %v2103
    %v6707 = vunpack.c.h.b16 %v2103
    %v6708 = vunpack.c.l.b16 %v2104
    %v6709 = vunpack.c.h.b16 %v2104
    %v6710 = vunpack.c.l.b16 %v2105
    %v6711 = vunpack.c.h.b16 %v2105
    %v6712 = vunpack.c.l.b16 %v2106
    %v6713 = vunpack.c.h.b16 %v2106
    %v6714 = vunpack.c.l.b16 %v2107
    %v6715 = vunpack.c.h.b16 %v2107
    %v6716 = vunpack.c.l.b16 %v2108
    %v6717 = vunpack.c.h.b16 %v2108
    %v6718 = vunpack.c.l.b16 %v2109
    %v6719 = vunpack.c.h.b16 %v2109
    %v6720 = vunpack.c.l.b16 %v2110
    %v6721 = vunpack.c.h.b16 %v2110
    %v6722 = vunpack.c.l.b16 %v2111
    %v6723 = vunpack.c.h.b16 %v2111
    %v6724 = vunpack.c.l.b16 %v2112
    %v6725 = vunpack.c.h.b16 %v2112
    %v6726 = vunpack.c.l.b16 %v2113
    %v6727 = vunpack.c.h.b16 %v2113
    %v6728 = vunpack.c.l.b16 %v2114
    %v6729 = vunpack.c.h.b16 %v2114
    %v6730 = vunpack.c.l.b16 %v2115
    %v6731 = vunpack.c.h.b16 %v2115
    %v6732 = vunpack.c.l.b16 %v2116
    %v6733 = vunpack.c.h.b16 %v2116
    %v6734 = vunpack.c.l.b16 %v2117
    %v6735 = vunpack.c.h.b16 %v2117
    %v6736 = vunpack.c.l.b16 %v2118
    %v6737 = vunpack.c.h.b16 %v2118
    %v6738 = vunpack.c.l.b16 %v2119
    %v6739 = vunpack.c.h.b16 %v2119
    %v6740 = vunpack.c.l.b16 %v2120
    %v6741 = vunpack.c.h.b16 %v2120
    %v6742 = vunpack.c.l.b16 %v2121
    %v6743 = vunpack.c.h.b16 %v2121
    %v6744 = vunpack.c.l.b16 %v2122
    %v6745 = vunpack.c.h.b16 %v2122
    %v6746 = vunpack.c.l.b16 %v2123
    %v6747 = vunpack.c.h.b16 %v2123
    %v6748 = vunpack.c.l.b16 %v2124
    %v6749 = vunpack.c.h.b16 %v2124
    %v6750 = vunpack.c.l.b16 %v2125
    %v6751 = vunpack.c.h.b16 %v2125
    %v6752 = vunpack.c.l.b16 %v2126
    %v6753 = vunpack.c.h.b16 %v2126
    %v6754 = vunpack.c.l.b16 %v2127
    %v6755 = vunpack.c.h.b16 %v2127
    %v6756 = vunpack.c.l.b16 %v2128
    %v6757 = vunpack.c.h.b16 %v2128
    %v6758 = vunpack.c.l.b16 %v2129
    %v6759 = vunpack.c.h.b16 %v2129
    %v6760 = vunpack.c.l.b16 %v2130
    %v6761 = vunpack.c.h.b16 %v2130
    %v6762 = vunpack.c.l.b16 %v2131
    %v6763 = vunpack.c.h.b16 %v2131
    %v6764 = vunpack.c.l.b16 %v2132
    %v6765 = vunpack.c.h.b16 %v2132
    %v6766 = vunpack.c.l.b16 %v2133
    %v6767 = vunpack.c.h.b16 %v2133
    %v6768 = vunpack.c.l.b16 %v2134
    %v6769 = vunpack.c.h.b16 %v2134
    %v6770 = vunpack.c.l.b16 %v2135
    %v6771 = vunpack.c.h.b16 %v2135
    %v6772 = vunpack.c.l.b16 %v2136
    %v6773 = vunpack.c.h.b16 %v2136
    %v6774 = vunpack.c.l.b16 %v2137
    %v6775 = vunpack.c.h.b16 %v2137
    %v6776 = vunpack.c.l.b16 %v2138
    %v6777 = vunpack.c.h.b16 %v2138
    %v6778 = vunpack.c.l.b16 %v2139
    %v6779 = vunpack.c.h.b16 %v2139
    %v6780 = vunpack.c.l.b16 %v2140
    %v6781 = vunpack.c.h.b16 %v2140
    %v6782 = vunpack.c.l.b16 %v2141
    %v6783 = vunpack.c.h.b16 %v2141
    %v6784 = vunpack.c.l.b16 %v2142
    %v6785 = vunpack.c.h.b16 %v2142
    %v6786 = vunpack.c.l.b16 %v2143
    %v6787 = vunpack.c.h.b16 %v2143
    %v6788 = vunpack.c.l.b16 %v2144
    %v6789 = vunpack.c.h.b16 %v2144
    %v6790 = vunpack.c.l.b16 %v2145
    %v6791 = vunpack.c.h.b16 %v2145
    %v6792 = vunpack.c.l.b16 %v2146
    %v6793 = vunpack.c.h.b16 %v2146
    %v6794 = vunpack.c.l.b16 %v2147
    %v6795 = vunpack.c.h.b16 %v2147
    %v6796 = vunpack.c.l.b16 %v2148
    %v6797 = vunpack.c.h.b16 %v2148
    %v6798 = vunpack.c.l.b16 %v2149
    %v6799 = vunpack.c.h.b16 %v2149
    %v6800 = vunpack.c.l.b16 %v2150
    %v6801 = vunpack.c.h.b16 %v2150
    %v6802 = vunpack.c.l.b16 %v2151
    %v6803 = vunpack.c.h.b16 %v2151
    %v6804 = vunpack.c.l.b16 %v2152
    %v6805 = vunpack.c.h.b16 %v2152
    %v6806 = vunpack.c.l.b16 %v2153
    %v6807 = vunpack.c.h.b16 %v2153
    %v6808 = vunpack.c.l.b16 %v2154
    %v6809 = vunpack.c.h.b16 %v2154
    %v6810 = vunpack.c.l.b16 %v2155
    %v6811 = vunpack.c.h.b16 %v2155
    %v6812 = vunpack.c.l.b16 %v2156
    %v6813 = vunpack.c.h.b16 %v2156
    %v6814 = vunpack.c.l.b16 %v2157
    %v6815 = vunpack.c.h.b16 %v2157
    %v6816 = vunpack.c.l.b16 %v2158
    %v6817 = vunpack.c.h.b16 %v2158
    %v6818 = vunpack.c.l.b16 %v2159
    %v6819 = vunpack.c.h.b16 %v2159
    %v6820 = vunpack.c.l.b16 %v2160
    %v6821 = vunpack.c.h.b16 %v2160
    %v6822 = vunpack.c.l.b16 %v2161
    %v6823 = vunpack.c.h.b16 %v2161
    %v6824 = vunpack.c.l.b16 %v2162
    %v6825 = vunpack.c.h.b16 %v2162
    %v6826 = vunpack.c.l.b16 %v2163
    %v6827 = vunpack.c.h.b16 %v2163
    %v6828 = vunpack.c.l.b16 %v2164
    %v6829 = vunpack.c.h.b16 %v2164
    %v6830 = vunpack.c.l.b16 %v2165
    %v6831 = vunpack.c.h.b16 %v2165
    %v6832 = vunpack.c.l.b16 %v2166
    %v6833 = vunpack.c.h.b16 %v2166
    %v6834 = vunpack.c.l.b16 %v2167
    %v6835 = vunpack.c.h.b16 %v2167
    %v6836 = vunpack.c.l.b16 %v2168
    %v6837 = vunpack.c.h.b16 %v2168
    %v6838 = vunpack.c.l.b16 %v2169
    %v6839 = vunpack.c.h.b16 %v2169
    %v6840 = vunpack.c.l.b16 %v2170
    %v6841 = vunpack.c.h.b16 %v2170
    %v6842 = vunpack.c.l.b16 %v2171
    %v6843 = vunpack.c.h.b16 %v2171
    %v6844 = vunpack.c.l.b16 %v2172
    %v6845 = vunpack.c.h.b16 %v2172
    %v6846 = vunpack.c.l.b16 %v2173
    %v6847 = vunpack.c.h.b16 %v2173
    %v6848 = vunpack.c.l.b16 %v2174
    %v6849 = vunpack.c.h.b16 %v2174
    %v6850 = vunpack.c.l.b16 %v2175
    %v6851 = vunpack.c.h.b16 %v2175
    %v6852 = vunpack.c.l.b16 %v2176
    %v6853 = vunpack.c.h.b16 %v2176
    %v6854 = vunpack.c.l.b16 %v2177
    %v6855 = vunpack.c.h.b16 %v2177
    %v6856 = vunpack.c.l.b16 %v2178
    %v6857 = vunpack.c.h.b16 %v2178
    %v6858 = vunpack.c.l.b16 %v2179
    %v6859 = vunpack.c.h.b16 %v2179
    %v6860 = vunpack.c.l.b16 %v2180
    %v6861 = vunpack.c.h.b16 %v2180
    %v6862 = vunpack.c.l.b16 %v2181
    %v6863 = vunpack.c.h.b16 %v2181
    %v6864 = vunpack.c.l.b16 %v2182
    %v6865 = vunpack.c.h.b16 %v2182
    %v6866 = vunpack.c.l.b16 %v2183
    %v6867 = vunpack.c.h.b16 %v2183
    %v6868 = vunpack.c.l.b16 %v2184
    %v6869 = vunpack.c.h.b16 %v2184
    %v6870 = vunpack.c.l.b16 %v2185
    %v6871 = vunpack.c.h.b16 %v2185
    %v6872 = vunpack.c.l.b16 %v2186
    %v6873 = vunpack.c.h.b16 %v2186
    %v6874 = vunpack.c.l.b16 %v2187
    %v6875 = vunpack.c.h.b16 %v2187
    %v6876 = vunpack.c.l.b16 %v2188
    %v6877 = vunpack.c.h.b16 %v2188
    %v6878 = vunpack.c.l.b16 %v2189
    %v6879 = vunpack.c.h.b16 %v2189
    %v6880 = vunpack.c.l.b16 %v2190
    %v6881 = vunpack.c.h.b16 %v2190
    %v6882 = vunpack.c.l.b16 %v2191
    %v6883 = vunpack.c.h.b16 %v2191
    %v6884 = vunpack.c.l.b16 %v2192
    %v6885 = vunpack.c.h.b16 %v2192
    %v6886 = vunpack.c.l.b16 %v2193
    %v6887 = vunpack.c.h.b16 %v2193
    %v6888 = vunpack.c.l.b16 %v2194
    %v6889 = vunpack.c.h.b16 %v2194
    %v6890 = vunpack.c.l.b16 %v2195
    %v6891 = vunpack.c.h.b16 %v2195
    %v6892 = vunpack.c.l.b16 %v2196
    %v6893 = vunpack.c.h.b16 %v2196
    %v6894 = vunpack.c.l.b16 %v2197
    %v6895 = vunpack.c.h.b16 %v2197
    %v6896 = vunpack.c.l.b16 %v2198
    %v6897 = vunpack.c.h.b16 %v2198
    %v6898 = vunpack.c.l.b16 %v2199
    %v6899 = vunpack.c.h.b16 %v2199
    %v6900 = vunpack.c.l.b16 %v2200
    %v6901 = vunpack.c.h.b16 %v2200
    %v6902 = vunpack.c.l.b16 %v2201
    %v6903 = vunpack.c.h.b16 %v2201
    %v6904 = vunpack.c.l.b16 %v2202
    %v6905 = vunpack.c.h.b16 %v2202
    %v6906 = vunpack.c.l.b16 %v2203
    %v6907 = vunpack.c.h.b16 %v2203
    %v6908 = vunpack.c.l.b16 %v2204
    %v6909 = vunpack.c.h.b16 %v2204
    %v6910 = vunpack.c.l.b16 %v2205
    %v6911 = vunpack.c.h.b16 %v2205
    %v6912 = vunpack.c.l.b16 %v2206
    %v6913 = vunpack.c.h.b16 %v2206
    %v6914 = vunpack.c.l.b16 %v2207
    %v6915 = vunpack.c.h.b16 %v2207
    %v6916 = vunpack.c.l.b16 %v2208
    %v6917 = vunpack.c.h.b16 %v2208
    %v6918 = vunpack.c.l.b16 %v2209
    %v6919 = vunpack.c.h.b16 %v2209
    %v6920 = vunpack.c.l.b16 %v2210
    %v6921 = vunpack.c.h.b16 %v2210
    %v6922 = vpack.c.b16 %v3982, %v3786
    %v6923 = vpack.c.b16 %v3983, %v3787
    %v6924 = vpack.c.b16 %v3984, %v3788
    %v6925 = vpack.c.b16 %v3985, %v3789
    %v6926 = vpack.c.b16 %v3986, %v3790
    %v6927 = vpack.c.b16 %v3987, %v3791
    %v6928 = vpack.c.b16 %v3988, %v3792
    %v6929 = vpack.c.b16 %v3989, %v3793
    %v6930 = vpack.c.b16 %v3990, %v3794
    %v6931 = vpack.c.b16 %v3991, %v3795
    %v6932 = vpack.c.b16 %v3992, %v3796
    %v6933 = vpack.c.b16 %v3993, %v3797
    %v6934 = vpack.c.b16 %v3994, %v3798
    %v6935 = vpack.c.b16 %v3995, %v3799
    %v6936 = vpack.c.b16 %v3996, %v3800
    %v6937 = vpack.c.b16 %v3997, %v3801
    %v6938 = vpack.c.b16 %v3998, %v3802
    %v6939 = vpack.c.b16 %v3999, %v3803
    %v6940 = vpack.c.b16 %v4000, %v3804
    %v6941 = vpack.c.b16 %v4001, %v3805
    %v6942 = vpack.c.b16 %v4002, %v3806
    %v6943 = vpack.c.b16 %v4003, %v3807
    %v6944 = vpack.c.b16 %v4004, %v3808
    %v6945 = vpack.c.b16 %v4005, %v3809
    %v6946 = vpack.c.b16 %v4006, %v3810
    %v6947 = vpack.c.b16 %v4007, %v3811
    %v6948 = vpack.c.b16 %v4008, %v3812
    %v6949 = vpack.c.b16 %v4009, %v3813
    %v6950 = vpack.c.b16 %v4010, %v3814
    %v6951 = vpack.c.b16 %v4011, %v3815
    %v6952 = vpack.c.b16 %v4012, %v3816
    %v6953 = vpack.c.b16 %v4013, %v3817
    %v6954 = vpack.c.b16 %v4014, %v3818
    %v6955 = vpack.c.b16 %v4015, %v3819
    %v6956 = vpack.c.b16 %v4016, %v3820
    %v6957 = vpack.c.b16 %v4017, %v3821
    %v6958 = vpack.c.b16 %v4018, %v3822
    %v6959 = vpack.c.b16 %v4019, %v3823
    %v6960 = vpack.c.b16 %v4020, %v3824
    %v6961 = vpack.c.b16 %v4021, %v3825
    %v6962 = vpack.c.b16 %v4022, %v3826
    %v6963 = vpack.c.b16 %v4023, %v3827
    %v6964 = vpack.c.b16 %v4024, %v3828
    %v6965 = vpack.c.b16 %v4025, %v3829
    %v6966 = vpack.c.b16 %v4026, %v3830
    %v6967 = vpack.c.b16 %v4027, %v3831
    %v6968 = vpack.c.b16 %v4028, %v3832
    %v6969 = vpack.c.b16 %v4029, %v3833
    %v6970 = vpack.c.b16 %v4030, %v3834
    %v6971 = vpack.c.b16 %v4031, %v3835
    %v6972 = vpack.c.b16 %v4032, %v3836
    %v6973 = vpack.c.b16 %v4033, %v3837
    %v6974 = vpack.c.b16 %v4034, %v3838
    %v6975 = vpack.c.b16 %v4035, %v3839
    %v6976 = vpack.c.b16 %v4036, %v3840
    %v6977 = vpack.c.b16 %v4037, %v3841
    %v6978 = vpack.c.b16 %v4038, %v3842
    %v6979 = vpack.c.b16 %v4039, %v3843
    %v6980 = vpack.c.b16 %v4040, %v3844
    %v6981 = vpack.c.b16 %v4041, %v3845
    %v6982 = vpack.c.b16 %v4042, %v3846
    %v6983 = vpack.c.b16 %v4043, %v3847
    %v6984 = vpack.c.b16 %v4044, %v3848
    %v6985 = vpack.c.b16 %v4045, %v3849
    %v6986 = vpack.c.b16 %v4046, %v3850
    %v6987 = vpack.c.b16 %v4047, %v3851
    %v6988 = vpack.c.b16 %v4048, %v3852
    %v6989 = vpack.c.b16 %v4049, %v3853
    %v6990 = vpack.c.b16 %v4050, %v3854
    %v6991 = vpack.c.b16 %v4051, %v3855
    %v6992 = vpack.c.b16 %v4052, %v3856
    %v6993 = vpack.c.b16 %v4053, %v3857
    %v6994 = vpack.c.b16 %v4054, %v3858
    %v6995 = vpack.c.b16 %v4055, %v3859
    %v6996 = vpack.c.b16 %v4056, %v3860
    %v6997 = vpack.c.b16 %v4057, %v3861
    %v6998 = vpack.c.b16 %v4058, %v3862
    %v6999 = vpack.c.b16 %v4059, %v3863
    %v7000 = vpack.c.b16 %v4060, %v3864
    %v7001 = vpack.c.b16 %v4061, %v3865
    %v7002 = vpack.c.b16 %v4062, %v3866
    %v7003 = vpack.c.b16 %v4063, %v3867
    %v7004 = vpack.c.b16 %v4064, %v3868
    %v7005 = vpack.c.b16 %v4065, %v3869
    %v7006 = vpack.c.b16 %v4066, %v3870
    %v7007 = vpack.c.b16 %v4067, %v3871
    %v7008 = vpack.c.b16 %v4068, %v3872
    %v7009 = vpack.c.b16 %v4069, %v3873
    %v7010 = vpack.c.b16 %v4070, %v3874
    %v7011 = vpack.c.b16 %v4071, %v3875
    %v7012 = vpack.c.b16 %v4072, %v3876
    %v7013 = vpack.c.b16 %v4073, %v3877
    %v7014 = vpack.c.b16 %v4074, %v3878
    %v7015 = vpack.c.b16 %v4075, %v3879
    %v7016 = vpack.c.b16 %v4076, %v3880
    %v7017 = vpack.c.b16 %v4077, %v3881
    %v7018 = vpack.c.b16 %v4078, %v3882
    %v7019 = vpack.c.b16 %v4079, %v3883
    %v7020 = vpack.c.b16 %v4080, %v3884
    %v7021 = vpack.c.b16 %v4081, %v3885
    %v7022 = vpack.c.b16 %v4082, %v3886
    %v7023 = vpack.c.b16 %v4083, %v3887
    %v7024 = vpack.c.b16 %v4084, %v3888
    %v7025 = vpack.c.b16 %v4085, %v3889
    %v7026 = vpack.c.b16 %v4086, %v3890
    %v7027 = vpack.c.b16 %v4087, %v3891
    %v7028 = vpack.c.b16 %v4088, %v3892
    %v7029 = vpack.c.b16 %v4089, %v3893
    %v7030 = vpack.c.b16 %v4090, %v3894
    %v7031 = vpack.c.b16 %v4091, %v3895
    %v7032 = vpack.c.b16 %v4092, %v3896
    %v7033 = vpack.c.b16 %v4093, %v3897
    %v7034 = vpack.c.b16 %v4094, %v3898
    %v7035 = vpack.c.b16 %v4095, %v3899
    %v7036 = vpack.c.b16 %v4096, %v3900
    %v7037 = vpack.c.b16 %v4097, %v3901
    %v7038 = vpack.c.b16 %v4098, %v3902
    %v7039 = vpack.c.b16 %v4099, %v3903
    %v7040 = vpack.c.b16 %v4100, %v3904
    %v7041 = vpack.c.b16 %v4101, %v3905
    %v7042 = vpack.c.b16 %v4102, %v3906
    %v7043 = vpack.c.b16 %v4103, %v3907
    %v7044 = vpack.c.b16 %v4104, %v3908
    %v7045 = vpack.c.b16 %v4105, %v3909
    %v7046 = vpack.c.b16 %v4106, %v3910
    %v7047 = vpack.c.b16 %v4107, %v3911
    %v7048 = vpack.c.b16 %v4108, %v3912
    %v7049 = vpack.c.b16 %v4109, %v3913
    %v7050 = vpack.c.b16 %v4110, %v3914
    %v7051 = vpack.c.b16 %v4111, %v3915
    %v7052 = vpack.c.b16 %v4112, %v3916
    %v7053 = vpack.c.b16 %v4113, %v3917
    %v7054 = vpack.c.b16 %v4114, %v3918
    %v7055 = vpack.c.b16 %v4115, %v3919
    %v7056 = vpack.c.b16 %v4116, %v3920
    %v7057 = vpack.c.b16 %v4117, %v3921
    %v7058 = vpack.c.b16 %v4118, %v3922
    %v7059 = vpack.c.b16 %v4119, %v3923
    %v7060 = vpack.c.b16 %v4120, %v3924
    %v7061 = vpack.c.b16 %v4121, %v3925
    %v7062 = vpack.c.b16 %v4122, %v3926
    %v7063 = vpack.c.b16 %v4123, %v3927
    %v7064 = vpack.c.b16 %v4124, %v3928
    %v7065 = vpack.c.b16 %v4125, %v3929
    %v7066 = vpack.c.b16 %v4126, %v3930
    %v7067 = vpack.c.b16 %v4127, %v3931
    %v7068 = vpack.c.b16 %v4128, %v3932
    %v7069 = vpack.c.b16 %v4129, %v3933
    %v7070 = vpack.c.b16 %v4130, %v3934
    %v7071 = vpack.c.b16 %v4131, %v3935
    %v7072 = vpack.c.b16 %v4132, %v3936
    %v7073 = vpack.c.b16 %v4133, %v3937
    %v7074 = vpack.c.b16 %v4134, %v3938
    %v7075 = vpack.c.b16 %v4135, %v3939
    %v7076 = vpack.c.b16 %v4136, %v3940
    %v7077 = vpack.c.b16 %v4137, %v3941
    %v7078 = vpack.c.b16 %v4138, %v3942
    %v7079 = vpack.c.b16 %v4139, %v3943
    %v7080 = vpack.c.b16 %v4140, %v3944
    %v7081 = vpack.c.b16 %v4141, %v3945
    %v7082 = vpack.c.b16 %v4142, %v3946
    %v7083 = vpack.c.b16 %v4143, %v3947
    %v7084 = vpack.c.b16 %v4144, %v3948
    %v7085 = vpack.c.b16 %v4145, %v3949
    %v7086 = vpack.c.b16 %v4146, %v3950
    %v7087 = vpack.c.b16 %v4147, %v3951
    %v7088 = vpack.c.b16 %v4148, %v3952
    %v7089 = vpack.c.b16 %v4149, %v3953
    %v7090 = vpack.c.b16 %v4150, %v3954
    %v7091 = vpack.c.b16 %v4151, %v3955
    %v7092 = vpack.c.b16 %v4152, %v3956
    %v7093 = vpack.c.b16 %v4153, %v3957
    %v7094 = vpack.c.b16 %v4154, %v3958
    %v7095 = vpack.c.b16 %v4155, %v3959
    %v7096 = vpack.c.b16 %v4156, %v3960
    %v7097 = vpack.c.b16 %v4157, %v3961
    %v7098 = vpack.c.b16 %v4158, %v3962
    %v7099 = vpack.c.b16 %v4159, %v3963
    %v7100 = vpack.c.b16 %v4160, %v3964
    %v7101 = vpack.c.b16 %v4161, %v3965
    %v7102 = vpack.c.b16 %v4162, %v3966
    %v7103 = vpack.c.b16 %v4163, %v3967
    %v7104 = vpack.c.b16 %v4164, %v3968
    %v7105 = vpack.c.b16 %v4165, %v3969
    %v7106 = vpack.c.b16 %v4166, %v3970
    %v7107 = vpack.c.b16 %v4167, %v3971
    %v7108 = vpack.c.b16 %v4168, %v3972
    %v7109 = vpack.c.b16 %v4169, %v3973
    %v7110 = vpack.c.b16 %v4170, %v3974
    %v7111 = vpack.c.b16 %v4171, %v3975
    %v7112 = vpack.c.b16 %v4172, %v3976
    %v7113 = vpack.c.b16 %v4173, %v3977
    %v7114 = vpack.c.b16 %v4174, %v3978
    %v7115 = vpack.c.b16 %v4175, %v3979
    %v7116 = vpack.c.b16 %v4176, %v3980
    %v7117 = vpack.c.b16 %v4177, %v3981
    %v7118 = vpack.c.b16 %v4374, %v4178
    %v7119 = vpack.c.b16 %v4375, %v4179
    %v7120 = vpack.c.b16 %v4376, %v4180
    %v7121 = vpack.c.b16 %v4377, %v4181
    %v7122 = vpack.c.b16 %v4378, %v4182
    %v7123 = vpack.c.b16 %v4379, %v4183
    %v7124 = vpack.c.b16 %v4380, %v4184
    %v7125 = vpack.c.b16 %v4381, %v4185
    %v7126 = vpack.c.b16 %v4382, %v4186
    %v7127 = vpack.c.b16 %v4383, %v4187
    %v7128 = vpack.c.b16 %v4384, %v4188
    %v7129 = vpack.c.b16 %v4385, %v4189
    %v7130 = vpack.c.b16 %v4386, %v4190
    %v7131 = vpack.c.b16 %v4387, %v4191
    %v7132 = vpack.c.b16 %v4388, %v4192
    %v7133 = vpack.c.b16 %v4389, %v4193
    %v7134 = vpack.c.b16 %v4390, %v4194
    %v7135 = vpack.c.b16 %v4391, %v4195
    %v7136 = vpack.c.b16 %v4392, %v4196
    %v7137 = vpack.c.b16 %v4393, %v4197
    %v7138 = vpack.c.b16 %v4394, %v4198
    %v7139 = vpack.c.b16 %v4395, %v4199
    %v7140 = vpack.c.b16 %v4396, %v4200
    %v7141 = vpack.c.b16 %v4397, %v4201
    %v7142 = vpack.c.b16 %v4398, %v4202
    %v7143 = vpack.c.b16 %v4399, %v4203
    %v7144 = vpack.c.b16 %v4400, %v4204
    %v7145 = vpack.c.b16 %v4401, %v4205
    %v7146 = vpack.c.b16 %v4402, %v4206
    %v7147 = vpack.c.b16 %v4403, %v4207
    %v7148 = vpack.c.b16 %v4404, %v4208
    %v7149 = vpack.c.b16 %v4405, %v4209
    %v7150 = vpack.c.b16 %v4406, %v4210
    %v7151 = vpack.c.b16 %v4407, %v4211
    %v7152 = vpack.c.b16 %v4408, %v4212
    %v7153 = vpack.c.b16 %v4409, %v4213
    %v7154 = vpack.c.b16 %v4410, %v4214
    %v7155 = vpack.c.b16 %v4411, %v4215
    %v7156 = vpack.c.b16 %v4412, %v4216
    %v7157 = vpack.c.b16 %v4413, %v4217
    %v7158 = vpack.c.b16 %v4414, %v4218
    %v7159 = vpack.c.b16 %v4415, %v4219
    %v7160 = vpack.c.b16 %v4416, %v4220
    %v7161 = vpack.c.b16 %v4417, %v4221
    %v7162 = vpack.c.b16 %v4418, %v4222
    %v7163 = vpack.c.b16 %v4419, %v4223
    %v7164 = vpack.c.b16 %v4420, %v4224
    %v7165 = vpack.c.b16 %v4421, %v4225
    %v7166 = vpack.c.b16 %v4422, %v4226
    %v7167 = vpack.c.b16 %v4423, %v4227
    %v7168 = vpack.c.b16 %v4424, %v4228
    %v7169 = vpack.c.b16 %v4425, %v4229
    %v7170 = vpack.c.b16 %v4426, %v4230
    %v7171 = vpack.c.b16 %v4427, %v4231
    %v7172 = vpack.c.b16 %v4428, %v4232
    %v7173 = vpack.c.b16 %v4429, %v4233
    %v7174 = vpack.c.b16 %v4430, %v4234
    %v7175 = vpack.c.b16 %v4431, %v4235
    %v7176 = vpack.c.b16 %v4432, %v4236
    %v7177 = vpack.c.b16 %v4433, %v4237
    %v7178 = vpack.c.b16 %v4434, %v4238
    %v7179 = vpack.c.b16 %v4435, %v4239
    %v7180 = vpack.c.b16 %v4436, %v4240
    %v7181 = vpack.c.b16 %v4437, %v4241
    %v7182 = vpack.c.b16 %v4438, %v4242
    %v7183 = vpack.c.b16 %v4439, %v4243
    %v7184 = vpack.c.b16 %v4440, %v4244
    %v7185 = vpack.c.b16 %v4441, %v4245
    %v7186 = vpack.c.b16 %v4442, %v4246
    %v7187 = vpack.c.b16 %v4443, %v4247
    %v7188 = vpack.c.b16 %v4444, %v4248
    %v7189 = vpack.c.b16 %v4445, %v4249
    %v7190 = vpack.c.b16 %v4446, %v4250
    %v7191 = vpack.c.b16 %v4447, %v4251
    %v7192 = vpack.c.b16 %v4448, %v4252
    %v7193 = vpack.c.b16 %v4449, %v4253
    %v7194 = vpack.c.b16 %v4450, %v4254
    %v7195 = vpack.c.b16 %v4451, %v4255
    %v7196 = vpack.c.b16 %v4452, %v4256
    %v7197 = vpack.c.b16 %v4453, %v4257
    %v7198 = vpack.c.b16 %v4454, %v4258
    %v7199 = vpack.c.b16 %v4455, %v4259
    %v7200 = vpack.c.b16 %v4456, %v4260
    %v7201 = vpack.c.b16 %v4457, %v4261
    %v7202 = vpack.c.b16 %v4458, %v4262
    %v7203 = vpack.c.b16 %v4459, %v4263
    %v7204 = vpack.c.b16 %v4460, %v4264
    %v7205 = vpack.c.b16 %v4461, %v4265
    %v7206 = vpack.c.b16 %v4462, %v4266
    %v7207 = vpack.c.b16 %v4463, %v4267
    %v7208 = vpack.c.b16 %v4464, %v4268
    %v7209 = vpack.c.b16 %v4465, %v4269
    %v7210 = vpack.c.b16 %v4466, %v4270
    %v7211 = vpack.c.b16 %v4467, %v4271
    %v7212 = vpack.c.b16 %v4468, %v4272
    %v7213 = vpack.c.b16 %v4469, %v4273
    %v7214 = vpack.c.b16 %v4470, %v4274
    %v7215 = vpack.c.b16 %v4471, %v4275
    %v7216 = vpack.c.b16 %v4472, %v4276
    %v7217 = vpack.c.b16 %v4473, %v4277
    %v7218 = vpack.c.b16 %v4474, %v4278
    %v7219 = vpack.c.b16 %v4475, %v4279
    %v7220 = vpack.c.b16 %v4476, %v4280
    %v7221 = vpack.c.b16 %v4477, %v4281
    %v7222 = vpack.c.b16 %v4478, %v4282
    %v7223 = vpack.c.b16 %v4479, %v4283
    %v7224 = vpack.c.b16 %v4480, %v4284
    %v7225 = vpack.c.b16 %v4481, %v4285
    %v7226 = vpack.c.b16 %v4482, %v4286
    %v7227 = vpack.c.b16 %v4483, %v4287
    %v7228 = vpack.c.b16 %v4484, %v4288
    %v7229 = vpack.c.b16 %v4485, %v4289
    %v7230 = vpack.c.b16 %v4486, %v4290
    %v7231 = vpack.c.b16 %v4487, %v4291
    %v7232 = vpack.c.b16 %v4488, %v4292
    %v7233 = vpack.c.b16 %v4489, %v4293
    %v7234 = vpack.c.b16 %v4490, %v4294
    %v7235 = vpack.c.b16 %v4491, %v4295
    %v7236 = vpack.c.b16 %v4492, %v4296
    %v7237 = vpack.c.b16 %v4493, %v4297
    %v7238 = vpack.c.b16 %v4494, %v4298
    %v7239 = vpack.c.b16 %v4495, %v4299
    %v7240 = vpack.c.b16 %v4496, %v4300
    %v7241 = vpack.c.b16 %v4497, %v4301
    %v7242 = vpack.c.b16 %v4498, %v4302
    %v7243 = vpack.c.b16 %v4499, %v4303
    %v7244 = vpack.c.b16 %v4500, %v4304
    %v7245 = vpack.c.b16 %v4501, %v4305
    %v7246 = vpack.c.b16 %v4502, %v4306
    %v7247 = vpack.c.b16 %v4503, %v4307
    %v7248 = vpack.c.b16 %v4504, %v4308
    %v7249 = vpack.c.b16 %v4505, %v4309
    %v7250 = vpack.c.b16 %v4506, %v4310
    %v7251 = vpack.c.b16 %v4507, %v4311
    %v7252 = vpack.c.b16 %v4508, %v4312
    %v7253 = vpack.c.b16 %v4509, %v4313
    %v7254 = vpack.c.b16 %v4510, %v4314
    %v7255 = vpack.c.b16 %v4511, %v4315
    %v7256 = vpack.c.b16 %v4512, %v4316
    %v7257 = vpack.c.b16 %v4513, %v4317
    %v7258 = vpack.c.b16 %v4514, %v4318
    %v7259 = vpack.c.b16 %v4515, %v4319
    %v7260 = vpack.c.b16 %v4516, %v4320
    %v7261 = vpack.c.b16 %v4517, %v4321
    %v7262 = vpack.c.b16 %v4518, %v4322
    %v7263 = vpack.c.b16 %v4519, %v4323
    %v7264 = vpack.c.b16 %v4520, %v4324
    %v7265 = vpack.c.b16 %v4521, %v4325
    %v7266 = vpack.c.b16 %v4522, %v4326
    %v7267 = vpack.c.b16 %v4523, %v4327
    %v7268 = vpack.c.b16 %v4524, %v4328
    %v7269 = vpack.c.b16 %v4525, %v4329
    %v7270 = vpack.c.b16 %v4526, %v4330
    %v7271 = vpack.c.b16 %v4527, %v4331
    %v7272 = vpack.c.b16 %v4528, %v4332
    %v7273 = vpack.c.b16 %v4529, %v4333
    %v7274 = vpack.c.b16 %v4530, %v4334
    %v7275 = vpack.c.b16 %v4531, %v4335
    %v7276 = vpack.c.b16 %v4532, %v4336
    %v7277 = vpack.c.b16 %v4533, %v4337
    %v7278 = vpack.c.b16 %v4534, %v4338
    %v7279 = vpack.c.b16 %v4535, %v4339
    %v7280 = vpack.c.b16 %v4536, %v4340
    %v7281 = vpack.c.b16 %v4537, %v4341
    %v7282 = vpack.c.b16 %v4538, %v4342
    %v7283 = vpack.c.b16 %v4539, %v4343
    %v7284 = vpack.c.b16 %v4540, %v4344
    %v7285 = vpack.c.b16 %v4541, %v4345
    %v7286 = vpack.c.b16 %v4542, %v4346
    %v7287 = vpack.c.b16 %v4543, %v4347
    %v7288 = vpack.c.b16 %v4544, %v4348
    %v7289 = vpack.c.b16 %v4545, %v4349
    %v7290 = vpack.c.b16 %v4546, %v4350
    %v7291 = vpack.c.b16 %v4547, %v4351
    %v7292 = vpack.c.b16 %v4548, %v4352
    %v7293 = vpack.c.b16 %v4549, %v4353
    %v7294 = vpack.c.b16 %v4550, %v4354
    %v7295 = vpack.c.b16 %v4551, %v4355
    %v7296 = vpack.c.b16 %v4552, %v4356
    %v7297 = vpack.c.b16 %v4553, %v4357
    %v7298 = vpack.c.b16 %v4554, %v4358
    %v7299 = vpack.c.b16 %v4555, %v4359
    %v7300 = vpack.c.b16 %v4556, %v4360
    %v7301 = vpack.c.b16 %v4557, %v4361
    %v7302 = vpack.c.b16 %v4558, %v4362
    %v7303 = vpack.c.b16 %v4559, %v4363
    %v7304 = vpack.c.b16 %v4560, %v4364
    %v7305 = vpack.c.b16 %v4561, %v4365
    %v7306 = vpack.c.b16 %v4562, %v4366
    %v7307 = vpack.c.b16 %v4563, %v4367
    %v7308 = vpack.c.b16 %v4564, %v4368
    %v7309 = vpack.c.b16 %v4565, %v4369
    %v7310 = vpack.c.b16 %v4566, %v4370
    %v7311 = vpack.c.b16 %v4567, %v4371
    %v7312 = vpack.c.b16 %v4568, %v4372
    %v7313 = vpack.c.b16 %v4569, %v4373
    %v7314 = vpack.c.b16 %v4766, %v4570
    %v7315 = vpack.c.b16 %v4767, %v4571
    %v7316 = vpack.c.b16 %v4768, %v4572
    %v7317 = vpack.c.b16 %v4769, %v4573
    %v7318 = vpack.c.b16 %v4770, %v4574
    %v7319 = vpack.c.b16 %v4771, %v4575
    %v7320 = vpack.c.b16 %v4772, %v4576
    %v7321 = vpack.c.b16 %v4773, %v4577
    %v7322 = vpack.c.b16 %v4774, %v4578
    %v7323 = vpack.c.b16 %v4775, %v4579
    %v7324 = vpack.c.b16 %v4776, %v4580
    %v7325 = vpack.c.b16 %v4777, %v4581
    %v7326 = vpack.c.b16 %v4778, %v4582
    %v7327 = vpack.c.b16 %v4779, %v4583
    %v7328 = vpack.c.b16 %v4780, %v4584
    %v7329 = vpack.c.b16 %v4781, %v4585
    %v7330 = vpack.c.b16 %v4782, %v4586
    %v7331 = vpack.c.b16 %v4783, %v4587
    %v7332 = vpack.c.b16 %v4784, %v4588
    %v7333 = vpack.c.b16 %v4785, %v4589
    %v7334 = vpack.c.b16 %v4786, %v4590
    %v7335 = vpack.c.b16 %v4787, %v4591
    %v7336 = vpack.c.b16 %v4788, %v4592
    %v7337 = vpack.c.b16 %v4789, %v4593
    %v7338 = vpack.c.b16 %v4790, %v4594
    %v7339 = vpack.c.b16 %v4791, %v4595
    %v7340 = vpack.c.b16 %v4792, %v4596
    %v7341 = vpack.c.b16 %v4793, %v4597
    %v7342 = vpack.c.b16 %v4794, %v4598
    %v7343 = vpack.c.b16 %v4795, %v4599
    %v7344 = vpack.c.b16 %v4796, %v4600
    %v7345 = vpack.c.b16 %v4797, %v4601
    %v7346 = vpack.c.b16 %v4798, %v4602
    %v7347 = vpack.c.b16 %v4799, %v4603
    %v7348 = vpack.c.b16 %v4800, %v4604
    %v7349 = vpack.c.b16 %v4801, %v4605
    %v7350 = vpack.c.b16 %v4802, %v4606
    %v7351 = vpack.c.b16 %v4803, %v4607
    %v7352 = vpack.c.b16 %v4804, %v4608
    %v7353 = vpack.c.b16 %v4805, %v4609
    %v7354 = vpack.c.b16 %v4806, %v4610
    %v7355 = vpack.c.b16 %v4807, %v4611
    %v7356 = vpack.c.b16 %v4808, %v4612
    %v7357 = vpack.c.b16 %v4809, %v4613
    %v7358 = vpack.c.b16 %v4810, %v4614
    %v7359 = vpack.c.b16 %v4811, %v4615
    %v7360 = vpack.c.b16 %v4812, %v4616
    %v7361 = vpack.c.b16 %v4813, %v4617
    %v7362 = vpack.c.b16 %v4814, %v4618
    %v7363 = vpack.c.b16 %v4815, %v4619
    %v7364 = vpack.c.b16 %v4816, %v4620
    %v7365 = vpack.c.b16 %v4817, %v4621
    %v7366 = vpack.c.b16 %v4818, %v4622
    %v7367 = vpack.c.b16 %v4819, %v4623
    %v7368 = vpack.c.b16 %v4820, %v4624
    %v7369 = vpack.c.b16 %v4821, %v4625
    %v7370 = vpack.c.b16 %v4822, %v4626
    %v7371 = vpack.c.b16 %v4823, %v4627
    %v7372 = vpack.c.b16 %v4824, %v4628
    %v7373 = vpack.c.b16 %v4825, %v4629
    %v7374 = vpack.c.b16 %v4826, %v4630
    %v7375 = vpack.c.b16 %v4827, %v4631
    %v7376 = vpack.c.b16 %v4828, %v4632
    %v7377 = vpack.c.b16 %v4829, %v4633
    %v7378 = vpack.c.b16 %v4830, %v4634
    %v7379 = vpack.c.b16 %v4831, %v4635
    %v7380 = vpack.c.b16 %v4832, %v4636
    %v7381 = vpack.c.b16 %v4833, %v4637
    %v7382 = vpack.c.b16 %v4834, %v4638
    %v7383 = vpack.c.b16 %v4835, %v4639
    %v7384 = vpack.c.b16 %v4836, %v4640
    %v7385 = vpack.c.b16 %v4837, %v4641
    %v7386 = vpack.c.b16 %v4838, %v4642
    %v7387 = vpack.c.b16 %v4839, %v4643
    %v7388 = vpack.c.b16 %v4840, %v4644
    %v7389 = vpack.c.b16 %v4841, %v4645
    %v7390 = vpack.c.b16 %v4842, %v4646
    %v7391 = vpack.c.b16 %v4843, %v4647
    %v7392 = vpack.c.b16 %v4844, %v4648
    %v7393 = vpack.c.b16 %v4845, %v4649
    %v7394 = vpack.c.b16 %v4846, %v4650
    %v7395 = vpack.c.b16 %v4847, %v4651
    %v7396 = vpack.c.b16 %v4848, %v4652
    %v7397 = vpack.c.b16 %v4849, %v4653
    %v7398 = vpack.c.b16 %v4850, %v4654
    %v7399 = vpack.c.b16 %v4851, %v4655
    %v7400 = vpack.c.b16 %v4852, %v4656
    %v7401 = vpack.c.b16 %v4853, %v4657
    %v7402 = vpack.c.b16 %v4854, %v4658
    %v7403 = vpack.c.b16 %v4855, %v4659
    %v7404 = vpack.c.b16 %v4856, %v4660
    %v7405 = vpack.c.b16 %v4857, %v4661
    %v7406 = vpack.c.b16 %v4858, %v4662
    %v7407 = vpack.c.b16 %v4859, %v4663
    %v7408 = vpack.c.b16 %v4860, %v4664
    %v7409 = vpack.c.b16 %v4861, %v4665
    %v7410 = vpack.c.b16 %v4862, %v4666
    %v7411 = vpack.c.b16 %v4863, %v4667
    %v7412 = vpack.c.b16 %v4864, %v4668
    %v7413 = vpack.c.b16 %v4865, %v4669
    %v7414 = vpack.c.b16 %v4866, %v4670
    %v7415 = vpack.c.b16 %v4867, %v4671
    %v7416 = vpack.c.b16 %v4868, %v4672
    %v7417 = vpack.c.b16 %v4869, %v4673
    %v7418 = vpack.c.b16 %v4870, %v4674
    %v7419 = vpack.c.b16 %v4871, %v4675
    %v7420 = vpack.c.b16 %v4872, %v4676
    %v7421 = vpack.c.b16 %v4873, %v4677
    %v7422 = vpack.c.b16 %v4874, %v4678
    %v7423 = vpack.c.b16 %v4875, %v4679
    %v7424 = vpack.c.b16 %v4876, %v4680
    %v7425 = vpack.c.b16 %v4877, %v4681
    %v7426 = vpack.c.b16 %v4878, %v4682
    %v7427 = vpack.c.b16 %v4879, %v4683
    %v7428 = vpack.c.b16 %v4880, %v4684
    %v7429 = vpack.c.b16 %v4881, %v4685
    %v7430 = vpack.c.b16 %v4882, %v4686
    %v7431 = vpack.c.b16 %v4883, %v4687
    %v7432 = vpack.c.b16 %v4884, %v4688
    %v7433 = vpack.c.b16 %v4885, %v4689
    %v7434 = vpack.c.b16 %v4886, %v4690
    %v7435 = vpack.c.b16 %v4887, %v4691
    %v7436 = vpack.c.b16 %v4888, %v4692
    %v7437 = vpack.c.b16 %v4889, %v4693
    %v7438 = vpack.c.b16 %v4890, %v4694
    %v7439 = vpack.c.b16 %v4891, %v4695
    %v7440 = vpack.c.b16 %v4892, %v4696
    %v7441 = vpack.c.b16 %v4893, %v4697
    %v7442 = vpack.c.b16 %v4894, %v4698
    %v7443 = vpack.c.b16 %v4895, %v4699
    %v7444 = vpack.c.b16 %v4896, %v4700
    %v7445 = vpack.c.b16 %v4897, %v4701
    %v7446 = vpack.c.b16 %v4898, %v4702
    %v7447 = vpack.c.b16 %v4899, %v4703
    %v7448 = vpack.c.b16 %v4900, %v4704
    %v7449 = vpack.c.b16 %v4901, %v4705
    %v7450 = vpack.c.b16 %v4902, %v4706
    %v7451 = vpack.c.b16 %v4903, %v4707
    %v7452 = vpack.c.b16 %v4904, %v4708
    %v7453 = vpack.c.b16 %v4905, %v4709
    %v7454 = vpack.c.b16 %v4906, %v4710
    %v7455 = vpack.c.b16 %v4907, %v4711
    %v7456 = vpack.c.b16 %v4908, %v4712
    %v7457 = vpack.c.b16 %v4909, %v4713
    %v7458 = vpack.c.b16 %v4910, %v4714
    %v7459 = vpack.c.b16 %v4911, %v4715
    %v7460 = vpack.c.b16 %v4912, %v4716
    %v7461 = vpack.c.b16 %v4913, %v4717
    %v7462 = vpack.c.b16 %v4914, %v4718
    %v7463 = vpack.c.b16 %v4915, %v4719
    %v7464 = vpack.c.b16 %v4916, %v4720
    %v7465 = vpack.c.b16 %v4917, %v4721
    %v7466 = vpack.c.b16 %v4918, %v4722
    %v7467 = vpack.c.b16 %v4919, %v4723
    %v7468 = vpack.c.b16 %v4920, %v4724
    %v7469 = vpack.c.b16 %v4921, %v4725
    %v7470 = vpack.c.b16 %v4922, %v4726
    %v7471 = vpack.c.b16 %v4923, %v4727
    %v7472 = vpack.c.b16 %v4924, %v4728
    %v7473 = vpack.c.b16 %v4925, %v4729
    %v7474 = vpack.c.b16 %v4926, %v4730
    %v7475 = vpack.c.b16 %v4927, %v4731
    %v7476 = vpack.c.b16 %v4928, %v4732
    %v7477 = vpack.c.b16 %v4929, %v4733
    %v7478 = vpack.c.b16 %v4930, %v4734
    %v7479 = vpack.c.b16 %v4931, %v4735
    %v7480 = vpack.c.b16 %v4932, %v4736
    %v7481 = vpack.c.b16 %v4933, %v4737
    %v7482 = vpack.c.b16 %v4934, %v4738
    %v7483 = vpack.c.b16 %v4935, %v4739
    %v7484 = vpack.c.b16 %v4936, %v4740
    %v7485 = vpack.c.b16 %v4937, %v4741
    %v7486 = vpack.c.b16 %v4938, %v4742
    %v7487 = vpack.c.b16 %v4939, %v4743
    %v7488 = vpack.c.b16 %v4940, %v4744
    %v7489 = vpack.c.b16 %v4941, %v4745
    %v7490 = vpack.c.b16 %v4942, %v4746
    %v7491 = vpack.c.b16 %v4943, %v4747
    %v7492 = vpack.c.b16 %v4944, %v4748
    %v7493 = vpack.c.b16 %v4945, %v4749
    %v7494 = vpack.c.b16 %v4946, %v4750
    %v7495 = vpack.c.b16 %v4947, %v4751
    %v7496 = vpack.c.b16 %v4948, %v4752
    %v7497 = vpack.c.b16 %v4949, %v4753
    %v7498 = vpack.c.b16 %v4950, %v4754
    %v7499 = vpack.c.b16 %v4951, %v4755
    %v7500 = vpack.c.b16 %v4952, %v4756
    %v7501 = vpack.c.b16 %v4953, %v4757
    %v7502 = vpack.c.b16 %v4954, %v4758
    %v7503 = vpack.c.b16 %v4955, %v4759
    %v7504 = vpack.c.b16 %v4956, %v4760
    %v7505 = vpack.c.b16 %v4957, %v4761
    %v7506 = vpack.c.b16 %v4958, %v4762
    %v7507 = vpack.c.b16 %v4959, %v4763
    %v7508 = vpack.c.b16 %v4960, %v4764
    %v7509 = vpack.c.b16 %v4961, %v4765
    %v7510 = vpack.c.b16 %v5158, %v4962
    %v7511 = vpack.c.b16 %v5159, %v4963
    %v7512 = vpack.c.b16 %v5160, %v4964
    %v7513 = vpack.c.b16 %v5161, %v4965
    %v7514 = vpack.c.b16 %v5162, %v4966
    %v7515 = vpack.c.b16 %v5163, %v4967
    %v7516 = vpack.c.b16 %v5164, %v4968
    %v7517 = vpack.c.b16 %v5165, %v4969
    %v7518 = vpack.c.b16 %v5166, %v4970
    %v7519 = vpack.c.b16 %v5167, %v4971
    %v7520 = vpack.c.b16 %v5168, %v4972
    %v7521 = vpack.c.b16 %v5169, %v4973
    %v7522 = vpack.c.b16 %v5170, %v4974
    %v7523 = vpack.c.b16 %v5171, %v4975
    %v7524 = vpack.c.b16 %v5172, %v4976
    %v7525 = vpack.c.b16 %v5173, %v4977
    %v7526 = vpack.c.b16 %v5174, %v4978
    %v7527 = vpack.c.b16 %v5175, %v4979
    %v7528 = vpack.c.b16 %v5176, %v4980
    %v7529 = vpack.c.b16 %v5177, %v4981
    %v7530 = vpack.c.b16 %v5178, %v4982
    %v7531 = vpack.c.b16 %v5179, %v4983
    %v7532 = vpack.c.b16 %v5180, %v4984
    %v7533 = vpack.c.b16 %v5181, %v4985
    %v7534 = vpack.c.b16 %v5182, %v4986
    %v7535 = vpack.c.b16 %v5183, %v4987
    %v7536 = vpack.c.b16 %v5184, %v4988
    %v7537 = vpack.c.b16 %v5185, %v4989
    %v7538 = vpack.c.b16 %v5186, %v4990
    %v7539 = vpack.c.b16 %v5187, %v4991
    %v7540 = vpack.c.b16 %v5188, %v4992
    %v7541 = vpack.c.b16 %v5189, %v4993
    %v7542 = vpack.c.b16 %v5190, %v4994
    %v7543 = vpack.c.b16 %v5191, %v4995
    %v7544 = vpack.c.b16 %v5192, %v4996
    %v7545 = vpack.c.b16 %v5193, %v4997
    %v7546 = vpack.c.b16 %v5194, %v4998
    %v7547 = vpack.c.b16 %v5195, %v4999
    %v7548 = vpack.c.b16 %v5196, %v5000
    %v7549 = vpack.c.b16 %v5197, %v5001
    %v7550 = vpack.c.b16 %v5198, %v5002
    %v7551 = vpack.c.b16 %v5199, %v5003
    %v7552 = vpack.c.b16 %v5200, %v5004
    %v7553 = vpack.c.b16 %v5201, %v5005
    %v7554 = vpack.c.b16 %v5202, %v5006
    %v7555 = vpack.c.b16 %v5203, %v5007
    %v7556 = vpack.c.b16 %v5204, %v5008
    %v7557 = vpack.c.b16 %v5205, %v5009
    %v7558 = vpack.c.b16 %v5206, %v5010
    %v7559 = vpack.c.b16 %v5207, %v5011
    %v7560 = vpack.c.b16 %v5208, %v5012
    %v7561 = vpack.c.b16 %v5209, %v5013
    %v7562 = vpack.c.b16 %v5210, %v5014
    %v7563 = vpack.c.b16 %v5211, %v5015
    %v7564 = vpack.c.b16 %v5212, %v5016
    %v7565 = vpack.c.b16 %v5213, %v5017
    %v7566 = vpack.c.b16 %v5214, %v5018
    %v7567 = vpack.c.b16 %v5215, %v5019
    %v7568 = vpack.c.b16 %v5216, %v5020
    %v7569 = vpack.c.b16 %v5217, %v5021
    %v7570 = vpack.c.b16 %v5218, %v5022
    %v7571 = vpack.c.b16 %v5219, %v5023
    %v7572 = vpack.c.b16 %v5220, %v5024
    %v7573 = vpack.c.b16 %v5221, %v5025
    %v7574 = vpack.c.b16 %v5222, %v5026
    %v7575 = vpack.c.b16 %v5223, %v5027
    %v7576 = vpack.c.b16 %v5224, %v5028
    %v7577 = vpack.c.b16 %v5225, %v5029
    %v7578 = vpack.c.b16 %v5226, %v5030
    %v7579 = vpack.c.b16 %v5227, %v5031
    %v7580 = vpack.c.b16 %v5228, %v5032
    %v7581 = vpack.c.b16 %v5229, %v5033
    %v7582 = vpack.c.b16 %v5230, %v5034
    %v7583 = vpack.c.b16 %v5231, %v5035
    %v7584 = vpack.c.b16 %v5232, %v5036
    %v7585 = vpack.c.b16 %v5233, %v5037
    %v7586 = vpack.c.b16 %v5234, %v5038
    %v7587 = vpack.c.b16 %v5235, %v5039
    %v7588 = vpack.c.b16 %v5236, %v5040
    %v7589 = vpack.c.b16 %v5237, %v5041
    %v7590 = vpack.c.b16 %v5238, %v5042
    %v7591 = vpack.c.b16 %v5239, %v5043
    %v7592 = vpack.c.b16 %v5240, %v5044
    %v7593 = vpack.c.b16 %v5241, %v5045
    %v7594 = vpack.c.b16 %v5242, %v5046
    %v7595 = vpack.c.b16 %v5243, %v5047
    %v7596 = vpack.c.b16 %v5244, %v5048
    %v7597 = vpack.c.b16 %v5245, %v5049
    %v7598 = vpack.c.b16 %v5246, %v5050
    %v7599 = vpack.c.b16 %v5247, %v5051
    %v7600 = vpack.c.b16 %v5248, %v5052
    %v7601 = vpack.c.b16 %v5249, %v5053
    %v7602 = vpack.c.b16 %v5250, %v5054
    %v7603 = vpack.c.b16 %v5251, %v5055
    %v7604 = vpack.c.b16 %v5252, %v5056
    %v7605 = vpack.c.b16 %v5253, %v5057
    %v7606 = vpack.c.b16 %v5254, %v5058
    %v7607 = vpack.c.b16 %v5255, %v5059
    %v7608 = vpack.c.b16 %v5256, %v5060
    %v7609 = vpack.c.b16 %v5257, %v5061
    %v7610 = vpack.c.b16 %v5258, %v5062
    %v7611 = vpack.c.b16 %v5259, %v5063
    %v7612 = vpack.c.b16 %v5260, %v5064
    %v7613 = vpack.c.b16 %v5261, %v5065
    %v7614 = vpack.c.b16 %v5262, %v5066
    %v7615 = vpack.c.b16 %v5263, %v5067
    %v7616 = vpack.c.b16 %v5264, %v5068
    %v7617 = vpack.c.b16 %v5265, %v5069
    %v7618 = vpack.c.b16 %v5266, %v5070
    %v7619 = vpack.c.b16 %v5267, %v5071
    %v7620 = vpack.c.b16 %v5268, %v5072
    %v7621 = vpack.c.b16 %v5269, %v5073
    %v7622 = vpack.c.b16 %v5270, %v5074
    %v7623 = vpack.c.b16 %v5271, %v5075
    %v7624 = vpack.c.b16 %v5272, %v5076
    %v7625 = vpack.c.b16 %v5273, %v5077
    %v7626 = vpack.c.b16 %v5274, %v5078
    %v7627 = vpack.c.b16 %v5275, %v5079
    %v7628 = vpack.c.b16 %v5276, %v5080
    %v7629 = vpack.c.b16 %v5277, %v5081
    %v7630 = vpack.c.b16 %v5278, %v5082
    %v7631 = vpack.c.b16 %v5279, %v5083
    %v7632 = vpack.c.b16 %v5280, %v5084
    %v7633 = vpack.c.b16 %v5281, %v5085
    %v7634 = vpack.c.b16 %v5282, %v5086
    %v7635 = vpack.c.b16 %v5283, %v5087
    %v7636 = vpack.c.b16 %v5284, %v5088
    %v7637 = vpack.c.b16 %v5285, %v5089
    %v7638 = vpack.c.b16 %v5286, %v5090
    %v7639 = vpack.c.b16 %v5287, %v5091
    %v7640 = vpack.c.b16 %v5288, %v5092
    %v7641 = vpack.c.b16 %v5289, %v5093
    %v7642 = vpack.c.b16 %v5290, %v5094
    %v7643 = vpack.c.b16 %v5291, %v5095
    %v7644 = vpack.c.b16 %v5292, %v5096
    %v7645 = vpack.c.b16 %v5293, %v5097
    %v7646 = vpack.c.b16 %v5294, %v5098
    %v7647 = vpack.c.b16 %v5295, %v5099
    %v7648 = vpack.c.b16 %v5296, %v5100
    %v7649 = vpack.c.b16 %v5297, %v5101
    %v7650 = vpack.c.b16 %v5298, %v5102
    %v7651 = vpack.c.b16 %v5299, %v5103
    %v7652 = vpack.c.b16 %v5300, %v5104
    %v7653 = vpack.c.b16 %v5301, %v5105
    %v7654 = vpack.c.b16 %v5302, %v5106
    %v7655 = vpack.c.b16 %v5303, %v5107
    %v7656 = vpack.c.b16 %v5304, %v5108
    %v7657 = vpack.c.b16 %v5305, %v5109
    %v7658 = vpack.c.b16 %v5306, %v5110
    %v7659 = vpack.c.b16 %v5307, %v5111
    %v7660 = vpack.c.b16 %v5308, %v5112
    %v7661 = vpack.c.b16 %v5309, %v5113
    %v7662 = vpack.c.b16 %v5310, %v5114
    %v7663 = vpack.c.b16 %v5311, %v5115
    %v7664 = vpack.c.b16 %v5312, %v5116
    %v7665 = vpack.c.b16 %v5313, %v5117
    %v7666 = vpack.c.b16 %v5314, %v5118
    %v7667 = vpack.c.b16 %v5315, %v5119
    %v7668 = vpack.c.b16 %v5316, %v5120
    %v7669 = vpack.c.b16 %v5317, %v5121
    %v7670 = vpack.c.b16 %v5318, %v5122
    %v7671 = vpack.c.b16 %v5319, %v5123
    %v7672 = vpack.c.b16 %v5320, %v5124
    %v7673 = vpack.c.b16 %v5321, %v5125
    %v7674 = vpack.c.b16 %v5322, %v5126
    %v7675 = vpack.c.b16 %v5323, %v5127
    %v7676 = vpack.c.b16 %v5324, %v5128
    %v7677 = vpack.c.b16 %v5325, %v5129
    %v7678 = vpack.c.b16 %v5326, %v5130
    %v7679 = vpack.c.b16 %v5327, %v5131
    %v7680 = vpack.c.b16 %v5328, %v5132
    %v7681 = vpack.c.b16 %v5329, %v5133
    %v7682 = vpack.c.b16 %v5330, %v5134
    %v7683 = vpack.c.b16 %v5331, %v5135
    %v7684 = vpack.c.b16 %v5332, %v5136
    %v7685 = vpack.c.b16 %v5333, %v5137
    %v7686 = vpack.c.b16 %v5334, %v5138
    %v7687 = vpack.c.b16 %v5335, %v5139
    %v7688 = vpack.c.b16 %v5336, %v5140
    %v7689 = vpack.c.b16 %v5337, %v5141
    %v7690 = vpack.c.b16 %v5338, %v5142
    %v7691 = vpack.c.b16 %v5339, %v5143
    %v7692 = vpack.c.b16 %v5340, %v5144
    %v7693 = vpack.c.b16 %v5341, %v5145
    %v7694 = vpack.c.b16 %v5342, %v5146
    %v7695 = vpack.c.b16 %v5343, %v5147
    %v7696 = vpack.c.b16 %v5344, %v5148
    %v7697 = vpack.c.b16 %v5345, %v5149
    %v7698 = vpack.c.b16 %v5346, %v5150
    %v7699 = vpack.c.b16 %v5347, %v5151
    %v7700 = vpack.c.b16 %v5348, %v5152
    %v7701 = vpack.c.b16 %v5349, %v5153
    %v7702 = vpack.c.b16 %v5350, %v5154
    %v7703 = vpack.c.b16 %v5351, %v5155
    %v7704 = vpack.c.b16 %v5352, %v5156
    %v7705 = vpack.c.b16 %v5353, %v5157
    %v7706 = vpack.c.b16 %v5550, %v5354
    %v7707 = vpack.c.b16 %v5551, %v5355
    %v7708 = vpack.c.b16 %v5552, %v5356
    %v7709 = vpack.c.b16 %v5553, %v5357
    %v7710 = vpack.c.b16 %v5554, %v5358
    %v7711 = vpack.c.b16 %v5555, %v5359
    %v7712 = vpack.c.b16 %v5556, %v5360
    %v7713 = vpack.c.b16 %v5557, %v5361
    %v7714 = vpack.c.b16 %v5558, %v5362
    %v7715 = vpack.c.b16 %v5559, %v5363
    %v7716 = vpack.c.b16 %v5560, %v5364
    %v7717 = vpack.c.b16 %v5561, %v5365
    %v7718 = vpack.c.b16 %v5562, %v5366
    %v7719 = vpack.c.b16 %v5563, %v5367
    %v7720 = vpack.c.b16 %v5564, %v5368
    %v7721 = vpack.c.b16 %v5565, %v5369
    %v7722 = vpack.c.b16 %v5566, %v5370
    %v7723 = vpack.c.b16 %v5567, %v5371
    %v7724 = vpack.c.b16 %v5568, %v5372
    %v7725 = vpack.c.b16 %v5569, %v5373
    %v7726 = vpack.c.b16 %v5570, %v5374
    %v7727 = vpack.c.b16 %v5571, %v5375
    %v7728 = vpack.c.b16 %v5572, %v5376
    %v7729 = vpack.c.b16 %v5573, %v5377
    %v7730 = vpack.c.b16 %v5574, %v5378
    %v7731 = vpack.c.b16 %v5575, %v5379
    %v7732 = vpack.c.b16 %v5576, %v5380
    %v7733 = vpack.c.b16 %v5577, %v5381
    %v7734 = vpack.c.b16 %v5578, %v5382
    %v7735 = vpack.c.b16 %v5579, %v5383
    %v7736 = vpack.c.b16 %v5580, %v5384
    %v7737 = vpack.c.b16 %v5581, %v5385
    %v7738 = vpack.c.b16 %v5582, %v5386
    %v7739 = vpack.c.b16 %v5583, %v5387
    %v7740 = vpack.c.b16 %v5584, %v5388
    %v7741 = vpack.c.b16 %v5585, %v5389
    %v7742 = vpack.c.b16 %v5586, %v5390
    %v7743 = vpack.c.b16 %v5587, %v5391
    %v7744 = vpack.c.b16 %v5588, %v5392
    %v7745 = vpack.c.b16 %v5589, %v5393
    %v7746 = vpack.c.b16 %v5590, %v5394
    %v7747 = vpack.c.b16 %v5591, %v5395
    %v7748 = vpack.c.b16 %v5592, %v5396
    %v7749 = vpack.c.b16 %v5593, %v5397
    %v7750 = vpack.c.b16 %v5594, %v5398
    %v7751 = vpack.c.b16 %v5595, %v5399
    %v7752 = vpack.c.b16 %v5596, %v5400
    %v7753 = vpack.c.b16 %v5597, %v5401
    %v7754 = vpack.c.b16 %v5598, %v5402
    %v7755 = vpack.c.b16 %v5599, %v5403
    %v7756 = vpack.c.b16 %v5600, %v5404
    %v7757 = vpack.c.b16 %v5601, %v5405
    %v7758 = vpack.c.b16 %v5602, %v5406
    %v7759 = vpack.c.b16 %v5603, %v5407
    %v7760 = vpack.c.b16 %v5604, %v5408
    %v7761 = vpack.c.b16 %v5605, %v5409
    %v7762 = vpack.c.b16 %v5606, %v5410
    %v7763 = vpack.c.b16 %v5607, %v5411
    %v7764 = vpack.c.b16 %v5608, %v5412
    %v7765 = vpack.c.b16 %v5609, %v5413
    %v7766 = vpack.c.b16 %v5610, %v5414
    %v7767 = vpack.c.b16 %v5611, %v5415
    %v7768 = vpack.c.b16 %v5612, %v5416
    %v7769 = vpack.c.b16 %v5613, %v5417
    %v7770 = vpack.c.b16 %v5614, %v5418
    %v7771 = vpack.c.b16 %v5615, %v5419
    %v7772 = vpack.c.b16 %v5616, %v5420
    %v7773 = vpack.c.b16 %v5617, %v5421
    %v7774 = vpack.c.b16 %v5618, %v5422
    %v7775 = vpack.c.b16 %v5619, %v5423
    %v7776 = vpack.c.b16 %v5620, %v5424
    %v7777 = vpack.c.b16 %v5621, %v5425
    %v7778 = vpack.c.b16 %v5622, %v5426
    %v7779 = vpack.c.b16 %v5623, %v5427
    %v7780 = vpack.c.b16 %v5624, %v5428
    %v7781 = vpack.c.b16 %v5625, %v5429
    %v7782 = vpack.c.b16 %v5626, %v5430
    %v7783 = vpack.c.b16 %v5627, %v5431
    %v7784 = vpack.c.b16 %v5628, %v5432
    %v7785 = vpack.c.b16 %v5629, %v5433
    %v7786 = vpack.c.b16 %v5630, %v5434
    %v7787 = vpack.c.b16 %v5631, %v5435
    %v7788 = vpack.c.b16 %v5632, %v5436
    %v7789 = vpack.c.b16 %v5633, %v5437
    %v7790 = vpack.c.b16 %v5634, %v5438
    %v7791 = vpack.c.b16 %v5635, %v5439
    %v7792 = vpack.c.b16 %v5636, %v5440
    %v7793 = vpack.c.b16 %v5637, %v5441
    %v7794 = vpack.c.b16 %v5638, %v5442
    %v7795 = vpack.c.b16 %v5639, %v5443
    %v7796 = vpack.c.b16 %v5640, %v5444
    %v7797 = vpack.c.b16 %v5641, %v5445
    %v7798 = vpack.c.b16 %v5642, %v5446
    %v7799 = vpack.c.b16 %v5643, %v5447
    %v7800 = vpack.c.b16 %v5644, %v5448
    %v7801 = vpack.c.b16 %v5645, %v5449
    %v7802 = vpack.c.b16 %v5646, %v5450
    %v7803 = vpack.c.b16 %v5647, %v5451
    %v7804 = vpack.c.b16 %v5648, %v5452
    %v7805 = vpack.c.b16 %v5649, %v5453
    %v7806 = vpack.c.b16 %v5650, %v5454
    %v7807 = vpack.c.b16 %v5651, %v5455
    %v7808 = vpack.c.b16 %v5652, %v5456
    %v7809 = vpack.c.b16 %v5653, %v5457
    %v7810 = vpack.c.b16 %v5654, %v5458
    %v7811 = vpack.c.b16 %v5655, %v5459
    %v7812 = vpack.c.b16 %v5656, %v5460
    %v7813 = vpack.c.b16 %v5657, %v5461
    %v7814 = vpack.c.b16 %v5658, %v5462
    %v7815 = vpack.c.b16 %v5659, %v5463
    %v7816 = vpack.c.b16 %v5660, %v5464
    %v7817 = vpack.c.b16 %v5661, %v5465
    %v7818 = vpack.c.b16 %v5662, %v5466
    %v7819 = vpack.c.b16 %v5663, %v5467
    %v7820 = vpack.c.b16 %v5664, %v5468
    %v7821 = vpack.c.b16 %v5665, %v5469
    %v7822 = vpack.c.b16 %v5666, %v5470
    %v7823 = vpack.c.b16 %v5667, %v5471
    %v7824 = vpack.c.b16 %v5668, %v5472
    %v7825 = vpack.c.b16 %v5669, %v5473
    %v7826 = vpack.c.b16 %v5670, %v5474
    %v7827 = vpack.c.b16 %v5671, %v5475
    %v7828 = vpack.c.b16 %v5672, %v5476
    %v7829 = vpack.c.b16 %v5673, %v5477
    %v7830 = vpack.c.b16 %v5674, %v5478
    %v7831 = vpack.c.b16 %v5675, %v5479
    %v7832 = vpack.c.b16 %v5676, %v5480
    %v7833 = vpack.c.b16 %v5677, %v5481
    %v7834 = vpack.c.b16 %v5678, %v5482
    %v7835 = vpack.c.b16 %v5679, %v5483
    %v7836 = vpack.c.b16 %v5680, %v5484
    %v7837 = vpack.c.b16 %v5681, %v5485
    %v7838 = vpack.c.b16 %v5682, %v5486
    %v7839 = vpack.c.b16 %v5683, %v5487
    %v7840 = vpack.c.b16 %v5684, %v5488
    %v7841 = vpack.c.b16 %v5685, %v5489
    %v7842 = vpack.c.b16 %v5686, %v5490
    %v7843 = vpack.c.b16 %v5687, %v5491
    %v7844 = vpack.c.b16 %v5688, %v5492
    %v7845 = vpack.c.b16 %v5689, %v5493
    %v7846 = vpack.c.b16 %v5690, %v5494
    %v7847 = vpack.c.b16 %v5691, %v5495
    %v7848 = vpack.c.b16 %v5692, %v5496
    %v7849 = vpack.c.b16 %v5693, %v5497
    %v7850 = vpack.c.b16 %v5694, %v5498
    %v7851 = vpack.c.b16 %v5695, %v5499
    %v7852 = vpack.c.b16 %v5696, %v5500
    %v7853 = vpack.c.b16 %v5697, %v5501
    %v7854 = vpack.c.b16 %v5698, %v5502
    %v7855 = vpack.c.b16 %v5699, %v5503
    %v7856 = vpack.c.b16 %v5700, %v5504
    %v7857 = vpack.c.b16 %v5701, %v5505
    %v7858 = vpack.c.b16 %v5702, %v5506
    %v7859 = vpack.c.b16 %v5703, %v5507
    %v7860 = vpack.c.b16 %v5704, %v5508
    %v7861 = vpack.c.b16 %v5705, %v5509
    %v7862 = vpack.c.b16 %v5706, %v5510
    %v7863 = vpack.c.b16 %v5707, %v5511
    %v7864 = vpack.c.b16 %v5708, %v5512
    %v7865 = vpack.c.b16 %v5709, %v5513
    %v7866 = vpack.c.b16 %v5710, %v5514
    %v7867 = vpack.c.b16 %v5711, %v5515
    %v7868 = vpack.c.b16 %v5712, %v5516
    %v7869 = vpack.c.b16 %v5713, %v5517
    %v7870 = vpack.c.b16 %v5714, %v5518
    %v7871 = vpack.c.b16 %v5715, %v5519
    %v7872 = vpack.c.b16 %v5716, %v5520
    %v7873 = vpack.c.b16 %v5717, %v5521
    %v7874 = vpack.c.b16 %v5718, %v5522
    %v7875 = vpack.c.b16 %v5719, %v5523
    %v7876 = vpack.c.b16 %v5720, %v5524
    %v7877 = vpack.c.b16 %v5721, %v5525
    %v7878 = vpack.c.b16 %v5722, %v5526
    %v7879 = vpack.c.b16 %v5723, %v5527
    %v7880 = vpack.c.b16 %v5724, %v5528
    %v7881 = vpack.c.b16 %v5725, %v5529
    %v7882 = vpack.c.b16 %v5726, %v5530
    %v7883 = vpack.c.b16 %v5727, %v5531
    %v7884 = vpack.c.b16 %v5728, %v5532
    %v7885 = vpack.c.b16 %v5729, %v5533
    %v7886 = vpack.c.b16 %v5730, %v5534
    %v7887 = vpack.c.b16 %v5731, %v5535
    %v7888 = vpack.c.b16 %v5732, %v5536
    %v7889 = vpack.c.b16 %v5733, %v5537
    %v7890 = vpack.c.b16 %v5734, %v5538
    %v7891 = vpack.c.b16 %v5735, %v5539
    %v7892 = vpack.c.b16 %v5736, %v5540
    %v7893 = vpack.c.b16 %v5737, %v5541
    %v7894 = vpack.c.b16 %v5738, %v5542
    %v7895 = vpack.c.b16 %v5739, %v5543
    %v7896 = vpack.c.b16 %v5740, %v5544
    %v7897 = vpack.c.b16 %v5741, %v5545
    %v7898 = vpack.c.b16 %v5742, %v5546
    %v7899 = vpack.c.b16 %v5743, %v5547
    %v7900 = vpack.c.b16 %v5744, %v5548
    %v7901 = vpack.c.b16 %v5745, %v5549
    %v7902 = vpack.c.b16 %v5942, %v5746
    %v7903 = vpack.c.b16 %v5943, %v5747
    %v7904 = vpack.c.b16 %v5944, %v5748
    %v7905 = vpack.c.b16 %v5945, %v5749
    %v7906 = vpack.c.b16 %v5946, %v5750
    %v7907 = vpack.c.b16 %v5947, %v5751
    %v7908 = vpack.c.b16 %v5948, %v5752
    %v7909 = vpack.c.b16 %v5949, %v5753
    %v7910 = vpack.c.b16 %v5950, %v5754
    %v7911 = vpack.c.b16 %v5951, %v5755
    %v7912 = vpack.c.b16 %v5952, %v5756
    %v7913 = vpack.c.b16 %v5953, %v5757
    %v7914 = vpack.c.b16 %v5954, %v5758
    %v7915 = vpack.c.b16 %v5955, %v5759
    %v7916 = vpack.c.b16 %v5956, %v5760
    %v7917 = vpack.c.b16 %v5957, %v5761
    %v7918 = vpack.c.b16 %v5958, %v5762
    %v7919 = vpack.c.b16 %v5959, %v5763
    %v7920 = vpack.c.b16 %v5960, %v5764
    %v7921 = vpack.c.b16 %v5961, %v5765
    %v7922 = vpack.c.b16 %v5962, %v5766
    %v7923 = vpack.c.b16 %v5963, %v5767
    %v7924 = vpack.c.b16 %v5964, %v5768
    %v7925 = vpack.c.b16 %v5965, %v5769
    %v7926 = vpack.c.b16 %v5966, %v5770
    %v7927 = vpack.c.b16 %v5967, %v5771
    %v7928 = vpack.c.b16 %v5968, %v5772
    %v7929 = vpack.c.b16 %v5969, %v5773
    %v7930 = vpack.c.b16 %v5970, %v5774
    %v7931 = vpack.c.b16 %v5971, %v5775
    %v7932 = vpack.c.b16 %v5972, %v5776
    %v7933 = vpack.c.b16 %v5973, %v5777
    %v7934 = vpack.c.b16 %v5974, %v5778
    %v7935 = vpack.c.b16 %v5975, %v5779
    %v7936 = vpack.c.b16 %v5976, %v5780
    %v7937 = vpack.c.b16 %v5977, %v5781
    %v7938 = vpack.c.b16 %v5978, %v5782
    %v7939 = vpack.c.b16 %v5979, %v5783
    %v7940 = vpack.c.b16 %v5980, %v5784
    %v7941 = vpack.c.b16 %v5981, %v5785
    %v7942 = vpack.c.b16 %v5982, %v5786
    %v7943 = vpack.c.b16 %v5983, %v5787
    %v7944 = vpack.c.b16 %v5984, %v5788
    %v7945 = vpack.c.b16 %v5985, %v5789
    %v7946 = vpack.c.b16 %v5986, %v5790
    %v7947 = vpack.c.b16 %v5987, %v5791
    %v7948 = vpack.c.b16 %v5988, %v5792
    %v7949 = vpack.c.b16 %v5989, %v5793
    %v7950 = vpack.c.b16 %v5990, %v5794
    %v7951 = vpack.c.b16 %v5991, %v5795
    %v7952 = vpack.c.b16 %v5992, %v5796
    %v7953 = vpack.c.b16 %v5993, %v5797
    %v7954 = vpack.c.b16 %v5994, %v5798
    %v7955 = vpack.c.b16 %v5995, %v5799
    %v7956 = vpack.c.b16 %v5996, %v5800
    %v7957 = vpack.c.b16 %v5997, %v5801
    %v7958 = vpack.c.b16 %v5998, %v5802
    %v7959 = vpack.c.b16 %v5999, %v5803
    %v7960 = vpack.c.b16 %v6000, %v5804
    %v7961 = vpack.c.b16 %v6001, %v5805
    %v7962 = vpack.c.b16 %v6002, %v5806
    %v7963 = vpack.c.b16 %v6003, %v5807
    %v7964 = vpack.c.b16 %v6004, %v5808
    %v7965 = vpack.c.b16 %v6005, %v5809
    %v7966 = vpack.c.b16 %v6006, %v5810
    %v7967 = vpack.c.b16 %v6007, %v5811
    %v7968 = vpack.c.b16 %v6008, %v5812
    %v7969 = vpack.c.b16 %v6009, %v5813
    %v7970 = vpack.c.b16 %v6010, %v5814
    %v7971 = vpack.c.b16 %v6011, %v5815
    %v7972 = vpack.c.b16 %v6012, %v5816
    %v7973 = vpack.c.b16 %v6013, %v5817
    %v7974 = vpack.c.b16 %v6014, %v5818
    %v7975 = vpack.c.b16 %v6015, %v5819
    %v7976 = vpack.c.b16 %v6016, %v5820
    %v7977 = vpack.c.b16 %v6017, %v5821
    %v7978 = vpack.c.b16 %v6018, %v5822
    %v7979 = vpack.c.b16 %v6019, %v5823
    %v7980 = vpack.c.b16 %v6020, %v5824
    %v7981 = vpack.c.b16 %v6021, %v5825
    %v7982 = vpack.c.b16 %v6022, %v5826
    %v7983 = vpack.c.b16 %v6023, %v5827
    %v7984 = vpack.c.b16 %v6024, %v5828
    %v7985 = vpack.c.b16 %v6025, %v5829
    %v7986 = vpack.c.b16 %v6026, %v5830
    %v7987 = vpack.c.b16 %v6027, %v5831
    %v7988 = vpack.c.b16 %v6028, %v5832
    %v7989 = vpack.c.b16 %v6029, %v5833
    %v7990 = vpack.c.b16 %v6030, %v5834
    %v7991 = vpack.c.b16 %v6031, %v5835
    %v7992 = vpack.c.b16 %v6032, %v5836
    %v7993 = vpack.c.b16 %v6033, %v5837
    %v7994 = vpack.c.b16 %v6034, %v5838
    %v7995 = vpack.c.b16 %v6035, %v5839
    %v7996 = vpack.c.b16 %v6036, %v5840
    %v7997 = vpack.c.b16 %v6037, %v5841
    %v7998 = vpack.c.b16 %v6038, %v5842
    %v7999 = vpack.c.b16 %v6039, %v5843
    %v8000 = vpack.c.b16 %v6040, %v5844
    %v8001 = vpack.c.b16 %v6041, %v5845
    %v8002 = vpack.c.b16 %v6042, %v5846
    %v8003 = vpack.c.b16 %v6043, %v5847
    %v8004 = vpack.c.b16 %v6044, %v5848
    %v8005 = vpack.c.b16 %v6045, %v5849
    %v8006 = vpack.c.b16 %v6046, %v5850
    %v8007 = vpack.c.b16 %v6047, %v5851
    %v8008 = vpack.c.b16 %v6048, %v5852
    %v8009 = vpack.c.b16 %v6049, %v5853
    %v8010 = vpack.c.b16 %v6050, %v5854
    %v8011 = vpack.c.b16 %v6051, %v5855
    %v8012 = vpack.c.b16 %v6052, %v5856
    %v8013 = vpack.c.b16 %v6053, %v5857
    %v8014 = vpack.c.b16 %v6054, %v5858
    %v8015 = vpack.c.b16 %v6055, %v5859
    %v8016 = vpack.c.b16 %v6056, %v5860
    %v8017 = vpack.c.b16 %v6057, %v5861
    %v8018 = vpack.c.b16 %v6058, %v5862
    %v8019 = vpack.c.b16 %v6059, %v5863
    %v8020 = vpack.c.b16 %v6060, %v5864
    %v8021 = vpack.c.b16 %v6061, %v5865
    %v8022 = vpack.c.b16 %v6062, %v5866
    %v8023 = vpack.c.b16 %v6063, %v5867
    %v8024 = vpack.c.b16 %v6064, %v5868
    %v8025 = vpack.c.b16 %v6065, %v5869
    %v8026 = vpack.c.b16 %v6066, %v5870
    %v8027 = vpack.c.b16 %v6067, %v5871
    %v8028 = vpack.c.b16 %v6068, %v5872
    %v8029 = vpack.c.b16 %v6069, %v5873
    %v8030 = vpack.c.b16 %v6070, %v5874
    %v8031 = vpack.c.b16 %v6071, %v5875
    %v8032 = vpack.c.b16 %v6072, %v5876
    %v8033 = vpack.c.b16 %v6073, %v5877
    %v8034 = vpack.c.b16 %v6074, %v5878
    %v8035 = vpack.c.b16 %v6075, %v5879
    %v8036 = vpack.c.b16 %v6076, %v5880
    %v8037 = vpack.c.b16 %v6077, %v5881
    %v8038 = vpack.c.b16 %v6078, %v5882
    %v8039 = vpack.c.b16 %v6079, %v5883
    %v8040 = vpack.c.b16 %v6080, %v5884
    %v8041 = vpack.c.b16 %v6081, %v5885
    %v8042 = vpack.c.b16 %v6082, %v5886
    %v8043 = vpack.c.b16 %v6083, %v5887
    %v8044 = vpack.c.b16 %v6084, %v5888
    %v8045 = vpack.c.b16 %v6085, %v5889
    %v8046 = vpack.c.b16 %v6086, %v5890
    %v8047 = vpack.c.b16 %v6087, %v5891
    %v8048 = vpack.c.b16 %v6088, %v5892
    %v8049 = vpack.c.b16 %v6089, %v5893
    %v8050 = vpack.c.b16 %v6090, %v5894
    %v8051 = vpack.c.b16 %v6091, %v5895
    %v8052 = vpack.c.b16 %v6092, %v5896
    %v8053 = vpack.c.b16 %v6093, %v5897
    %v8054 = vpack.c.b16 %v6094, %v5898
    %v8055 = vpack.c.b16 %v6095, %v5899
    %v8056 = vpack.c.b16 %v6096, %v5900
    %v8057 = vpack.c.b16 %v6097, %v5901
    %v8058 = vpack.c.b16 %v6098, %v5902
    %v8059 = vpack.c.b16 %v6099, %v5903
    %v8060 = vpack.c.b16 %v6100, %v5904
    %v8061 = vpack.c.b16 %v6101, %v5905
    %v8062 = vpack.c.b16 %v6102, %v5906
    %v8063 = vpack.c.b16 %v6103, %v5907
    %v8064 = vpack.c.b16 %v6104, %v5908
    %v8065 = vpack.c.b16 %v6105, %v5909
    %v8066 = vpack.c.b16 %v6106, %v5910
    %v8067 = vpack.c.b16 %v6107, %v5911
    %v8068 = vpack.c.b16 %v6108, %v5912
    %v8069 = vpack.c.b16 %v6109, %v5913
    %v8070 = vpack.c.b16 %v6110, %v5914
    %v8071 = vpack.c.b16 %v6111, %v5915
    %v8072 = vpack.c.b16 %v6112, %v5916
    %v8073 = vpack.c.b16 %v6113, %v5917
    %v8074 = vpack.c.b16 %v6114, %v5918
    %v8075 = vpack.c.b16 %v6115, %v5919
    %v8076 = vpack.c.b16 %v6116, %v5920
    %v8077 = vpack.c.b16 %v6117, %v5921
    %v8078 = vpack.c.b16 %v6118, %v5922
    %v8079 = vpack.c.b16 %v6119, %v5923
    %v8080 = vpack.c.b16 %v6120, %v5924
    %v8081 = vpack.c.b16 %v6121, %v5925
    %v8082 = vpack.c.b16 %v6122, %v5926
    %v8083 = vpack.c.b16 %v6123, %v5927
    %v8084 = vpack.c.b16 %v6124, %v5928
    %v8085 = vpack.c.b16 %v6125, %v5929
    %v8086 = vpack.c.b16 %v6126, %v5930
    %v8087 = vpack.c.b16 %v6127, %v5931
    %v8088 = vpack.c.b16 %v6128, %v5932
    %v8089 = vpack.c.b16 %v6129, %v5933
    %v8090 = vpack.c.b16 %v6130, %v5934
    %v8091 = vpack.c.b16 %v6131, %v5935
    %v8092 = vpack.c.b16 %v6132, %v5936
    %v8093 = vpack.c.b16 %v6133, %v5937
    %v8094 = vpack.c.b16 %v6134, %v5938
    %v8095 = vpack.c.b16 %v6135, %v5939
    %v8096 = vpack.c.b16 %v6136, %v5940
    %v8097 = vpack.c.b16 %v6137, %v5941
    %v8098 = vpack.c.b16 %v6334, %v6138
    %v8099 = vpack.c.b16 %v6335, %v6139
    %v8100 = vpack.c.b16 %v6336, %v6140
    %v8101 = vpack.c.b16 %v6337, %v6141
    %v8102 = vpack.c.b16 %v6338, %v6142
    %v8103 = vpack.c.b16 %v6339, %v6143
    %v8104 = vpack.c.b16 %v6340, %v6144
    %v8105 = vpack.c.b16 %v6341, %v6145
    %v8106 = vpack.c.b16 %v6342, %v6146
    %v8107 = vpack.c.b16 %v6343, %v6147
    %v8108 = vpack.c.b16 %v6344, %v6148
    %v8109 = vpack.c.b16 %v6345, %v6149
    %v8110 = vpack.c.b16 %v6346, %v6150
    %v8111 = vpack.c.b16 %v6347, %v6151
    %v8112 = vpack.c.b16 %v6348, %v6152
    %v8113 = vpack.c.b16 %v6349, %v6153
    %v8114 = vpack.c.b16 %v6350, %v6154
    %v8115 = vpack.c.b16 %v6351, %v6155
    %v8116 = vpack.c.b16 %v6352, %v6156
    %v8117 = vpack.c.b16 %v6353, %v6157
    %v8118 = vpack.c.b16 %v6354, %v6158
    %v8119 = vpack.c.b16 %v6355, %v6159
    %v8120 = vpack.c.b16 %v6356, %v6160
    %v8121 = vpack.c.b16 %v6357, %v6161
    %v8122 = vpack.c.b16 %v6358, %v6162
    %v8123 = vpack.c.b16 %v6359, %v6163
    %v8124 = vpack.c.b16 %v6360, %v6164
    %v8125 = vpack.c.b16 %v6361, %v6165
    %v8126 = vpack.c.b16 %v6362, %v6166
    %v8127 = vpack.c.b16 %v6363, %v6167
    %v8128 = vpack.c.b16 %v6364, %v6168
    %v8129 = vpack.c.b16 %v6365, %v6169
    %v8130 = vpack.c.b16 %v6366, %v6170
    %v8131 = vpack.c.b16 %v6367, %v6171
    %v8132 = vpack.c.b16 %v6368, %v6172
    %v8133 = vpack.c.b16 %v6369, %v6173
    %v8134 = vpack.c.b16 %v6370, %v6174
    %v8135 = vpack.c.b16 %v6371, %v6175
    %v8136 = vpack.c.b16 %v6372, %v6176
    %v8137 = vpack.c.b16 %v6373, %v6177
    %v8138 = vpack.c.b16 %v6374, %v6178
    %v8139 = vpack.c.b16 %v6375, %v6179
    %v8140 = vpack.c.b16 %v6376, %v6180
    %v8141 = vpack.c.b16 %v6377, %v6181
    %v8142 = vpack.c.b16 %v6378, %v6182
    %v8143 = vpack.c.b16 %v6379, %v6183
    %v8144 = vpack.c.b16 %v6380, %v6184
    %v8145 = vpack.c.b16 %v6381, %v6185
    %v8146 = vpack.c.b16 %v6382, %v6186
    %v8147 = vpack.c.b16 %v6383, %v6187
    %v8148 = vpack.c.b16 %v6384, %v6188
    %v8149 = vpack.c.b16 %v6385, %v6189
    %v8150 = vpack.c.b16 %v6386, %v6190
    %v8151 = vpack.c.b16 %v6387, %v6191
    %v8152 = vpack.c.b16 %v6388, %v6192
    %v8153 = vpack.c.b16 %v6389, %v6193
    %v8154 = vpack.c.b16 %v6390, %v6194
    %v8155 = vpack.c.b16 %v6391, %v6195
    %v8156 = vpack.c.b16 %v6392, %v6196
    %v8157 = vpack.c.b16 %v6393, %v6197
    %v8158 = vpack.c.b16 %v6394, %v6198
    %v8159 = vpack.c.b16 %v6395, %v6199
    %v8160 = vpack.c.b16 %v6396, %v6200
    %v8161 = vpack.c.b16 %v6397, %v6201
    %v8162 = vpack.c.b16 %v6398, %v6202
    %v8163 = vpack.c.b16 %v6399, %v6203
    %v8164 = vpack.c.b16 %v6400, %v6204
    %v8165 = vpack.c.b16 %v6401, %v6205
    %v8166 = vpack.c.b16 %v6402, %v6206
    %v8167 = vpack.c.b16 %v6403, %v6207
    %v8168 = vpack.c.b16 %v6404, %v6208
    %v8169 = vpack.c.b16 %v6405, %v6209
    %v8170 = vpack.c.b16 %v6406, %v6210
    %v8171 = vpack.c.b16 %v6407, %v6211
    %v8172 = vpack.c.b16 %v6408, %v6212
    %v8173 = vpack.c.b16 %v6409, %v6213
    %v8174 = vpack.c.b16 %v6410, %v6214
    %v8175 = vpack.c.b16 %v6411, %v6215
    %v8176 = vpack.c.b16 %v6412, %v6216
    %v8177 = vpack.c.b16 %v6413, %v6217
    %v8178 = vpack.c.b16 %v6414, %v6218
    %v8179 = vpack.c.b16 %v6415, %v6219
    %v8180 = vpack.c.b16 %v6416, %v6220
    %v8181 = vpack.c.b16 %v6417, %v6221
    %v8182 = vpack.c.b16 %v6418, %v6222
    %v8183 = vpack.c.b16 %v6419, %v6223
    %v8184 = vpack.c.b16 %v6420, %v6224
    %v8185 = vpack.c.b16 %v6421, %v6225
    %v8186 = vpack.c.b16 %v6422, %v6226
    %v8187 = vpack.c.b16 %v6423, %v6227
    %v8188 = vpack.c.b16 %v6424, %v6228
    %v8189 = vpack.c.b16 %v6425, %v6229
    %v8190 = vpack.c.b16 %v6426, %v6230
    %v8191 = vpack.c.b16 %v6427, %v6231
    %v8192 = vpack.c.b16 %v6428, %v6232
    %v8193 = vpack.c.b16 %v6429, %v6233
    %v8194 = vpack.c.b16 %v6430, %v6234
    %v8195 = vpack.c.b16 %v6431, %v6235
    %v8196 = vpack.c.b16 %v6432, %v6236
    %v8197 = vpack.c.b16 %v6433, %v6237
    %v8198 = vpack.c.b16 %v6434, %v6238
    %v8199 = vpack.c.b16 %v6435, %v6239
    %v8200 = vpack.c.b16 %v6436, %v6240
    %v8201 = vpack.c.b16 %v6437, %v6241
    %v8202 = vpack.c.b16 %v6438, %v6242
    %v8203 = vpack.c.b16 %v6439, %v6243
    %v8204 = vpack.c.b16 %v6440, %v6244
    %v8205 = vpack.c.b16 %v6441, %v6245
    %v8206 = vpack.c.b16 %v6442, %v6246
    %v8207 = vpack.c.b16 %v6443, %v6247
    %v8208 = vpack.c.b16 %v6444, %v6248
    %v8209 = vpack.c.b16 %v6445, %v6249
    %v8210 = vpack.c.b16 %v6446, %v6250
    %v8211 = vpack.c.b16 %v6447, %v6251
    %v8212 = vpack.c.b16 %v6448, %v6252
    %v8213 = vpack.c.b16 %v6449, %v6253
    %v8214 = vpack.c.b16 %v6450, %v6254
    %v8215 = vpack.c.b16 %v6451, %v6255
    %v8216 = vpack.c.b16 %v6452, %v6256
    %v8217 = vpack.c.b16 %v6453, %v6257
    %v8218 = vpack.c.b16 %v6454, %v6258
    %v8219 = vpack.c.b16 %v6455, %v6259
    %v8220 = vpack.c.b16 %v6456, %v6260
    %v8221 = vpack.c.b16 %v6457, %v6261
    %v8222 = vpack.c.b16 %v6458, %v6262
    %v8223 = vpack.c.b16 %v6459, %v6263
    %v8224 = vpack.c.b16 %v6460, %v6264
    %v8225 = vpack.c.b16 %v6461, %v6265
    %v8226 = vpack.c.b16 %v6462, %v6266
    %v8227 = vpack.c.b16 %v6463, %v6267
    %v8228 = vpack.c.b16 %v6464, %v6268
    %v8229 = vpack.c.b16 %v6465, %v6269
    %v8230 = vpack.c.b16 %v6466, %v6270
    %v8231 = vpack.c.b16 %v6467, %v6271
    %v8232 = vpack.c.b16 %v6468, %v6272
    %v8233 = vpack.c.b16 %v6469, %v6273
    %v8234 = vpack.c.b16 %v6470, %v6274
    %v8235 = vpack.c.b16 %v6471, %v6275
    %v8236 = vpack.c.b16 %v6472, %v6276
    %v8237 = vpack.c.b16 %v6473, %v6277
    %v8238 = vpack.c.b16 %v6474, %v6278
    %v8239 = vpack.c.b16 %v6475, %v6279
    %v8240 = vpack.c.b16 %v6476, %v6280
    %v8241 = vpack.c.b16 %v6477, %v6281
    %v8242 = vpack.c.b16 %v6478, %v6282
    %v8243 = vpack.c.b16 %v6479, %v6283
    %v8244 = vpack.c.b16 %v6480, %v6284
    %v8245 = vpack.c.b16 %v6481, %v6285
    %v8246 = vpack.c.b16 %v6482, %v6286
    %v8247 = vpack.c.b16 %v6483, %v6287
    %v8248 = vpack.c.b16 %v6484, %v6288
    %v8249 = vpack.c.b16 %v6485, %v6289
    %v8250 = vpack.c.b16 %v6486, %v6290
    %v8251 = vpack.c.b16 %v6487, %v6291
    %v8252 = vpack.c.b16 %v6488, %v6292
    %v8253 = vpack.c.b16 %v6489, %v6293
    %v8254 = vpack.c.b16 %v6490, %v6294
    %v8255 = vpack.c.b16 %v6491, %v6295
    %v8256 = vpack.c.b16 %v6492, %v6296
    %v8257 = vpack.c.b16 %v6493, %v6297
    %v8258 = vpack.c.b16 %v6494, %v6298
    %v8259 = vpack.c.b16 %v6495, %v6299
    %v8260 = vpack.c.b16 %v6496, %v6300
    %v8261 = vpack.c.b16 %v6497, %v6301
    %v8262 = vpack.c.b16 %v6498, %v6302
    %v8263 = vpack.c.b16 %v6499, %v6303
    %v8264 = vpack.c.b16 %v6500, %v6304
    %v8265 = vpack.c.b16 %v6501, %v6305
    %v8266 = vpack.c.b16 %v6502, %v6306
    %v8267 = vpack.c.b16 %v6503, %v6307
    %v8268 = vpack.c.b16 %v6504, %v6308
    %v8269 = vpack.c.b16 %v6505, %v6309
    %v8270 = vpack.c.b16 %v6506, %v6310
    %v8271 = vpack.c.b16 %v6507, %v6311
    %v8272 = vpack.c.b16 %v6508, %v6312
    %v8273 = vpack.c.b16 %v6509, %v6313
    %v8274 = vpack.c.b16 %v6510, %v6314
    %v8275 = vpack.c.b16 %v6511, %v6315
    %v8276 = vpack.c.b16 %v6512, %v6316
    %v8277 = vpack.c.b16 %v6513, %v6317
    %v8278 = vpack.c.b16 %v6514, %v6318
    %v8279 = vpack.c.b16 %v6515, %v6319
    %v8280 = vpack.c.b16 %v6516, %v6320
    %v8281 = vpack.c.b16 %v6517, %v6321
    %v8282 = vpack.c.b16 %v6518, %v6322
    %v8283 = vpack.c.b16 %v6519, %v6323
    %v8284 = vpack.c.b16 %v6520, %v6324
    %v8285 = vpack.c.b16 %v6521, %v6325
    %v8286 = vpack.c.b16 %v6522, %v6326
    %v8287 = vpack.c.b16 %v6523, %v6327
    %v8288 = vpack.c.b16 %v6524, %v6328
    %v8289 = vpack.c.b16 %v6525, %v6329
    %v8290 = vpack.c.b16 %v6526, %v6330
    %v8291 = vpack.c.b16 %v6527, %v6331
    %v8292 = vpack.c.b16 %v6528, %v6332
    %v8293 = vpack.c.b16 %v6529, %v6333
    %v8294 = vpack.c.b16 %v6726, %v6530
    %v8295 = vpack.c.b16 %v6727, %v6531
    %v8296 = vpack.c.b16 %v6728, %v6532
    %v8297 = vpack.c.b16 %v6729, %v6533
    %v8298 = vpack.c.b16 %v6730, %v6534
    %v8299 = vpack.c.b16 %v6731, %v6535
    %v8300 = vpack.c.b16 %v6732, %v6536
    %v8301 = vpack.c.b16 %v6733, %v6537
    %v8302 = vpack.c.b16 %v6734, %v6538
    %v8303 = vpack.c.b16 %v6735, %v6539
    %v8304 = vpack.c.b16 %v6736, %v6540
    %v8305 = vpack.c.b16 %v6737, %v6541
    %v8306 = vpack.c.b16 %v6738, %v6542
    %v8307 = vpack.c.b16 %v6739, %v6543
    %v8308 = vpack.c.b16 %v6740, %v6544
    %v8309 = vpack.c.b16 %v6741, %v6545
    %v8310 = vpack.c.b16 %v6742, %v6546
    %v8311 = vpack.c.b16 %v6743, %v6547
    %v8312 = vpack.c.b16 %v6744, %v6548
    %v8313 = vpack.c.b16 %v6745, %v6549
    %v8314 = vpack.c.b16 %v6746, %v6550
    %v8315 = vpack.c.b16 %v6747, %v6551
    %v8316 = vpack.c.b16 %v6748, %v6552
    %v8317 = vpack.c.b16 %v6749, %v6553
    %v8318 = vpack.c.b16 %v6750, %v6554
    %v8319 = vpack.c.b16 %v6751, %v6555
    %v8320 = vpack.c.b16 %v6752, %v6556
    %v8321 = vpack.c.b16 %v6753, %v6557
    %v8322 = vpack.c.b16 %v6754, %v6558
    %v8323 = vpack.c.b16 %v6755, %v6559
    %v8324 = vpack.c.b16 %v6756, %v6560
    %v8325 = vpack.c.b16 %v6757, %v6561
    %v8326 = vpack.c.b16 %v6758, %v6562
    %v8327 = vpack.c.b16 %v6759, %v6563
    %v8328 = vpack.c.b16 %v6760, %v6564
    %v8329 = vpack.c.b16 %v6761, %v6565
    %v8330 = vpack.c.b16 %v6762, %v6566
    %v8331 = vpack.c.b16 %v6763, %v6567
    %v8332 = vpack.c.b16 %v6764, %v6568
    %v8333 = vpack.c.b16 %v6765, %v6569
    %v8334 = vpack.c.b16 %v6766, %v6570
    %v8335 = vpack.c.b16 %v6767, %v6571
    %v8336 = vpack.c.b16 %v6768, %v6572
    %v8337 = vpack.c.b16 %v6769, %v6573
    %v8338 = vpack.c.b16 %v6770, %v6574
    %v8339 = vpack.c.b16 %v6771, %v6575
    %v8340 = vpack.c.b16 %v6772, %v6576
    %v8341 = vpack.c.b16 %v6773, %v6577
    %v8342 = vpack.c.b16 %v6774, %v6578
    %v8343 = vpack.c.b16 %v6775, %v6579
    %v8344 = vpack.c.b16 %v6776, %v6580
    %v8345 = vpack.c.b16 %v6777, %v6581
    %v8346 = vpack.c.b16 %v6778, %v6582
    %v8347 = vpack.c.b16 %v6779, %v6583
    %v8348 = vpack.c.b16 %v6780, %v6584
    %v8349 = vpack.c.b16 %v6781, %v6585
    %v8350 = vpack.c.b16 %v6782, %v6586
    %v8351 = vpack.c.b16 %v6783, %v6587
    %v8352 = vpack.c.b16 %v6784, %v6588
    %v8353 = vpack.c.b16 %v6785, %v6589
    %v8354 = vpack.c.b16 %v6786, %v6590
    %v8355 = vpack.c.b16 %v6787, %v6591
    %v8356 = vpack.c.b16 %v6788, %v6592
    %v8357 = vpack.c.b16 %v6789, %v6593
    %v8358 = vpack.c.b16 %v6790, %v6594
    %v8359 = vpack.c.b16 %v6791, %v6595
    %v8360 = vpack.c.b16 %v6792, %v6596
    %v8361 = vpack.c.b16 %v6793, %v6597
    %v8362 = vpack.c.b16 %v6794, %v6598
    %v8363 = vpack.c.b16 %v6795, %v6599
    %v8364 = vpack.c.b16 %v6796, %v6600
    %v8365 = vpack.c.b16 %v6797, %v6601
    %v8366 = vpack.c.b16 %v6798, %v6602
    %v8367 = vpack.c.b16 %v6799, %v6603
    %v8368 = vpack.c.b16 %v6800, %v6604
    %v8369 = vpack.c.b16 %v6801, %v6605
    %v8370 = vpack.c.b16 %v6802, %v6606
    %v8371 = vpack.c.b16 %v6803, %v6607
    %v8372 = vpack.c.b16 %v6804, %v6608
    %v8373 = vpack.c.b16 %v6805, %v6609
    %v8374 = vpack.c.b16 %v6806, %v6610
    %v8375 = vpack.c.b16 %v6807, %v6611
    %v8376 = vpack.c.b16 %v6808, %v6612
    %v8377 = vpack.c.b16 %v6809, %v6613
    %v8378 = vpack.c.b16 %v6810, %v6614
    %v8379 = vpack.c.b16 %v6811, %v6615
    %v8380 = vpack.c.b16 %v6812, %v6616
    %v8381 = vpack.c.b16 %v6813, %v6617
    %v8382 = vpack.c.b16 %v6814, %v6618
    %v8383 = vpack.c.b16 %v6815, %v6619
    %v8384 = vpack.c.b16 %v6816, %v6620
    %v8385 = vpack.c.b16 %v6817, %v6621
    %v8386 = vpack.c.b16 %v6818, %v6622
    %v8387 = vpack.c.b16 %v6819, %v6623
    %v8388 = vpack.c.b16 %v6820, %v6624
    %v8389 = vpack.c.b16 %v6821, %v6625
    %v8390 = vpack.c.b16 %v6822, %v6626
    %v8391 = vpack.c.b16 %v6823, %v6627
    %v8392 = vpack.c.b16 %v6824, %v6628
    %v8393 = vpack.c.b16 %v6825, %v6629
    %v8394 = vpack.c.b16 %v6826, %v6630
    %v8395 = vpack.c.b16 %v6827, %v6631
    %v8396 = vpack.c.b16 %v6828, %v6632
    %v8397 = vpack.c.b16 %v6829, %v6633
    %v8398 = vpack.c.b16 %v6830, %v6634
    %v8399 = vpack.c.b16 %v6831, %v6635
    %v8400 = vpack.c.b16 %v6832, %v6636
    %v8401 = vpack.c.b16 %v6833, %v6637
    %v8402 = vpack.c.b16 %v6834, %v6638
    %v8403 = vpack.c.b16 %v6835, %v6639
    %v8404 = vpack.c.b16 %v6836, %v6640
    %v8405 = vpack.c.b16 %v6837, %v6641
    %v8406 = vpack.c.b16 %v6838, %v6642
    %v8407 = vpack.c.b16 %v6839, %v6643
    %v8408 = vpack.c.b16 %v6840, %v6644
    %v8409 = vpack.c.b16 %v6841, %v6645
    %v8410 = vpack.c.b16 %v6842, %v6646
    %v8411 = vpack.c.b16 %v6843, %v6647
    %v8412 = vpack.c.b16 %v6844, %v6648
    %v8413 = vpack.c.b16 %v6845, %v6649
    %v8414 = vpack.c.b16 %v6846, %v6650
    %v8415 = vpack.c.b16 %v6847, %v6651
    %v8416 = vpack.c.b16 %v6848, %v6652
    %v8417 = vpack.c.b16 %v6849, %v6653
    %v8418 = vpack.c.b16 %v6850, %v6654
    %v8419 = vpack.c.b16 %v6851, %v6655
    %v8420 = vpack.c.b16 %v6852, %v6656
    %v8421 = vpack.c.b16 %v6853, %v6657
    %v8422 = vpack.c.b16 %v6854, %v6658
    %v8423 = vpack.c.b16 %v6855, %v6659
    %v8424 = vpack.c.b16 %v6856, %v6660
    %v8425 = vpack.c.b16 %v6857, %v6661
    %v8426 = vpack.c.b16 %v6858, %v6662
    %v8427 = vpack.c.b16 %v6859, %v6663
    %v8428 = vpack.c.b16 %v6860, %v6664
    %v8429 = vpack.c.b16 %v6861, %v6665
    %v8430 = vpack.c.b16 %v6862, %v6666
    %v8431 = vpack.c.b16 %v6863, %v6667
    %v8432 = vpack.c.b16 %v6864, %v6668
    %v8433 = vpack.c.b16 %v6865, %v6669
    %v8434 = vpack.c.b16 %v6866, %v6670
    %v8435 = vpack.c.b16 %v6867, %v6671
    %v8436 = vpack.c.b16 %v6868, %v6672
    %v8437 = vpack.c.b16 %v6869, %v6673
    %v8438 = vpack.c.b16 %v6870, %v6674
    %v8439 = vpack.c.b16 %v6871, %v6675
    %v8440 = vpack.c.b16 %v6872, %v6676
    %v8441 = vpack.c.b16 %v6873, %v6677
    %v8442 = vpack.c.b16 %v6874, %v6678
    %v8443 = vpack.c.b16 %v6875, %v6679
    %v8444 = vpack.c.b16 %v6876, %v6680
    %v8445 = vpack.c.b16 %v6877, %v6681
    %v8446 = vpack.c.b16 %v6878, %v6682
    %v8447 = vpack.c.b16 %v6879, %v6683
    %v8448 = vpack.c.b16 %v6880, %v6684
    %v8449 = vpack.c.b16 %v6881, %v6685
    %v8450 = vpack.c.b16 %v6882, %v6686
    %v8451 = vpack.c.b16 %v6883, %v6687
    %v8452 = vpack.c.b16 %v6884, %v6688
    %v8453 = vpack.c.b16 %v6885, %v6689
    %v8454 = vpack.c.b16 %v6886, %v6690
    %v8455 = vpack.c.b16 %v6887, %v6691
    %v8456 = vpack.c.b16 %v6888, %v6692
    %v8457 = vpack.c.b16 %v6889, %v6693
    %v8458 = vpack.c.b16 %v6890, %v6694
    %v8459 = vpack.c.b16 %v6891, %v6695
    %v8460 = vpack.c.b16 %v6892, %v6696
    %v8461 = vpack.c.b16 %v6893, %v6697
    %v8462 = vpack.c.b16 %v6894, %v6698
    %v8463 = vpack.c.b16 %v6895, %v6699
    %v8464 = vpack.c.b16 %v6896, %v6700
    %v8465 = vpack.c.b16 %v6897, %v6701
    %v8466 = vpack.c.b16 %v6898, %v6702
    %v8467 = vpack.c.b16 %v6899, %v6703
    %v8468 = vpack.c.b16 %v6900, %v6704
    %v8469 = vpack.c.b16 %v6901, %v6705
    %v8470 = vpack.c.b16 %v6902, %v6706
    %v8471 = vpack.c.b16 %v6903, %v6707
    %v8472 = vpack.c.b16 %v6904, %v6708
    %v8473 = vpack.c.b16 %v6905, %v6709
    %v8474 = vpack.c.b16 %v6906, %v6710
    %v8475 = vpack.c.b16 %v6907, %v6711
    %v8476 = vpack.c.b16 %v6908, %v6712
    %v8477 = vpack.c.b16 %v6909, %v6713
    %v8478 = vpack.c.b16 %v6910, %v6714
    %v8479 = vpack.c.b16 %v6911, %v6715
    %v8480 = vpack.c.b16 %v6912, %v6716
    %v8481 = vpack.c.b16 %v6913, %v6717
    %v8482 = vpack.c.b16 %v6914, %v6718
    %v8483 = vpack.c.b16 %v6915, %v6719
    %v8484 = vpack.c.b16 %v6916, %v6720
    %v8485 = vpack.c.b16 %v6917, %v6721
    %v8486 = vpack.c.b16 %v6918, %v6722
    %v8487 = vpack.c.b16 %v6919, %v6723
    %v8488 = vpack.c.b16 %v6920, %v6724
    %v8489 = vpack.c.b16 %v6921, %v6725
    %10058 = vmatprep.subr.bf16.mxu0 %v6923
    %10059 = vmatpush1.bf16.xpose.msra.mxu0 %v6922
    %10060 = vmatprep.subr.bf16.mxu0 %v7119
    %10061 = vmatpush1.bf16.xpose.msra.mxu0 %v7118
    %10062 = vmatprep.subr.bf16.mxu0 %v7315
    %10063 = vmatpush1.bf16.xpose.msra.mxu0 %v7314
    %10064 = vmatprep.subr.bf16.mxu0 %v7511
    %10065 = vmatpush1.bf16.xpose.msra.mxu0 %v7510
    %10066 = vmatprep.subr.bf16.mxu0 %v7707
    %10067 = vmatpush1.bf16.xpose.msra.mxu0 %v7706
    %10068 = vmatprep.subr.bf16.mxu0 %v7903
    %10069 = vmatpush1.bf16.xpose.msra.mxu0 %v7902
    %10070 = vmatprep.subr.bf16.mxu0 %v8099
    %10071 = vmatpush1.bf16.xpose.msra.mxu0 %v8098
    %10072 = vmatprep.subr.bf16.mxu0 %v8295
    %10073 = vmatpush1.bf16.xpose.msra.mxu0 %v8294
    %10074 = vmatprep.subr.bf16.mxu0 0
    %10075 = vmatpush1.bf16.xpose.msra.mxu0 0
    %10076 = vmatprep.subr.bf16.mxu0 0
    %10077 = vmatpush1.bf16.xpose.msra.mxu0 0
    %10078 = vmatprep.subr.bf16.mxu0 0
    %10079 = vmatpush1.bf16.xpose.msra.mxu0 0
    %10080 = vmatprep.subr.bf16.mxu0 0
    %10081 = vmatpush1.bf16.xpose.msra.mxu0 0
    %10082 = vmatprep.subr.bf16.mxu0 0
    %10083 = vmatpush1.bf16.xpose.msra.mxu0 0
    %10084 = vmatprep.subr.bf16.mxu0 0
    %10085 = vmatpush1.bf16.xpose.msra.mxu0 0
    %10086 = vmatprep.subr.bf16.mxu0 0
    %10087 = vmatpush1.bf16.xpose.msra.mxu0 0
    %10088 = vmatprep.subr.bf16.mxu0 0
    %10089 = vmatpush1.bf16.xpose.msra.mxu0 0
    %10090 = vmatprep.mubr.bf16.mxu0 %v448
    %10091 = vmatmul.mubr.bf16.gmra.mrb[0].mxu0 %v447
    %v10092 = vpop.f32.mrb[0].mxu0
    %v10093 = vadd.f32 %v2216, %v10092
    %v10094 = vpop.f32.mrb[0].mxu0
    %v10095 = vpop.f32.mrb[0].mxu0
    %v10096 = vadd.f32 %v2216, %v10095
    %v10097 = vpop.f32.mrb[0].mxu0
    %10098 = vdwg.mxu0
    %10099 = vmatprep.subr.bf16.mxu0 %v6925
    %10100 = vmatpush1.bf16.xpose.msra.mxu0 %v6924
    %10101 = vmatprep.subr.bf16.mxu0 %v7121
    %10102 = vmatpush1.bf16.xpose.msra.mxu0 %v7120
    %10103 = vmatprep.subr.bf16.mxu0 %v7317
    %10104 = vmatpush1.bf16.xpose.msra.mxu0 %v7316
    %10105 = vmatprep.subr.bf16.mxu0 %v7513
    %10106 = vmatpush1.bf16.xpose.msra.mxu0 %v7512
    %10107 = vmatprep.subr.bf16.mxu0 %v7709
    %10108 = vmatpush1.bf16.xpose.msra.mxu0 %v7708
    %10109 = vmatprep.subr.bf16.mxu0 %v7905
    %10110 = vmatpush1.bf16.xpose.msra.mxu0 %v7904
    %10111 = vmatprep.subr.bf16.mxu0 %v8101
    %10112 = vmatpush1.bf16.xpose.msra.mxu0 %v8100
    %10113 = vmatprep.subr.bf16.mxu0 %v8297
    %10114 = vmatpush1.bf16.xpose.msra.mxu0 %v8296
    %10115 = vmatprep.subr.bf16.mxu0 0
    %10116 = vmatpush1.bf16.xpose.msra.mxu0 0
    %10117 = vmatprep.subr.bf16.mxu0 0
    %10118 = vmatpush1.bf16.xpose.msra.mxu0 0
    %10119 = vmatprep.subr.bf16.mxu0 0
    %10120 = vmatpush1.bf16.xpose.msra.mxu0 0
    %10121 = vmatprep.subr.bf16.mxu0 0
    %10122 = vmatpush1.bf16.xpose.msra.mxu0 0
    %10123 = vmatprep.subr.bf16.mxu0 0
    %10124 = vmatpush1.bf16.xpose.msra.mxu0 0
    %10125 = vmatprep.subr.bf16.mxu0 0
    %10126 = vmatpush1.bf16.xpose.msra.mxu0 0
    %10127 = vmatprep.subr.bf16.mxu0 0
    %10128 = vmatpush1.bf16.xpose.msra.mxu0 0
    %10129 = vmatprep.subr.bf16.mxu0 0
    %10130 = vmatpush1.bf16.xpose.msra.mxu0 0
    %10131 = vmatprep.mubr.bf16.mxu0 %v450
    %10132 = vmatmul.mubr.bf16.gmra.mrb[0].mxu0 %v449
    %v10133 = vpop.f32.mrb[0].mxu0
    %v10134 = vadd.f32 %v10093, %v10133
    %v10135 = vpop.f32.mrb[0].mxu0
    %v10136 = vpop.f32.mrb[0].mxu0
    %v10137 = vadd.f32 %v10096, %v10136
    %v10138 = vpop.f32.mrb[0].mxu0
    %10139 = vdwg.mxu0
    %10140 = vmatprep.subr.bf16.mxu0 %v6927
    %10141 = vmatpush1.bf16.xpose.msra.mxu0 %v6926
    %10142 = vmatprep.subr.bf16.mxu0 %v7123
    %10143 = vmatpush1.bf16.xpose.msra.mxu0 %v7122
    %10144 = vmatprep.subr.bf16.mxu0 %v7319
    %10145 = vmatpush1.bf16.xpose.msra.mxu0 %v7318
    %10146 = vmatprep.subr.bf16.mxu0 %v7515
    %10147 = vmatpush1.bf16.xpose.msra.mxu0 %v7514
    %10148 = vmatprep.subr.bf16.mxu0 %v7711
    %10149 = vmatpush1.bf16.xpose.msra.mxu0 %v7710
    %10150 = vmatprep.subr.bf16.mxu0 %v7907
    %10151 = vmatpush1.bf16.xpose.msra.mxu0 %v7906
    %10152 = vmatprep.subr.bf16.mxu0 %v8103
    %10153 = vmatpush1.bf16.xpose.msra.mxu0 %v8102
    %10154 = vmatprep.subr.bf16.mxu0 %v8299
    %10155 = vmatpush1.bf16.xpose.msra.mxu0 %v8298
    %10156 = vmatprep.subr.bf16.mxu0 0
    %10157 = vmatpush1.bf16.xpose.msra.mxu0 0
    %10158 = vmatprep.subr.bf16.mxu0 0
    %10159 = vmatpush1.bf16.xpose.msra.mxu0 0
    %10160 = vmatprep.subr.bf16.mxu0 0
    %10161 = vmatpush1.bf16.xpose.msra.mxu0 0
    %10162 = vmatprep.subr.bf16.mxu0 0
    %10163 = vmatpush1.bf16.xpose.msra.mxu0 0
    %10164 = vmatprep.subr.bf16.mxu0 0
    %10165 = vmatpush1.bf16.xpose.msra.mxu0 0
    %10166 = vmatprep.subr.bf16.mxu0 0
    %10167 = vmatpush1.bf16.xpose.msra.mxu0 0
    %10168 = vmatprep.subr.bf16.mxu0 0
    %10169 = vmatpush1.bf16.xpose.msra.mxu0 0
    %10170 = vmatprep.subr.bf16.mxu0 0
    %10171 = vmatpush1.bf16.xpose.msra.mxu0 0
    %10172 = vmatprep.mubr.bf16.mxu0 %v452
    %10173 = vmatmul.mubr.bf16.gmra.mrb[0].mxu0 %v451
    %v10174 = vpop.f32.mrb[0].mxu0
    %v10175 = vadd.f32 %v10134, %v10174
    %v10176 = vpop.f32.mrb[0].mxu0
    %v10177 = vpop.f32.mrb[0].mxu0
    %v10178 = vadd.f32 %v10137, %v10177
    %v10179 = vpop.f32.mrb[0].mxu0
    %10180 = vdwg.mxu0
    %10181 = vmatprep.subr.bf16.mxu0 %v6929
    %10182 = vmatpush1.bf16.xpose.msra.mxu0 %v6928
    %10183 = vmatprep.subr.bf16.mxu0 %v7125
    %10184 = vmatpush1.bf16.xpose.msra.mxu0 %v7124
    %10185 = vmatprep.subr.bf16.mxu0 %v7321
    %10186 = vmatpush1.bf16.xpose.msra.mxu0 %v7320
    %10187 = vmatprep.subr.bf16.mxu0 %v7517
    %10188 = vmatpush1.bf16.xpose.msra.mxu0 %v7516
    %10189 = vmatprep.subr.bf16.mxu0 %v7713
    %10190 = vmatpush1.bf16.xpose.msra.mxu0 %v7712
    %10191 = vmatprep.subr.bf16.mxu0 %v7909
    %10192 = vmatpush1.bf16.xpose.msra.mxu0 %v7908
    %10193 = vmatprep.subr.bf16.mxu0 %v8105
    %10194 = vmatpush1.bf16.xpose.msra.mxu0 %v8104
    %10195 = vmatprep.subr.bf16.mxu0 %v8301
    %10196 = vmatpush1.bf16.xpose.msra.mxu0 %v8300
    %10197 = vmatprep.subr.bf16.mxu0 0
    %10198 = vmatpush1.bf16.xpose.msra.mxu0 0
    %10199 = vmatprep.subr.bf16.mxu0 0
    %10200 = vmatpush1.bf16.xpose.msra.mxu0 0
    %10201 = vmatprep.subr.bf16.mxu0 0
    %10202 = vmatpush1.bf16.xpose.msra.mxu0 0
    %10203 = vmatprep.subr.bf16.mxu0 0
    %10204 = vmatpush1.bf16.xpose.msra.mxu0 0
    %10205 = vmatprep.subr.bf16.mxu0 0
    %10206 = vmatpush1.bf16.xpose.msra.mxu0 0
    %10207 = vmatprep.subr.bf16.mxu0 0
    %10208 = vmatpush1.bf16.xpose.msra.mxu0 0
    %10209 = vmatprep.subr.bf16.mxu0 0
    %10210 = vmatpush1.bf16.xpose.msra.mxu0 0
    %10211 = vmatprep.subr.bf16.mxu0 0
    %10212 = vmatpush1.bf16.xpose.msra.mxu0 0
    %10213 = vmatprep.mubr.bf16.mxu0 %v454
    %10214 = vmatmul.mubr.bf16.gmra.mrb[0].mxu0 %v453
    %v10215 = vpop.f32.mrb[0].mxu0
    %v10216 = vadd.f32 %v10175, %v10215
    %v10217 = vpop.f32.mrb[0].mxu0
    %v10218 = vpop.f32.mrb[0].mxu0
    %v10219 = vadd.f32 %v10178, %v10218
    %v10220 = vpop.f32.mrb[0].mxu0
    %10221 = vdwg.mxu0
    %10222 = vmatprep.subr.bf16.mxu0 %v6931
    %10223 = vmatpush1.bf16.xpose.msra.mxu0 %v6930
    %10224 = vmatprep.subr.bf16.mxu0 %v7127
    %10225 = vmatpush1.bf16.xpose.msra.mxu0 %v7126
    %10226 = vmatprep.subr.bf16.mxu0 %v7323
    %10227 = vmatpush1.bf16.xpose.msra.mxu0 %v7322
    %10228 = vmatprep.subr.bf16.mxu0 %v7519
    %10229 = vmatpush1.bf16.xpose.msra.mxu0 %v7518
    %10230 = vmatprep.subr.bf16.mxu0 %v7715
    %10231 = vmatpush1.bf16.xpose.msra.mxu0 %v7714
    %10232 = vmatprep.subr.bf16.mxu0 %v7911
    %10233 = vmatpush1.bf16.xpose.msra.mxu0 %v7910
    %10234 = vmatprep.subr.bf16.mxu0 %v8107
    %10235 = vmatpush1.bf16.xpose.msra.mxu0 %v8106
    %10236 = vmatprep.subr.bf16.mxu0 %v8303
    %10237 = vmatpush1.bf16.xpose.msra.mxu0 %v8302
    %10238 = vmatprep.subr.bf16.mxu0 0
    %10239 = vmatpush1.bf16.xpose.msra.mxu0 0
    %10240 = vmatprep.subr.bf16.mxu0 0
    %10241 = vmatpush1.bf16.xpose.msra.mxu0 0
    %10242 = vmatprep.subr.bf16.mxu0 0
    %10243 = vmatpush1.bf16.xpose.msra.mxu0 0
    %10244 = vmatprep.subr.bf16.mxu0 0
    %10245 = vmatpush1.bf16.xpose.msra.mxu0 0
    %10246 = vmatprep.subr.bf16.mxu0 0
    %10247 = vmatpush1.bf16.xpose.msra.mxu0 0
    %10248 = vmatprep.subr.bf16.mxu0 0
    %10249 = vmatpush1.bf16.xpose.msra.mxu0 0
    %10250 = vmatprep.subr.bf16.mxu0 0
    %10251 = vmatpush1.bf16.xpose.msra.mxu0 0
    %10252 = vmatprep.subr.bf16.mxu0 0
    %10253 = vmatpush1.bf16.xpose.msra.mxu0 0
    %10254 = vmatprep.mubr.bf16.mxu0 %v456
    %10255 = vmatmul.mubr.bf16.gmra.mrb[0].mxu0 %v455
    %v10256 = vpop.f32.mrb[0].mxu0
    %v10257 = vadd.f32 %v10216, %v10256
    %v10258 = vpop.f32.mrb[0].mxu0
    %v10259 = vpop.f32.mrb[0].mxu0
    %v10260 = vadd.f32 %v10219, %v10259
    %v10261 = vpop.f32.mrb[0].mxu0
    %10262 = vdwg.mxu0
    %10263 = vmatprep.subr.bf16.mxu0 %v6933
    %10264 = vmatpush1.bf16.xpose.msra.mxu0 %v6932
    %10265 = vmatprep.subr.bf16.mxu0 %v7129
    %10266 = vmatpush1.bf16.xpose.msra.mxu0 %v7128
    %10267 = vmatprep.subr.bf16.mxu0 %v7325
    %10268 = vmatpush1.bf16.xpose.msra.mxu0 %v7324
    %10269 = vmatprep.subr.bf16.mxu0 %v7521
    %10270 = vmatpush1.bf16.xpose.msra.mxu0 %v7520
    %10271 = vmatprep.subr.bf16.mxu0 %v7717
    %10272 = vmatpush1.bf16.xpose.msra.mxu0 %v7716
    %10273 = vmatprep.subr.bf16.mxu0 %v7913
    %10274 = vmatpush1.bf16.xpose.msra.mxu0 %v7912
    %10275 = vmatprep.subr.bf16.mxu0 %v8109
    %10276 = vmatpush1.bf16.xpose.msra.mxu0 %v8108
    %10277 = vmatprep.subr.bf16.mxu0 %v8305
    %10278 = vmatpush1.bf16.xpose.msra.mxu0 %v8304
    %10279 = vmatprep.subr.bf16.mxu0 0
    %10280 = vmatpush1.bf16.xpose.msra.mxu0 0
    %10281 = vmatprep.subr.bf16.mxu0 0
    %10282 = vmatpush1.bf16.xpose.msra.mxu0 0
    %10283 = vmatprep.subr.bf16.mxu0 0
    %10284 = vmatpush1.bf16.xpose.msra.mxu0 0
    %10285 = vmatprep.subr.bf16.mxu0 0
    %10286 = vmatpush1.bf16.xpose.msra.mxu0 0
    %10287 = vmatprep.subr.bf16.mxu0 0
    %10288 = vmatpush1.bf16.xpose.msra.mxu0 0
    %10289 = vmatprep.subr.bf16.mxu0 0
    %10290 = vmatpush1.bf16.xpose.msra.mxu0 0
    %10291 = vmatprep.subr.bf16.mxu0 0
    %10292 = vmatpush1.bf16.xpose.msra.mxu0 0
    %10293 = vmatprep.subr.bf16.mxu0 0
    %10294 = vmatpush1.bf16.xpose.msra.mxu0 0
    %10295 = vmatprep.mubr.bf16.mxu0 %v458
    %10296 = vmatmul.mubr.bf16.gmra.mrb[0].mxu0 %v457
    %v10297 = vpop.f32.mrb[0].mxu0
    %v10298 = vadd.f32 %v10257, %v10297
    %v10299 = vpop.f32.mrb[0].mxu0
    %v10300 = vpop.f32.mrb[0].mxu0
    %v10301 = vadd.f32 %v10260, %v10300
    %v10302 = vpop.f32.mrb[0].mxu0
    %10303 = vdwg.mxu0
    %10304 = vmatprep.subr.bf16.mxu0 %v6935
    %10305 = vmatpush1.bf16.xpose.msra.mxu0 %v6934
    %10306 = vmatprep.subr.bf16.mxu0 %v7131
    %10307 = vmatpush1.bf16.xpose.msra.mxu0 %v7130
    %10308 = vmatprep.subr.bf16.mxu0 %v7327
    %10309 = vmatpush1.bf16.xpose.msra.mxu0 %v7326
    %10310 = vmatprep.subr.bf16.mxu0 %v7523
    %10311 = vmatpush1.bf16.xpose.msra.mxu0 %v7522
    %10312 = vmatprep.subr.bf16.mxu0 %v7719
    %10313 = vmatpush1.bf16.xpose.msra.mxu0 %v7718
    %10314 = vmatprep.subr.bf16.mxu0 %v7915
    %10315 = vmatpush1.bf16.xpose.msra.mxu0 %v7914
    %10316 = vmatprep.subr.bf16.mxu0 %v8111
    %10317 = vmatpush1.bf16.xpose.msra.mxu0 %v8110
    %10318 = vmatprep.subr.bf16.mxu0 %v8307
    %10319 = vmatpush1.bf16.xpose.msra.mxu0 %v8306
    %10320 = vmatprep.subr.bf16.mxu0 0
    %10321 = vmatpush1.bf16.xpose.msra.mxu0 0
    %10322 = vmatprep.subr.bf16.mxu0 0
    %10323 = vmatpush1.bf16.xpose.msra.mxu0 0
    %10324 = vmatprep.subr.bf16.mxu0 0
    %10325 = vmatpush1.bf16.xpose.msra.mxu0 0
    %10326 = vmatprep.subr.bf16.mxu0 0
    %10327 = vmatpush1.bf16.xpose.msra.mxu0 0
    %10328 = vmatprep.subr.bf16.mxu0 0
    %10329 = vmatpush1.bf16.xpose.msra.mxu0 0
    %10330 = vmatprep.subr.bf16.mxu0 0
    %10331 = vmatpush1.bf16.xpose.msra.mxu0 0
    %10332 = vmatprep.subr.bf16.mxu0 0
    %10333 = vmatpush1.bf16.xpose.msra.mxu0 0
    %10334 = vmatprep.subr.bf16.mxu0 0
    %10335 = vmatpush1.bf16.xpose.msra.mxu0 0
    %10336 = vmatprep.mubr.bf16.mxu0 %v460
    %10337 = vmatmul.mubr.bf16.gmra.mrb[0].mxu0 %v459
    %v10338 = vpop.f32.mrb[0].mxu0
    %v10339 = vadd.f32 %v10298, %v10338
    %v10340 = vpop.f32.mrb[0].mxu0
    %v10341 = vpop.f32.mrb[0].mxu0
    %v10342 = vadd.f32 %v10301, %v10341
    %v10343 = vpop.f32.mrb[0].mxu0
    %10344 = vdwg.mxu0
    %10345 = vmatprep.subr.bf16.mxu0 %v6937
    %10346 = vmatpush1.bf16.xpose.msra.mxu0 %v6936
    %10347 = vmatprep.subr.bf16.mxu0 %v7133
    %10348 = vmatpush1.bf16.xpose.msra.mxu0 %v7132
    %10349 = vmatprep.subr.bf16.mxu0 %v7329
    %10350 = vmatpush1.bf16.xpose.msra.mxu0 %v7328
    %10351 = vmatprep.subr.bf16.mxu0 %v7525
    %10352 = vmatpush1.bf16.xpose.msra.mxu0 %v7524
    %10353 = vmatprep.subr.bf16.mxu0 %v7721
    %10354 = vmatpush1.bf16.xpose.msra.mxu0 %v7720
    %10355 = vmatprep.subr.bf16.mxu0 %v7917
    %10356 = vmatpush1.bf16.xpose.msra.mxu0 %v7916
    %10357 = vmatprep.subr.bf16.mxu0 %v8113
    %10358 = vmatpush1.bf16.xpose.msra.mxu0 %v8112
    %10359 = vmatprep.subr.bf16.mxu0 %v8309
    %10360 = vmatpush1.bf16.xpose.msra.mxu0 %v8308
    %10361 = vmatprep.subr.bf16.mxu0 0
    %10362 = vmatpush1.bf16.xpose.msra.mxu0 0
    %10363 = vmatprep.subr.bf16.mxu0 0
    %10364 = vmatpush1.bf16.xpose.msra.mxu0 0
    %10365 = vmatprep.subr.bf16.mxu0 0
    %10366 = vmatpush1.bf16.xpose.msra.mxu0 0
    %10367 = vmatprep.subr.bf16.mxu0 0
    %10368 = vmatpush1.bf16.xpose.msra.mxu0 0
    %10369 = vmatprep.subr.bf16.mxu0 0
    %10370 = vmatpush1.bf16.xpose.msra.mxu0 0
    %10371 = vmatprep.subr.bf16.mxu0 0
    %10372 = vmatpush1.bf16.xpose.msra.mxu0 0
    %10373 = vmatprep.subr.bf16.mxu0 0
    %10374 = vmatpush1.bf16.xpose.msra.mxu0 0
    %10375 = vmatprep.subr.bf16.mxu0 0
    %10376 = vmatpush1.bf16.xpose.msra.mxu0 0
    %10377 = vmatprep.mubr.bf16.mxu0 %v462
    %10378 = vmatmul.mubr.bf16.gmra.mrb[0].mxu0 %v461
    %v10379 = vpop.f32.mrb[0].mxu0
    %v10380 = vadd.f32 %v10339, %v10379
    %v10381 = vpop.f32.mrb[0].mxu0
    %v10382 = vpop.f32.mrb[0].mxu0
    %v10383 = vadd.f32 %v10342, %v10382
    %v10384 = vpop.f32.mrb[0].mxu0
    %10385 = vdwg.mxu0
    %10386 = vmatprep.subr.bf16.mxu0 %v6939
    %10387 = vmatpush1.bf16.xpose.msra.mxu0 %v6938
    %10388 = vmatprep.subr.bf16.mxu0 %v7135
    %10389 = vmatpush1.bf16.xpose.msra.mxu0 %v7134
    %10390 = vmatprep.subr.bf16.mxu0 %v7331
    %10391 = vmatpush1.bf16.xpose.msra.mxu0 %v7330
    %10392 = vmatprep.subr.bf16.mxu0 %v7527
    %10393 = vmatpush1.bf16.xpose.msra.mxu0 %v7526
    %10394 = vmatprep.subr.bf16.mxu0 %v7723
    %10395 = vmatpush1.bf16.xpose.msra.mxu0 %v7722
    %10396 = vmatprep.subr.bf16.mxu0 %v7919
    %10397 = vmatpush1.bf16.xpose.msra.mxu0 %v7918
    %10398 = vmatprep.subr.bf16.mxu0 %v8115
    %10399 = vmatpush1.bf16.xpose.msra.mxu0 %v8114
    %10400 = vmatprep.subr.bf16.mxu0 %v8311
    %10401 = vmatpush1.bf16.xpose.msra.mxu0 %v8310
    %10402 = vmatprep.subr.bf16.mxu0 0
    %10403 = vmatpush1.bf16.xpose.msra.mxu0 0
    %10404 = vmatprep.subr.bf16.mxu0 0
    %10405 = vmatpush1.bf16.xpose.msra.mxu0 0
    %10406 = vmatprep.subr.bf16.mxu0 0
    %10407 = vmatpush1.bf16.xpose.msra.mxu0 0
    %10408 = vmatprep.subr.bf16.mxu0 0
    %10409 = vmatpush1.bf16.xpose.msra.mxu0 0
    %10410 = vmatprep.subr.bf16.mxu0 0
    %10411 = vmatpush1.bf16.xpose.msra.mxu0 0
    %10412 = vmatprep.subr.bf16.mxu0 0
    %10413 = vmatpush1.bf16.xpose.msra.mxu0 0
    %10414 = vmatprep.subr.bf16.mxu0 0
    %10415 = vmatpush1.bf16.xpose.msra.mxu0 0
    %10416 = vmatprep.subr.bf16.mxu0 0
    %10417 = vmatpush1.bf16.xpose.msra.mxu0 0
    %10418 = vmatprep.mubr.bf16.mxu0 %v464
    %10419 = vmatmul.mubr.bf16.gmra.mrb[0].mxu0 %v463
    %v10420 = vpop.f32.mrb[0].mxu0
    %v10421 = vadd.f32 %v10380, %v10420
    %v10422 = vpop.f32.mrb[0].mxu0
    %v10423 = vpop.f32.mrb[0].mxu0
    %v10424 = vadd.f32 %v10383, %v10423
    %v10425 = vpop.f32.mrb[0].mxu0
    %10426 = vdwg.mxu0
    %10427 = vmatprep.subr.bf16.mxu0 %v6941
    %10428 = vmatpush1.bf16.xpose.msra.mxu0 %v6940
    %10429 = vmatprep.subr.bf16.mxu0 %v7137
    %10430 = vmatpush1.bf16.xpose.msra.mxu0 %v7136
    %10431 = vmatprep.subr.bf16.mxu0 %v7333
    %10432 = vmatpush1.bf16.xpose.msra.mxu0 %v7332
    %10433 = vmatprep.subr.bf16.mxu0 %v7529
    %10434 = vmatpush1.bf16.xpose.msra.mxu0 %v7528
    %10435 = vmatprep.subr.bf16.mxu0 %v7725
    %10436 = vmatpush1.bf16.xpose.msra.mxu0 %v7724
    %10437 = vmatprep.subr.bf16.mxu0 %v7921
    %10438 = vmatpush1.bf16.xpose.msra.mxu0 %v7920
    %10439 = vmatprep.subr.bf16.mxu0 %v8117
    %10440 = vmatpush1.bf16.xpose.msra.mxu0 %v8116
    %10441 = vmatprep.subr.bf16.mxu0 %v8313
    %10442 = vmatpush1.bf16.xpose.msra.mxu0 %v8312
    %10443 = vmatprep.subr.bf16.mxu0 0
    %10444 = vmatpush1.bf16.xpose.msra.mxu0 0
    %10445 = vmatprep.subr.bf16.mxu0 0
    %10446 = vmatpush1.bf16.xpose.msra.mxu0 0
    %10447 = vmatprep.subr.bf16.mxu0 0
    %10448 = vmatpush1.bf16.xpose.msra.mxu0 0
    %10449 = vmatprep.subr.bf16.mxu0 0
    %10450 = vmatpush1.bf16.xpose.msra.mxu0 0
    %10451 = vmatprep.subr.bf16.mxu0 0
    %10452 = vmatpush1.bf16.xpose.msra.mxu0 0
    %10453 = vmatprep.subr.bf16.mxu0 0
    %10454 = vmatpush1.bf16.xpose.msra.mxu0 0
    %10455 = vmatprep.subr.bf16.mxu0 0
    %10456 = vmatpush1.bf16.xpose.msra.mxu0 0
    %10457 = vmatprep.subr.bf16.mxu0 0
    %10458 = vmatpush1.bf16.xpose.msra.mxu0 0
    %10459 = vmatprep.mubr.bf16.mxu0 %v466
    %10460 = vmatmul.mubr.bf16.gmra.mrb[0].mxu0 %v465
    %v10461 = vpop.f32.mrb[0].mxu0
    %v10462 = vadd.f32 %v10421, %v10461
    %v10463 = vpop.f32.mrb[0].mxu0
    %v10464 = vpop.f32.mrb[0].mxu0
    %v10465 = vadd.f32 %v10424, %v10464
    %v10466 = vpop.f32.mrb[0].mxu0
    %10467 = vdwg.mxu0
    %10468 = vmatprep.subr.bf16.mxu0 %v6943
    %10469 = vmatpush1.bf16.xpose.msra.mxu0 %v6942
    %10470 = vmatprep.subr.bf16.mxu0 %v7139
    %10471 = vmatpush1.bf16.xpose.msra.mxu0 %v7138
    %10472 = vmatprep.subr.bf16.mxu0 %v7335
    %10473 = vmatpush1.bf16.xpose.msra.mxu0 %v7334
    %10474 = vmatprep.subr.bf16.mxu0 %v7531
    %10475 = vmatpush1.bf16.xpose.msra.mxu0 %v7530
    %10476 = vmatprep.subr.bf16.mxu0 %v7727
    %10477 = vmatpush1.bf16.xpose.msra.mxu0 %v7726
    %10478 = vmatprep.subr.bf16.mxu0 %v7923
    %10479 = vmatpush1.bf16.xpose.msra.mxu0 %v7922
    %10480 = vmatprep.subr.bf16.mxu0 %v8119
    %10481 = vmatpush1.bf16.xpose.msra.mxu0 %v8118
    %10482 = vmatprep.subr.bf16.mxu0 %v8315
    %10483 = vmatpush1.bf16.xpose.msra.mxu0 %v8314
    %10484 = vmatprep.subr.bf16.mxu0 0
    %10485 = vmatpush1.bf16.xpose.msra.mxu0 0
    %10486 = vmatprep.subr.bf16.mxu0 0
    %10487 = vmatpush1.bf16.xpose.msra.mxu0 0
    %10488 = vmatprep.subr.bf16.mxu0 0
    %10489 = vmatpush1.bf16.xpose.msra.mxu0 0
    %10490 = vmatprep.subr.bf16.mxu0 0
    %10491 = vmatpush1.bf16.xpose.msra.mxu0 0
    %10492 = vmatprep.subr.bf16.mxu0 0
    %10493 = vmatpush1.bf16.xpose.msra.mxu0 0
    %10494 = vmatprep.subr.bf16.mxu0 0
    %10495 = vmatpush1.bf16.xpose.msra.mxu0 0
    %10496 = vmatprep.subr.bf16.mxu0 0
    %10497 = vmatpush1.bf16.xpose.msra.mxu0 0
    %10498 = vmatprep.subr.bf16.mxu0 0
    %10499 = vmatpush1.bf16.xpose.msra.mxu0 0
    %10500 = vmatprep.mubr.bf16.mxu0 %v468
    %10501 = vmatmul.mubr.bf16.gmra.mrb[0].mxu0 %v467
    %v10502 = vpop.f32.mrb[0].mxu0
    %v10503 = vadd.f32 %v10462, %v10502
    %v10504 = vpop.f32.mrb[0].mxu0
    %v10505 = vpop.f32.mrb[0].mxu0
    %v10506 = vadd.f32 %v10465, %v10505
    %v10507 = vpop.f32.mrb[0].mxu0
    %10508 = vdwg.mxu0
    %10509 = vmatprep.subr.bf16.mxu0 %v6945
    %10510 = vmatpush1.bf16.xpose.msra.mxu0 %v6944
    %10511 = vmatprep.subr.bf16.mxu0 %v7141
    %10512 = vmatpush1.bf16.xpose.msra.mxu0 %v7140
    %10513 = vmatprep.subr.bf16.mxu0 %v7337
    %10514 = vmatpush1.bf16.xpose.msra.mxu0 %v7336
    %10515 = vmatprep.subr.bf16.mxu0 %v7533
    %10516 = vmatpush1.bf16.xpose.msra.mxu0 %v7532
    %10517 = vmatprep.subr.bf16.mxu0 %v7729
    %10518 = vmatpush1.bf16.xpose.msra.mxu0 %v7728
    %10519 = vmatprep.subr.bf16.mxu0 %v7925
    %10520 = vmatpush1.bf16.xpose.msra.mxu0 %v7924
    %10521 = vmatprep.subr.bf16.mxu0 %v8121
    %10522 = vmatpush1.bf16.xpose.msra.mxu0 %v8120
    %10523 = vmatprep.subr.bf16.mxu0 %v8317
    %10524 = vmatpush1.bf16.xpose.msra.mxu0 %v8316
    %10525 = vmatprep.subr.bf16.mxu0 0
    %10526 = vmatpush1.bf16.xpose.msra.mxu0 0
    %10527 = vmatprep.subr.bf16.mxu0 0
    %10528 = vmatpush1.bf16.xpose.msra.mxu0 0
    %10529 = vmatprep.subr.bf16.mxu0 0
    %10530 = vmatpush1.bf16.xpose.msra.mxu0 0
    %10531 = vmatprep.subr.bf16.mxu0 0
    %10532 = vmatpush1.bf16.xpose.msra.mxu0 0
    %10533 = vmatprep.subr.bf16.mxu0 0
    %10534 = vmatpush1.bf16.xpose.msra.mxu0 0
    %10535 = vmatprep.subr.bf16.mxu0 0
    %10536 = vmatpush1.bf16.xpose.msra.mxu0 0
    %10537 = vmatprep.subr.bf16.mxu0 0
    %10538 = vmatpush1.bf16.xpose.msra.mxu0 0
    %10539 = vmatprep.subr.bf16.mxu0 0
    %10540 = vmatpush1.bf16.xpose.msra.mxu0 0
    %10541 = vmatprep.mubr.bf16.mxu0 %v470
    %10542 = vmatmul.mubr.bf16.gmra.mrb[0].mxu0 %v469
    %v10543 = vpop.f32.mrb[0].mxu0
    %v10544 = vadd.f32 %v10503, %v10543
    %v10545 = vpop.f32.mrb[0].mxu0
    %v10546 = vpop.f32.mrb[0].mxu0
    %v10547 = vadd.f32 %v10506, %v10546
    %v10548 = vpop.f32.mrb[0].mxu0
    %10549 = vdwg.mxu0
    %10550 = vmatprep.subr.bf16.mxu0 %v6947
    %10551 = vmatpush1.bf16.xpose.msra.mxu0 %v6946
    %10552 = vmatprep.subr.bf16.mxu0 %v7143
    %10553 = vmatpush1.bf16.xpose.msra.mxu0 %v7142
    %10554 = vmatprep.subr.bf16.mxu0 %v7339
    %10555 = vmatpush1.bf16.xpose.msra.mxu0 %v7338
    %10556 = vmatprep.subr.bf16.mxu0 %v7535
    %10557 = vmatpush1.bf16.xpose.msra.mxu0 %v7534
    %10558 = vmatprep.subr.bf16.mxu0 %v7731
    %10559 = vmatpush1.bf16.xpose.msra.mxu0 %v7730
    %10560 = vmatprep.subr.bf16.mxu0 %v7927
    %10561 = vmatpush1.bf16.xpose.msra.mxu0 %v7926
    %10562 = vmatprep.subr.bf16.mxu0 %v8123
    %10563 = vmatpush1.bf16.xpose.msra.mxu0 %v8122
    %10564 = vmatprep.subr.bf16.mxu0 %v8319
    %10565 = vmatpush1.bf16.xpose.msra.mxu0 %v8318
    %10566 = vmatprep.subr.bf16.mxu0 0
    %10567 = vmatpush1.bf16.xpose.msra.mxu0 0
    %10568 = vmatprep.subr.bf16.mxu0 0
    %10569 = vmatpush1.bf16.xpose.msra.mxu0 0
    %10570 = vmatprep.subr.bf16.mxu0 0
    %10571 = vmatpush1.bf16.xpose.msra.mxu0 0
    %10572 = vmatprep.subr.bf16.mxu0 0
    %10573 = vmatpush1.bf16.xpose.msra.mxu0 0
    %10574 = vmatprep.subr.bf16.mxu0 0
    %10575 = vmatpush1.bf16.xpose.msra.mxu0 0
    %10576 = vmatprep.subr.bf16.mxu0 0
    %10577 = vmatpush1.bf16.xpose.msra.mxu0 0
    %10578 = vmatprep.subr.bf16.mxu0 0
    %10579 = vmatpush1.bf16.xpose.msra.mxu0 0
    %10580 = vmatprep.subr.bf16.mxu0 0
    %10581 = vmatpush1.bf16.xpose.msra.mxu0 0
    %10582 = vmatprep.mubr.bf16.mxu0 %v472
    %10583 = vmatmul.mubr.bf16.gmra.mrb[0].mxu0 %v471
    %v10584 = vpop.f32.mrb[0].mxu0
    %v10585 = vadd.f32 %v10544, %v10584
    %v10586 = vpop.f32.mrb[0].mxu0
    %v10587 = vpop.f32.mrb[0].mxu0
    %v10588 = vadd.f32 %v10547, %v10587
    %v10589 = vpop.f32.mrb[0].mxu0
    %10590 = vdwg.mxu0
    %10591 = vmatprep.subr.bf16.mxu0 %v6949
    %10592 = vmatpush1.bf16.xpose.msra.mxu0 %v6948
    %10593 = vmatprep.subr.bf16.mxu0 %v7145
    %10594 = vmatpush1.bf16.xpose.msra.mxu0 %v7144
    %10595 = vmatprep.subr.bf16.mxu0 %v7341
    %10596 = vmatpush1.bf16.xpose.msra.mxu0 %v7340
    %10597 = vmatprep.subr.bf16.mxu0 %v7537
    %10598 = vmatpush1.bf16.xpose.msra.mxu0 %v7536
    %10599 = vmatprep.subr.bf16.mxu0 %v7733
    %10600 = vmatpush1.bf16.xpose.msra.mxu0 %v7732
    %10601 = vmatprep.subr.bf16.mxu0 %v7929
    %10602 = vmatpush1.bf16.xpose.msra.mxu0 %v7928
    %10603 = vmatprep.subr.bf16.mxu0 %v8125
    %10604 = vmatpush1.bf16.xpose.msra.mxu0 %v8124
    %10605 = vmatprep.subr.bf16.mxu0 %v8321
    %10606 = vmatpush1.bf16.xpose.msra.mxu0 %v8320
    %10607 = vmatprep.subr.bf16.mxu0 0
    %10608 = vmatpush1.bf16.xpose.msra.mxu0 0
    %10609 = vmatprep.subr.bf16.mxu0 0
    %10610 = vmatpush1.bf16.xpose.msra.mxu0 0
    %10611 = vmatprep.subr.bf16.mxu0 0
    %10612 = vmatpush1.bf16.xpose.msra.mxu0 0
    %10613 = vmatprep.subr.bf16.mxu0 0
    %10614 = vmatpush1.bf16.xpose.msra.mxu0 0
    %10615 = vmatprep.subr.bf16.mxu0 0
    %10616 = vmatpush1.bf16.xpose.msra.mxu0 0
    %10617 = vmatprep.subr.bf16.mxu0 0
    %10618 = vmatpush1.bf16.xpose.msra.mxu0 0
    %10619 = vmatprep.subr.bf16.mxu0 0
    %10620 = vmatpush1.bf16.xpose.msra.mxu0 0
    %10621 = vmatprep.subr.bf16.mxu0 0
    %10622 = vmatpush1.bf16.xpose.msra.mxu0 0
    %10623 = vmatprep.mubr.bf16.mxu0 %v474
    %10624 = vmatmul.mubr.bf16.gmra.mrb[0].mxu0 %v473
    %v10625 = vpop.f32.mrb[0].mxu0
    %v10626 = vadd.f32 %v10585, %v10625
    %v10627 = vpop.f32.mrb[0].mxu0
    %v10628 = vpop.f32.mrb[0].mxu0
    %v10629 = vadd.f32 %v10588, %v10628
    %v10630 = vpop.f32.mrb[0].mxu0
    %10631 = vdwg.mxu0
    %10632 = vmatprep.subr.bf16.mxu0 %v6951
    %10633 = vmatpush1.bf16.xpose.msra.mxu0 %v6950
    %10634 = vmatprep.subr.bf16.mxu0 %v7147
    %10635 = vmatpush1.bf16.xpose.msra.mxu0 %v7146
    %10636 = vmatprep.subr.bf16.mxu0 %v7343
    %10637 = vmatpush1.bf16.xpose.msra.mxu0 %v7342
    %10638 = vmatprep.subr.bf16.mxu0 %v7539
    %10639 = vmatpush1.bf16.xpose.msra.mxu0 %v7538
    %10640 = vmatprep.subr.bf16.mxu0 %v7735
    %10641 = vmatpush1.bf16.xpose.msra.mxu0 %v7734
    %10642 = vmatprep.subr.bf16.mxu0 %v7931
    %10643 = vmatpush1.bf16.xpose.msra.mxu0 %v7930
    %10644 = vmatprep.subr.bf16.mxu0 %v8127
    %10645 = vmatpush1.bf16.xpose.msra.mxu0 %v8126
    %10646 = vmatprep.subr.bf16.mxu0 %v8323
    %10647 = vmatpush1.bf16.xpose.msra.mxu0 %v8322
    %10648 = vmatprep.subr.bf16.mxu0 0
    %10649 = vmatpush1.bf16.xpose.msra.mxu0 0
    %10650 = vmatprep.subr.bf16.mxu0 0
    %10651 = vmatpush1.bf16.xpose.msra.mxu0 0
    %10652 = vmatprep.subr.bf16.mxu0 0
    %10653 = vmatpush1.bf16.xpose.msra.mxu0 0
    %10654 = vmatprep.subr.bf16.mxu0 0
    %10655 = vmatpush1.bf16.xpose.msra.mxu0 0
    %10656 = vmatprep.subr.bf16.mxu0 0
    %10657 = vmatpush1.bf16.xpose.msra.mxu0 0
    %10658 = vmatprep.subr.bf16.mxu0 0
    %10659 = vmatpush1.bf16.xpose.msra.mxu0 0
    %10660 = vmatprep.subr.bf16.mxu0 0
    %10661 = vmatpush1.bf16.xpose.msra.mxu0 0
    %10662 = vmatprep.subr.bf16.mxu0 0
    %10663 = vmatpush1.bf16.xpose.msra.mxu0 0
    %10664 = vmatprep.mubr.bf16.mxu0 %v476
    %10665 = vmatmul.mubr.bf16.gmra.mrb[0].mxu0 %v475
    %v10666 = vpop.f32.mrb[0].mxu0
    %v10667 = vadd.f32 %v10626, %v10666
    %v10668 = vpop.f32.mrb[0].mxu0
    %v10669 = vpop.f32.mrb[0].mxu0
    %v10670 = vadd.f32 %v10629, %v10669
    %v10671 = vpop.f32.mrb[0].mxu0
    %10672 = vdwg.mxu0
    %10673 = vmatprep.subr.bf16.mxu0 %v6953
    %10674 = vmatpush1.bf16.xpose.msra.mxu0 %v6952
    %10675 = vmatprep.subr.bf16.mxu0 %v7149
    %10676 = vmatpush1.bf16.xpose.msra.mxu0 %v7148
    %10677 = vmatprep.subr.bf16.mxu0 %v7345
    %10678 = vmatpush1.bf16.xpose.msra.mxu0 %v7344
    %10679 = vmatprep.subr.bf16.mxu0 %v7541
    %10680 = vmatpush1.bf16.xpose.msra.mxu0 %v7540
    %10681 = vmatprep.subr.bf16.mxu0 %v7737
    %10682 = vmatpush1.bf16.xpose.msra.mxu0 %v7736
    %10683 = vmatprep.subr.bf16.mxu0 %v7933
    %10684 = vmatpush1.bf16.xpose.msra.mxu0 %v7932
    %10685 = vmatprep.subr.bf16.mxu0 %v8129
    %10686 = vmatpush1.bf16.xpose.msra.mxu0 %v8128
    %10687 = vmatprep.subr.bf16.mxu0 %v8325
    %10688 = vmatpush1.bf16.xpose.msra.mxu0 %v8324
    %10689 = vmatprep.subr.bf16.mxu0 0
    %10690 = vmatpush1.bf16.xpose.msra.mxu0 0
    %10691 = vmatprep.subr.bf16.mxu0 0
    %10692 = vmatpush1.bf16.xpose.msra.mxu0 0
    %10693 = vmatprep.subr.bf16.mxu0 0
    %10694 = vmatpush1.bf16.xpose.msra.mxu0 0
    %10695 = vmatprep.subr.bf16.mxu0 0
    %10696 = vmatpush1.bf16.xpose.msra.mxu0 0
    %10697 = vmatprep.subr.bf16.mxu0 0
    %10698 = vmatpush1.bf16.xpose.msra.mxu0 0
    %10699 = vmatprep.subr.bf16.mxu0 0
    %10700 = vmatpush1.bf16.xpose.msra.mxu0 0
    %10701 = vmatprep.subr.bf16.mxu0 0
    %10702 = vmatpush1.bf16.xpose.msra.mxu0 0
    %10703 = vmatprep.subr.bf16.mxu0 0
    %10704 = vmatpush1.bf16.xpose.msra.mxu0 0
    %10705 = vmatprep.mubr.bf16.mxu0 %v478
    %10706 = vmatmul.mubr.bf16.gmra.mrb[0].mxu0 %v477
    %v10707 = vpop.f32.mrb[0].mxu0
    %v10708 = vadd.f32 %v10667, %v10707
    %v10709 = vpop.f32.mrb[0].mxu0
    %v10710 = vpop.f32.mrb[0].mxu0
    %v10711 = vadd.f32 %v10670, %v10710
    %v10712 = vpop.f32.mrb[0].mxu0
    %10713 = vdwg.mxu0
    %10714 = vmatprep.subr.bf16.mxu0 %v6955
    %10715 = vmatpush1.bf16.xpose.msra.mxu0 %v6954
    %10716 = vmatprep.subr.bf16.mxu0 %v7151
    %10717 = vmatpush1.bf16.xpose.msra.mxu0 %v7150
    %10718 = vmatprep.subr.bf16.mxu0 %v7347
    %10719 = vmatpush1.bf16.xpose.msra.mxu0 %v7346
    %10720 = vmatprep.subr.bf16.mxu0 %v7543
    %10721 = vmatpush1.bf16.xpose.msra.mxu0 %v7542
    %10722 = vmatprep.subr.bf16.mxu0 %v7739
    %10723 = vmatpush1.bf16.xpose.msra.mxu0 %v7738
    %10724 = vmatprep.subr.bf16.mxu0 %v7935
    %10725 = vmatpush1.bf16.xpose.msra.mxu0 %v7934
    %10726 = vmatprep.subr.bf16.mxu0 %v8131
    %10727 = vmatpush1.bf16.xpose.msra.mxu0 %v8130
    %10728 = vmatprep.subr.bf16.mxu0 %v8327
    %10729 = vmatpush1.bf16.xpose.msra.mxu0 %v8326
    %10730 = vmatprep.subr.bf16.mxu0 0
    %10731 = vmatpush1.bf16.xpose.msra.mxu0 0
    %10732 = vmatprep.subr.bf16.mxu0 0
    %10733 = vmatpush1.bf16.xpose.msra.mxu0 0
    %10734 = vmatprep.subr.bf16.mxu0 0
    %10735 = vmatpush1.bf16.xpose.msra.mxu0 0
    %10736 = vmatprep.subr.bf16.mxu0 0
    %10737 = vmatpush1.bf16.xpose.msra.mxu0 0
    %10738 = vmatprep.subr.bf16.mxu0 0
    %10739 = vmatpush1.bf16.xpose.msra.mxu0 0
    %10740 = vmatprep.subr.bf16.mxu0 0
    %10741 = vmatpush1.bf16.xpose.msra.mxu0 0
    %10742 = vmatprep.subr.bf16.mxu0 0
    %10743 = vmatpush1.bf16.xpose.msra.mxu0 0
    %10744 = vmatprep.subr.bf16.mxu0 0
    %10745 = vmatpush1.bf16.xpose.msra.mxu0 0
    %10746 = vmatprep.mubr.bf16.mxu0 %v480
    %10747 = vmatmul.mubr.bf16.gmra.mrb[0].mxu0 %v479
    %v10748 = vpop.f32.mrb[0].mxu0
    %v10749 = vadd.f32 %v10708, %v10748
    %v10750 = vpop.f32.mrb[0].mxu0
    %v10751 = vpop.f32.mrb[0].mxu0
    %v10752 = vadd.f32 %v10711, %v10751
    %v10753 = vpop.f32.mrb[0].mxu0
    %10754 = vdwg.mxu0
    %10755 = vmatprep.subr.bf16.mxu0 %v6957
    %10756 = vmatpush1.bf16.xpose.msra.mxu0 %v6956
    %10757 = vmatprep.subr.bf16.mxu0 %v7153
    %10758 = vmatpush1.bf16.xpose.msra.mxu0 %v7152
    %10759 = vmatprep.subr.bf16.mxu0 %v7349
    %10760 = vmatpush1.bf16.xpose.msra.mxu0 %v7348
    %10761 = vmatprep.subr.bf16.mxu0 %v7545
    %10762 = vmatpush1.bf16.xpose.msra.mxu0 %v7544
    %10763 = vmatprep.subr.bf16.mxu0 %v7741
    %10764 = vmatpush1.bf16.xpose.msra.mxu0 %v7740
    %10765 = vmatprep.subr.bf16.mxu0 %v7937
    %10766 = vmatpush1.bf16.xpose.msra.mxu0 %v7936
    %10767 = vmatprep.subr.bf16.mxu0 %v8133
    %10768 = vmatpush1.bf16.xpose.msra.mxu0 %v8132
    %10769 = vmatprep.subr.bf16.mxu0 %v8329
    %10770 = vmatpush1.bf16.xpose.msra.mxu0 %v8328
    %10771 = vmatprep.subr.bf16.mxu0 0
    %10772 = vmatpush1.bf16.xpose.msra.mxu0 0
    %10773 = vmatprep.subr.bf16.mxu0 0
    %10774 = vmatpush1.bf16.xpose.msra.mxu0 0
    %10775 = vmatprep.subr.bf16.mxu0 0
    %10776 = vmatpush1.bf16.xpose.msra.mxu0 0
    %10777 = vmatprep.subr.bf16.mxu0 0
    %10778 = vmatpush1.bf16.xpose.msra.mxu0 0
    %10779 = vmatprep.subr.bf16.mxu0 0
    %10780 = vmatpush1.bf16.xpose.msra.mxu0 0
    %10781 = vmatprep.subr.bf16.mxu0 0
    %10782 = vmatpush1.bf16.xpose.msra.mxu0 0
    %10783 = vmatprep.subr.bf16.mxu0 0
    %10784 = vmatpush1.bf16.xpose.msra.mxu0 0
    %10785 = vmatprep.subr.bf16.mxu0 0
    %10786 = vmatpush1.bf16.xpose.msra.mxu0 0
    %10787 = vmatprep.mubr.bf16.mxu0 %v482
    %10788 = vmatmul.mubr.bf16.gmra.mrb[0].mxu0 %v481
    %v10789 = vpop.f32.mrb[0].mxu0
    %v10790 = vadd.f32 %v10749, %v10789
    %v10791 = vpop.f32.mrb[0].mxu0
    %v10792 = vpop.f32.mrb[0].mxu0
    %v10793 = vadd.f32 %v10752, %v10792
    %v10794 = vpop.f32.mrb[0].mxu0
    %10795 = vdwg.mxu0
    %10796 = vmatprep.subr.bf16.mxu0 %v6959
    %10797 = vmatpush1.bf16.xpose.msra.mxu0 %v6958
    %10798 = vmatprep.subr.bf16.mxu0 %v7155
    %10799 = vmatpush1.bf16.xpose.msra.mxu0 %v7154
    %10800 = vmatprep.subr.bf16.mxu0 %v7351
    %10801 = vmatpush1.bf16.xpose.msra.mxu0 %v7350
    %10802 = vmatprep.subr.bf16.mxu0 %v7547
    %10803 = vmatpush1.bf16.xpose.msra.mxu0 %v7546
    %10804 = vmatprep.subr.bf16.mxu0 %v7743
    %10805 = vmatpush1.bf16.xpose.msra.mxu0 %v7742
    %10806 = vmatprep.subr.bf16.mxu0 %v7939
    %10807 = vmatpush1.bf16.xpose.msra.mxu0 %v7938
    %10808 = vmatprep.subr.bf16.mxu0 %v8135
    %10809 = vmatpush1.bf16.xpose.msra.mxu0 %v8134
    %10810 = vmatprep.subr.bf16.mxu0 %v8331
    %10811 = vmatpush1.bf16.xpose.msra.mxu0 %v8330
    %10812 = vmatprep.subr.bf16.mxu0 0
    %10813 = vmatpush1.bf16.xpose.msra.mxu0 0
    %10814 = vmatprep.subr.bf16.mxu0 0
    %10815 = vmatpush1.bf16.xpose.msra.mxu0 0
    %10816 = vmatprep.subr.bf16.mxu0 0
    %10817 = vmatpush1.bf16.xpose.msra.mxu0 0
    %10818 = vmatprep.subr.bf16.mxu0 0
    %10819 = vmatpush1.bf16.xpose.msra.mxu0 0
    %10820 = vmatprep.subr.bf16.mxu0 0
    %10821 = vmatpush1.bf16.xpose.msra.mxu0 0
    %10822 = vmatprep.subr.bf16.mxu0 0
    %10823 = vmatpush1.bf16.xpose.msra.mxu0 0
    %10824 = vmatprep.subr.bf16.mxu0 0
    %10825 = vmatpush1.bf16.xpose.msra.mxu0 0
    %10826 = vmatprep.subr.bf16.mxu0 0
    %10827 = vmatpush1.bf16.xpose.msra.mxu0 0
    %10828 = vmatprep.mubr.bf16.mxu0 %v484
    %10829 = vmatmul.mubr.bf16.gmra.mrb[0].mxu0 %v483
    %v10830 = vpop.f32.mrb[0].mxu0
    %v10831 = vadd.f32 %v10790, %v10830
    %v10832 = vpop.f32.mrb[0].mxu0
    %v10833 = vpop.f32.mrb[0].mxu0
    %v10834 = vadd.f32 %v10793, %v10833
    %v10835 = vpop.f32.mrb[0].mxu0
    %10836 = vdwg.mxu0
    %10837 = vmatprep.subr.bf16.mxu0 %v6961
    %10838 = vmatpush1.bf16.xpose.msra.mxu0 %v6960
    %10839 = vmatprep.subr.bf16.mxu0 %v7157
    %10840 = vmatpush1.bf16.xpose.msra.mxu0 %v7156
    %10841 = vmatprep.subr.bf16.mxu0 %v7353
    %10842 = vmatpush1.bf16.xpose.msra.mxu0 %v7352
    %10843 = vmatprep.subr.bf16.mxu0 %v7549
    %10844 = vmatpush1.bf16.xpose.msra.mxu0 %v7548
    %10845 = vmatprep.subr.bf16.mxu0 %v7745
    %10846 = vmatpush1.bf16.xpose.msra.mxu0 %v7744
    %10847 = vmatprep.subr.bf16.mxu0 %v7941
    %10848 = vmatpush1.bf16.xpose.msra.mxu0 %v7940
    %10849 = vmatprep.subr.bf16.mxu0 %v8137
    %10850 = vmatpush1.bf16.xpose.msra.mxu0 %v8136
    %10851 = vmatprep.subr.bf16.mxu0 %v8333
    %10852 = vmatpush1.bf16.xpose.msra.mxu0 %v8332
    %10853 = vmatprep.subr.bf16.mxu0 0
    %10854 = vmatpush1.bf16.xpose.msra.mxu0 0
    %10855 = vmatprep.subr.bf16.mxu0 0
    %10856 = vmatpush1.bf16.xpose.msra.mxu0 0
    %10857 = vmatprep.subr.bf16.mxu0 0
    %10858 = vmatpush1.bf16.xpose.msra.mxu0 0
    %10859 = vmatprep.subr.bf16.mxu0 0
    %10860 = vmatpush1.bf16.xpose.msra.mxu0 0
    %10861 = vmatprep.subr.bf16.mxu0 0
    %10862 = vmatpush1.bf16.xpose.msra.mxu0 0
    %10863 = vmatprep.subr.bf16.mxu0 0
    %10864 = vmatpush1.bf16.xpose.msra.mxu0 0
    %10865 = vmatprep.subr.bf16.mxu0 0
    %10866 = vmatpush1.bf16.xpose.msra.mxu0 0
    %10867 = vmatprep.subr.bf16.mxu0 0
    %10868 = vmatpush1.bf16.xpose.msra.mxu0 0
    %10869 = vmatprep.mubr.bf16.mxu0 %v486
    %10870 = vmatmul.mubr.bf16.gmra.mrb[0].mxu0 %v485
    %v10871 = vpop.f32.mrb[0].mxu0
    %v10872 = vadd.f32 %v10831, %v10871
    %v10873 = vpop.f32.mrb[0].mxu0
    %v10874 = vpop.f32.mrb[0].mxu0
    %v10875 = vadd.f32 %v10834, %v10874
    %v10876 = vpop.f32.mrb[0].mxu0
    %10877 = vdwg.mxu0
    %10878 = vmatprep.subr.bf16.mxu0 %v6963
    %10879 = vmatpush1.bf16.xpose.msra.mxu0 %v6962
    %10880 = vmatprep.subr.bf16.mxu0 %v7159
    %10881 = vmatpush1.bf16.xpose.msra.mxu0 %v7158
    %10882 = vmatprep.subr.bf16.mxu0 %v7355
    %10883 = vmatpush1.bf16.xpose.msra.mxu0 %v7354
    %10884 = vmatprep.subr.bf16.mxu0 %v7551
    %10885 = vmatpush1.bf16.xpose.msra.mxu0 %v7550
    %10886 = vmatprep.subr.bf16.mxu0 %v7747
    %10887 = vmatpush1.bf16.xpose.msra.mxu0 %v7746
    %10888 = vmatprep.subr.bf16.mxu0 %v7943
    %10889 = vmatpush1.bf16.xpose.msra.mxu0 %v7942
    %10890 = vmatprep.subr.bf16.mxu0 %v8139
    %10891 = vmatpush1.bf16.xpose.msra.mxu0 %v8138
    %10892 = vmatprep.subr.bf16.mxu0 %v8335
    %10893 = vmatpush1.bf16.xpose.msra.mxu0 %v8334
    %10894 = vmatprep.subr.bf16.mxu0 0
    %10895 = vmatpush1.bf16.xpose.msra.mxu0 0
    %10896 = vmatprep.subr.bf16.mxu0 0
    %10897 = vmatpush1.bf16.xpose.msra.mxu0 0
    %10898 = vmatprep.subr.bf16.mxu0 0
    %10899 = vmatpush1.bf16.xpose.msra.mxu0 0
    %10900 = vmatprep.subr.bf16.mxu0 0
    %10901 = vmatpush1.bf16.xpose.msra.mxu0 0
    %10902 = vmatprep.subr.bf16.mxu0 0
    %10903 = vmatpush1.bf16.xpose.msra.mxu0 0
    %10904 = vmatprep.subr.bf16.mxu0 0
    %10905 = vmatpush1.bf16.xpose.msra.mxu0 0
    %10906 = vmatprep.subr.bf16.mxu0 0
    %10907 = vmatpush1.bf16.xpose.msra.mxu0 0
    %10908 = vmatprep.subr.bf16.mxu0 0
    %10909 = vmatpush1.bf16.xpose.msra.mxu0 0
    %10910 = vmatprep.mubr.bf16.mxu0 %v488
    %10911 = vmatmul.mubr.bf16.gmra.mrb[0].mxu0 %v487
    %v10912 = vpop.f32.mrb[0].mxu0
    %v10913 = vadd.f32 %v10872, %v10912
    %v10914 = vpop.f32.mrb[0].mxu0
    %v10915 = vpop.f32.mrb[0].mxu0
    %v10916 = vadd.f32 %v10875, %v10915
    %v10917 = vpop.f32.mrb[0].mxu0
    %10918 = vdwg.mxu0
    %10919 = vmatprep.subr.bf16.mxu0 %v6965
    %10920 = vmatpush1.bf16.xpose.msra.mxu0 %v6964
    %10921 = vmatprep.subr.bf16.mxu0 %v7161
    %10922 = vmatpush1.bf16.xpose.msra.mxu0 %v7160
    %10923 = vmatprep.subr.bf16.mxu0 %v7357
    %10924 = vmatpush1.bf16.xpose.msra.mxu0 %v7356
    %10925 = vmatprep.subr.bf16.mxu0 %v7553
    %10926 = vmatpush1.bf16.xpose.msra.mxu0 %v7552
    %10927 = vmatprep.subr.bf16.mxu0 %v7749
    %10928 = vmatpush1.bf16.xpose.msra.mxu0 %v7748
    %10929 = vmatprep.subr.bf16.mxu0 %v7945
    %10930 = vmatpush1.bf16.xpose.msra.mxu0 %v7944
    %10931 = vmatprep.subr.bf16.mxu0 %v8141
    %10932 = vmatpush1.bf16.xpose.msra.mxu0 %v8140
    %10933 = vmatprep.subr.bf16.mxu0 %v8337
    %10934 = vmatpush1.bf16.xpose.msra.mxu0 %v8336
    %10935 = vmatprep.subr.bf16.mxu0 0
    %10936 = vmatpush1.bf16.xpose.msra.mxu0 0
    %10937 = vmatprep.subr.bf16.mxu0 0
    %10938 = vmatpush1.bf16.xpose.msra.mxu0 0
    %10939 = vmatprep.subr.bf16.mxu0 0
    %10940 = vmatpush1.bf16.xpose.msra.mxu0 0
    %10941 = vmatprep.subr.bf16.mxu0 0
    %10942 = vmatpush1.bf16.xpose.msra.mxu0 0
    %10943 = vmatprep.subr.bf16.mxu0 0
    %10944 = vmatpush1.bf16.xpose.msra.mxu0 0
    %10945 = vmatprep.subr.bf16.mxu0 0
    %10946 = vmatpush1.bf16.xpose.msra.mxu0 0
    %10947 = vmatprep.subr.bf16.mxu0 0
    %10948 = vmatpush1.bf16.xpose.msra.mxu0 0
    %10949 = vmatprep.subr.bf16.mxu0 0
    %10950 = vmatpush1.bf16.xpose.msra.mxu0 0
    %10951 = vmatprep.mubr.bf16.mxu0 %v490
    %10952 = vmatmul.mubr.bf16.gmra.mrb[0].mxu0 %v489
    %v10953 = vpop.f32.mrb[0].mxu0
    %v10954 = vadd.f32 %v10913, %v10953
    %v10955 = vpop.f32.mrb[0].mxu0
    %v10956 = vpop.f32.mrb[0].mxu0
    %v10957 = vadd.f32 %v10916, %v10956
    %v10958 = vpop.f32.mrb[0].mxu0
    %10959 = vdwg.mxu0
    %10960 = vmatprep.subr.bf16.mxu0 %v6967
    %10961 = vmatpush1.bf16.xpose.msra.mxu0 %v6966
    %10962 = vmatprep.subr.bf16.mxu0 %v7163
    %10963 = vmatpush1.bf16.xpose.msra.mxu0 %v7162
    %10964 = vmatprep.subr.bf16.mxu0 %v7359
    %10965 = vmatpush1.bf16.xpose.msra.mxu0 %v7358
    %10966 = vmatprep.subr.bf16.mxu0 %v7555
    %10967 = vmatpush1.bf16.xpose.msra.mxu0 %v7554
    %10968 = vmatprep.subr.bf16.mxu0 %v7751
    %10969 = vmatpush1.bf16.xpose.msra.mxu0 %v7750
    %10970 = vmatprep.subr.bf16.mxu0 %v7947
    %10971 = vmatpush1.bf16.xpose.msra.mxu0 %v7946
    %10972 = vmatprep.subr.bf16.mxu0 %v8143
    %10973 = vmatpush1.bf16.xpose.msra.mxu0 %v8142
    %10974 = vmatprep.subr.bf16.mxu0 %v8339
    %10975 = vmatpush1.bf16.xpose.msra.mxu0 %v8338
    %10976 = vmatprep.subr.bf16.mxu0 0
    %10977 = vmatpush1.bf16.xpose.msra.mxu0 0
    %10978 = vmatprep.subr.bf16.mxu0 0
    %10979 = vmatpush1.bf16.xpose.msra.mxu0 0
    %10980 = vmatprep.subr.bf16.mxu0 0
    %10981 = vmatpush1.bf16.xpose.msra.mxu0 0
    %10982 = vmatprep.subr.bf16.mxu0 0
    %10983 = vmatpush1.bf16.xpose.msra.mxu0 0
    %10984 = vmatprep.subr.bf16.mxu0 0
    %10985 = vmatpush1.bf16.xpose.msra.mxu0 0
    %10986 = vmatprep.subr.bf16.mxu0 0
    %10987 = vmatpush1.bf16.xpose.msra.mxu0 0
    %10988 = vmatprep.subr.bf16.mxu0 0
    %10989 = vmatpush1.bf16.xpose.msra.mxu0 0
    %10990 = vmatprep.subr.bf16.mxu0 0
    %10991 = vmatpush1.bf16.xpose.msra.mxu0 0
    %10992 = vmatprep.mubr.bf16.mxu0 %v492
    %10993 = vmatmul.mubr.bf16.gmra.mrb[0].mxu0 %v491
    %v10994 = vpop.f32.mrb[0].mxu0
    %v10995 = vadd.f32 %v10954, %v10994
    %v10996 = vpop.f32.mrb[0].mxu0
    %v10997 = vpop.f32.mrb[0].mxu0
    %v10998 = vadd.f32 %v10957, %v10997
    %v10999 = vpop.f32.mrb[0].mxu0
    %11000 = vdwg.mxu0
    %11001 = vmatprep.subr.bf16.mxu0 %v6969
    %11002 = vmatpush1.bf16.xpose.msra.mxu0 %v6968
    %11003 = vmatprep.subr.bf16.mxu0 %v7165
    %11004 = vmatpush1.bf16.xpose.msra.mxu0 %v7164
    %11005 = vmatprep.subr.bf16.mxu0 %v7361
    %11006 = vmatpush1.bf16.xpose.msra.mxu0 %v7360
    %11007 = vmatprep.subr.bf16.mxu0 %v7557
    %11008 = vmatpush1.bf16.xpose.msra.mxu0 %v7556
    %11009 = vmatprep.subr.bf16.mxu0 %v7753
    %11010 = vmatpush1.bf16.xpose.msra.mxu0 %v7752
    %11011 = vmatprep.subr.bf16.mxu0 %v7949
    %11012 = vmatpush1.bf16.xpose.msra.mxu0 %v7948
    %11013 = vmatprep.subr.bf16.mxu0 %v8145
    %11014 = vmatpush1.bf16.xpose.msra.mxu0 %v8144
    %11015 = vmatprep.subr.bf16.mxu0 %v8341
    %11016 = vmatpush1.bf16.xpose.msra.mxu0 %v8340
    %11017 = vmatprep.subr.bf16.mxu0 0
    %11018 = vmatpush1.bf16.xpose.msra.mxu0 0
    %11019 = vmatprep.subr.bf16.mxu0 0
    %11020 = vmatpush1.bf16.xpose.msra.mxu0 0
    %11021 = vmatprep.subr.bf16.mxu0 0
    %11022 = vmatpush1.bf16.xpose.msra.mxu0 0
    %11023 = vmatprep.subr.bf16.mxu0 0
    %11024 = vmatpush1.bf16.xpose.msra.mxu0 0
    %11025 = vmatprep.subr.bf16.mxu0 0
    %11026 = vmatpush1.bf16.xpose.msra.mxu0 0
    %11027 = vmatprep.subr.bf16.mxu0 0
    %11028 = vmatpush1.bf16.xpose.msra.mxu0 0
    %11029 = vmatprep.subr.bf16.mxu0 0
    %11030 = vmatpush1.bf16.xpose.msra.mxu0 0
    %11031 = vmatprep.subr.bf16.mxu0 0
    %11032 = vmatpush1.bf16.xpose.msra.mxu0 0
    %11033 = vmatprep.mubr.bf16.mxu0 %v494
    %11034 = vmatmul.mubr.bf16.gmra.mrb[0].mxu0 %v493
    %v11035 = vpop.f32.mrb[0].mxu0
    %v11036 = vadd.f32 %v10995, %v11035
    %v11037 = vpop.f32.mrb[0].mxu0
    %v11038 = vpop.f32.mrb[0].mxu0
    %v11039 = vadd.f32 %v10998, %v11038
    %v11040 = vpop.f32.mrb[0].mxu0
    %11041 = vdwg.mxu0
    %11042 = vmatprep.subr.bf16.mxu0 %v6971
    %11043 = vmatpush1.bf16.xpose.msra.mxu0 %v6970
    %11044 = vmatprep.subr.bf16.mxu0 %v7167
    %11045 = vmatpush1.bf16.xpose.msra.mxu0 %v7166
    %11046 = vmatprep.subr.bf16.mxu0 %v7363
    %11047 = vmatpush1.bf16.xpose.msra.mxu0 %v7362
    %11048 = vmatprep.subr.bf16.mxu0 %v7559
    %11049 = vmatpush1.bf16.xpose.msra.mxu0 %v7558
    %11050 = vmatprep.subr.bf16.mxu0 %v7755
    %11051 = vmatpush1.bf16.xpose.msra.mxu0 %v7754
    %11052 = vmatprep.subr.bf16.mxu0 %v7951
    %11053 = vmatpush1.bf16.xpose.msra.mxu0 %v7950
    %11054 = vmatprep.subr.bf16.mxu0 %v8147
    %11055 = vmatpush1.bf16.xpose.msra.mxu0 %v8146
    %11056 = vmatprep.subr.bf16.mxu0 %v8343
    %11057 = vmatpush1.bf16.xpose.msra.mxu0 %v8342
    %11058 = vmatprep.subr.bf16.mxu0 0
    %11059 = vmatpush1.bf16.xpose.msra.mxu0 0
    %11060 = vmatprep.subr.bf16.mxu0 0
    %11061 = vmatpush1.bf16.xpose.msra.mxu0 0
    %11062 = vmatprep.subr.bf16.mxu0 0
    %11063 = vmatpush1.bf16.xpose.msra.mxu0 0
    %11064 = vmatprep.subr.bf16.mxu0 0
    %11065 = vmatpush1.bf16.xpose.msra.mxu0 0
    %11066 = vmatprep.subr.bf16.mxu0 0
    %11067 = vmatpush1.bf16.xpose.msra.mxu0 0
    %11068 = vmatprep.subr.bf16.mxu0 0
    %11069 = vmatpush1.bf16.xpose.msra.mxu0 0
    %11070 = vmatprep.subr.bf16.mxu0 0
    %11071 = vmatpush1.bf16.xpose.msra.mxu0 0
    %11072 = vmatprep.subr.bf16.mxu0 0
    %11073 = vmatpush1.bf16.xpose.msra.mxu0 0
    %11074 = vmatprep.mubr.bf16.mxu0 %v496
    %11075 = vmatmul.mubr.bf16.gmra.mrb[0].mxu0 %v495
    %v11076 = vpop.f32.mrb[0].mxu0
    %v11077 = vadd.f32 %v11036, %v11076
    %v11078 = vpop.f32.mrb[0].mxu0
    %v11079 = vpop.f32.mrb[0].mxu0
    %v11080 = vadd.f32 %v11039, %v11079
    %v11081 = vpop.f32.mrb[0].mxu0
    %11082 = vdwg.mxu0
    %11083 = vmatprep.subr.bf16.mxu0 %v6973
    %11084 = vmatpush1.bf16.xpose.msra.mxu0 %v6972
    %11085 = vmatprep.subr.bf16.mxu0 %v7169
    %11086 = vmatpush1.bf16.xpose.msra.mxu0 %v7168
    %11087 = vmatprep.subr.bf16.mxu0 %v7365
    %11088 = vmatpush1.bf16.xpose.msra.mxu0 %v7364
    %11089 = vmatprep.subr.bf16.mxu0 %v7561
    %11090 = vmatpush1.bf16.xpose.msra.mxu0 %v7560
    %11091 = vmatprep.subr.bf16.mxu0 %v7757
    %11092 = vmatpush1.bf16.xpose.msra.mxu0 %v7756
    %11093 = vmatprep.subr.bf16.mxu0 %v7953
    %11094 = vmatpush1.bf16.xpose.msra.mxu0 %v7952
    %11095 = vmatprep.subr.bf16.mxu0 %v8149
    %11096 = vmatpush1.bf16.xpose.msra.mxu0 %v8148
    %11097 = vmatprep.subr.bf16.mxu0 %v8345
    %11098 = vmatpush1.bf16.xpose.msra.mxu0 %v8344
    %11099 = vmatprep.subr.bf16.mxu0 0
    %11100 = vmatpush1.bf16.xpose.msra.mxu0 0
    %11101 = vmatprep.subr.bf16.mxu0 0
    %11102 = vmatpush1.bf16.xpose.msra.mxu0 0
    %11103 = vmatprep.subr.bf16.mxu0 0
    %11104 = vmatpush1.bf16.xpose.msra.mxu0 0
    %11105 = vmatprep.subr.bf16.mxu0 0
    %11106 = vmatpush1.bf16.xpose.msra.mxu0 0
    %11107 = vmatprep.subr.bf16.mxu0 0
    %11108 = vmatpush1.bf16.xpose.msra.mxu0 0
    %11109 = vmatprep.subr.bf16.mxu0 0
    %11110 = vmatpush1.bf16.xpose.msra.mxu0 0
    %11111 = vmatprep.subr.bf16.mxu0 0
    %11112 = vmatpush1.bf16.xpose.msra.mxu0 0
    %11113 = vmatprep.subr.bf16.mxu0 0
    %11114 = vmatpush1.bf16.xpose.msra.mxu0 0
    %11115 = vmatprep.mubr.bf16.mxu0 %v498
    %11116 = vmatmul.mubr.bf16.gmra.mrb[0].mxu0 %v497
    %v11117 = vpop.f32.mrb[0].mxu0
    %v11118 = vadd.f32 %v11077, %v11117
    %v11119 = vpop.f32.mrb[0].mxu0
    %v11120 = vpop.f32.mrb[0].mxu0
    %v11121 = vadd.f32 %v11080, %v11120
    %v11122 = vpop.f32.mrb[0].mxu0
    %11123 = vdwg.mxu0
    %11124 = vmatprep.subr.bf16.mxu0 %v6975
    %11125 = vmatpush1.bf16.xpose.msra.mxu0 %v6974
    %11126 = vmatprep.subr.bf16.mxu0 %v7171
    %11127 = vmatpush1.bf16.xpose.msra.mxu0 %v7170
    %11128 = vmatprep.subr.bf16.mxu0 %v7367
    %11129 = vmatpush1.bf16.xpose.msra.mxu0 %v7366
    %11130 = vmatprep.subr.bf16.mxu0 %v7563
    %11131 = vmatpush1.bf16.xpose.msra.mxu0 %v7562
    %11132 = vmatprep.subr.bf16.mxu0 %v7759
    %11133 = vmatpush1.bf16.xpose.msra.mxu0 %v7758
    %11134 = vmatprep.subr.bf16.mxu0 %v7955
    %11135 = vmatpush1.bf16.xpose.msra.mxu0 %v7954
    %11136 = vmatprep.subr.bf16.mxu0 %v8151
    %11137 = vmatpush1.bf16.xpose.msra.mxu0 %v8150
    %11138 = vmatprep.subr.bf16.mxu0 %v8347
    %11139 = vmatpush1.bf16.xpose.msra.mxu0 %v8346
    %11140 = vmatprep.subr.bf16.mxu0 0
    %11141 = vmatpush1.bf16.xpose.msra.mxu0 0
    %11142 = vmatprep.subr.bf16.mxu0 0
    %11143 = vmatpush1.bf16.xpose.msra.mxu0 0
    %11144 = vmatprep.subr.bf16.mxu0 0
    %11145 = vmatpush1.bf16.xpose.msra.mxu0 0
    %11146 = vmatprep.subr.bf16.mxu0 0
    %11147 = vmatpush1.bf16.xpose.msra.mxu0 0
    %11148 = vmatprep.subr.bf16.mxu0 0
    %11149 = vmatpush1.bf16.xpose.msra.mxu0 0
    %11150 = vmatprep.subr.bf16.mxu0 0
    %11151 = vmatpush1.bf16.xpose.msra.mxu0 0
    %11152 = vmatprep.subr.bf16.mxu0 0
    %11153 = vmatpush1.bf16.xpose.msra.mxu0 0
    %11154 = vmatprep.subr.bf16.mxu0 0
    %11155 = vmatpush1.bf16.xpose.msra.mxu0 0
    %11156 = vmatprep.mubr.bf16.mxu0 %v500
    %11157 = vmatmul.mubr.bf16.gmra.mrb[0].mxu0 %v499
    %v11158 = vpop.f32.mrb[0].mxu0
    %v11159 = vadd.f32 %v11118, %v11158
    %v11160 = vpop.f32.mrb[0].mxu0
    %v11161 = vpop.f32.mrb[0].mxu0
    %v11162 = vadd.f32 %v11121, %v11161
    %v11163 = vpop.f32.mrb[0].mxu0
    %11164 = vdwg.mxu0
    %11165 = vmatprep.subr.bf16.mxu0 %v6977
    %11166 = vmatpush1.bf16.xpose.msra.mxu0 %v6976
    %11167 = vmatprep.subr.bf16.mxu0 %v7173
    %11168 = vmatpush1.bf16.xpose.msra.mxu0 %v7172
    %11169 = vmatprep.subr.bf16.mxu0 %v7369
    %11170 = vmatpush1.bf16.xpose.msra.mxu0 %v7368
    %11171 = vmatprep.subr.bf16.mxu0 %v7565
    %11172 = vmatpush1.bf16.xpose.msra.mxu0 %v7564
    %11173 = vmatprep.subr.bf16.mxu0 %v7761
    %11174 = vmatpush1.bf16.xpose.msra.mxu0 %v7760
    %11175 = vmatprep.subr.bf16.mxu0 %v7957
    %11176 = vmatpush1.bf16.xpose.msra.mxu0 %v7956
    %11177 = vmatprep.subr.bf16.mxu0 %v8153
    %11178 = vmatpush1.bf16.xpose.msra.mxu0 %v8152
    %11179 = vmatprep.subr.bf16.mxu0 %v8349
    %11180 = vmatpush1.bf16.xpose.msra.mxu0 %v8348
    %11181 = vmatprep.subr.bf16.mxu0 0
    %11182 = vmatpush1.bf16.xpose.msra.mxu0 0
    %11183 = vmatprep.subr.bf16.mxu0 0
    %11184 = vmatpush1.bf16.xpose.msra.mxu0 0
    %11185 = vmatprep.subr.bf16.mxu0 0
    %11186 = vmatpush1.bf16.xpose.msra.mxu0 0
    %11187 = vmatprep.subr.bf16.mxu0 0
    %11188 = vmatpush1.bf16.xpose.msra.mxu0 0
    %11189 = vmatprep.subr.bf16.mxu0 0
    %11190 = vmatpush1.bf16.xpose.msra.mxu0 0
    %11191 = vmatprep.subr.bf16.mxu0 0
    %11192 = vmatpush1.bf16.xpose.msra.mxu0 0
    %11193 = vmatprep.subr.bf16.mxu0 0
    %11194 = vmatpush1.bf16.xpose.msra.mxu0 0
    %11195 = vmatprep.subr.bf16.mxu0 0
    %11196 = vmatpush1.bf16.xpose.msra.mxu0 0
    %11197 = vmatprep.mubr.bf16.mxu0 %v502
    %11198 = vmatmul.mubr.bf16.gmra.mrb[0].mxu0 %v501
    %v11199 = vpop.f32.mrb[0].mxu0
    %v11200 = vadd.f32 %v11159, %v11199
    %v11201 = vpop.f32.mrb[0].mxu0
    %v11202 = vpop.f32.mrb[0].mxu0
    %v11203 = vadd.f32 %v11162, %v11202
    %v11204 = vpop.f32.mrb[0].mxu0
    %11205 = vdwg.mxu0
    %11206 = vmatprep.subr.bf16.mxu0 %v6979
    %11207 = vmatpush1.bf16.xpose.msra.mxu0 %v6978
    %11208 = vmatprep.subr.bf16.mxu0 %v7175
    %11209 = vmatpush1.bf16.xpose.msra.mxu0 %v7174
    %11210 = vmatprep.subr.bf16.mxu0 %v7371
    %11211 = vmatpush1.bf16.xpose.msra.mxu0 %v7370
    %11212 = vmatprep.subr.bf16.mxu0 %v7567
    %11213 = vmatpush1.bf16.xpose.msra.mxu0 %v7566
    %11214 = vmatprep.subr.bf16.mxu0 %v7763
    %11215 = vmatpush1.bf16.xpose.msra.mxu0 %v7762
    %11216 = vmatprep.subr.bf16.mxu0 %v7959
    %11217 = vmatpush1.bf16.xpose.msra.mxu0 %v7958
    %11218 = vmatprep.subr.bf16.mxu0 %v8155
    %11219 = vmatpush1.bf16.xpose.msra.mxu0 %v8154
    %11220 = vmatprep.subr.bf16.mxu0 %v8351
    %11221 = vmatpush1.bf16.xpose.msra.mxu0 %v8350
    %11222 = vmatprep.subr.bf16.mxu0 0
    %11223 = vmatpush1.bf16.xpose.msra.mxu0 0
    %11224 = vmatprep.subr.bf16.mxu0 0
    %11225 = vmatpush1.bf16.xpose.msra.mxu0 0
    %11226 = vmatprep.subr.bf16.mxu0 0
    %11227 = vmatpush1.bf16.xpose.msra.mxu0 0
    %11228 = vmatprep.subr.bf16.mxu0 0
    %11229 = vmatpush1.bf16.xpose.msra.mxu0 0
    %11230 = vmatprep.subr.bf16.mxu0 0
    %11231 = vmatpush1.bf16.xpose.msra.mxu0 0
    %11232 = vmatprep.subr.bf16.mxu0 0
    %11233 = vmatpush1.bf16.xpose.msra.mxu0 0
    %11234 = vmatprep.subr.bf16.mxu0 0
    %11235 = vmatpush1.bf16.xpose.msra.mxu0 0
    %11236 = vmatprep.subr.bf16.mxu0 0
    %11237 = vmatpush1.bf16.xpose.msra.mxu0 0
    %11238 = vmatprep.mubr.bf16.mxu0 %v504
    %11239 = vmatmul.mubr.bf16.gmra.mrb[0].mxu0 %v503
    %v11240 = vpop.f32.mrb[0].mxu0
    %v11241 = vadd.f32 %v11200, %v11240
    %v11242 = vpop.f32.mrb[0].mxu0
    %v11243 = vpop.f32.mrb[0].mxu0
    %v11244 = vadd.f32 %v11203, %v11243
    %v11245 = vpop.f32.mrb[0].mxu0
    %11246 = vdwg.mxu0
    %11247 = vmatprep.subr.bf16.mxu0 %v6981
    %11248 = vmatpush1.bf16.xpose.msra.mxu0 %v6980
    %11249 = vmatprep.subr.bf16.mxu0 %v7177
    %11250 = vmatpush1.bf16.xpose.msra.mxu0 %v7176
    %11251 = vmatprep.subr.bf16.mxu0 %v7373
    %11252 = vmatpush1.bf16.xpose.msra.mxu0 %v7372
    %11253 = vmatprep.subr.bf16.mxu0 %v7569
    %11254 = vmatpush1.bf16.xpose.msra.mxu0 %v7568
    %11255 = vmatprep.subr.bf16.mxu0 %v7765
    %11256 = vmatpush1.bf16.xpose.msra.mxu0 %v7764
    %11257 = vmatprep.subr.bf16.mxu0 %v7961
    %11258 = vmatpush1.bf16.xpose.msra.mxu0 %v7960
    %11259 = vmatprep.subr.bf16.mxu0 %v8157
    %11260 = vmatpush1.bf16.xpose.msra.mxu0 %v8156
    %11261 = vmatprep.subr.bf16.mxu0 %v8353
    %11262 = vmatpush1.bf16.xpose.msra.mxu0 %v8352
    %11263 = vmatprep.subr.bf16.mxu0 0
    %11264 = vmatpush1.bf16.xpose.msra.mxu0 0
    %11265 = vmatprep.subr.bf16.mxu0 0
    %11266 = vmatpush1.bf16.xpose.msra.mxu0 0
    %11267 = vmatprep.subr.bf16.mxu0 0
    %11268 = vmatpush1.bf16.xpose.msra.mxu0 0
    %11269 = vmatprep.subr.bf16.mxu0 0
    %11270 = vmatpush1.bf16.xpose.msra.mxu0 0
    %11271 = vmatprep.subr.bf16.mxu0 0
    %11272 = vmatpush1.bf16.xpose.msra.mxu0 0
    %11273 = vmatprep.subr.bf16.mxu0 0
    %11274 = vmatpush1.bf16.xpose.msra.mxu0 0
    %11275 = vmatprep.subr.bf16.mxu0 0
    %11276 = vmatpush1.bf16.xpose.msra.mxu0 0
    %11277 = vmatprep.subr.bf16.mxu0 0
    %11278 = vmatpush1.bf16.xpose.msra.mxu0 0
    %11279 = vmatprep.mubr.bf16.mxu0 %v506
    %11280 = vmatmul.mubr.bf16.gmra.mrb[0].mxu0 %v505
    %v11281 = vpop.f32.mrb[0].mxu0
    %v11282 = vadd.f32 %v11241, %v11281
    %v11283 = vpop.f32.mrb[0].mxu0
    %v11284 = vpop.f32.mrb[0].mxu0
    %v11285 = vadd.f32 %v11244, %v11284
    %v11286 = vpop.f32.mrb[0].mxu0
    %11287 = vdwg.mxu0
    %11288 = vmatprep.subr.bf16.mxu0 %v6983
    %11289 = vmatpush1.bf16.xpose.msra.mxu0 %v6982
    %11290 = vmatprep.subr.bf16.mxu0 %v7179
    %11291 = vmatpush1.bf16.xpose.msra.mxu0 %v7178
    %11292 = vmatprep.subr.bf16.mxu0 %v7375
    %11293 = vmatpush1.bf16.xpose.msra.mxu0 %v7374
    %11294 = vmatprep.subr.bf16.mxu0 %v7571
    %11295 = vmatpush1.bf16.xpose.msra.mxu0 %v7570
    %11296 = vmatprep.subr.bf16.mxu0 %v7767
    %11297 = vmatpush1.bf16.xpose.msra.mxu0 %v7766
    %11298 = vmatprep.subr.bf16.mxu0 %v7963
    %11299 = vmatpush1.bf16.xpose.msra.mxu0 %v7962
    %11300 = vmatprep.subr.bf16.mxu0 %v8159
    %11301 = vmatpush1.bf16.xpose.msra.mxu0 %v8158
    %11302 = vmatprep.subr.bf16.mxu0 %v8355
    %11303 = vmatpush1.bf16.xpose.msra.mxu0 %v8354
    %11304 = vmatprep.subr.bf16.mxu0 0
    %11305 = vmatpush1.bf16.xpose.msra.mxu0 0
    %11306 = vmatprep.subr.bf16.mxu0 0
    %11307 = vmatpush1.bf16.xpose.msra.mxu0 0
    %11308 = vmatprep.subr.bf16.mxu0 0
    %11309 = vmatpush1.bf16.xpose.msra.mxu0 0
    %11310 = vmatprep.subr.bf16.mxu0 0
    %11311 = vmatpush1.bf16.xpose.msra.mxu0 0
    %11312 = vmatprep.subr.bf16.mxu0 0
    %11313 = vmatpush1.bf16.xpose.msra.mxu0 0
    %11314 = vmatprep.subr.bf16.mxu0 0
    %11315 = vmatpush1.bf16.xpose.msra.mxu0 0
    %11316 = vmatprep.subr.bf16.mxu0 0
    %11317 = vmatpush1.bf16.xpose.msra.mxu0 0
    %11318 = vmatprep.subr.bf16.mxu0 0
    %11319 = vmatpush1.bf16.xpose.msra.mxu0 0
    %11320 = vmatprep.mubr.bf16.mxu0 %v508
    %11321 = vmatmul.mubr.bf16.gmra.mrb[0].mxu0 %v507
    %v11322 = vpop.f32.mrb[0].mxu0
    %v11323 = vadd.f32 %v11282, %v11322
    %v11324 = vpop.f32.mrb[0].mxu0
    %v11325 = vpop.f32.mrb[0].mxu0
    %v11326 = vadd.f32 %v11285, %v11325
    %v11327 = vpop.f32.mrb[0].mxu0
    %11328 = vdwg.mxu0
    %11329 = vmatprep.subr.bf16.mxu0 %v6985
    %11330 = vmatpush1.bf16.xpose.msra.mxu0 %v6984
    %11331 = vmatprep.subr.bf16.mxu0 %v7181
    %11332 = vmatpush1.bf16.xpose.msra.mxu0 %v7180
    %11333 = vmatprep.subr.bf16.mxu0 %v7377
    %11334 = vmatpush1.bf16.xpose.msra.mxu0 %v7376
    %11335 = vmatprep.subr.bf16.mxu0 %v7573
    %11336 = vmatpush1.bf16.xpose.msra.mxu0 %v7572
    %11337 = vmatprep.subr.bf16.mxu0 %v7769
    %11338 = vmatpush1.bf16.xpose.msra.mxu0 %v7768
    %11339 = vmatprep.subr.bf16.mxu0 %v7965
    %11340 = vmatpush1.bf16.xpose.msra.mxu0 %v7964
    %11341 = vmatprep.subr.bf16.mxu0 %v8161
    %11342 = vmatpush1.bf16.xpose.msra.mxu0 %v8160
    %11343 = vmatprep.subr.bf16.mxu0 %v8357
    %11344 = vmatpush1.bf16.xpose.msra.mxu0 %v8356
    %11345 = vmatprep.subr.bf16.mxu0 0
    %11346 = vmatpush1.bf16.xpose.msra.mxu0 0
    %11347 = vmatprep.subr.bf16.mxu0 0
    %11348 = vmatpush1.bf16.xpose.msra.mxu0 0
    %11349 = vmatprep.subr.bf16.mxu0 0
    %11350 = vmatpush1.bf16.xpose.msra.mxu0 0
    %11351 = vmatprep.subr.bf16.mxu0 0
    %11352 = vmatpush1.bf16.xpose.msra.mxu0 0
    %11353 = vmatprep.subr.bf16.mxu0 0
    %11354 = vmatpush1.bf16.xpose.msra.mxu0 0
    %11355 = vmatprep.subr.bf16.mxu0 0
    %11356 = vmatpush1.bf16.xpose.msra.mxu0 0
    %11357 = vmatprep.subr.bf16.mxu0 0
    %11358 = vmatpush1.bf16.xpose.msra.mxu0 0
    %11359 = vmatprep.subr.bf16.mxu0 0
    %11360 = vmatpush1.bf16.xpose.msra.mxu0 0
    %11361 = vmatprep.mubr.bf16.mxu0 %v510
    %11362 = vmatmul.mubr.bf16.gmra.mrb[0].mxu0 %v509
    %v11363 = vpop.f32.mrb[0].mxu0
    %v11364 = vadd.f32 %v11323, %v11363
    %v11365 = vpop.f32.mrb[0].mxu0
    %v11366 = vpop.f32.mrb[0].mxu0
    %v11367 = vadd.f32 %v11326, %v11366
    %v11368 = vpop.f32.mrb[0].mxu0
    %11369 = vdwg.mxu0
    %11370 = vmatprep.subr.bf16.mxu0 %v6987
    %11371 = vmatpush1.bf16.xpose.msra.mxu0 %v6986
    %11372 = vmatprep.subr.bf16.mxu0 %v7183
    %11373 = vmatpush1.bf16.xpose.msra.mxu0 %v7182
    %11374 = vmatprep.subr.bf16.mxu0 %v7379
    %11375 = vmatpush1.bf16.xpose.msra.mxu0 %v7378
    %11376 = vmatprep.subr.bf16.mxu0 %v7575
    %11377 = vmatpush1.bf16.xpose.msra.mxu0 %v7574
    %11378 = vmatprep.subr.bf16.mxu0 %v7771
    %11379 = vmatpush1.bf16.xpose.msra.mxu0 %v7770
    %11380 = vmatprep.subr.bf16.mxu0 %v7967
    %11381 = vmatpush1.bf16.xpose.msra.mxu0 %v7966
    %11382 = vmatprep.subr.bf16.mxu0 %v8163
    %11383 = vmatpush1.bf16.xpose.msra.mxu0 %v8162
    %11384 = vmatprep.subr.bf16.mxu0 %v8359
    %11385 = vmatpush1.bf16.xpose.msra.mxu0 %v8358
    %11386 = vmatprep.subr.bf16.mxu0 0
    %11387 = vmatpush1.bf16.xpose.msra.mxu0 0
    %11388 = vmatprep.subr.bf16.mxu0 0
    %11389 = vmatpush1.bf16.xpose.msra.mxu0 0
    %11390 = vmatprep.subr.bf16.mxu0 0
    %11391 = vmatpush1.bf16.xpose.msra.mxu0 0
    %11392 = vmatprep.subr.bf16.mxu0 0
    %11393 = vmatpush1.bf16.xpose.msra.mxu0 0
    %11394 = vmatprep.subr.bf16.mxu0 0
    %11395 = vmatpush1.bf16.xpose.msra.mxu0 0
    %11396 = vmatprep.subr.bf16.mxu0 0
    %11397 = vmatpush1.bf16.xpose.msra.mxu0 0
    %11398 = vmatprep.subr.bf16.mxu0 0
    %11399 = vmatpush1.bf16.xpose.msra.mxu0 0
    %11400 = vmatprep.subr.bf16.mxu0 0
    %11401 = vmatpush1.bf16.xpose.msra.mxu0 0
    %11402 = vmatprep.mubr.bf16.mxu0 %v512
    %11403 = vmatmul.mubr.bf16.gmra.mrb[0].mxu0 %v511
    %v11404 = vpop.f32.mrb[0].mxu0
    %v11405 = vadd.f32 %v11364, %v11404
    %v11406 = vpop.f32.mrb[0].mxu0
    %v11407 = vpop.f32.mrb[0].mxu0
    %v11408 = vadd.f32 %v11367, %v11407
    %v11409 = vpop.f32.mrb[0].mxu0
    %11410 = vdwg.mxu0
    %11411 = vmatprep.subr.bf16.mxu0 %v6989
    %11412 = vmatpush1.bf16.xpose.msra.mxu0 %v6988
    %11413 = vmatprep.subr.bf16.mxu0 %v7185
    %11414 = vmatpush1.bf16.xpose.msra.mxu0 %v7184
    %11415 = vmatprep.subr.bf16.mxu0 %v7381
    %11416 = vmatpush1.bf16.xpose.msra.mxu0 %v7380
    %11417 = vmatprep.subr.bf16.mxu0 %v7577
    %11418 = vmatpush1.bf16.xpose.msra.mxu0 %v7576
    %11419 = vmatprep.subr.bf16.mxu0 %v7773
    %11420 = vmatpush1.bf16.xpose.msra.mxu0 %v7772
    %11421 = vmatprep.subr.bf16.mxu0 %v7969
    %11422 = vmatpush1.bf16.xpose.msra.mxu0 %v7968
    %11423 = vmatprep.subr.bf16.mxu0 %v8165
    %11424 = vmatpush1.bf16.xpose.msra.mxu0 %v8164
    %11425 = vmatprep.subr.bf16.mxu0 %v8361
    %11426 = vmatpush1.bf16.xpose.msra.mxu0 %v8360
    %11427 = vmatprep.subr.bf16.mxu0 0
    %11428 = vmatpush1.bf16.xpose.msra.mxu0 0
    %11429 = vmatprep.subr.bf16.mxu0 0
    %11430 = vmatpush1.bf16.xpose.msra.mxu0 0
    %11431 = vmatprep.subr.bf16.mxu0 0
    %11432 = vmatpush1.bf16.xpose.msra.mxu0 0
    %11433 = vmatprep.subr.bf16.mxu0 0
    %11434 = vmatpush1.bf16.xpose.msra.mxu0 0
    %11435 = vmatprep.subr.bf16.mxu0 0
    %11436 = vmatpush1.bf16.xpose.msra.mxu0 0
    %11437 = vmatprep.subr.bf16.mxu0 0
    %11438 = vmatpush1.bf16.xpose.msra.mxu0 0
    %11439 = vmatprep.subr.bf16.mxu0 0
    %11440 = vmatpush1.bf16.xpose.msra.mxu0 0
    %11441 = vmatprep.subr.bf16.mxu0 0
    %11442 = vmatpush1.bf16.xpose.msra.mxu0 0
    %11443 = vmatprep.mubr.bf16.mxu0 %v514
    %11444 = vmatmul.mubr.bf16.gmra.mrb[0].mxu0 %v513
    %v11445 = vpop.f32.mrb[0].mxu0
    %v11446 = vadd.f32 %v11405, %v11445
    %v11447 = vpop.f32.mrb[0].mxu0
    %v11448 = vpop.f32.mrb[0].mxu0
    %v11449 = vadd.f32 %v11408, %v11448
    %v11450 = vpop.f32.mrb[0].mxu0
    %11451 = vdwg.mxu0
    %11452 = vmatprep.subr.bf16.mxu0 %v6991
    %11453 = vmatpush1.bf16.xpose.msra.mxu0 %v6990
    %11454 = vmatprep.subr.bf16.mxu0 %v7187
    %11455 = vmatpush1.bf16.xpose.msra.mxu0 %v7186
    %11456 = vmatprep.subr.bf16.mxu0 %v7383
    %11457 = vmatpush1.bf16.xpose.msra.mxu0 %v7382
    %11458 = vmatprep.subr.bf16.mxu0 %v7579
    %11459 = vmatpush1.bf16.xpose.msra.mxu0 %v7578
    %11460 = vmatprep.subr.bf16.mxu0 %v7775
    %11461 = vmatpush1.bf16.xpose.msra.mxu0 %v7774
    %11462 = vmatprep.subr.bf16.mxu0 %v7971
    %11463 = vmatpush1.bf16.xpose.msra.mxu0 %v7970
    %11464 = vmatprep.subr.bf16.mxu0 %v8167
    %11465 = vmatpush1.bf16.xpose.msra.mxu0 %v8166
    %11466 = vmatprep.subr.bf16.mxu0 %v8363
    %11467 = vmatpush1.bf16.xpose.msra.mxu0 %v8362
    %11468 = vmatprep.subr.bf16.mxu0 0
    %11469 = vmatpush1.bf16.xpose.msra.mxu0 0
    %11470 = vmatprep.subr.bf16.mxu0 0
    %11471 = vmatpush1.bf16.xpose.msra.mxu0 0
    %11472 = vmatprep.subr.bf16.mxu0 0
    %11473 = vmatpush1.bf16.xpose.msra.mxu0 0
    %11474 = vmatprep.subr.bf16.mxu0 0
    %11475 = vmatpush1.bf16.xpose.msra.mxu0 0
    %11476 = vmatprep.subr.bf16.mxu0 0
    %11477 = vmatpush1.bf16.xpose.msra.mxu0 0
    %11478 = vmatprep.subr.bf16.mxu0 0
    %11479 = vmatpush1.bf16.xpose.msra.mxu0 0
    %11480 = vmatprep.subr.bf16.mxu0 0
    %11481 = vmatpush1.bf16.xpose.msra.mxu0 0
    %11482 = vmatprep.subr.bf16.mxu0 0
    %11483 = vmatpush1.bf16.xpose.msra.mxu0 0
    %11484 = vmatprep.mubr.bf16.mxu0 %v516
    %11485 = vmatmul.mubr.bf16.gmra.mrb[0].mxu0 %v515
    %v11486 = vpop.f32.mrb[0].mxu0
    %v11487 = vadd.f32 %v11446, %v11486
    %v11488 = vpop.f32.mrb[0].mxu0
    %v11489 = vpop.f32.mrb[0].mxu0
    %v11490 = vadd.f32 %v11449, %v11489
    %v11491 = vpop.f32.mrb[0].mxu0
    %11492 = vdwg.mxu0
    %11493 = vmatprep.subr.bf16.mxu0 %v6993
    %11494 = vmatpush1.bf16.xpose.msra.mxu0 %v6992
    %11495 = vmatprep.subr.bf16.mxu0 %v7189
    %11496 = vmatpush1.bf16.xpose.msra.mxu0 %v7188
    %11497 = vmatprep.subr.bf16.mxu0 %v7385
    %11498 = vmatpush1.bf16.xpose.msra.mxu0 %v7384
    %11499 = vmatprep.subr.bf16.mxu0 %v7581
    %11500 = vmatpush1.bf16.xpose.msra.mxu0 %v7580
    %11501 = vmatprep.subr.bf16.mxu0 %v7777
    %11502 = vmatpush1.bf16.xpose.msra.mxu0 %v7776
    %11503 = vmatprep.subr.bf16.mxu0 %v7973
    %11504 = vmatpush1.bf16.xpose.msra.mxu0 %v7972
    %11505 = vmatprep.subr.bf16.mxu0 %v8169
    %11506 = vmatpush1.bf16.xpose.msra.mxu0 %v8168
    %11507 = vmatprep.subr.bf16.mxu0 %v8365
    %11508 = vmatpush1.bf16.xpose.msra.mxu0 %v8364
    %11509 = vmatprep.subr.bf16.mxu0 0
    %11510 = vmatpush1.bf16.xpose.msra.mxu0 0
    %11511 = vmatprep.subr.bf16.mxu0 0
    %11512 = vmatpush1.bf16.xpose.msra.mxu0 0
    %11513 = vmatprep.subr.bf16.mxu0 0
    %11514 = vmatpush1.bf16.xpose.msra.mxu0 0
    %11515 = vmatprep.subr.bf16.mxu0 0
    %11516 = vmatpush1.bf16.xpose.msra.mxu0 0
    %11517 = vmatprep.subr.bf16.mxu0 0
    %11518 = vmatpush1.bf16.xpose.msra.mxu0 0
    %11519 = vmatprep.subr.bf16.mxu0 0
    %11520 = vmatpush1.bf16.xpose.msra.mxu0 0
    %11521 = vmatprep.subr.bf16.mxu0 0
    %11522 = vmatpush1.bf16.xpose.msra.mxu0 0
    %11523 = vmatprep.subr.bf16.mxu0 0
    %11524 = vmatpush1.bf16.xpose.msra.mxu0 0
    %11525 = vmatprep.mubr.bf16.mxu0 %v518
    %11526 = vmatmul.mubr.bf16.gmra.mrb[0].mxu0 %v517
    %v11527 = vpop.f32.mrb[0].mxu0
    %v11528 = vadd.f32 %v11487, %v11527
    %v11529 = vpop.f32.mrb[0].mxu0
    %v11530 = vpop.f32.mrb[0].mxu0
    %v11531 = vadd.f32 %v11490, %v11530
    %v11532 = vpop.f32.mrb[0].mxu0
    %11533 = vdwg.mxu0
    %11534 = vmatprep.subr.bf16.mxu0 %v6995
    %11535 = vmatpush1.bf16.xpose.msra.mxu0 %v6994
    %11536 = vmatprep.subr.bf16.mxu0 %v7191
    %11537 = vmatpush1.bf16.xpose.msra.mxu0 %v7190
    %11538 = vmatprep.subr.bf16.mxu0 %v7387
    %11539 = vmatpush1.bf16.xpose.msra.mxu0 %v7386
    %11540 = vmatprep.subr.bf16.mxu0 %v7583
    %11541 = vmatpush1.bf16.xpose.msra.mxu0 %v7582
    %11542 = vmatprep.subr.bf16.mxu0 %v7779
    %11543 = vmatpush1.bf16.xpose.msra.mxu0 %v7778
    %11544 = vmatprep.subr.bf16.mxu0 %v7975
    %11545 = vmatpush1.bf16.xpose.msra.mxu0 %v7974
    %11546 = vmatprep.subr.bf16.mxu0 %v8171
    %11547 = vmatpush1.bf16.xpose.msra.mxu0 %v8170
    %11548 = vmatprep.subr.bf16.mxu0 %v8367
    %11549 = vmatpush1.bf16.xpose.msra.mxu0 %v8366
    %11550 = vmatprep.subr.bf16.mxu0 0
    %11551 = vmatpush1.bf16.xpose.msra.mxu0 0
    %11552 = vmatprep.subr.bf16.mxu0 0
    %11553 = vmatpush1.bf16.xpose.msra.mxu0 0
    %11554 = vmatprep.subr.bf16.mxu0 0
    %11555 = vmatpush1.bf16.xpose.msra.mxu0 0
    %11556 = vmatprep.subr.bf16.mxu0 0
    %11557 = vmatpush1.bf16.xpose.msra.mxu0 0
    %11558 = vmatprep.subr.bf16.mxu0 0
    %11559 = vmatpush1.bf16.xpose.msra.mxu0 0
    %11560 = vmatprep.subr.bf16.mxu0 0
    %11561 = vmatpush1.bf16.xpose.msra.mxu0 0
    %11562 = vmatprep.subr.bf16.mxu0 0
    %11563 = vmatpush1.bf16.xpose.msra.mxu0 0
    %11564 = vmatprep.subr.bf16.mxu0 0
    %11565 = vmatpush1.bf16.xpose.msra.mxu0 0
    %11566 = vmatprep.mubr.bf16.mxu0 %v520
    %11567 = vmatmul.mubr.bf16.gmra.mrb[0].mxu0 %v519
    %v11568 = vpop.f32.mrb[0].mxu0
    %v11569 = vadd.f32 %v11528, %v11568
    %v11570 = vpop.f32.mrb[0].mxu0
    %v11571 = vpop.f32.mrb[0].mxu0
    %v11572 = vadd.f32 %v11531, %v11571
    %v11573 = vpop.f32.mrb[0].mxu0
    %11574 = vdwg.mxu0
    %11575 = vmatprep.subr.bf16.mxu0 %v6997
    %11576 = vmatpush1.bf16.xpose.msra.mxu0 %v6996
    %11577 = vmatprep.subr.bf16.mxu0 %v7193
    %11578 = vmatpush1.bf16.xpose.msra.mxu0 %v7192
    %11579 = vmatprep.subr.bf16.mxu0 %v7389
    %11580 = vmatpush1.bf16.xpose.msra.mxu0 %v7388
    %11581 = vmatprep.subr.bf16.mxu0 %v7585
    %11582 = vmatpush1.bf16.xpose.msra.mxu0 %v7584
    %11583 = vmatprep.subr.bf16.mxu0 %v7781
    %11584 = vmatpush1.bf16.xpose.msra.mxu0 %v7780
    %11585 = vmatprep.subr.bf16.mxu0 %v7977
    %11586 = vmatpush1.bf16.xpose.msra.mxu0 %v7976
    %11587 = vmatprep.subr.bf16.mxu0 %v8173
    %11588 = vmatpush1.bf16.xpose.msra.mxu0 %v8172
    %11589 = vmatprep.subr.bf16.mxu0 %v8369
    %11590 = vmatpush1.bf16.xpose.msra.mxu0 %v8368
    %11591 = vmatprep.subr.bf16.mxu0 0
    %11592 = vmatpush1.bf16.xpose.msra.mxu0 0
    %11593 = vmatprep.subr.bf16.mxu0 0
    %11594 = vmatpush1.bf16.xpose.msra.mxu0 0
    %11595 = vmatprep.subr.bf16.mxu0 0
    %11596 = vmatpush1.bf16.xpose.msra.mxu0 0
    %11597 = vmatprep.subr.bf16.mxu0 0
    %11598 = vmatpush1.bf16.xpose.msra.mxu0 0
    %11599 = vmatprep.subr.bf16.mxu0 0
    %11600 = vmatpush1.bf16.xpose.msra.mxu0 0
    %11601 = vmatprep.subr.bf16.mxu0 0
    %11602 = vmatpush1.bf16.xpose.msra.mxu0 0
    %11603 = vmatprep.subr.bf16.mxu0 0
    %11604 = vmatpush1.bf16.xpose.msra.mxu0 0
    %11605 = vmatprep.subr.bf16.mxu0 0
    %11606 = vmatpush1.bf16.xpose.msra.mxu0 0
    %11607 = vmatprep.mubr.bf16.mxu0 %v522
    %11608 = vmatmul.mubr.bf16.gmra.mrb[0].mxu0 %v521
    %v11609 = vpop.f32.mrb[0].mxu0
    %v11610 = vadd.f32 %v11569, %v11609
    %v11611 = vpop.f32.mrb[0].mxu0
    %v11612 = vpop.f32.mrb[0].mxu0
    %v11613 = vadd.f32 %v11572, %v11612
    %v11614 = vpop.f32.mrb[0].mxu0
    %11615 = vdwg.mxu0
    %11616 = vmatprep.subr.bf16.mxu0 %v6999
    %11617 = vmatpush1.bf16.xpose.msra.mxu0 %v6998
    %11618 = vmatprep.subr.bf16.mxu0 %v7195
    %11619 = vmatpush1.bf16.xpose.msra.mxu0 %v7194
    %11620 = vmatprep.subr.bf16.mxu0 %v7391
    %11621 = vmatpush1.bf16.xpose.msra.mxu0 %v7390
    %11622 = vmatprep.subr.bf16.mxu0 %v7587
    %11623 = vmatpush1.bf16.xpose.msra.mxu0 %v7586
    %11624 = vmatprep.subr.bf16.mxu0 %v7783
    %11625 = vmatpush1.bf16.xpose.msra.mxu0 %v7782
    %11626 = vmatprep.subr.bf16.mxu0 %v7979
    %11627 = vmatpush1.bf16.xpose.msra.mxu0 %v7978
    %11628 = vmatprep.subr.bf16.mxu0 %v8175
    %11629 = vmatpush1.bf16.xpose.msra.mxu0 %v8174
    %11630 = vmatprep.subr.bf16.mxu0 %v8371
    %11631 = vmatpush1.bf16.xpose.msra.mxu0 %v8370
    %11632 = vmatprep.subr.bf16.mxu0 0
    %11633 = vmatpush1.bf16.xpose.msra.mxu0 0
    %11634 = vmatprep.subr.bf16.mxu0 0
    %11635 = vmatpush1.bf16.xpose.msra.mxu0 0
    %11636 = vmatprep.subr.bf16.mxu0 0
    %11637 = vmatpush1.bf16.xpose.msra.mxu0 0
    %11638 = vmatprep.subr.bf16.mxu0 0
    %11639 = vmatpush1.bf16.xpose.msra.mxu0 0
    %11640 = vmatprep.subr.bf16.mxu0 0
    %11641 = vmatpush1.bf16.xpose.msra.mxu0 0
    %11642 = vmatprep.subr.bf16.mxu0 0
    %11643 = vmatpush1.bf16.xpose.msra.mxu0 0
    %11644 = vmatprep.subr.bf16.mxu0 0
    %11645 = vmatpush1.bf16.xpose.msra.mxu0 0
    %11646 = vmatprep.subr.bf16.mxu0 0
    %11647 = vmatpush1.bf16.xpose.msra.mxu0 0
    %11648 = vmatprep.mubr.bf16.mxu0 %v524
    %11649 = vmatmul.mubr.bf16.gmra.mrb[0].mxu0 %v523
    %v11650 = vpop.f32.mrb[0].mxu0
    %v11651 = vadd.f32 %v11610, %v11650
    %v11652 = vpop.f32.mrb[0].mxu0
    %v11653 = vpop.f32.mrb[0].mxu0
    %v11654 = vadd.f32 %v11613, %v11653
    %v11655 = vpop.f32.mrb[0].mxu0
    %11656 = vdwg.mxu0
    %11657 = vmatprep.subr.bf16.mxu0 %v7001
    %11658 = vmatpush1.bf16.xpose.msra.mxu0 %v7000
    %11659 = vmatprep.subr.bf16.mxu0 %v7197
    %11660 = vmatpush1.bf16.xpose.msra.mxu0 %v7196
    %11661 = vmatprep.subr.bf16.mxu0 %v7393
    %11662 = vmatpush1.bf16.xpose.msra.mxu0 %v7392
    %11663 = vmatprep.subr.bf16.mxu0 %v7589
    %11664 = vmatpush1.bf16.xpose.msra.mxu0 %v7588
    %11665 = vmatprep.subr.bf16.mxu0 %v7785
    %11666 = vmatpush1.bf16.xpose.msra.mxu0 %v7784
    %11667 = vmatprep.subr.bf16.mxu0 %v7981
    %11668 = vmatpush1.bf16.xpose.msra.mxu0 %v7980
    %11669 = vmatprep.subr.bf16.mxu0 %v8177
    %11670 = vmatpush1.bf16.xpose.msra.mxu0 %v8176
    %11671 = vmatprep.subr.bf16.mxu0 %v8373
    %11672 = vmatpush1.bf16.xpose.msra.mxu0 %v8372
    %11673 = vmatprep.subr.bf16.mxu0 0
    %11674 = vmatpush1.bf16.xpose.msra.mxu0 0
    %11675 = vmatprep.subr.bf16.mxu0 0
    %11676 = vmatpush1.bf16.xpose.msra.mxu0 0
    %11677 = vmatprep.subr.bf16.mxu0 0
    %11678 = vmatpush1.bf16.xpose.msra.mxu0 0
    %11679 = vmatprep.subr.bf16.mxu0 0
    %11680 = vmatpush1.bf16.xpose.msra.mxu0 0
    %11681 = vmatprep.subr.bf16.mxu0 0
    %11682 = vmatpush1.bf16.xpose.msra.mxu0 0
    %11683 = vmatprep.subr.bf16.mxu0 0
    %11684 = vmatpush1.bf16.xpose.msra.mxu0 0
    %11685 = vmatprep.subr.bf16.mxu0 0
    %11686 = vmatpush1.bf16.xpose.msra.mxu0 0
    %11687 = vmatprep.subr.bf16.mxu0 0
    %11688 = vmatpush1.bf16.xpose.msra.mxu0 0
    %11689 = vmatprep.mubr.bf16.mxu0 %v526
    %11690 = vmatmul.mubr.bf16.gmra.mrb[0].mxu0 %v525
    %v11691 = vpop.f32.mrb[0].mxu0
    %v11692 = vadd.f32 %v11651, %v11691
    %v11693 = vpop.f32.mrb[0].mxu0
    %v11694 = vpop.f32.mrb[0].mxu0
    %v11695 = vadd.f32 %v11654, %v11694
    %v11696 = vpop.f32.mrb[0].mxu0
    %11697 = vdwg.mxu0
    %11698 = vmatprep.subr.bf16.mxu0 %v7003
    %11699 = vmatpush1.bf16.xpose.msra.mxu0 %v7002
    %11700 = vmatprep.subr.bf16.mxu0 %v7199
    %11701 = vmatpush1.bf16.xpose.msra.mxu0 %v7198
    %11702 = vmatprep.subr.bf16.mxu0 %v7395
    %11703 = vmatpush1.bf16.xpose.msra.mxu0 %v7394
    %11704 = vmatprep.subr.bf16.mxu0 %v7591
    %11705 = vmatpush1.bf16.xpose.msra.mxu0 %v7590
    %11706 = vmatprep.subr.bf16.mxu0 %v7787
    %11707 = vmatpush1.bf16.xpose.msra.mxu0 %v7786
    %11708 = vmatprep.subr.bf16.mxu0 %v7983
    %11709 = vmatpush1.bf16.xpose.msra.mxu0 %v7982
    %11710 = vmatprep.subr.bf16.mxu0 %v8179
    %11711 = vmatpush1.bf16.xpose.msra.mxu0 %v8178
    %11712 = vmatprep.subr.bf16.mxu0 %v8375
    %11713 = vmatpush1.bf16.xpose.msra.mxu0 %v8374
    %11714 = vmatprep.subr.bf16.mxu0 0
    %11715 = vmatpush1.bf16.xpose.msra.mxu0 0
    %11716 = vmatprep.subr.bf16.mxu0 0
    %11717 = vmatpush1.bf16.xpose.msra.mxu0 0
    %11718 = vmatprep.subr.bf16.mxu0 0
    %11719 = vmatpush1.bf16.xpose.msra.mxu0 0
    %11720 = vmatprep.subr.bf16.mxu0 0
    %11721 = vmatpush1.bf16.xpose.msra.mxu0 0
    %11722 = vmatprep.subr.bf16.mxu0 0
    %11723 = vmatpush1.bf16.xpose.msra.mxu0 0
    %11724 = vmatprep.subr.bf16.mxu0 0
    %11725 = vmatpush1.bf16.xpose.msra.mxu0 0
    %11726 = vmatprep.subr.bf16.mxu0 0
    %11727 = vmatpush1.bf16.xpose.msra.mxu0 0
    %11728 = vmatprep.subr.bf16.mxu0 0
    %11729 = vmatpush1.bf16.xpose.msra.mxu0 0
    %11730 = vmatprep.mubr.bf16.mxu0 %v528
    %11731 = vmatmul.mubr.bf16.gmra.mrb[0].mxu0 %v527
    %v11732 = vpop.f32.mrb[0].mxu0
    %v11733 = vadd.f32 %v11692, %v11732
    %v11734 = vpop.f32.mrb[0].mxu0
    %v11735 = vpop.f32.mrb[0].mxu0
    %v11736 = vadd.f32 %v11695, %v11735
    %v11737 = vpop.f32.mrb[0].mxu0
    %11738 = vdwg.mxu0
    %11739 = vmatprep.subr.bf16.mxu0 %v7005
    %11740 = vmatpush1.bf16.xpose.msra.mxu0 %v7004
    %11741 = vmatprep.subr.bf16.mxu0 %v7201
    %11742 = vmatpush1.bf16.xpose.msra.mxu0 %v7200
    %11743 = vmatprep.subr.bf16.mxu0 %v7397
    %11744 = vmatpush1.bf16.xpose.msra.mxu0 %v7396
    %11745 = vmatprep.subr.bf16.mxu0 %v7593
    %11746 = vmatpush1.bf16.xpose.msra.mxu0 %v7592
    %11747 = vmatprep.subr.bf16.mxu0 %v7789
    %11748 = vmatpush1.bf16.xpose.msra.mxu0 %v7788
    %11749 = vmatprep.subr.bf16.mxu0 %v7985
    %11750 = vmatpush1.bf16.xpose.msra.mxu0 %v7984
    %11751 = vmatprep.subr.bf16.mxu0 %v8181
    %11752 = vmatpush1.bf16.xpose.msra.mxu0 %v8180
    %11753 = vmatprep.subr.bf16.mxu0 %v8377
    %11754 = vmatpush1.bf16.xpose.msra.mxu0 %v8376
    %11755 = vmatprep.subr.bf16.mxu0 0
    %11756 = vmatpush1.bf16.xpose.msra.mxu0 0
    %11757 = vmatprep.subr.bf16.mxu0 0
    %11758 = vmatpush1.bf16.xpose.msra.mxu0 0
    %11759 = vmatprep.subr.bf16.mxu0 0
    %11760 = vmatpush1.bf16.xpose.msra.mxu0 0
    %11761 = vmatprep.subr.bf16.mxu0 0
    %11762 = vmatpush1.bf16.xpose.msra.mxu0 0
    %11763 = vmatprep.subr.bf16.mxu0 0
    %11764 = vmatpush1.bf16.xpose.msra.mxu0 0
    %11765 = vmatprep.subr.bf16.mxu0 0
    %11766 = vmatpush1.bf16.xpose.msra.mxu0 0
    %11767 = vmatprep.subr.bf16.mxu0 0
    %11768 = vmatpush1.bf16.xpose.msra.mxu0 0
    %11769 = vmatprep.subr.bf16.mxu0 0
    %11770 = vmatpush1.bf16.xpose.msra.mxu0 0
    %11771 = vmatprep.mubr.bf16.mxu0 %v530
    %11772 = vmatmul.mubr.bf16.gmra.mrb[0].mxu0 %v529
    %v11773 = vpop.f32.mrb[0].mxu0
    %v11774 = vadd.f32 %v11733, %v11773
    %v11775 = vpop.f32.mrb[0].mxu0
    %v11776 = vpop.f32.mrb[0].mxu0
    %v11777 = vadd.f32 %v11736, %v11776
    %v11778 = vpop.f32.mrb[0].mxu0
    %11779 = vdwg.mxu0
    %11780 = vmatprep.subr.bf16.mxu0 %v7007
    %11781 = vmatpush1.bf16.xpose.msra.mxu0 %v7006
    %11782 = vmatprep.subr.bf16.mxu0 %v7203
    %11783 = vmatpush1.bf16.xpose.msra.mxu0 %v7202
    %11784 = vmatprep.subr.bf16.mxu0 %v7399
    %11785 = vmatpush1.bf16.xpose.msra.mxu0 %v7398
    %11786 = vmatprep.subr.bf16.mxu0 %v7595
    %11787 = vmatpush1.bf16.xpose.msra.mxu0 %v7594
    %11788 = vmatprep.subr.bf16.mxu0 %v7791
    %11789 = vmatpush1.bf16.xpose.msra.mxu0 %v7790
    %11790 = vmatprep.subr.bf16.mxu0 %v7987
    %11791 = vmatpush1.bf16.xpose.msra.mxu0 %v7986
    %11792 = vmatprep.subr.bf16.mxu0 %v8183
    %11793 = vmatpush1.bf16.xpose.msra.mxu0 %v8182
    %11794 = vmatprep.subr.bf16.mxu0 %v8379
    %11795 = vmatpush1.bf16.xpose.msra.mxu0 %v8378
    %11796 = vmatprep.subr.bf16.mxu0 0
    %11797 = vmatpush1.bf16.xpose.msra.mxu0 0
    %11798 = vmatprep.subr.bf16.mxu0 0
    %11799 = vmatpush1.bf16.xpose.msra.mxu0 0
    %11800 = vmatprep.subr.bf16.mxu0 0
    %11801 = vmatpush1.bf16.xpose.msra.mxu0 0
    %11802 = vmatprep.subr.bf16.mxu0 0
    %11803 = vmatpush1.bf16.xpose.msra.mxu0 0
    %11804 = vmatprep.subr.bf16.mxu0 0
    %11805 = vmatpush1.bf16.xpose.msra.mxu0 0
    %11806 = vmatprep.subr.bf16.mxu0 0
    %11807 = vmatpush1.bf16.xpose.msra.mxu0 0
    %11808 = vmatprep.subr.bf16.mxu0 0
    %11809 = vmatpush1.bf16.xpose.msra.mxu0 0
    %11810 = vmatprep.subr.bf16.mxu0 0
    %11811 = vmatpush1.bf16.xpose.msra.mxu0 0
    %11812 = vmatprep.mubr.bf16.mxu0 %v532
    %11813 = vmatmul.mubr.bf16.gmra.mrb[0].mxu0 %v531
    %v11814 = vpop.f32.mrb[0].mxu0
    %v11815 = vadd.f32 %v11774, %v11814
    %v11816 = vpop.f32.mrb[0].mxu0
    %v11817 = vpop.f32.mrb[0].mxu0
    %v11818 = vadd.f32 %v11777, %v11817
    %v11819 = vpop.f32.mrb[0].mxu0
    %11820 = vdwg.mxu0
    %11821 = vmatprep.subr.bf16.mxu0 %v7009
    %11822 = vmatpush1.bf16.xpose.msra.mxu0 %v7008
    %11823 = vmatprep.subr.bf16.mxu0 %v7205
    %11824 = vmatpush1.bf16.xpose.msra.mxu0 %v7204
    %11825 = vmatprep.subr.bf16.mxu0 %v7401
    %11826 = vmatpush1.bf16.xpose.msra.mxu0 %v7400
    %11827 = vmatprep.subr.bf16.mxu0 %v7597
    %11828 = vmatpush1.bf16.xpose.msra.mxu0 %v7596
    %11829 = vmatprep.subr.bf16.mxu0 %v7793
    %11830 = vmatpush1.bf16.xpose.msra.mxu0 %v7792
    %11831 = vmatprep.subr.bf16.mxu0 %v7989
    %11832 = vmatpush1.bf16.xpose.msra.mxu0 %v7988
    %11833 = vmatprep.subr.bf16.mxu0 %v8185
    %11834 = vmatpush1.bf16.xpose.msra.mxu0 %v8184
    %11835 = vmatprep.subr.bf16.mxu0 %v8381
    %11836 = vmatpush1.bf16.xpose.msra.mxu0 %v8380
    %11837 = vmatprep.subr.bf16.mxu0 0
    %11838 = vmatpush1.bf16.xpose.msra.mxu0 0
    %11839 = vmatprep.subr.bf16.mxu0 0
    %11840 = vmatpush1.bf16.xpose.msra.mxu0 0
    %11841 = vmatprep.subr.bf16.mxu0 0
    %11842 = vmatpush1.bf16.xpose.msra.mxu0 0
    %11843 = vmatprep.subr.bf16.mxu0 0
    %11844 = vmatpush1.bf16.xpose.msra.mxu0 0
    %11845 = vmatprep.subr.bf16.mxu0 0
    %11846 = vmatpush1.bf16.xpose.msra.mxu0 0
    %11847 = vmatprep.subr.bf16.mxu0 0
    %11848 = vmatpush1.bf16.xpose.msra.mxu0 0
    %11849 = vmatprep.subr.bf16.mxu0 0
    %11850 = vmatpush1.bf16.xpose.msra.mxu0 0
    %11851 = vmatprep.subr.bf16.mxu0 0
    %11852 = vmatpush1.bf16.xpose.msra.mxu0 0
    %11853 = vmatprep.mubr.bf16.mxu0 %v534
    %11854 = vmatmul.mubr.bf16.gmra.mrb[0].mxu0 %v533
    %v11855 = vpop.f32.mrb[0].mxu0
    %v11856 = vadd.f32 %v11815, %v11855
    %v11857 = vpop.f32.mrb[0].mxu0
    %v11858 = vpop.f32.mrb[0].mxu0
    %v11859 = vadd.f32 %v11818, %v11858
    %v11860 = vpop.f32.mrb[0].mxu0
    %11861 = vdwg.mxu0
    %11862 = vmatprep.subr.bf16.mxu0 %v7011
    %11863 = vmatpush1.bf16.xpose.msra.mxu0 %v7010
    %11864 = vmatprep.subr.bf16.mxu0 %v7207
    %11865 = vmatpush1.bf16.xpose.msra.mxu0 %v7206
    %11866 = vmatprep.subr.bf16.mxu0 %v7403
    %11867 = vmatpush1.bf16.xpose.msra.mxu0 %v7402
    %11868 = vmatprep.subr.bf16.mxu0 %v7599
    %11869 = vmatpush1.bf16.xpose.msra.mxu0 %v7598
    %11870 = vmatprep.subr.bf16.mxu0 %v7795
    %11871 = vmatpush1.bf16.xpose.msra.mxu0 %v7794
    %11872 = vmatprep.subr.bf16.mxu0 %v7991
    %11873 = vmatpush1.bf16.xpose.msra.mxu0 %v7990
    %11874 = vmatprep.subr.bf16.mxu0 %v8187
    %11875 = vmatpush1.bf16.xpose.msra.mxu0 %v8186
    %11876 = vmatprep.subr.bf16.mxu0 %v8383
    %11877 = vmatpush1.bf16.xpose.msra.mxu0 %v8382
    %11878 = vmatprep.subr.bf16.mxu0 0
    %11879 = vmatpush1.bf16.xpose.msra.mxu0 0
    %11880 = vmatprep.subr.bf16.mxu0 0
    %11881 = vmatpush1.bf16.xpose.msra.mxu0 0
    %11882 = vmatprep.subr.bf16.mxu0 0
    %11883 = vmatpush1.bf16.xpose.msra.mxu0 0
    %11884 = vmatprep.subr.bf16.mxu0 0
    %11885 = vmatpush1.bf16.xpose.msra.mxu0 0
    %11886 = vmatprep.subr.bf16.mxu0 0
    %11887 = vmatpush1.bf16.xpose.msra.mxu0 0
    %11888 = vmatprep.subr.bf16.mxu0 0
    %11889 = vmatpush1.bf16.xpose.msra.mxu0 0
    %11890 = vmatprep.subr.bf16.mxu0 0
    %11891 = vmatpush1.bf16.xpose.msra.mxu0 0
    %11892 = vmatprep.subr.bf16.mxu0 0
    %11893 = vmatpush1.bf16.xpose.msra.mxu0 0
    %11894 = vmatprep.mubr.bf16.mxu0 %v536
    %11895 = vmatmul.mubr.bf16.gmra.mrb[0].mxu0 %v535
    %v11896 = vpop.f32.mrb[0].mxu0
    %v11897 = vadd.f32 %v11856, %v11896
    %v11898 = vpop.f32.mrb[0].mxu0
    %v11899 = vpop.f32.mrb[0].mxu0
    %v11900 = vadd.f32 %v11859, %v11899
    %v11901 = vpop.f32.mrb[0].mxu0
    %11902 = vdwg.mxu0
    %11903 = vmatprep.subr.bf16.mxu0 %v7013
    %11904 = vmatpush1.bf16.xpose.msra.mxu0 %v7012
    %11905 = vmatprep.subr.bf16.mxu0 %v7209
    %11906 = vmatpush1.bf16.xpose.msra.mxu0 %v7208
    %11907 = vmatprep.subr.bf16.mxu0 %v7405
    %11908 = vmatpush1.bf16.xpose.msra.mxu0 %v7404
    %11909 = vmatprep.subr.bf16.mxu0 %v7601
    %11910 = vmatpush1.bf16.xpose.msra.mxu0 %v7600
    %11911 = vmatprep.subr.bf16.mxu0 %v7797
    %11912 = vmatpush1.bf16.xpose.msra.mxu0 %v7796
    %11913 = vmatprep.subr.bf16.mxu0 %v7993
    %11914 = vmatpush1.bf16.xpose.msra.mxu0 %v7992
    %11915 = vmatprep.subr.bf16.mxu0 %v8189
    %11916 = vmatpush1.bf16.xpose.msra.mxu0 %v8188
    %11917 = vmatprep.subr.bf16.mxu0 %v8385
    %11918 = vmatpush1.bf16.xpose.msra.mxu0 %v8384
    %11919 = vmatprep.subr.bf16.mxu0 0
    %11920 = vmatpush1.bf16.xpose.msra.mxu0 0
    %11921 = vmatprep.subr.bf16.mxu0 0
    %11922 = vmatpush1.bf16.xpose.msra.mxu0 0
    %11923 = vmatprep.subr.bf16.mxu0 0
    %11924 = vmatpush1.bf16.xpose.msra.mxu0 0
    %11925 = vmatprep.subr.bf16.mxu0 0
    %11926 = vmatpush1.bf16.xpose.msra.mxu0 0
    %11927 = vmatprep.subr.bf16.mxu0 0
    %11928 = vmatpush1.bf16.xpose.msra.mxu0 0
    %11929 = vmatprep.subr.bf16.mxu0 0
    %11930 = vmatpush1.bf16.xpose.msra.mxu0 0
    %11931 = vmatprep.subr.bf16.mxu0 0
    %11932 = vmatpush1.bf16.xpose.msra.mxu0 0
    %11933 = vmatprep.subr.bf16.mxu0 0
    %11934 = vmatpush1.bf16.xpose.msra.mxu0 0
    %11935 = vmatprep.mubr.bf16.mxu0 %v538
    %11936 = vmatmul.mubr.bf16.gmra.mrb[0].mxu0 %v537
    %v11937 = vpop.f32.mrb[0].mxu0
    %v11938 = vadd.f32 %v11897, %v11937
    %v11939 = vpop.f32.mrb[0].mxu0
    %v11940 = vpop.f32.mrb[0].mxu0
    %v11941 = vadd.f32 %v11900, %v11940
    %v11942 = vpop.f32.mrb[0].mxu0
    %11943 = vdwg.mxu0
    %11944 = vmatprep.subr.bf16.mxu0 %v7015
    %11945 = vmatpush1.bf16.xpose.msra.mxu0 %v7014
    %11946 = vmatprep.subr.bf16.mxu0 %v7211
    %11947 = vmatpush1.bf16.xpose.msra.mxu0 %v7210
    %11948 = vmatprep.subr.bf16.mxu0 %v7407
    %11949 = vmatpush1.bf16.xpose.msra.mxu0 %v7406
    %11950 = vmatprep.subr.bf16.mxu0 %v7603
    %11951 = vmatpush1.bf16.xpose.msra.mxu0 %v7602
    %11952 = vmatprep.subr.bf16.mxu0 %v7799
    %11953 = vmatpush1.bf16.xpose.msra.mxu0 %v7798
    %11954 = vmatprep.subr.bf16.mxu0 %v7995
    %11955 = vmatpush1.bf16.xpose.msra.mxu0 %v7994
    %11956 = vmatprep.subr.bf16.mxu0 %v8191
    %11957 = vmatpush1.bf16.xpose.msra.mxu0 %v8190
    %11958 = vmatprep.subr.bf16.mxu0 %v8387
    %11959 = vmatpush1.bf16.xpose.msra.mxu0 %v8386
    %11960 = vmatprep.subr.bf16.mxu0 0
    %11961 = vmatpush1.bf16.xpose.msra.mxu0 0
    %11962 = vmatprep.subr.bf16.mxu0 0
    %11963 = vmatpush1.bf16.xpose.msra.mxu0 0
    %11964 = vmatprep.subr.bf16.mxu0 0
    %11965 = vmatpush1.bf16.xpose.msra.mxu0 0
    %11966 = vmatprep.subr.bf16.mxu0 0
    %11967 = vmatpush1.bf16.xpose.msra.mxu0 0
    %11968 = vmatprep.subr.bf16.mxu0 0
    %11969 = vmatpush1.bf16.xpose.msra.mxu0 0
    %11970 = vmatprep.subr.bf16.mxu0 0
    %11971 = vmatpush1.bf16.xpose.msra.mxu0 0
    %11972 = vmatprep.subr.bf16.mxu0 0
    %11973 = vmatpush1.bf16.xpose.msra.mxu0 0
    %11974 = vmatprep.subr.bf16.mxu0 0
    %11975 = vmatpush1.bf16.xpose.msra.mxu0 0
    %11976 = vmatprep.mubr.bf16.mxu0 %v540
    %11977 = vmatmul.mubr.bf16.gmra.mrb[0].mxu0 %v539
    %v11978 = vpop.f32.mrb[0].mxu0
    %v11979 = vadd.f32 %v11938, %v11978
    %v11980 = vpop.f32.mrb[0].mxu0
    %v11981 = vpop.f32.mrb[0].mxu0
    %v11982 = vadd.f32 %v11941, %v11981
    %v11983 = vpop.f32.mrb[0].mxu0
    %11984 = vdwg.mxu0
    %11985 = vmatprep.subr.bf16.mxu0 %v7017
    %11986 = vmatpush1.bf16.xpose.msra.mxu0 %v7016
    %11987 = vmatprep.subr.bf16.mxu0 %v7213
    %11988 = vmatpush1.bf16.xpose.msra.mxu0 %v7212
    %11989 = vmatprep.subr.bf16.mxu0 %v7409
    %11990 = vmatpush1.bf16.xpose.msra.mxu0 %v7408
    %11991 = vmatprep.subr.bf16.mxu0 %v7605
    %11992 = vmatpush1.bf16.xpose.msra.mxu0 %v7604
    %11993 = vmatprep.subr.bf16.mxu0 %v7801
    %11994 = vmatpush1.bf16.xpose.msra.mxu0 %v7800
    %11995 = vmatprep.subr.bf16.mxu0 %v7997
    %11996 = vmatpush1.bf16.xpose.msra.mxu0 %v7996
    %11997 = vmatprep.subr.bf16.mxu0 %v8193
    %11998 = vmatpush1.bf16.xpose.msra.mxu0 %v8192
    %11999 = vmatprep.subr.bf16.mxu0 %v8389
    %12000 = vmatpush1.bf16.xpose.msra.mxu0 %v8388
    %12001 = vmatprep.subr.bf16.mxu0 0
    %12002 = vmatpush1.bf16.xpose.msra.mxu0 0
    %12003 = vmatprep.subr.bf16.mxu0 0
    %12004 = vmatpush1.bf16.xpose.msra.mxu0 0
    %12005 = vmatprep.subr.bf16.mxu0 0
    %12006 = vmatpush1.bf16.xpose.msra.mxu0 0
    %12007 = vmatprep.subr.bf16.mxu0 0
    %12008 = vmatpush1.bf16.xpose.msra.mxu0 0
    %12009 = vmatprep.subr.bf16.mxu0 0
    %12010 = vmatpush1.bf16.xpose.msra.mxu0 0
    %12011 = vmatprep.subr.bf16.mxu0 0
    %12012 = vmatpush1.bf16.xpose.msra.mxu0 0
    %12013 = vmatprep.subr.bf16.mxu0 0
    %12014 = vmatpush1.bf16.xpose.msra.mxu0 0
    %12015 = vmatprep.subr.bf16.mxu0 0
    %12016 = vmatpush1.bf16.xpose.msra.mxu0 0
    %12017 = vmatprep.mubr.bf16.mxu0 %v542
    %12018 = vmatmul.mubr.bf16.gmra.mrb[0].mxu0 %v541
    %v12019 = vpop.f32.mrb[0].mxu0
    %v12020 = vadd.f32 %v11979, %v12019
    %v12021 = vpop.f32.mrb[0].mxu0
    %v12022 = vpop.f32.mrb[0].mxu0
    %v12023 = vadd.f32 %v11982, %v12022
    %v12024 = vpop.f32.mrb[0].mxu0
    %12025 = vdwg.mxu0
    %12026 = vmatprep.subr.bf16.mxu0 %v7019
    %12027 = vmatpush1.bf16.xpose.msra.mxu0 %v7018
    %12028 = vmatprep.subr.bf16.mxu0 %v7215
    %12029 = vmatpush1.bf16.xpose.msra.mxu0 %v7214
    %12030 = vmatprep.subr.bf16.mxu0 %v7411
    %12031 = vmatpush1.bf16.xpose.msra.mxu0 %v7410
    %12032 = vmatprep.subr.bf16.mxu0 %v7607
    %12033 = vmatpush1.bf16.xpose.msra.mxu0 %v7606
    %12034 = vmatprep.subr.bf16.mxu0 %v7803
    %12035 = vmatpush1.bf16.xpose.msra.mxu0 %v7802
    %12036 = vmatprep.subr.bf16.mxu0 %v7999
    %12037 = vmatpush1.bf16.xpose.msra.mxu0 %v7998
    %12038 = vmatprep.subr.bf16.mxu0 %v8195
    %12039 = vmatpush1.bf16.xpose.msra.mxu0 %v8194
    %12040 = vmatprep.subr.bf16.mxu0 %v8391
    %12041 = vmatpush1.bf16.xpose.msra.mxu0 %v8390
    %12042 = vmatprep.subr.bf16.mxu0 0
    %12043 = vmatpush1.bf16.xpose.msra.mxu0 0
    %12044 = vmatprep.subr.bf16.mxu0 0
    %12045 = vmatpush1.bf16.xpose.msra.mxu0 0
    %12046 = vmatprep.subr.bf16.mxu0 0
    %12047 = vmatpush1.bf16.xpose.msra.mxu0 0
    %12048 = vmatprep.subr.bf16.mxu0 0
    %12049 = vmatpush1.bf16.xpose.msra.mxu0 0
    %12050 = vmatprep.subr.bf16.mxu0 0
    %12051 = vmatpush1.bf16.xpose.msra.mxu0 0
    %12052 = vmatprep.subr.bf16.mxu0 0
    %12053 = vmatpush1.bf16.xpose.msra.mxu0 0
    %12054 = vmatprep.subr.bf16.mxu0 0
    %12055 = vmatpush1.bf16.xpose.msra.mxu0 0
    %12056 = vmatprep.subr.bf16.mxu0 0
    %12057 = vmatpush1.bf16.xpose.msra.mxu0 0
    %12058 = vmatprep.mubr.bf16.mxu0 %v544
    %12059 = vmatmul.mubr.bf16.gmra.mrb[0].mxu0 %v543
    %v12060 = vpop.f32.mrb[0].mxu0
    %v12061 = vadd.f32 %v12020, %v12060
    %v12062 = vpop.f32.mrb[0].mxu0
    %v12063 = vpop.f32.mrb[0].mxu0
    %v12064 = vadd.f32 %v12023, %v12063
    %v12065 = vpop.f32.mrb[0].mxu0
    %12066 = vdwg.mxu0
    %12067 = vmatprep.subr.bf16.mxu0 %v7021
    %12068 = vmatpush1.bf16.xpose.msra.mxu0 %v7020
    %12069 = vmatprep.subr.bf16.mxu0 %v7217
    %12070 = vmatpush1.bf16.xpose.msra.mxu0 %v7216
    %12071 = vmatprep.subr.bf16.mxu0 %v7413
    %12072 = vmatpush1.bf16.xpose.msra.mxu0 %v7412
    %12073 = vmatprep.subr.bf16.mxu0 %v7609
    %12074 = vmatpush1.bf16.xpose.msra.mxu0 %v7608
    %12075 = vmatprep.subr.bf16.mxu0 %v7805
    %12076 = vmatpush1.bf16.xpose.msra.mxu0 %v7804
    %12077 = vmatprep.subr.bf16.mxu0 %v8001
    %12078 = vmatpush1.bf16.xpose.msra.mxu0 %v8000
    %12079 = vmatprep.subr.bf16.mxu0 %v8197
    %12080 = vmatpush1.bf16.xpose.msra.mxu0 %v8196
    %12081 = vmatprep.subr.bf16.mxu0 %v8393
    %12082 = vmatpush1.bf16.xpose.msra.mxu0 %v8392
    %12083 = vmatprep.subr.bf16.mxu0 0
    %12084 = vmatpush1.bf16.xpose.msra.mxu0 0
    %12085 = vmatprep.subr.bf16.mxu0 0
    %12086 = vmatpush1.bf16.xpose.msra.mxu0 0
    %12087 = vmatprep.subr.bf16.mxu0 0
    %12088 = vmatpush1.bf16.xpose.msra.mxu0 0
    %12089 = vmatprep.subr.bf16.mxu0 0
    %12090 = vmatpush1.bf16.xpose.msra.mxu0 0
    %12091 = vmatprep.subr.bf16.mxu0 0
    %12092 = vmatpush1.bf16.xpose.msra.mxu0 0
    %12093 = vmatprep.subr.bf16.mxu0 0
    %12094 = vmatpush1.bf16.xpose.msra.mxu0 0
    %12095 = vmatprep.subr.bf16.mxu0 0
    %12096 = vmatpush1.bf16.xpose.msra.mxu0 0
    %12097 = vmatprep.subr.bf16.mxu0 0
    %12098 = vmatpush1.bf16.xpose.msra.mxu0 0
    %12099 = vmatprep.mubr.bf16.mxu0 %v546
    %12100 = vmatmul.mubr.bf16.gmra.mrb[0].mxu0 %v545
    %v12101 = vpop.f32.mrb[0].mxu0
    %v12102 = vadd.f32 %v12061, %v12101
    %v12103 = vpop.f32.mrb[0].mxu0
    %v12104 = vpop.f32.mrb[0].mxu0
    %v12105 = vadd.f32 %v12064, %v12104
    %v12106 = vpop.f32.mrb[0].mxu0
    %12107 = vdwg.mxu0
    %12108 = vmatprep.subr.bf16.mxu0 %v7023
    %12109 = vmatpush1.bf16.xpose.msra.mxu0 %v7022
    %12110 = vmatprep.subr.bf16.mxu0 %v7219
    %12111 = vmatpush1.bf16.xpose.msra.mxu0 %v7218
    %12112 = vmatprep.subr.bf16.mxu0 %v7415
    %12113 = vmatpush1.bf16.xpose.msra.mxu0 %v7414
    %12114 = vmatprep.subr.bf16.mxu0 %v7611
    %12115 = vmatpush1.bf16.xpose.msra.mxu0 %v7610
    %12116 = vmatprep.subr.bf16.mxu0 %v7807
    %12117 = vmatpush1.bf16.xpose.msra.mxu0 %v7806
    %12118 = vmatprep.subr.bf16.mxu0 %v8003
    %12119 = vmatpush1.bf16.xpose.msra.mxu0 %v8002
    %12120 = vmatprep.subr.bf16.mxu0 %v8199
    %12121 = vmatpush1.bf16.xpose.msra.mxu0 %v8198
    %12122 = vmatprep.subr.bf16.mxu0 %v8395
    %12123 = vmatpush1.bf16.xpose.msra.mxu0 %v8394
    %12124 = vmatprep.subr.bf16.mxu0 0
    %12125 = vmatpush1.bf16.xpose.msra.mxu0 0
    %12126 = vmatprep.subr.bf16.mxu0 0
    %12127 = vmatpush1.bf16.xpose.msra.mxu0 0
    %12128 = vmatprep.subr.bf16.mxu0 0
    %12129 = vmatpush1.bf16.xpose.msra.mxu0 0
    %12130 = vmatprep.subr.bf16.mxu0 0
    %12131 = vmatpush1.bf16.xpose.msra.mxu0 0
    %12132 = vmatprep.subr.bf16.mxu0 0
    %12133 = vmatpush1.bf16.xpose.msra.mxu0 0
    %12134 = vmatprep.subr.bf16.mxu0 0
    %12135 = vmatpush1.bf16.xpose.msra.mxu0 0
    %12136 = vmatprep.subr.bf16.mxu0 0
    %12137 = vmatpush1.bf16.xpose.msra.mxu0 0
    %12138 = vmatprep.subr.bf16.mxu0 0
    %12139 = vmatpush1.bf16.xpose.msra.mxu0 0
    %12140 = vmatprep.mubr.bf16.mxu0 %v548
    %12141 = vmatmul.mubr.bf16.gmra.mrb[0].mxu0 %v547
    %v12142 = vpop.f32.mrb[0].mxu0
    %v12143 = vadd.f32 %v12102, %v12142
    %v12144 = vpop.f32.mrb[0].mxu0
    %v12145 = vpop.f32.mrb[0].mxu0
    %v12146 = vadd.f32 %v12105, %v12145
    %v12147 = vpop.f32.mrb[0].mxu0
    %12148 = vdwg.mxu0
    %12149 = vmatprep.subr.bf16.mxu0 %v7025
    %12150 = vmatpush1.bf16.xpose.msra.mxu0 %v7024
    %12151 = vmatprep.subr.bf16.mxu0 %v7221
    %12152 = vmatpush1.bf16.xpose.msra.mxu0 %v7220
    %12153 = vmatprep.subr.bf16.mxu0 %v7417
    %12154 = vmatpush1.bf16.xpose.msra.mxu0 %v7416
    %12155 = vmatprep.subr.bf16.mxu0 %v7613
    %12156 = vmatpush1.bf16.xpose.msra.mxu0 %v7612
    %12157 = vmatprep.subr.bf16.mxu0 %v7809
    %12158 = vmatpush1.bf16.xpose.msra.mxu0 %v7808
    %12159 = vmatprep.subr.bf16.mxu0 %v8005
    %12160 = vmatpush1.bf16.xpose.msra.mxu0 %v8004
    %12161 = vmatprep.subr.bf16.mxu0 %v8201
    %12162 = vmatpush1.bf16.xpose.msra.mxu0 %v8200
    %12163 = vmatprep.subr.bf16.mxu0 %v8397
    %12164 = vmatpush1.bf16.xpose.msra.mxu0 %v8396
    %12165 = vmatprep.subr.bf16.mxu0 0
    %12166 = vmatpush1.bf16.xpose.msra.mxu0 0
    %12167 = vmatprep.subr.bf16.mxu0 0
    %12168 = vmatpush1.bf16.xpose.msra.mxu0 0
    %12169 = vmatprep.subr.bf16.mxu0 0
    %12170 = vmatpush1.bf16.xpose.msra.mxu0 0
    %12171 = vmatprep.subr.bf16.mxu0 0
    %12172 = vmatpush1.bf16.xpose.msra.mxu0 0
    %12173 = vmatprep.subr.bf16.mxu0 0
    %12174 = vmatpush1.bf16.xpose.msra.mxu0 0
    %12175 = vmatprep.subr.bf16.mxu0 0
    %12176 = vmatpush1.bf16.xpose.msra.mxu0 0
    %12177 = vmatprep.subr.bf16.mxu0 0
    %12178 = vmatpush1.bf16.xpose.msra.mxu0 0
    %12179 = vmatprep.subr.bf16.mxu0 0
    %12180 = vmatpush1.bf16.xpose.msra.mxu0 0
    %12181 = vmatprep.mubr.bf16.mxu0 %v550
    %12182 = vmatmul.mubr.bf16.gmra.mrb[0].mxu0 %v549
    %v12183 = vpop.f32.mrb[0].mxu0
    %v12184 = vadd.f32 %v12143, %v12183
    %v12185 = vpop.f32.mrb[0].mxu0
    %v12186 = vpop.f32.mrb[0].mxu0
    %v12187 = vadd.f32 %v12146, %v12186
    %v12188 = vpop.f32.mrb[0].mxu0
    %12189 = vdwg.mxu0
    %12190 = vmatprep.subr.bf16.mxu0 %v7027
    %12191 = vmatpush1.bf16.xpose.msra.mxu0 %v7026
    %12192 = vmatprep.subr.bf16.mxu0 %v7223
    %12193 = vmatpush1.bf16.xpose.msra.mxu0 %v7222
    %12194 = vmatprep.subr.bf16.mxu0 %v7419
    %12195 = vmatpush1.bf16.xpose.msra.mxu0 %v7418
    %12196 = vmatprep.subr.bf16.mxu0 %v7615
    %12197 = vmatpush1.bf16.xpose.msra.mxu0 %v7614
    %12198 = vmatprep.subr.bf16.mxu0 %v7811
    %12199 = vmatpush1.bf16.xpose.msra.mxu0 %v7810
    %12200 = vmatprep.subr.bf16.mxu0 %v8007
    %12201 = vmatpush1.bf16.xpose.msra.mxu0 %v8006
    %12202 = vmatprep.subr.bf16.mxu0 %v8203
    %12203 = vmatpush1.bf16.xpose.msra.mxu0 %v8202
    %12204 = vmatprep.subr.bf16.mxu0 %v8399
    %12205 = vmatpush1.bf16.xpose.msra.mxu0 %v8398
    %12206 = vmatprep.subr.bf16.mxu0 0
    %12207 = vmatpush1.bf16.xpose.msra.mxu0 0
    %12208 = vmatprep.subr.bf16.mxu0 0
    %12209 = vmatpush1.bf16.xpose.msra.mxu0 0
    %12210 = vmatprep.subr.bf16.mxu0 0
    %12211 = vmatpush1.bf16.xpose.msra.mxu0 0
    %12212 = vmatprep.subr.bf16.mxu0 0
    %12213 = vmatpush1.bf16.xpose.msra.mxu0 0
    %12214 = vmatprep.subr.bf16.mxu0 0
    %12215 = vmatpush1.bf16.xpose.msra.mxu0 0
    %12216 = vmatprep.subr.bf16.mxu0 0
    %12217 = vmatpush1.bf16.xpose.msra.mxu0 0
    %12218 = vmatprep.subr.bf16.mxu0 0
    %12219 = vmatpush1.bf16.xpose.msra.mxu0 0
    %12220 = vmatprep.subr.bf16.mxu0 0
    %12221 = vmatpush1.bf16.xpose.msra.mxu0 0
    %12222 = vmatprep.mubr.bf16.mxu0 %v552
    %12223 = vmatmul.mubr.bf16.gmra.mrb[0].mxu0 %v551
    %v12224 = vpop.f32.mrb[0].mxu0
    %v12225 = vadd.f32 %v12184, %v12224
    %v12226 = vpop.f32.mrb[0].mxu0
    %v12227 = vpop.f32.mrb[0].mxu0
    %v12228 = vadd.f32 %v12187, %v12227
    %v12229 = vpop.f32.mrb[0].mxu0
    %12230 = vdwg.mxu0
    %12231 = vmatprep.subr.bf16.mxu0 %v7029
    %12232 = vmatpush1.bf16.xpose.msra.mxu0 %v7028
    %12233 = vmatprep.subr.bf16.mxu0 %v7225
    %12234 = vmatpush1.bf16.xpose.msra.mxu0 %v7224
    %12235 = vmatprep.subr.bf16.mxu0 %v7421
    %12236 = vmatpush1.bf16.xpose.msra.mxu0 %v7420
    %12237 = vmatprep.subr.bf16.mxu0 %v7617
    %12238 = vmatpush1.bf16.xpose.msra.mxu0 %v7616
    %12239 = vmatprep.subr.bf16.mxu0 %v7813
    %12240 = vmatpush1.bf16.xpose.msra.mxu0 %v7812
    %12241 = vmatprep.subr.bf16.mxu0 %v8009
    %12242 = vmatpush1.bf16.xpose.msra.mxu0 %v8008
    %12243 = vmatprep.subr.bf16.mxu0 %v8205
    %12244 = vmatpush1.bf16.xpose.msra.mxu0 %v8204
    %12245 = vmatprep.subr.bf16.mxu0 %v8401
    %12246 = vmatpush1.bf16.xpose.msra.mxu0 %v8400
    %12247 = vmatprep.subr.bf16.mxu0 0
    %12248 = vmatpush1.bf16.xpose.msra.mxu0 0
    %12249 = vmatprep.subr.bf16.mxu0 0
    %12250 = vmatpush1.bf16.xpose.msra.mxu0 0
    %12251 = vmatprep.subr.bf16.mxu0 0
    %12252 = vmatpush1.bf16.xpose.msra.mxu0 0
    %12253 = vmatprep.subr.bf16.mxu0 0
    %12254 = vmatpush1.bf16.xpose.msra.mxu0 0
    %12255 = vmatprep.subr.bf16.mxu0 0
    %12256 = vmatpush1.bf16.xpose.msra.mxu0 0
    %12257 = vmatprep.subr.bf16.mxu0 0
    %12258 = vmatpush1.bf16.xpose.msra.mxu0 0
    %12259 = vmatprep.subr.bf16.mxu0 0
    %12260 = vmatpush1.bf16.xpose.msra.mxu0 0
    %12261 = vmatprep.subr.bf16.mxu0 0
    %12262 = vmatpush1.bf16.xpose.msra.mxu0 0
    %12263 = vmatprep.mubr.bf16.mxu0 %v554
    %12264 = vmatmul.mubr.bf16.gmra.mrb[0].mxu0 %v553
    %v12265 = vpop.f32.mrb[0].mxu0
    %v12266 = vadd.f32 %v12225, %v12265
    %v12267 = vpop.f32.mrb[0].mxu0
    %v12268 = vpop.f32.mrb[0].mxu0
    %v12269 = vadd.f32 %v12228, %v12268
    %v12270 = vpop.f32.mrb[0].mxu0
    %12271 = vdwg.mxu0
    %12272 = vmatprep.subr.bf16.mxu0 %v7031
    %12273 = vmatpush1.bf16.xpose.msra.mxu0 %v7030
    %12274 = vmatprep.subr.bf16.mxu0 %v7227
    %12275 = vmatpush1.bf16.xpose.msra.mxu0 %v7226
    %12276 = vmatprep.subr.bf16.mxu0 %v7423
    %12277 = vmatpush1.bf16.xpose.msra.mxu0 %v7422
    %12278 = vmatprep.subr.bf16.mxu0 %v7619
    %12279 = vmatpush1.bf16.xpose.msra.mxu0 %v7618
    %12280 = vmatprep.subr.bf16.mxu0 %v7815
    %12281 = vmatpush1.bf16.xpose.msra.mxu0 %v7814
    %12282 = vmatprep.subr.bf16.mxu0 %v8011
    %12283 = vmatpush1.bf16.xpose.msra.mxu0 %v8010
    %12284 = vmatprep.subr.bf16.mxu0 %v8207
    %12285 = vmatpush1.bf16.xpose.msra.mxu0 %v8206
    %12286 = vmatprep.subr.bf16.mxu0 %v8403
    %12287 = vmatpush1.bf16.xpose.msra.mxu0 %v8402
    %12288 = vmatprep.subr.bf16.mxu0 0
    %12289 = vmatpush1.bf16.xpose.msra.mxu0 0
    %12290 = vmatprep.subr.bf16.mxu0 0
    %12291 = vmatpush1.bf16.xpose.msra.mxu0 0
    %12292 = vmatprep.subr.bf16.mxu0 0
    %12293 = vmatpush1.bf16.xpose.msra.mxu0 0
    %12294 = vmatprep.subr.bf16.mxu0 0
    %12295 = vmatpush1.bf16.xpose.msra.mxu0 0
    %12296 = vmatprep.subr.bf16.mxu0 0
    %12297 = vmatpush1.bf16.xpose.msra.mxu0 0
    %12298 = vmatprep.subr.bf16.mxu0 0
    %12299 = vmatpush1.bf16.xpose.msra.mxu0 0
    %12300 = vmatprep.subr.bf16.mxu0 0
    %12301 = vmatpush1.bf16.xpose.msra.mxu0 0
    %12302 = vmatprep.subr.bf16.mxu0 0
    %12303 = vmatpush1.bf16.xpose.msra.mxu0 0
    %12304 = vmatprep.mubr.bf16.mxu0 %v556
    %12305 = vmatmul.mubr.bf16.gmra.mrb[0].mxu0 %v555
    %v12306 = vpop.f32.mrb[0].mxu0
    %v12307 = vadd.f32 %v12266, %v12306
    %v12308 = vpop.f32.mrb[0].mxu0
    %v12309 = vpop.f32.mrb[0].mxu0
    %v12310 = vadd.f32 %v12269, %v12309
    %v12311 = vpop.f32.mrb[0].mxu0
    %12312 = vdwg.mxu0
    %12313 = vmatprep.subr.bf16.mxu0 %v7033
    %12314 = vmatpush1.bf16.xpose.msra.mxu0 %v7032
    %12315 = vmatprep.subr.bf16.mxu0 %v7229
    %12316 = vmatpush1.bf16.xpose.msra.mxu0 %v7228
    %12317 = vmatprep.subr.bf16.mxu0 %v7425
    %12318 = vmatpush1.bf16.xpose.msra.mxu0 %v7424
    %12319 = vmatprep.subr.bf16.mxu0 %v7621
    %12320 = vmatpush1.bf16.xpose.msra.mxu0 %v7620
    %12321 = vmatprep.subr.bf16.mxu0 %v7817
    %12322 = vmatpush1.bf16.xpose.msra.mxu0 %v7816
    %12323 = vmatprep.subr.bf16.mxu0 %v8013
    %12324 = vmatpush1.bf16.xpose.msra.mxu0 %v8012
    %12325 = vmatprep.subr.bf16.mxu0 %v8209
    %12326 = vmatpush1.bf16.xpose.msra.mxu0 %v8208
    %12327 = vmatprep.subr.bf16.mxu0 %v8405
    %12328 = vmatpush1.bf16.xpose.msra.mxu0 %v8404
    %12329 = vmatprep.subr.bf16.mxu0 0
    %12330 = vmatpush1.bf16.xpose.msra.mxu0 0
    %12331 = vmatprep.subr.bf16.mxu0 0
    %12332 = vmatpush1.bf16.xpose.msra.mxu0 0
    %12333 = vmatprep.subr.bf16.mxu0 0
    %12334 = vmatpush1.bf16.xpose.msra.mxu0 0
    %12335 = vmatprep.subr.bf16.mxu0 0
    %12336 = vmatpush1.bf16.xpose.msra.mxu0 0
    %12337 = vmatprep.subr.bf16.mxu0 0
    %12338 = vmatpush1.bf16.xpose.msra.mxu0 0
    %12339 = vmatprep.subr.bf16.mxu0 0
    %12340 = vmatpush1.bf16.xpose.msra.mxu0 0
    %12341 = vmatprep.subr.bf16.mxu0 0
    %12342 = vmatpush1.bf16.xpose.msra.mxu0 0
    %12343 = vmatprep.subr.bf16.mxu0 0
    %12344 = vmatpush1.bf16.xpose.msra.mxu0 0
    %12345 = vmatprep.mubr.bf16.mxu0 %v558
    %12346 = vmatmul.mubr.bf16.gmra.mrb[0].mxu0 %v557
    %v12347 = vpop.f32.mrb[0].mxu0
    %v12348 = vadd.f32 %v12307, %v12347
    %v12349 = vpop.f32.mrb[0].mxu0
    %v12350 = vpop.f32.mrb[0].mxu0
    %v12351 = vadd.f32 %v12310, %v12350
    %v12352 = vpop.f32.mrb[0].mxu0
    %12353 = vdwg.mxu0
    %12354 = vmatprep.subr.bf16.mxu0 %v7035
    %12355 = vmatpush1.bf16.xpose.msra.mxu0 %v7034
    %12356 = vmatprep.subr.bf16.mxu0 %v7231
    %12357 = vmatpush1.bf16.xpose.msra.mxu0 %v7230
    %12358 = vmatprep.subr.bf16.mxu0 %v7427
    %12359 = vmatpush1.bf16.xpose.msra.mxu0 %v7426
    %12360 = vmatprep.subr.bf16.mxu0 %v7623
    %12361 = vmatpush1.bf16.xpose.msra.mxu0 %v7622
    %12362 = vmatprep.subr.bf16.mxu0 %v7819
    %12363 = vmatpush1.bf16.xpose.msra.mxu0 %v7818
    %12364 = vmatprep.subr.bf16.mxu0 %v8015
    %12365 = vmatpush1.bf16.xpose.msra.mxu0 %v8014
    %12366 = vmatprep.subr.bf16.mxu0 %v8211
    %12367 = vmatpush1.bf16.xpose.msra.mxu0 %v8210
    %12368 = vmatprep.subr.bf16.mxu0 %v8407
    %12369 = vmatpush1.bf16.xpose.msra.mxu0 %v8406
    %12370 = vmatprep.subr.bf16.mxu0 0
    %12371 = vmatpush1.bf16.xpose.msra.mxu0 0
    %12372 = vmatprep.subr.bf16.mxu0 0
    %12373 = vmatpush1.bf16.xpose.msra.mxu0 0
    %12374 = vmatprep.subr.bf16.mxu0 0
    %12375 = vmatpush1.bf16.xpose.msra.mxu0 0
    %12376 = vmatprep.subr.bf16.mxu0 0
    %12377 = vmatpush1.bf16.xpose.msra.mxu0 0
    %12378 = vmatprep.subr.bf16.mxu0 0
    %12379 = vmatpush1.bf16.xpose.msra.mxu0 0
    %12380 = vmatprep.subr.bf16.mxu0 0
    %12381 = vmatpush1.bf16.xpose.msra.mxu0 0
    %12382 = vmatprep.subr.bf16.mxu0 0
    %12383 = vmatpush1.bf16.xpose.msra.mxu0 0
    %12384 = vmatprep.subr.bf16.mxu0 0
    %12385 = vmatpush1.bf16.xpose.msra.mxu0 0
    %12386 = vmatprep.mubr.bf16.mxu0 %v560
    %12387 = vmatmul.mubr.bf16.gmra.mrb[0].mxu0 %v559
    %v12388 = vpop.f32.mrb[0].mxu0
    %v12389 = vadd.f32 %v12348, %v12388
    %v12390 = vpop.f32.mrb[0].mxu0
    %v12391 = vpop.f32.mrb[0].mxu0
    %v12392 = vadd.f32 %v12351, %v12391
    %v12393 = vpop.f32.mrb[0].mxu0
    %12394 = vdwg.mxu0
    %12395 = vmatprep.subr.bf16.mxu0 %v7037
    %12396 = vmatpush1.bf16.xpose.msra.mxu0 %v7036
    %12397 = vmatprep.subr.bf16.mxu0 %v7233
    %12398 = vmatpush1.bf16.xpose.msra.mxu0 %v7232
    %12399 = vmatprep.subr.bf16.mxu0 %v7429
    %12400 = vmatpush1.bf16.xpose.msra.mxu0 %v7428
    %12401 = vmatprep.subr.bf16.mxu0 %v7625
    %12402 = vmatpush1.bf16.xpose.msra.mxu0 %v7624
    %12403 = vmatprep.subr.bf16.mxu0 %v7821
    %12404 = vmatpush1.bf16.xpose.msra.mxu0 %v7820
    %12405 = vmatprep.subr.bf16.mxu0 %v8017
    %12406 = vmatpush1.bf16.xpose.msra.mxu0 %v8016
    %12407 = vmatprep.subr.bf16.mxu0 %v8213
    %12408 = vmatpush1.bf16.xpose.msra.mxu0 %v8212
    %12409 = vmatprep.subr.bf16.mxu0 %v8409
    %12410 = vmatpush1.bf16.xpose.msra.mxu0 %v8408
    %12411 = vmatprep.subr.bf16.mxu0 0
    %12412 = vmatpush1.bf16.xpose.msra.mxu0 0
    %12413 = vmatprep.subr.bf16.mxu0 0
    %12414 = vmatpush1.bf16.xpose.msra.mxu0 0
    %12415 = vmatprep.subr.bf16.mxu0 0
    %12416 = vmatpush1.bf16.xpose.msra.mxu0 0
    %12417 = vmatprep.subr.bf16.mxu0 0
    %12418 = vmatpush1.bf16.xpose.msra.mxu0 0
    %12419 = vmatprep.subr.bf16.mxu0 0
    %12420 = vmatpush1.bf16.xpose.msra.mxu0 0
    %12421 = vmatprep.subr.bf16.mxu0 0
    %12422 = vmatpush1.bf16.xpose.msra.mxu0 0
    %12423 = vmatprep.subr.bf16.mxu0 0
    %12424 = vmatpush1.bf16.xpose.msra.mxu0 0
    %12425 = vmatprep.subr.bf16.mxu0 0
    %12426 = vmatpush1.bf16.xpose.msra.mxu0 0
    %12427 = vmatprep.mubr.bf16.mxu0 %v562
    %12428 = vmatmul.mubr.bf16.gmra.mrb[0].mxu0 %v561
    %v12429 = vpop.f32.mrb[0].mxu0
    %v12430 = vadd.f32 %v12389, %v12429
    %v12431 = vpop.f32.mrb[0].mxu0
    %v12432 = vpop.f32.mrb[0].mxu0
    %v12433 = vadd.f32 %v12392, %v12432
    %v12434 = vpop.f32.mrb[0].mxu0
    %12435 = vdwg.mxu0
    %12436 = vmatprep.subr.bf16.mxu0 %v7039
    %12437 = vmatpush1.bf16.xpose.msra.mxu0 %v7038
    %12438 = vmatprep.subr.bf16.mxu0 %v7235
    %12439 = vmatpush1.bf16.xpose.msra.mxu0 %v7234
    %12440 = vmatprep.subr.bf16.mxu0 %v7431
    %12441 = vmatpush1.bf16.xpose.msra.mxu0 %v7430
    %12442 = vmatprep.subr.bf16.mxu0 %v7627
    %12443 = vmatpush1.bf16.xpose.msra.mxu0 %v7626
    %12444 = vmatprep.subr.bf16.mxu0 %v7823
    %12445 = vmatpush1.bf16.xpose.msra.mxu0 %v7822
    %12446 = vmatprep.subr.bf16.mxu0 %v8019
    %12447 = vmatpush1.bf16.xpose.msra.mxu0 %v8018
    %12448 = vmatprep.subr.bf16.mxu0 %v8215
    %12449 = vmatpush1.bf16.xpose.msra.mxu0 %v8214
    %12450 = vmatprep.subr.bf16.mxu0 %v8411
    %12451 = vmatpush1.bf16.xpose.msra.mxu0 %v8410
    %12452 = vmatprep.subr.bf16.mxu0 0
    %12453 = vmatpush1.bf16.xpose.msra.mxu0 0
    %12454 = vmatprep.subr.bf16.mxu0 0
    %12455 = vmatpush1.bf16.xpose.msra.mxu0 0
    %12456 = vmatprep.subr.bf16.mxu0 0
    %12457 = vmatpush1.bf16.xpose.msra.mxu0 0
    %12458 = vmatprep.subr.bf16.mxu0 0
    %12459 = vmatpush1.bf16.xpose.msra.mxu0 0
    %12460 = vmatprep.subr.bf16.mxu0 0
    %12461 = vmatpush1.bf16.xpose.msra.mxu0 0
    %12462 = vmatprep.subr.bf16.mxu0 0
    %12463 = vmatpush1.bf16.xpose.msra.mxu0 0
    %12464 = vmatprep.subr.bf16.mxu0 0
    %12465 = vmatpush1.bf16.xpose.msra.mxu0 0
    %12466 = vmatprep.subr.bf16.mxu0 0
    %12467 = vmatpush1.bf16.xpose.msra.mxu0 0
    %12468 = vmatprep.mubr.bf16.mxu0 %v564
    %12469 = vmatmul.mubr.bf16.gmra.mrb[0].mxu0 %v563
    %v12470 = vpop.f32.mrb[0].mxu0
    %v12471 = vadd.f32 %v12430, %v12470
    %v12472 = vpop.f32.mrb[0].mxu0
    %v12473 = vpop.f32.mrb[0].mxu0
    %v12474 = vadd.f32 %v12433, %v12473
    %v12475 = vpop.f32.mrb[0].mxu0
    %12476 = vdwg.mxu0
    %12477 = vmatprep.subr.bf16.mxu0 %v7041
    %12478 = vmatpush1.bf16.xpose.msra.mxu0 %v7040
    %12479 = vmatprep.subr.bf16.mxu0 %v7237
    %12480 = vmatpush1.bf16.xpose.msra.mxu0 %v7236
    %12481 = vmatprep.subr.bf16.mxu0 %v7433
    %12482 = vmatpush1.bf16.xpose.msra.mxu0 %v7432
    %12483 = vmatprep.subr.bf16.mxu0 %v7629
    %12484 = vmatpush1.bf16.xpose.msra.mxu0 %v7628
    %12485 = vmatprep.subr.bf16.mxu0 %v7825
    %12486 = vmatpush1.bf16.xpose.msra.mxu0 %v7824
    %12487 = vmatprep.subr.bf16.mxu0 %v8021
    %12488 = vmatpush1.bf16.xpose.msra.mxu0 %v8020
    %12489 = vmatprep.subr.bf16.mxu0 %v8217
    %12490 = vmatpush1.bf16.xpose.msra.mxu0 %v8216
    %12491 = vmatprep.subr.bf16.mxu0 %v8413
    %12492 = vmatpush1.bf16.xpose.msra.mxu0 %v8412
    %12493 = vmatprep.subr.bf16.mxu0 0
    %12494 = vmatpush1.bf16.xpose.msra.mxu0 0
    %12495 = vmatprep.subr.bf16.mxu0 0
    %12496 = vmatpush1.bf16.xpose.msra.mxu0 0
    %12497 = vmatprep.subr.bf16.mxu0 0
    %12498 = vmatpush1.bf16.xpose.msra.mxu0 0
    %12499 = vmatprep.subr.bf16.mxu0 0
    %12500 = vmatpush1.bf16.xpose.msra.mxu0 0
    %12501 = vmatprep.subr.bf16.mxu0 0
    %12502 = vmatpush1.bf16.xpose.msra.mxu0 0
    %12503 = vmatprep.subr.bf16.mxu0 0
    %12504 = vmatpush1.bf16.xpose.msra.mxu0 0
    %12505 = vmatprep.subr.bf16.mxu0 0
    %12506 = vmatpush1.bf16.xpose.msra.mxu0 0
    %12507 = vmatprep.subr.bf16.mxu0 0
    %12508 = vmatpush1.bf16.xpose.msra.mxu0 0
    %12509 = vmatprep.mubr.bf16.mxu0 %v566
    %12510 = vmatmul.mubr.bf16.gmra.mrb[0].mxu0 %v565
    %v12511 = vpop.f32.mrb[0].mxu0
    %v12512 = vadd.f32 %v12471, %v12511
    %v12513 = vpop.f32.mrb[0].mxu0
    %v12514 = vpop.f32.mrb[0].mxu0
    %v12515 = vadd.f32 %v12474, %v12514
    %v12516 = vpop.f32.mrb[0].mxu0
    %12517 = vdwg.mxu0
    %12518 = vmatprep.subr.bf16.mxu0 %v7043
    %12519 = vmatpush1.bf16.xpose.msra.mxu0 %v7042
    %12520 = vmatprep.subr.bf16.mxu0 %v7239
    %12521 = vmatpush1.bf16.xpose.msra.mxu0 %v7238
    %12522 = vmatprep.subr.bf16.mxu0 %v7435
    %12523 = vmatpush1.bf16.xpose.msra.mxu0 %v7434
    %12524 = vmatprep.subr.bf16.mxu0 %v7631
    %12525 = vmatpush1.bf16.xpose.msra.mxu0 %v7630
    %12526 = vmatprep.subr.bf16.mxu0 %v7827
    %12527 = vmatpush1.bf16.xpose.msra.mxu0 %v7826
    %12528 = vmatprep.subr.bf16.mxu0 %v8023
    %12529 = vmatpush1.bf16.xpose.msra.mxu0 %v8022
    %12530 = vmatprep.subr.bf16.mxu0 %v8219
    %12531 = vmatpush1.bf16.xpose.msra.mxu0 %v8218
    %12532 = vmatprep.subr.bf16.mxu0 %v8415
    %12533 = vmatpush1.bf16.xpose.msra.mxu0 %v8414
    %12534 = vmatprep.subr.bf16.mxu0 0
    %12535 = vmatpush1.bf16.xpose.msra.mxu0 0
    %12536 = vmatprep.subr.bf16.mxu0 0
    %12537 = vmatpush1.bf16.xpose.msra.mxu0 0
    %12538 = vmatprep.subr.bf16.mxu0 0
    %12539 = vmatpush1.bf16.xpose.msra.mxu0 0
    %12540 = vmatprep.subr.bf16.mxu0 0
    %12541 = vmatpush1.bf16.xpose.msra.mxu0 0
    %12542 = vmatprep.subr.bf16.mxu0 0
    %12543 = vmatpush1.bf16.xpose.msra.mxu0 0
    %12544 = vmatprep.subr.bf16.mxu0 0
    %12545 = vmatpush1.bf16.xpose.msra.mxu0 0
    %12546 = vmatprep.subr.bf16.mxu0 0
    %12547 = vmatpush1.bf16.xpose.msra.mxu0 0
    %12548 = vmatprep.subr.bf16.mxu0 0
    %12549 = vmatpush1.bf16.xpose.msra.mxu0 0
    %12550 = vmatprep.mubr.bf16.mxu0 %v568
    %12551 = vmatmul.mubr.bf16.gmra.mrb[0].mxu0 %v567
    %v12552 = vpop.f32.mrb[0].mxu0
    %v12553 = vadd.f32 %v12512, %v12552
    %v12554 = vpop.f32.mrb[0].mxu0
    %v12555 = vpop.f32.mrb[0].mxu0
    %v12556 = vadd.f32 %v12515, %v12555
    %v12557 = vpop.f32.mrb[0].mxu0
    %12558 = vdwg.mxu0
    %12559 = vmatprep.subr.bf16.mxu0 %v7045
    %12560 = vmatpush1.bf16.xpose.msra.mxu0 %v7044
    %12561 = vmatprep.subr.bf16.mxu0 %v7241
    %12562 = vmatpush1.bf16.xpose.msra.mxu0 %v7240
    %12563 = vmatprep.subr.bf16.mxu0 %v7437
    %12564 = vmatpush1.bf16.xpose.msra.mxu0 %v7436
    %12565 = vmatprep.subr.bf16.mxu0 %v7633
    %12566 = vmatpush1.bf16.xpose.msra.mxu0 %v7632
    %12567 = vmatprep.subr.bf16.mxu0 %v7829
    %12568 = vmatpush1.bf16.xpose.msra.mxu0 %v7828
    %12569 = vmatprep.subr.bf16.mxu0 %v8025
    %12570 = vmatpush1.bf16.xpose.msra.mxu0 %v8024
    %12571 = vmatprep.subr.bf16.mxu0 %v8221
    %12572 = vmatpush1.bf16.xpose.msra.mxu0 %v8220
    %12573 = vmatprep.subr.bf16.mxu0 %v8417
    %12574 = vmatpush1.bf16.xpose.msra.mxu0 %v8416
    %12575 = vmatprep.subr.bf16.mxu0 0
    %12576 = vmatpush1.bf16.xpose.msra.mxu0 0
    %12577 = vmatprep.subr.bf16.mxu0 0
    %12578 = vmatpush1.bf16.xpose.msra.mxu0 0
    %12579 = vmatprep.subr.bf16.mxu0 0
    %12580 = vmatpush1.bf16.xpose.msra.mxu0 0
    %12581 = vmatprep.subr.bf16.mxu0 0
    %12582 = vmatpush1.bf16.xpose.msra.mxu0 0
    %12583 = vmatprep.subr.bf16.mxu0 0
    %12584 = vmatpush1.bf16.xpose.msra.mxu0 0
    %12585 = vmatprep.subr.bf16.mxu0 0
    %12586 = vmatpush1.bf16.xpose.msra.mxu0 0
    %12587 = vmatprep.subr.bf16.mxu0 0
    %12588 = vmatpush1.bf16.xpose.msra.mxu0 0
    %12589 = vmatprep.subr.bf16.mxu0 0
    %12590 = vmatpush1.bf16.xpose.msra.mxu0 0
    %12591 = vmatprep.mubr.bf16.mxu0 %v570
    %12592 = vmatmul.mubr.bf16.gmra.mrb[0].mxu0 %v569
    %v12593 = vpop.f32.mrb[0].mxu0
    %v12594 = vadd.f32 %v12553, %v12593
    %v12595 = vpop.f32.mrb[0].mxu0
    %v12596 = vpop.f32.mrb[0].mxu0
    %v12597 = vadd.f32 %v12556, %v12596
    %v12598 = vpop.f32.mrb[0].mxu0
    %12599 = vdwg.mxu0
    %12600 = vmatprep.subr.bf16.mxu0 %v7047
    %12601 = vmatpush1.bf16.xpose.msra.mxu0 %v7046
    %12602 = vmatprep.subr.bf16.mxu0 %v7243
    %12603 = vmatpush1.bf16.xpose.msra.mxu0 %v7242
    %12604 = vmatprep.subr.bf16.mxu0 %v7439
    %12605 = vmatpush1.bf16.xpose.msra.mxu0 %v7438
    %12606 = vmatprep.subr.bf16.mxu0 %v7635
    %12607 = vmatpush1.bf16.xpose.msra.mxu0 %v7634
    %12608 = vmatprep.subr.bf16.mxu0 %v7831
    %12609 = vmatpush1.bf16.xpose.msra.mxu0 %v7830
    %12610 = vmatprep.subr.bf16.mxu0 %v8027
    %12611 = vmatpush1.bf16.xpose.msra.mxu0 %v8026
    %12612 = vmatprep.subr.bf16.mxu0 %v8223
    %12613 = vmatpush1.bf16.xpose.msra.mxu0 %v8222
    %12614 = vmatprep.subr.bf16.mxu0 %v8419
    %12615 = vmatpush1.bf16.xpose.msra.mxu0 %v8418
    %12616 = vmatprep.subr.bf16.mxu0 0
    %12617 = vmatpush1.bf16.xpose.msra.mxu0 0
    %12618 = vmatprep.subr.bf16.mxu0 0
    %12619 = vmatpush1.bf16.xpose.msra.mxu0 0
    %12620 = vmatprep.subr.bf16.mxu0 0
    %12621 = vmatpush1.bf16.xpose.msra.mxu0 0
    %12622 = vmatprep.subr.bf16.mxu0 0
    %12623 = vmatpush1.bf16.xpose.msra.mxu0 0
    %12624 = vmatprep.subr.bf16.mxu0 0
    %12625 = vmatpush1.bf16.xpose.msra.mxu0 0
    %12626 = vmatprep.subr.bf16.mxu0 0
    %12627 = vmatpush1.bf16.xpose.msra.mxu0 0
    %12628 = vmatprep.subr.bf16.mxu0 0
    %12629 = vmatpush1.bf16.xpose.msra.mxu0 0
    %12630 = vmatprep.subr.bf16.mxu0 0
    %12631 = vmatpush1.bf16.xpose.msra.mxu0 0
    %12632 = vmatprep.mubr.bf16.mxu0 %v572
    %12633 = vmatmul.mubr.bf16.gmra.mrb[0].mxu0 %v571
    %v12634 = vpop.f32.mrb[0].mxu0
    %v12635 = vadd.f32 %v12594, %v12634
    %v12636 = vpop.f32.mrb[0].mxu0
    %v12637 = vpop.f32.mrb[0].mxu0
    %v12638 = vadd.f32 %v12597, %v12637
    %v12639 = vpop.f32.mrb[0].mxu0
    %12640 = vdwg.mxu0
    %12641 = vmatprep.subr.bf16.mxu0 %v7049
    %12642 = vmatpush1.bf16.xpose.msra.mxu0 %v7048
    %12643 = vmatprep.subr.bf16.mxu0 %v7245
    %12644 = vmatpush1.bf16.xpose.msra.mxu0 %v7244
    %12645 = vmatprep.subr.bf16.mxu0 %v7441
    %12646 = vmatpush1.bf16.xpose.msra.mxu0 %v7440
    %12647 = vmatprep.subr.bf16.mxu0 %v7637
    %12648 = vmatpush1.bf16.xpose.msra.mxu0 %v7636
    %12649 = vmatprep.subr.bf16.mxu0 %v7833
    %12650 = vmatpush1.bf16.xpose.msra.mxu0 %v7832
    %12651 = vmatprep.subr.bf16.mxu0 %v8029
    %12652 = vmatpush1.bf16.xpose.msra.mxu0 %v8028
    %12653 = vmatprep.subr.bf16.mxu0 %v8225
    %12654 = vmatpush1.bf16.xpose.msra.mxu0 %v8224
    %12655 = vmatprep.subr.bf16.mxu0 %v8421
    %12656 = vmatpush1.bf16.xpose.msra.mxu0 %v8420
    %12657 = vmatprep.subr.bf16.mxu0 0
    %12658 = vmatpush1.bf16.xpose.msra.mxu0 0
    %12659 = vmatprep.subr.bf16.mxu0 0
    %12660 = vmatpush1.bf16.xpose.msra.mxu0 0
    %12661 = vmatprep.subr.bf16.mxu0 0
    %12662 = vmatpush1.bf16.xpose.msra.mxu0 0
    %12663 = vmatprep.subr.bf16.mxu0 0
    %12664 = vmatpush1.bf16.xpose.msra.mxu0 0
    %12665 = vmatprep.subr.bf16.mxu0 0
    %12666 = vmatpush1.bf16.xpose.msra.mxu0 0
    %12667 = vmatprep.subr.bf16.mxu0 0
    %12668 = vmatpush1.bf16.xpose.msra.mxu0 0
    %12669 = vmatprep.subr.bf16.mxu0 0
    %12670 = vmatpush1.bf16.xpose.msra.mxu0 0
    %12671 = vmatprep.subr.bf16.mxu0 0
    %12672 = vmatpush1.bf16.xpose.msra.mxu0 0
    %12673 = vmatprep.mubr.bf16.mxu0 %v574
    %12674 = vmatmul.mubr.bf16.gmra.mrb[0].mxu0 %v573
    %v12675 = vpop.f32.mrb[0].mxu0
    %v12676 = vadd.f32 %v12635, %v12675
    %v12677 = vpop.f32.mrb[0].mxu0
    %v12678 = vpop.f32.mrb[0].mxu0
    %v12679 = vadd.f32 %v12638, %v12678
    %v12680 = vpop.f32.mrb[0].mxu0
    %12681 = vdwg.mxu0
    %12682 = vmatprep.subr.bf16.mxu0 %v7051
    %12683 = vmatpush1.bf16.xpose.msra.mxu0 %v7050
    %12684 = vmatprep.subr.bf16.mxu0 %v7247
    %12685 = vmatpush1.bf16.xpose.msra.mxu0 %v7246
    %12686 = vmatprep.subr.bf16.mxu0 %v7443
    %12687 = vmatpush1.bf16.xpose.msra.mxu0 %v7442
    %12688 = vmatprep.subr.bf16.mxu0 %v7639
    %12689 = vmatpush1.bf16.xpose.msra.mxu0 %v7638
    %12690 = vmatprep.subr.bf16.mxu0 %v7835
    %12691 = vmatpush1.bf16.xpose.msra.mxu0 %v7834
    %12692 = vmatprep.subr.bf16.mxu0 %v8031
    %12693 = vmatpush1.bf16.xpose.msra.mxu0 %v8030
    %12694 = vmatprep.subr.bf16.mxu0 %v8227
    %12695 = vmatpush1.bf16.xpose.msra.mxu0 %v8226
    %12696 = vmatprep.subr.bf16.mxu0 %v8423
    %12697 = vmatpush1.bf16.xpose.msra.mxu0 %v8422
    %12698 = vmatprep.subr.bf16.mxu0 0
    %12699 = vmatpush1.bf16.xpose.msra.mxu0 0
    %12700 = vmatprep.subr.bf16.mxu0 0
    %12701 = vmatpush1.bf16.xpose.msra.mxu0 0
    %12702 = vmatprep.subr.bf16.mxu0 0
    %12703 = vmatpush1.bf16.xpose.msra.mxu0 0
    %12704 = vmatprep.subr.bf16.mxu0 0
    %12705 = vmatpush1.bf16.xpose.msra.mxu0 0
    %12706 = vmatprep.subr.bf16.mxu0 0
    %12707 = vmatpush1.bf16.xpose.msra.mxu0 0
    %12708 = vmatprep.subr.bf16.mxu0 0
    %12709 = vmatpush1.bf16.xpose.msra.mxu0 0
    %12710 = vmatprep.subr.bf16.mxu0 0
    %12711 = vmatpush1.bf16.xpose.msra.mxu0 0
    %12712 = vmatprep.subr.bf16.mxu0 0
    %12713 = vmatpush1.bf16.xpose.msra.mxu0 0
    %12714 = vmatprep.mubr.bf16.mxu0 %v576
    %12715 = vmatmul.mubr.bf16.gmra.mrb[0].mxu0 %v575
    %v12716 = vpop.f32.mrb[0].mxu0
    %v12717 = vadd.f32 %v12676, %v12716
    %v12718 = vpop.f32.mrb[0].mxu0
    %v12719 = vpop.f32.mrb[0].mxu0
    %v12720 = vadd.f32 %v12679, %v12719
    %v12721 = vpop.f32.mrb[0].mxu0
    %12722 = vdwg.mxu0
    %12723 = vmatprep.subr.bf16.mxu0 %v7053
    %12724 = vmatpush1.bf16.xpose.msra.mxu0 %v7052
    %12725 = vmatprep.subr.bf16.mxu0 %v7249
    %12726 = vmatpush1.bf16.xpose.msra.mxu0 %v7248
    %12727 = vmatprep.subr.bf16.mxu0 %v7445
    %12728 = vmatpush1.bf16.xpose.msra.mxu0 %v7444
    %12729 = vmatprep.subr.bf16.mxu0 %v7641
    %12730 = vmatpush1.bf16.xpose.msra.mxu0 %v7640
    %12731 = vmatprep.subr.bf16.mxu0 %v7837
    %12732 = vmatpush1.bf16.xpose.msra.mxu0 %v7836
    %12733 = vmatprep.subr.bf16.mxu0 %v8033
    %12734 = vmatpush1.bf16.xpose.msra.mxu0 %v8032
    %12735 = vmatprep.subr.bf16.mxu0 %v8229
    %12736 = vmatpush1.bf16.xpose.msra.mxu0 %v8228
    %12737 = vmatprep.subr.bf16.mxu0 %v8425
    %12738 = vmatpush1.bf16.xpose.msra.mxu0 %v8424
    %12739 = vmatprep.subr.bf16.mxu0 0
    %12740 = vmatpush1.bf16.xpose.msra.mxu0 0
    %12741 = vmatprep.subr.bf16.mxu0 0
    %12742 = vmatpush1.bf16.xpose.msra.mxu0 0
    %12743 = vmatprep.subr.bf16.mxu0 0
    %12744 = vmatpush1.bf16.xpose.msra.mxu0 0
    %12745 = vmatprep.subr.bf16.mxu0 0
    %12746 = vmatpush1.bf16.xpose.msra.mxu0 0
    %12747 = vmatprep.subr.bf16.mxu0 0
    %12748 = vmatpush1.bf16.xpose.msra.mxu0 0
    %12749 = vmatprep.subr.bf16.mxu0 0
    %12750 = vmatpush1.bf16.xpose.msra.mxu0 0
    %12751 = vmatprep.subr.bf16.mxu0 0
    %12752 = vmatpush1.bf16.xpose.msra.mxu0 0
    %12753 = vmatprep.subr.bf16.mxu0 0
    %12754 = vmatpush1.bf16.xpose.msra.mxu0 0
    %12755 = vmatprep.mubr.bf16.mxu0 %v578
    %12756 = vmatmul.mubr.bf16.gmra.mrb[0].mxu0 %v577
    %v12757 = vpop.f32.mrb[0].mxu0
    %v12758 = vadd.f32 %v12717, %v12757
    %v12759 = vpop.f32.mrb[0].mxu0
    %v12760 = vpop.f32.mrb[0].mxu0
    %v12761 = vadd.f32 %v12720, %v12760
    %v12762 = vpop.f32.mrb[0].mxu0
    %12763 = vdwg.mxu0
    %12764 = vmatprep.subr.bf16.mxu0 %v7055
    %12765 = vmatpush1.bf16.xpose.msra.mxu0 %v7054
    %12766 = vmatprep.subr.bf16.mxu0 %v7251
    %12767 = vmatpush1.bf16.xpose.msra.mxu0 %v7250
    %12768 = vmatprep.subr.bf16.mxu0 %v7447
    %12769 = vmatpush1.bf16.xpose.msra.mxu0 %v7446
    %12770 = vmatprep.subr.bf16.mxu0 %v7643
    %12771 = vmatpush1.bf16.xpose.msra.mxu0 %v7642
    %12772 = vmatprep.subr.bf16.mxu0 %v7839
    %12773 = vmatpush1.bf16.xpose.msra.mxu0 %v7838
    %12774 = vmatprep.subr.bf16.mxu0 %v8035
    %12775 = vmatpush1.bf16.xpose.msra.mxu0 %v8034
    %12776 = vmatprep.subr.bf16.mxu0 %v8231
    %12777 = vmatpush1.bf16.xpose.msra.mxu0 %v8230
    %12778 = vmatprep.subr.bf16.mxu0 %v8427
    %12779 = vmatpush1.bf16.xpose.msra.mxu0 %v8426
    %12780 = vmatprep.subr.bf16.mxu0 0
    %12781 = vmatpush1.bf16.xpose.msra.mxu0 0
    %12782 = vmatprep.subr.bf16.mxu0 0
    %12783 = vmatpush1.bf16.xpose.msra.mxu0 0
    %12784 = vmatprep.subr.bf16.mxu0 0
    %12785 = vmatpush1.bf16.xpose.msra.mxu0 0
    %12786 = vmatprep.subr.bf16.mxu0 0
    %12787 = vmatpush1.bf16.xpose.msra.mxu0 0
    %12788 = vmatprep.subr.bf16.mxu0 0
    %12789 = vmatpush1.bf16.xpose.msra.mxu0 0
    %12790 = vmatprep.subr.bf16.mxu0 0
    %12791 = vmatpush1.bf16.xpose.msra.mxu0 0
    %12792 = vmatprep.subr.bf16.mxu0 0
    %12793 = vmatpush1.bf16.xpose.msra.mxu0 0
    %12794 = vmatprep.subr.bf16.mxu0 0
    %12795 = vmatpush1.bf16.xpose.msra.mxu0 0
    %12796 = vmatprep.mubr.bf16.mxu0 %v580
    %12797 = vmatmul.mubr.bf16.gmra.mrb[0].mxu0 %v579
    %v12798 = vpop.f32.mrb[0].mxu0
    %v12799 = vadd.f32 %v12758, %v12798
    %v12800 = vpop.f32.mrb[0].mxu0
    %v12801 = vpop.f32.mrb[0].mxu0
    %v12802 = vadd.f32 %v12761, %v12801
    %v12803 = vpop.f32.mrb[0].mxu0
    %12804 = vdwg.mxu0
    %12805 = vmatprep.subr.bf16.mxu0 %v7057
    %12806 = vmatpush1.bf16.xpose.msra.mxu0 %v7056
    %12807 = vmatprep.subr.bf16.mxu0 %v7253
    %12808 = vmatpush1.bf16.xpose.msra.mxu0 %v7252
    %12809 = vmatprep.subr.bf16.mxu0 %v7449
    %12810 = vmatpush1.bf16.xpose.msra.mxu0 %v7448
    %12811 = vmatprep.subr.bf16.mxu0 %v7645
    %12812 = vmatpush1.bf16.xpose.msra.mxu0 %v7644
    %12813 = vmatprep.subr.bf16.mxu0 %v7841
    %12814 = vmatpush1.bf16.xpose.msra.mxu0 %v7840
    %12815 = vmatprep.subr.bf16.mxu0 %v8037
    %12816 = vmatpush1.bf16.xpose.msra.mxu0 %v8036
    %12817 = vmatprep.subr.bf16.mxu0 %v8233
    %12818 = vmatpush1.bf16.xpose.msra.mxu0 %v8232
    %12819 = vmatprep.subr.bf16.mxu0 %v8429
    %12820 = vmatpush1.bf16.xpose.msra.mxu0 %v8428
    %12821 = vmatprep.subr.bf16.mxu0 0
    %12822 = vmatpush1.bf16.xpose.msra.mxu0 0
    %12823 = vmatprep.subr.bf16.mxu0 0
    %12824 = vmatpush1.bf16.xpose.msra.mxu0 0
    %12825 = vmatprep.subr.bf16.mxu0 0
    %12826 = vmatpush1.bf16.xpose.msra.mxu0 0
    %12827 = vmatprep.subr.bf16.mxu0 0
    %12828 = vmatpush1.bf16.xpose.msra.mxu0 0
    %12829 = vmatprep.subr.bf16.mxu0 0
    %12830 = vmatpush1.bf16.xpose.msra.mxu0 0
    %12831 = vmatprep.subr.bf16.mxu0 0
    %12832 = vmatpush1.bf16.xpose.msra.mxu0 0
    %12833 = vmatprep.subr.bf16.mxu0 0
    %12834 = vmatpush1.bf16.xpose.msra.mxu0 0
    %12835 = vmatprep.subr.bf16.mxu0 0
    %12836 = vmatpush1.bf16.xpose.msra.mxu0 0
    %12837 = vmatprep.mubr.bf16.mxu0 %v582
    %12838 = vmatmul.mubr.bf16.gmra.mrb[0].mxu0 %v581
    %v12839 = vpop.f32.mrb[0].mxu0
    %v12840 = vadd.f32 %v12799, %v12839
    %v12841 = vpop.f32.mrb[0].mxu0
    %v12842 = vpop.f32.mrb[0].mxu0
    %v12843 = vadd.f32 %v12802, %v12842
    %v12844 = vpop.f32.mrb[0].mxu0
    %12845 = vdwg.mxu0
    %12846 = vmatprep.subr.bf16.mxu0 %v7059
    %12847 = vmatpush1.bf16.xpose.msra.mxu0 %v7058
    %12848 = vmatprep.subr.bf16.mxu0 %v7255
    %12849 = vmatpush1.bf16.xpose.msra.mxu0 %v7254
    %12850 = vmatprep.subr.bf16.mxu0 %v7451
    %12851 = vmatpush1.bf16.xpose.msra.mxu0 %v7450
    %12852 = vmatprep.subr.bf16.mxu0 %v7647
    %12853 = vmatpush1.bf16.xpose.msra.mxu0 %v7646
    %12854 = vmatprep.subr.bf16.mxu0 %v7843
    %12855 = vmatpush1.bf16.xpose.msra.mxu0 %v7842
    %12856 = vmatprep.subr.bf16.mxu0 %v8039
    %12857 = vmatpush1.bf16.xpose.msra.mxu0 %v8038
    %12858 = vmatprep.subr.bf16.mxu0 %v8235
    %12859 = vmatpush1.bf16.xpose.msra.mxu0 %v8234
    %12860 = vmatprep.subr.bf16.mxu0 %v8431
    %12861 = vmatpush1.bf16.xpose.msra.mxu0 %v8430
    %12862 = vmatprep.subr.bf16.mxu0 0
    %12863 = vmatpush1.bf16.xpose.msra.mxu0 0
    %12864 = vmatprep.subr.bf16.mxu0 0
    %12865 = vmatpush1.bf16.xpose.msra.mxu0 0
    %12866 = vmatprep.subr.bf16.mxu0 0
    %12867 = vmatpush1.bf16.xpose.msra.mxu0 0
    %12868 = vmatprep.subr.bf16.mxu0 0
    %12869 = vmatpush1.bf16.xpose.msra.mxu0 0
    %12870 = vmatprep.subr.bf16.mxu0 0
    %12871 = vmatpush1.bf16.xpose.msra.mxu0 0
    %12872 = vmatprep.subr.bf16.mxu0 0
    %12873 = vmatpush1.bf16.xpose.msra.mxu0 0
    %12874 = vmatprep.subr.bf16.mxu0 0
    %12875 = vmatpush1.bf16.xpose.msra.mxu0 0
    %12876 = vmatprep.subr.bf16.mxu0 0
    %12877 = vmatpush1.bf16.xpose.msra.mxu0 0
    %12878 = vmatprep.mubr.bf16.mxu0 %v584
    %12879 = vmatmul.mubr.bf16.gmra.mrb[0].mxu0 %v583
    %v12880 = vpop.f32.mrb[0].mxu0
    %v12881 = vadd.f32 %v12840, %v12880
    %v12882 = vpop.f32.mrb[0].mxu0
    %v12883 = vpop.f32.mrb[0].mxu0
    %v12884 = vadd.f32 %v12843, %v12883
    %v12885 = vpop.f32.mrb[0].mxu0
    %12886 = vdwg.mxu0
    %12887 = vmatprep.subr.bf16.mxu0 %v7061
    %12888 = vmatpush1.bf16.xpose.msra.mxu0 %v7060
    %12889 = vmatprep.subr.bf16.mxu0 %v7257
    %12890 = vmatpush1.bf16.xpose.msra.mxu0 %v7256
    %12891 = vmatprep.subr.bf16.mxu0 %v7453
    %12892 = vmatpush1.bf16.xpose.msra.mxu0 %v7452
    %12893 = vmatprep.subr.bf16.mxu0 %v7649
    %12894 = vmatpush1.bf16.xpose.msra.mxu0 %v7648
    %12895 = vmatprep.subr.bf16.mxu0 %v7845
    %12896 = vmatpush1.bf16.xpose.msra.mxu0 %v7844
    %12897 = vmatprep.subr.bf16.mxu0 %v8041
    %12898 = vmatpush1.bf16.xpose.msra.mxu0 %v8040
    %12899 = vmatprep.subr.bf16.mxu0 %v8237
    %12900 = vmatpush1.bf16.xpose.msra.mxu0 %v8236
    %12901 = vmatprep.subr.bf16.mxu0 %v8433
    %12902 = vmatpush1.bf16.xpose.msra.mxu0 %v8432
    %12903 = vmatprep.subr.bf16.mxu0 0
    %12904 = vmatpush1.bf16.xpose.msra.mxu0 0
    %12905 = vmatprep.subr.bf16.mxu0 0
    %12906 = vmatpush1.bf16.xpose.msra.mxu0 0
    %12907 = vmatprep.subr.bf16.mxu0 0
    %12908 = vmatpush1.bf16.xpose.msra.mxu0 0
    %12909 = vmatprep.subr.bf16.mxu0 0
    %12910 = vmatpush1.bf16.xpose.msra.mxu0 0
    %12911 = vmatprep.subr.bf16.mxu0 0
    %12912 = vmatpush1.bf16.xpose.msra.mxu0 0
    %12913 = vmatprep.subr.bf16.mxu0 0
    %12914 = vmatpush1.bf16.xpose.msra.mxu0 0
    %12915 = vmatprep.subr.bf16.mxu0 0
    %12916 = vmatpush1.bf16.xpose.msra.mxu0 0
    %12917 = vmatprep.subr.bf16.mxu0 0
    %12918 = vmatpush1.bf16.xpose.msra.mxu0 0
    %12919 = vmatprep.mubr.bf16.mxu0 %v586
    %12920 = vmatmul.mubr.bf16.gmra.mrb[0].mxu0 %v585
    %v12921 = vpop.f32.mrb[0].mxu0
    %v12922 = vadd.f32 %v12881, %v12921
    %v12923 = vpop.f32.mrb[0].mxu0
    %v12924 = vpop.f32.mrb[0].mxu0
    %v12925 = vadd.f32 %v12884, %v12924
    %v12926 = vpop.f32.mrb[0].mxu0
    %12927 = vdwg.mxu0
    %12928 = vmatprep.subr.bf16.mxu0 %v7063
    %12929 = vmatpush1.bf16.xpose.msra.mxu0 %v7062
    %12930 = vmatprep.subr.bf16.mxu0 %v7259
    %12931 = vmatpush1.bf16.xpose.msra.mxu0 %v7258
    %12932 = vmatprep.subr.bf16.mxu0 %v7455
    %12933 = vmatpush1.bf16.xpose.msra.mxu0 %v7454
    %12934 = vmatprep.subr.bf16.mxu0 %v7651
    %12935 = vmatpush1.bf16.xpose.msra.mxu0 %v7650
    %12936 = vmatprep.subr.bf16.mxu0 %v7847
    %12937 = vmatpush1.bf16.xpose.msra.mxu0 %v7846
    %12938 = vmatprep.subr.bf16.mxu0 %v8043
    %12939 = vmatpush1.bf16.xpose.msra.mxu0 %v8042
    %12940 = vmatprep.subr.bf16.mxu0 %v8239
    %12941 = vmatpush1.bf16.xpose.msra.mxu0 %v8238
    %12942 = vmatprep.subr.bf16.mxu0 %v8435
    %12943 = vmatpush1.bf16.xpose.msra.mxu0 %v8434
    %12944 = vmatprep.subr.bf16.mxu0 0
    %12945 = vmatpush1.bf16.xpose.msra.mxu0 0
    %12946 = vmatprep.subr.bf16.mxu0 0
    %12947 = vmatpush1.bf16.xpose.msra.mxu0 0
    %12948 = vmatprep.subr.bf16.mxu0 0
    %12949 = vmatpush1.bf16.xpose.msra.mxu0 0
    %12950 = vmatprep.subr.bf16.mxu0 0
    %12951 = vmatpush1.bf16.xpose.msra.mxu0 0
    %12952 = vmatprep.subr.bf16.mxu0 0
    %12953 = vmatpush1.bf16.xpose.msra.mxu0 0
    %12954 = vmatprep.subr.bf16.mxu0 0
    %12955 = vmatpush1.bf16.xpose.msra.mxu0 0
    %12956 = vmatprep.subr.bf16.mxu0 0
    %12957 = vmatpush1.bf16.xpose.msra.mxu0 0
    %12958 = vmatprep.subr.bf16.mxu0 0
    %12959 = vmatpush1.bf16.xpose.msra.mxu0 0
    %12960 = vmatprep.mubr.bf16.mxu0 %v588
    %12961 = vmatmul.mubr.bf16.gmra.mrb[0].mxu0 %v587
    %v12962 = vpop.f32.mrb[0].mxu0
    %v12963 = vadd.f32 %v12922, %v12962
    %v12964 = vpop.f32.mrb[0].mxu0
    %v12965 = vpop.f32.mrb[0].mxu0
    %v12966 = vadd.f32 %v12925, %v12965
    %v12967 = vpop.f32.mrb[0].mxu0
    %12968 = vdwg.mxu0
    %12969 = vmatprep.subr.bf16.mxu0 %v7065
    %12970 = vmatpush1.bf16.xpose.msra.mxu0 %v7064
    %12971 = vmatprep.subr.bf16.mxu0 %v7261
    %12972 = vmatpush1.bf16.xpose.msra.mxu0 %v7260
    %12973 = vmatprep.subr.bf16.mxu0 %v7457
    %12974 = vmatpush1.bf16.xpose.msra.mxu0 %v7456
    %12975 = vmatprep.subr.bf16.mxu0 %v7653
    %12976 = vmatpush1.bf16.xpose.msra.mxu0 %v7652
    %12977 = vmatprep.subr.bf16.mxu0 %v7849
    %12978 = vmatpush1.bf16.xpose.msra.mxu0 %v7848
    %12979 = vmatprep.subr.bf16.mxu0 %v8045
    %12980 = vmatpush1.bf16.xpose.msra.mxu0 %v8044
    %12981 = vmatprep.subr.bf16.mxu0 %v8241
    %12982 = vmatpush1.bf16.xpose.msra.mxu0 %v8240
    %12983 = vmatprep.subr.bf16.mxu0 %v8437
    %12984 = vmatpush1.bf16.xpose.msra.mxu0 %v8436
    %12985 = vmatprep.subr.bf16.mxu0 0
    %12986 = vmatpush1.bf16.xpose.msra.mxu0 0
    %12987 = vmatprep.subr.bf16.mxu0 0
    %12988 = vmatpush1.bf16.xpose.msra.mxu0 0
    %12989 = vmatprep.subr.bf16.mxu0 0
    %12990 = vmatpush1.bf16.xpose.msra.mxu0 0
    %12991 = vmatprep.subr.bf16.mxu0 0
    %12992 = vmatpush1.bf16.xpose.msra.mxu0 0
    %12993 = vmatprep.subr.bf16.mxu0 0
    %12994 = vmatpush1.bf16.xpose.msra.mxu0 0
    %12995 = vmatprep.subr.bf16.mxu0 0
    %12996 = vmatpush1.bf16.xpose.msra.mxu0 0
    %12997 = vmatprep.subr.bf16.mxu0 0
    %12998 = vmatpush1.bf16.xpose.msra.mxu0 0
    %12999 = vmatprep.subr.bf16.mxu0 0
    %13000 = vmatpush1.bf16.xpose.msra.mxu0 0
    %13001 = vmatprep.mubr.bf16.mxu0 %v590
    %13002 = vmatmul.mubr.bf16.gmra.mrb[0].mxu0 %v589
    %v13003 = vpop.f32.mrb[0].mxu0
    %v13004 = vadd.f32 %v12963, %v13003
    %v13005 = vpop.f32.mrb[0].mxu0
    %v13006 = vpop.f32.mrb[0].mxu0
    %v13007 = vadd.f32 %v12966, %v13006
    %v13008 = vpop.f32.mrb[0].mxu0
    %13009 = vdwg.mxu0
    %13010 = vmatprep.subr.bf16.mxu0 %v7067
    %13011 = vmatpush1.bf16.xpose.msra.mxu0 %v7066
    %13012 = vmatprep.subr.bf16.mxu0 %v7263
    %13013 = vmatpush1.bf16.xpose.msra.mxu0 %v7262
    %13014 = vmatprep.subr.bf16.mxu0 %v7459
    %13015 = vmatpush1.bf16.xpose.msra.mxu0 %v7458
    %13016 = vmatprep.subr.bf16.mxu0 %v7655
    %13017 = vmatpush1.bf16.xpose.msra.mxu0 %v7654
    %13018 = vmatprep.subr.bf16.mxu0 %v7851
    %13019 = vmatpush1.bf16.xpose.msra.mxu0 %v7850
    %13020 = vmatprep.subr.bf16.mxu0 %v8047
    %13021 = vmatpush1.bf16.xpose.msra.mxu0 %v8046
    %13022 = vmatprep.subr.bf16.mxu0 %v8243
    %13023 = vmatpush1.bf16.xpose.msra.mxu0 %v8242
    %13024 = vmatprep.subr.bf16.mxu0 %v8439
    %13025 = vmatpush1.bf16.xpose.msra.mxu0 %v8438
    %13026 = vmatprep.subr.bf16.mxu0 0
    %13027 = vmatpush1.bf16.xpose.msra.mxu0 0
    %13028 = vmatprep.subr.bf16.mxu0 0
    %13029 = vmatpush1.bf16.xpose.msra.mxu0 0
    %13030 = vmatprep.subr.bf16.mxu0 0
    %13031 = vmatpush1.bf16.xpose.msra.mxu0 0
    %13032 = vmatprep.subr.bf16.mxu0 0
    %13033 = vmatpush1.bf16.xpose.msra.mxu0 0
    %13034 = vmatprep.subr.bf16.mxu0 0
    %13035 = vmatpush1.bf16.xpose.msra.mxu0 0
    %13036 = vmatprep.subr.bf16.mxu0 0
    %13037 = vmatpush1.bf16.xpose.msra.mxu0 0
    %13038 = vmatprep.subr.bf16.mxu0 0
    %13039 = vmatpush1.bf16.xpose.msra.mxu0 0
    %13040 = vmatprep.subr.bf16.mxu0 0
    %13041 = vmatpush1.bf16.xpose.msra.mxu0 0
    %13042 = vmatprep.mubr.bf16.mxu0 %v592
    %13043 = vmatmul.mubr.bf16.gmra.mrb[0].mxu0 %v591
    %v13044 = vpop.f32.mrb[0].mxu0
    %v13045 = vadd.f32 %v13004, %v13044
    %v13046 = vpop.f32.mrb[0].mxu0
    %v13047 = vpop.f32.mrb[0].mxu0
    %v13048 = vadd.f32 %v13007, %v13047
    %v13049 = vpop.f32.mrb[0].mxu0
    %13050 = vdwg.mxu0
    %13051 = vmatprep.subr.bf16.mxu0 %v7069
    %13052 = vmatpush1.bf16.xpose.msra.mxu0 %v7068
    %13053 = vmatprep.subr.bf16.mxu0 %v7265
    %13054 = vmatpush1.bf16.xpose.msra.mxu0 %v7264
    %13055 = vmatprep.subr.bf16.mxu0 %v7461
    %13056 = vmatpush1.bf16.xpose.msra.mxu0 %v7460
    %13057 = vmatprep.subr.bf16.mxu0 %v7657
    %13058 = vmatpush1.bf16.xpose.msra.mxu0 %v7656
    %13059 = vmatprep.subr.bf16.mxu0 %v7853
    %13060 = vmatpush1.bf16.xpose.msra.mxu0 %v7852
    %13061 = vmatprep.subr.bf16.mxu0 %v8049
    %13062 = vmatpush1.bf16.xpose.msra.mxu0 %v8048
    %13063 = vmatprep.subr.bf16.mxu0 %v8245
    %13064 = vmatpush1.bf16.xpose.msra.mxu0 %v8244
    %13065 = vmatprep.subr.bf16.mxu0 %v8441
    %13066 = vmatpush1.bf16.xpose.msra.mxu0 %v8440
    %13067 = vmatprep.subr.bf16.mxu0 0
    %13068 = vmatpush1.bf16.xpose.msra.mxu0 0
    %13069 = vmatprep.subr.bf16.mxu0 0
    %13070 = vmatpush1.bf16.xpose.msra.mxu0 0
    %13071 = vmatprep.subr.bf16.mxu0 0
    %13072 = vmatpush1.bf16.xpose.msra.mxu0 0
    %13073 = vmatprep.subr.bf16.mxu0 0
    %13074 = vmatpush1.bf16.xpose.msra.mxu0 0
    %13075 = vmatprep.subr.bf16.mxu0 0
    %13076 = vmatpush1.bf16.xpose.msra.mxu0 0
    %13077 = vmatprep.subr.bf16.mxu0 0
    %13078 = vmatpush1.bf16.xpose.msra.mxu0 0
    %13079 = vmatprep.subr.bf16.mxu0 0
    %13080 = vmatpush1.bf16.xpose.msra.mxu0 0
    %13081 = vmatprep.subr.bf16.mxu0 0
    %13082 = vmatpush1.bf16.xpose.msra.mxu0 0
    %13083 = vmatprep.mubr.bf16.mxu0 %v594
    %13084 = vmatmul.mubr.bf16.gmra.mrb[0].mxu0 %v593
    %v13085 = vpop.f32.mrb[0].mxu0
    %v13086 = vadd.f32 %v13045, %v13085
    %v13087 = vpop.f32.mrb[0].mxu0
    %v13088 = vpop.f32.mrb[0].mxu0
    %v13089 = vadd.f32 %v13048, %v13088
    %v13090 = vpop.f32.mrb[0].mxu0
    %13091 = vdwg.mxu0
    %13092 = vmatprep.subr.bf16.mxu0 %v7071
    %13093 = vmatpush1.bf16.xpose.msra.mxu0 %v7070
    %13094 = vmatprep.subr.bf16.mxu0 %v7267
    %13095 = vmatpush1.bf16.xpose.msra.mxu0 %v7266
    %13096 = vmatprep.subr.bf16.mxu0 %v7463
    %13097 = vmatpush1.bf16.xpose.msra.mxu0 %v7462
    %13098 = vmatprep.subr.bf16.mxu0 %v7659
    %13099 = vmatpush1.bf16.xpose.msra.mxu0 %v7658
    %13100 = vmatprep.subr.bf16.mxu0 %v7855
    %13101 = vmatpush1.bf16.xpose.msra.mxu0 %v7854
    %13102 = vmatprep.subr.bf16.mxu0 %v8051
    %13103 = vmatpush1.bf16.xpose.msra.mxu0 %v8050
    %13104 = vmatprep.subr.bf16.mxu0 %v8247
    %13105 = vmatpush1.bf16.xpose.msra.mxu0 %v8246
    %13106 = vmatprep.subr.bf16.mxu0 %v8443
    %13107 = vmatpush1.bf16.xpose.msra.mxu0 %v8442
    %13108 = vmatprep.subr.bf16.mxu0 0
    %13109 = vmatpush1.bf16.xpose.msra.mxu0 0
    %13110 = vmatprep.subr.bf16.mxu0 0
    %13111 = vmatpush1.bf16.xpose.msra.mxu0 0
    %13112 = vmatprep.subr.bf16.mxu0 0
    %13113 = vmatpush1.bf16.xpose.msra.mxu0 0
    %13114 = vmatprep.subr.bf16.mxu0 0
    %13115 = vmatpush1.bf16.xpose.msra.mxu0 0
    %13116 = vmatprep.subr.bf16.mxu0 0
    %13117 = vmatpush1.bf16.xpose.msra.mxu0 0
    %13118 = vmatprep.subr.bf16.mxu0 0
    %13119 = vmatpush1.bf16.xpose.msra.mxu0 0
    %13120 = vmatprep.subr.bf16.mxu0 0
    %13121 = vmatpush1.bf16.xpose.msra.mxu0 0
    %13122 = vmatprep.subr.bf16.mxu0 0
    %13123 = vmatpush1.bf16.xpose.msra.mxu0 0
    %13124 = vmatprep.mubr.bf16.mxu0 %v596
    %13125 = vmatmul.mubr.bf16.gmra.mrb[0].mxu0 %v595
    %v13126 = vpop.f32.mrb[0].mxu0
    %v13127 = vadd.f32 %v13086, %v13126
    %v13128 = vpop.f32.mrb[0].mxu0
    %v13129 = vpop.f32.mrb[0].mxu0
    %v13130 = vadd.f32 %v13089, %v13129
    %v13131 = vpop.f32.mrb[0].mxu0
    %13132 = vdwg.mxu0
    %13133 = vmatprep.subr.bf16.mxu0 %v7073
    %13134 = vmatpush1.bf16.xpose.msra.mxu0 %v7072
    %13135 = vmatprep.subr.bf16.mxu0 %v7269
    %13136 = vmatpush1.bf16.xpose.msra.mxu0 %v7268
    %13137 = vmatprep.subr.bf16.mxu0 %v7465
    %13138 = vmatpush1.bf16.xpose.msra.mxu0 %v7464
    %13139 = vmatprep.subr.bf16.mxu0 %v7661
    %13140 = vmatpush1.bf16.xpose.msra.mxu0 %v7660
    %13141 = vmatprep.subr.bf16.mxu0 %v7857
    %13142 = vmatpush1.bf16.xpose.msra.mxu0 %v7856
    %13143 = vmatprep.subr.bf16.mxu0 %v8053
    %13144 = vmatpush1.bf16.xpose.msra.mxu0 %v8052
    %13145 = vmatprep.subr.bf16.mxu0 %v8249
    %13146 = vmatpush1.bf16.xpose.msra.mxu0 %v8248
    %13147 = vmatprep.subr.bf16.mxu0 %v8445
    %13148 = vmatpush1.bf16.xpose.msra.mxu0 %v8444
    %13149 = vmatprep.subr.bf16.mxu0 0
    %13150 = vmatpush1.bf16.xpose.msra.mxu0 0
    %13151 = vmatprep.subr.bf16.mxu0 0
    %13152 = vmatpush1.bf16.xpose.msra.mxu0 0
    %13153 = vmatprep.subr.bf16.mxu0 0
    %13154 = vmatpush1.bf16.xpose.msra.mxu0 0
    %13155 = vmatprep.subr.bf16.mxu0 0
    %13156 = vmatpush1.bf16.xpose.msra.mxu0 0
    %13157 = vmatprep.subr.bf16.mxu0 0
    %13158 = vmatpush1.bf16.xpose.msra.mxu0 0
    %13159 = vmatprep.subr.bf16.mxu0 0
    %13160 = vmatpush1.bf16.xpose.msra.mxu0 0
    %13161 = vmatprep.subr.bf16.mxu0 0
    %13162 = vmatpush1.bf16.xpose.msra.mxu0 0
    %13163 = vmatprep.subr.bf16.mxu0 0
    %13164 = vmatpush1.bf16.xpose.msra.mxu0 0
    %13165 = vmatprep.mubr.bf16.mxu0 %v598
    %13166 = vmatmul.mubr.bf16.gmra.mrb[0].mxu0 %v597
    %v13167 = vpop.f32.mrb[0].mxu0
    %v13168 = vadd.f32 %v13127, %v13167
    %v13169 = vpop.f32.mrb[0].mxu0
    %v13170 = vpop.f32.mrb[0].mxu0
    %v13171 = vadd.f32 %v13130, %v13170
    %v13172 = vpop.f32.mrb[0].mxu0
    %13173 = vdwg.mxu0
    %13174 = vmatprep.subr.bf16.mxu0 %v7075
    %13175 = vmatpush1.bf16.xpose.msra.mxu0 %v7074
    %13176 = vmatprep.subr.bf16.mxu0 %v7271
    %13177 = vmatpush1.bf16.xpose.msra.mxu0 %v7270
    %13178 = vmatprep.subr.bf16.mxu0 %v7467
    %13179 = vmatpush1.bf16.xpose.msra.mxu0 %v7466
    %13180 = vmatprep.subr.bf16.mxu0 %v7663
    %13181 = vmatpush1.bf16.xpose.msra.mxu0 %v7662
    %13182 = vmatprep.subr.bf16.mxu0 %v7859
    %13183 = vmatpush1.bf16.xpose.msra.mxu0 %v7858
    %13184 = vmatprep.subr.bf16.mxu0 %v8055
    %13185 = vmatpush1.bf16.xpose.msra.mxu0 %v8054
    %13186 = vmatprep.subr.bf16.mxu0 %v8251
    %13187 = vmatpush1.bf16.xpose.msra.mxu0 %v8250
    %13188 = vmatprep.subr.bf16.mxu0 %v8447
    %13189 = vmatpush1.bf16.xpose.msra.mxu0 %v8446
    %13190 = vmatprep.subr.bf16.mxu0 0
    %13191 = vmatpush1.bf16.xpose.msra.mxu0 0
    %13192 = vmatprep.subr.bf16.mxu0 0
    %13193 = vmatpush1.bf16.xpose.msra.mxu0 0
    %13194 = vmatprep.subr.bf16.mxu0 0
    %13195 = vmatpush1.bf16.xpose.msra.mxu0 0
    %13196 = vmatprep.subr.bf16.mxu0 0
    %13197 = vmatpush1.bf16.xpose.msra.mxu0 0
    %13198 = vmatprep.subr.bf16.mxu0 0
    %13199 = vmatpush1.bf16.xpose.msra.mxu0 0
    %13200 = vmatprep.subr.bf16.mxu0 0
    %13201 = vmatpush1.bf16.xpose.msra.mxu0 0
    %13202 = vmatprep.subr.bf16.mxu0 0
    %13203 = vmatpush1.bf16.xpose.msra.mxu0 0
    %13204 = vmatprep.subr.bf16.mxu0 0
    %13205 = vmatpush1.bf16.xpose.msra.mxu0 0
    %13206 = vmatprep.mubr.bf16.mxu0 %v600
    %13207 = vmatmul.mubr.bf16.gmra.mrb[0].mxu0 %v599
    %v13208 = vpop.f32.mrb[0].mxu0
    %v13209 = vadd.f32 %v13168, %v13208
    %v13210 = vpop.f32.mrb[0].mxu0
    %v13211 = vpop.f32.mrb[0].mxu0
    %v13212 = vadd.f32 %v13171, %v13211
    %v13213 = vpop.f32.mrb[0].mxu0
    %13214 = vdwg.mxu0
    %13215 = vmatprep.subr.bf16.mxu0 %v7077
    %13216 = vmatpush1.bf16.xpose.msra.mxu0 %v7076
    %13217 = vmatprep.subr.bf16.mxu0 %v7273
    %13218 = vmatpush1.bf16.xpose.msra.mxu0 %v7272
    %13219 = vmatprep.subr.bf16.mxu0 %v7469
    %13220 = vmatpush1.bf16.xpose.msra.mxu0 %v7468
    %13221 = vmatprep.subr.bf16.mxu0 %v7665
    %13222 = vmatpush1.bf16.xpose.msra.mxu0 %v7664
    %13223 = vmatprep.subr.bf16.mxu0 %v7861
    %13224 = vmatpush1.bf16.xpose.msra.mxu0 %v7860
    %13225 = vmatprep.subr.bf16.mxu0 %v8057
    %13226 = vmatpush1.bf16.xpose.msra.mxu0 %v8056
    %13227 = vmatprep.subr.bf16.mxu0 %v8253
    %13228 = vmatpush1.bf16.xpose.msra.mxu0 %v8252
    %13229 = vmatprep.subr.bf16.mxu0 %v8449
    %13230 = vmatpush1.bf16.xpose.msra.mxu0 %v8448
    %13231 = vmatprep.subr.bf16.mxu0 0
    %13232 = vmatpush1.bf16.xpose.msra.mxu0 0
    %13233 = vmatprep.subr.bf16.mxu0 0
    %13234 = vmatpush1.bf16.xpose.msra.mxu0 0
    %13235 = vmatprep.subr.bf16.mxu0 0
    %13236 = vmatpush1.bf16.xpose.msra.mxu0 0
    %13237 = vmatprep.subr.bf16.mxu0 0
    %13238 = vmatpush1.bf16.xpose.msra.mxu0 0
    %13239 = vmatprep.subr.bf16.mxu0 0
    %13240 = vmatpush1.bf16.xpose.msra.mxu0 0
    %13241 = vmatprep.subr.bf16.mxu0 0
    %13242 = vmatpush1.bf16.xpose.msra.mxu0 0
    %13243 = vmatprep.subr.bf16.mxu0 0
    %13244 = vmatpush1.bf16.xpose.msra.mxu0 0
    %13245 = vmatprep.subr.bf16.mxu0 0
    %13246 = vmatpush1.bf16.xpose.msra.mxu0 0
    %13247 = vmatprep.mubr.bf16.mxu0 %v602
    %13248 = vmatmul.mubr.bf16.gmra.mrb[0].mxu0 %v601
    %v13249 = vpop.f32.mrb[0].mxu0
    %v13250 = vadd.f32 %v13209, %v13249
    %v13251 = vpop.f32.mrb[0].mxu0
    %v13252 = vpop.f32.mrb[0].mxu0
    %v13253 = vadd.f32 %v13212, %v13252
    %v13254 = vpop.f32.mrb[0].mxu0
    %13255 = vdwg.mxu0
    %13256 = vmatprep.subr.bf16.mxu0 %v7079
    %13257 = vmatpush1.bf16.xpose.msra.mxu0 %v7078
    %13258 = vmatprep.subr.bf16.mxu0 %v7275
    %13259 = vmatpush1.bf16.xpose.msra.mxu0 %v7274
    %13260 = vmatprep.subr.bf16.mxu0 %v7471
    %13261 = vmatpush1.bf16.xpose.msra.mxu0 %v7470
    %13262 = vmatprep.subr.bf16.mxu0 %v7667
    %13263 = vmatpush1.bf16.xpose.msra.mxu0 %v7666
    %13264 = vmatprep.subr.bf16.mxu0 %v7863
    %13265 = vmatpush1.bf16.xpose.msra.mxu0 %v7862
    %13266 = vmatprep.subr.bf16.mxu0 %v8059
    %13267 = vmatpush1.bf16.xpose.msra.mxu0 %v8058
    %13268 = vmatprep.subr.bf16.mxu0 %v8255
    %13269 = vmatpush1.bf16.xpose.msra.mxu0 %v8254
    %13270 = vmatprep.subr.bf16.mxu0 %v8451
    %13271 = vmatpush1.bf16.xpose.msra.mxu0 %v8450
    %13272 = vmatprep.subr.bf16.mxu0 0
    %13273 = vmatpush1.bf16.xpose.msra.mxu0 0
    %13274 = vmatprep.subr.bf16.mxu0 0
    %13275 = vmatpush1.bf16.xpose.msra.mxu0 0
    %13276 = vmatprep.subr.bf16.mxu0 0
    %13277 = vmatpush1.bf16.xpose.msra.mxu0 0
    %13278 = vmatprep.subr.bf16.mxu0 0
    %13279 = vmatpush1.bf16.xpose.msra.mxu0 0
    %13280 = vmatprep.subr.bf16.mxu0 0
    %13281 = vmatpush1.bf16.xpose.msra.mxu0 0
    %13282 = vmatprep.subr.bf16.mxu0 0
    %13283 = vmatpush1.bf16.xpose.msra.mxu0 0
    %13284 = vmatprep.subr.bf16.mxu0 0
    %13285 = vmatpush1.bf16.xpose.msra.mxu0 0
    %13286 = vmatprep.subr.bf16.mxu0 0
    %13287 = vmatpush1.bf16.xpose.msra.mxu0 0
    %13288 = vmatprep.mubr.bf16.mxu0 %v604
    %13289 = vmatmul.mubr.bf16.gmra.mrb[0].mxu0 %v603
    %v13290 = vpop.f32.mrb[0].mxu0
    %v13291 = vadd.f32 %v13250, %v13290
    %v13292 = vpop.f32.mrb[0].mxu0
    %v13293 = vpop.f32.mrb[0].mxu0
    %v13294 = vadd.f32 %v13253, %v13293
    %v13295 = vpop.f32.mrb[0].mxu0
    %13296 = vdwg.mxu0
    %13297 = vmatprep.subr.bf16.mxu0 %v7081
    %13298 = vmatpush1.bf16.xpose.msra.mxu0 %v7080
    %13299 = vmatprep.subr.bf16.mxu0 %v7277
    %13300 = vmatpush1.bf16.xpose.msra.mxu0 %v7276
    %13301 = vmatprep.subr.bf16.mxu0 %v7473
    %13302 = vmatpush1.bf16.xpose.msra.mxu0 %v7472
    %13303 = vmatprep.subr.bf16.mxu0 %v7669
    %13304 = vmatpush1.bf16.xpose.msra.mxu0 %v7668
    %13305 = vmatprep.subr.bf16.mxu0 %v7865
    %13306 = vmatpush1.bf16.xpose.msra.mxu0 %v7864
    %13307 = vmatprep.subr.bf16.mxu0 %v8061
    %13308 = vmatpush1.bf16.xpose.msra.mxu0 %v8060
    %13309 = vmatprep.subr.bf16.mxu0 %v8257
    %13310 = vmatpush1.bf16.xpose.msra.mxu0 %v8256
    %13311 = vmatprep.subr.bf16.mxu0 %v8453
    %13312 = vmatpush1.bf16.xpose.msra.mxu0 %v8452
    %13313 = vmatprep.subr.bf16.mxu0 0
    %13314 = vmatpush1.bf16.xpose.msra.mxu0 0
    %13315 = vmatprep.subr.bf16.mxu0 0
    %13316 = vmatpush1.bf16.xpose.msra.mxu0 0
    %13317 = vmatprep.subr.bf16.mxu0 0
    %13318 = vmatpush1.bf16.xpose.msra.mxu0 0
    %13319 = vmatprep.subr.bf16.mxu0 0
    %13320 = vmatpush1.bf16.xpose.msra.mxu0 0
    %13321 = vmatprep.subr.bf16.mxu0 0
    %13322 = vmatpush1.bf16.xpose.msra.mxu0 0
    %13323 = vmatprep.subr.bf16.mxu0 0
    %13324 = vmatpush1.bf16.xpose.msra.mxu0 0
    %13325 = vmatprep.subr.bf16.mxu0 0
    %13326 = vmatpush1.bf16.xpose.msra.mxu0 0
    %13327 = vmatprep.subr.bf16.mxu0 0
    %13328 = vmatpush1.bf16.xpose.msra.mxu0 0
    %13329 = vmatprep.mubr.bf16.mxu0 %v606
    %13330 = vmatmul.mubr.bf16.gmra.mrb[0].mxu0 %v605
    %v13331 = vpop.f32.mrb[0].mxu0
    %v13332 = vadd.f32 %v13291, %v13331
    %v13333 = vpop.f32.mrb[0].mxu0
    %v13334 = vpop.f32.mrb[0].mxu0
    %v13335 = vadd.f32 %v13294, %v13334
    %v13336 = vpop.f32.mrb[0].mxu0
    %13337 = vdwg.mxu0
    %13338 = vmatprep.subr.bf16.mxu0 %v7083
    %13339 = vmatpush1.bf16.xpose.msra.mxu0 %v7082
    %13340 = vmatprep.subr.bf16.mxu0 %v7279
    %13341 = vmatpush1.bf16.xpose.msra.mxu0 %v7278
    %13342 = vmatprep.subr.bf16.mxu0 %v7475
    %13343 = vmatpush1.bf16.xpose.msra.mxu0 %v7474
    %13344 = vmatprep.subr.bf16.mxu0 %v7671
    %13345 = vmatpush1.bf16.xpose.msra.mxu0 %v7670
    %13346 = vmatprep.subr.bf16.mxu0 %v7867
    %13347 = vmatpush1.bf16.xpose.msra.mxu0 %v7866
    %13348 = vmatprep.subr.bf16.mxu0 %v8063
    %13349 = vmatpush1.bf16.xpose.msra.mxu0 %v8062
    %13350 = vmatprep.subr.bf16.mxu0 %v8259
    %13351 = vmatpush1.bf16.xpose.msra.mxu0 %v8258
    %13352 = vmatprep.subr.bf16.mxu0 %v8455
    %13353 = vmatpush1.bf16.xpose.msra.mxu0 %v8454
    %13354 = vmatprep.subr.bf16.mxu0 0
    %13355 = vmatpush1.bf16.xpose.msra.mxu0 0
    %13356 = vmatprep.subr.bf16.mxu0 0
    %13357 = vmatpush1.bf16.xpose.msra.mxu0 0
    %13358 = vmatprep.subr.bf16.mxu0 0
    %13359 = vmatpush1.bf16.xpose.msra.mxu0 0
    %13360 = vmatprep.subr.bf16.mxu0 0
    %13361 = vmatpush1.bf16.xpose.msra.mxu0 0
    %13362 = vmatprep.subr.bf16.mxu0 0
    %13363 = vmatpush1.bf16.xpose.msra.mxu0 0
    %13364 = vmatprep.subr.bf16.mxu0 0
    %13365 = vmatpush1.bf16.xpose.msra.mxu0 0
    %13366 = vmatprep.subr.bf16.mxu0 0
    %13367 = vmatpush1.bf16.xpose.msra.mxu0 0
    %13368 = vmatprep.subr.bf16.mxu0 0
    %13369 = vmatpush1.bf16.xpose.msra.mxu0 0
    %13370 = vmatprep.mubr.bf16.mxu0 %v608
    %13371 = vmatmul.mubr.bf16.gmra.mrb[0].mxu0 %v607
    %v13372 = vpop.f32.mrb[0].mxu0
    %v13373 = vadd.f32 %v13332, %v13372
    %v13374 = vpop.f32.mrb[0].mxu0
    %v13375 = vpop.f32.mrb[0].mxu0
    %v13376 = vadd.f32 %v13335, %v13375
    %v13377 = vpop.f32.mrb[0].mxu0
    %13378 = vdwg.mxu0
    %13379 = vmatprep.subr.bf16.mxu0 %v7085
    %13380 = vmatpush1.bf16.xpose.msra.mxu0 %v7084
    %13381 = vmatprep.subr.bf16.mxu0 %v7281
    %13382 = vmatpush1.bf16.xpose.msra.mxu0 %v7280
    %13383 = vmatprep.subr.bf16.mxu0 %v7477
    %13384 = vmatpush1.bf16.xpose.msra.mxu0 %v7476
    %13385 = vmatprep.subr.bf16.mxu0 %v7673
    %13386 = vmatpush1.bf16.xpose.msra.mxu0 %v7672
    %13387 = vmatprep.subr.bf16.mxu0 %v7869
    %13388 = vmatpush1.bf16.xpose.msra.mxu0 %v7868
    %13389 = vmatprep.subr.bf16.mxu0 %v8065
    %13390 = vmatpush1.bf16.xpose.msra.mxu0 %v8064
    %13391 = vmatprep.subr.bf16.mxu0 %v8261
    %13392 = vmatpush1.bf16.xpose.msra.mxu0 %v8260
    %13393 = vmatprep.subr.bf16.mxu0 %v8457
    %13394 = vmatpush1.bf16.xpose.msra.mxu0 %v8456
    %13395 = vmatprep.subr.bf16.mxu0 0
    %13396 = vmatpush1.bf16.xpose.msra.mxu0 0
    %13397 = vmatprep.subr.bf16.mxu0 0
    %13398 = vmatpush1.bf16.xpose.msra.mxu0 0
    %13399 = vmatprep.subr.bf16.mxu0 0
    %13400 = vmatpush1.bf16.xpose.msra.mxu0 0
    %13401 = vmatprep.subr.bf16.mxu0 0
    %13402 = vmatpush1.bf16.xpose.msra.mxu0 0
    %13403 = vmatprep.subr.bf16.mxu0 0
    %13404 = vmatpush1.bf16.xpose.msra.mxu0 0
    %13405 = vmatprep.subr.bf16.mxu0 0
    %13406 = vmatpush1.bf16.xpose.msra.mxu0 0
    %13407 = vmatprep.subr.bf16.mxu0 0
    %13408 = vmatpush1.bf16.xpose.msra.mxu0 0
    %13409 = vmatprep.subr.bf16.mxu0 0
    %13410 = vmatpush1.bf16.xpose.msra.mxu0 0
    %13411 = vmatprep.mubr.bf16.mxu0 %v610
    %13412 = vmatmul.mubr.bf16.gmra.mrb[0].mxu0 %v609
    %v13413 = vpop.f32.mrb[0].mxu0
    %v13414 = vadd.f32 %v13373, %v13413
    %v13415 = vpop.f32.mrb[0].mxu0
    %v13416 = vpop.f32.mrb[0].mxu0
    %v13417 = vadd.f32 %v13376, %v13416
    %v13418 = vpop.f32.mrb[0].mxu0
    %13419 = vdwg.mxu0
    %13420 = vmatprep.subr.bf16.mxu0 %v7087
    %13421 = vmatpush1.bf16.xpose.msra.mxu0 %v7086
    %13422 = vmatprep.subr.bf16.mxu0 %v7283
    %13423 = vmatpush1.bf16.xpose.msra.mxu0 %v7282
    %13424 = vmatprep.subr.bf16.mxu0 %v7479
    %13425 = vmatpush1.bf16.xpose.msra.mxu0 %v7478
    %13426 = vmatprep.subr.bf16.mxu0 %v7675
    %13427 = vmatpush1.bf16.xpose.msra.mxu0 %v7674
    %13428 = vmatprep.subr.bf16.mxu0 %v7871
    %13429 = vmatpush1.bf16.xpose.msra.mxu0 %v7870
    %13430 = vmatprep.subr.bf16.mxu0 %v8067
    %13431 = vmatpush1.bf16.xpose.msra.mxu0 %v8066
    %13432 = vmatprep.subr.bf16.mxu0 %v8263
    %13433 = vmatpush1.bf16.xpose.msra.mxu0 %v8262
    %13434 = vmatprep.subr.bf16.mxu0 %v8459
    %13435 = vmatpush1.bf16.xpose.msra.mxu0 %v8458
    %13436 = vmatprep.subr.bf16.mxu0 0
    %13437 = vmatpush1.bf16.xpose.msra.mxu0 0
    %13438 = vmatprep.subr.bf16.mxu0 0
    %13439 = vmatpush1.bf16.xpose.msra.mxu0 0
    %13440 = vmatprep.subr.bf16.mxu0 0
    %13441 = vmatpush1.bf16.xpose.msra.mxu0 0
    %13442 = vmatprep.subr.bf16.mxu0 0
    %13443 = vmatpush1.bf16.xpose.msra.mxu0 0
    %13444 = vmatprep.subr.bf16.mxu0 0
    %13445 = vmatpush1.bf16.xpose.msra.mxu0 0
    %13446 = vmatprep.subr.bf16.mxu0 0
    %13447 = vmatpush1.bf16.xpose.msra.mxu0 0
    %13448 = vmatprep.subr.bf16.mxu0 0
    %13449 = vmatpush1.bf16.xpose.msra.mxu0 0
    %13450 = vmatprep.subr.bf16.mxu0 0
    %13451 = vmatpush1.bf16.xpose.msra.mxu0 0
    %13452 = vmatprep.mubr.bf16.mxu0 %v612
    %13453 = vmatmul.mubr.bf16.gmra.mrb[0].mxu0 %v611
    %v13454 = vpop.f32.mrb[0].mxu0
    %v13455 = vadd.f32 %v13414, %v13454
    %v13456 = vpop.f32.mrb[0].mxu0
    %v13457 = vpop.f32.mrb[0].mxu0
    %v13458 = vadd.f32 %v13417, %v13457
    %v13459 = vpop.f32.mrb[0].mxu0
    %13460 = vdwg.mxu0
    %13461 = vmatprep.subr.bf16.mxu0 %v7089
    %13462 = vmatpush1.bf16.xpose.msra.mxu0 %v7088
    %13463 = vmatprep.subr.bf16.mxu0 %v7285
    %13464 = vmatpush1.bf16.xpose.msra.mxu0 %v7284
    %13465 = vmatprep.subr.bf16.mxu0 %v7481
    %13466 = vmatpush1.bf16.xpose.msra.mxu0 %v7480
    %13467 = vmatprep.subr.bf16.mxu0 %v7677
    %13468 = vmatpush1.bf16.xpose.msra.mxu0 %v7676
    %13469 = vmatprep.subr.bf16.mxu0 %v7873
    %13470 = vmatpush1.bf16.xpose.msra.mxu0 %v7872
    %13471 = vmatprep.subr.bf16.mxu0 %v8069
    %13472 = vmatpush1.bf16.xpose.msra.mxu0 %v8068
    %13473 = vmatprep.subr.bf16.mxu0 %v8265
    %13474 = vmatpush1.bf16.xpose.msra.mxu0 %v8264
    %13475 = vmatprep.subr.bf16.mxu0 %v8461
    %13476 = vmatpush1.bf16.xpose.msra.mxu0 %v8460
    %13477 = vmatprep.subr.bf16.mxu0 0
    %13478 = vmatpush1.bf16.xpose.msra.mxu0 0
    %13479 = vmatprep.subr.bf16.mxu0 0
    %13480 = vmatpush1.bf16.xpose.msra.mxu0 0
    %13481 = vmatprep.subr.bf16.mxu0 0
    %13482 = vmatpush1.bf16.xpose.msra.mxu0 0
    %13483 = vmatprep.subr.bf16.mxu0 0
    %13484 = vmatpush1.bf16.xpose.msra.mxu0 0
    %13485 = vmatprep.subr.bf16.mxu0 0
    %13486 = vmatpush1.bf16.xpose.msra.mxu0 0
    %13487 = vmatprep.subr.bf16.mxu0 0
    %13488 = vmatpush1.bf16.xpose.msra.mxu0 0
    %13489 = vmatprep.subr.bf16.mxu0 0
    %13490 = vmatpush1.bf16.xpose.msra.mxu0 0
    %13491 = vmatprep.subr.bf16.mxu0 0
    %13492 = vmatpush1.bf16.xpose.msra.mxu0 0
    %13493 = vmatprep.mubr.bf16.mxu0 %v614
    %13494 = vmatmul.mubr.bf16.gmra.mrb[0].mxu0 %v613
    %v13495 = vpop.f32.mrb[0].mxu0
    %v13496 = vadd.f32 %v13455, %v13495
    %v13497 = vpop.f32.mrb[0].mxu0
    %v13498 = vpop.f32.mrb[0].mxu0
    %v13499 = vadd.f32 %v13458, %v13498
    %v13500 = vpop.f32.mrb[0].mxu0
    %13501 = vdwg.mxu0
    %13502 = vmatprep.subr.bf16.mxu0 %v7091
    %13503 = vmatpush1.bf16.xpose.msra.mxu0 %v7090
    %13504 = vmatprep.subr.bf16.mxu0 %v7287
    %13505 = vmatpush1.bf16.xpose.msra.mxu0 %v7286
    %13506 = vmatprep.subr.bf16.mxu0 %v7483
    %13507 = vmatpush1.bf16.xpose.msra.mxu0 %v7482
    %13508 = vmatprep.subr.bf16.mxu0 %v7679
    %13509 = vmatpush1.bf16.xpose.msra.mxu0 %v7678
    %13510 = vmatprep.subr.bf16.mxu0 %v7875
    %13511 = vmatpush1.bf16.xpose.msra.mxu0 %v7874
    %13512 = vmatprep.subr.bf16.mxu0 %v8071
    %13513 = vmatpush1.bf16.xpose.msra.mxu0 %v8070
    %13514 = vmatprep.subr.bf16.mxu0 %v8267
    %13515 = vmatpush1.bf16.xpose.msra.mxu0 %v8266
    %13516 = vmatprep.subr.bf16.mxu0 %v8463
    %13517 = vmatpush1.bf16.xpose.msra.mxu0 %v8462
    %13518 = vmatprep.subr.bf16.mxu0 0
    %13519 = vmatpush1.bf16.xpose.msra.mxu0 0
    %13520 = vmatprep.subr.bf16.mxu0 0
    %13521 = vmatpush1.bf16.xpose.msra.mxu0 0
    %13522 = vmatprep.subr.bf16.mxu0 0
    %13523 = vmatpush1.bf16.xpose.msra.mxu0 0
    %13524 = vmatprep.subr.bf16.mxu0 0
    %13525 = vmatpush1.bf16.xpose.msra.mxu0 0
    %13526 = vmatprep.subr.bf16.mxu0 0
    %13527 = vmatpush1.bf16.xpose.msra.mxu0 0
    %13528 = vmatprep.subr.bf16.mxu0 0
    %13529 = vmatpush1.bf16.xpose.msra.mxu0 0
    %13530 = vmatprep.subr.bf16.mxu0 0
    %13531 = vmatpush1.bf16.xpose.msra.mxu0 0
    %13532 = vmatprep.subr.bf16.mxu0 0
    %13533 = vmatpush1.bf16.xpose.msra.mxu0 0
    %13534 = vmatprep.mubr.bf16.mxu0 %v616
    %13535 = vmatmul.mubr.bf16.gmra.mrb[0].mxu0 %v615
    %v13536 = vpop.f32.mrb[0].mxu0
    %v13537 = vadd.f32 %v13496, %v13536
    %v13538 = vpop.f32.mrb[0].mxu0
    %v13539 = vpop.f32.mrb[0].mxu0
    %v13540 = vadd.f32 %v13499, %v13539
    %v13541 = vpop.f32.mrb[0].mxu0
    %13542 = vdwg.mxu0
    %13543 = vmatprep.subr.bf16.mxu0 %v7093
    %13544 = vmatpush1.bf16.xpose.msra.mxu0 %v7092
    %13545 = vmatprep.subr.bf16.mxu0 %v7289
    %13546 = vmatpush1.bf16.xpose.msra.mxu0 %v7288
    %13547 = vmatprep.subr.bf16.mxu0 %v7485
    %13548 = vmatpush1.bf16.xpose.msra.mxu0 %v7484
    %13549 = vmatprep.subr.bf16.mxu0 %v7681
    %13550 = vmatpush1.bf16.xpose.msra.mxu0 %v7680
    %13551 = vmatprep.subr.bf16.mxu0 %v7877
    %13552 = vmatpush1.bf16.xpose.msra.mxu0 %v7876
    %13553 = vmatprep.subr.bf16.mxu0 %v8073
    %13554 = vmatpush1.bf16.xpose.msra.mxu0 %v8072
    %13555 = vmatprep.subr.bf16.mxu0 %v8269
    %13556 = vmatpush1.bf16.xpose.msra.mxu0 %v8268
    %13557 = vmatprep.subr.bf16.mxu0 %v8465
    %13558 = vmatpush1.bf16.xpose.msra.mxu0 %v8464
    %13559 = vmatprep.subr.bf16.mxu0 0
    %13560 = vmatpush1.bf16.xpose.msra.mxu0 0
    %13561 = vmatprep.subr.bf16.mxu0 0
    %13562 = vmatpush1.bf16.xpose.msra.mxu0 0
    %13563 = vmatprep.subr.bf16.mxu0 0
    %13564 = vmatpush1.bf16.xpose.msra.mxu0 0
    %13565 = vmatprep.subr.bf16.mxu0 0
    %13566 = vmatpush1.bf16.xpose.msra.mxu0 0
    %13567 = vmatprep.subr.bf16.mxu0 0
    %13568 = vmatpush1.bf16.xpose.msra.mxu0 0
    %13569 = vmatprep.subr.bf16.mxu0 0
    %13570 = vmatpush1.bf16.xpose.msra.mxu0 0
    %13571 = vmatprep.subr.bf16.mxu0 0
    %13572 = vmatpush1.bf16.xpose.msra.mxu0 0
    %13573 = vmatprep.subr.bf16.mxu0 0
    %13574 = vmatpush1.bf16.xpose.msra.mxu0 0
    %13575 = vmatprep.mubr.bf16.mxu0 %v618
    %13576 = vmatmul.mubr.bf16.gmra.mrb[0].mxu0 %v617
    %v13577 = vpop.f32.mrb[0].mxu0
    %v13578 = vadd.f32 %v13537, %v13577
    %v13579 = vpop.f32.mrb[0].mxu0
    %v13580 = vpop.f32.mrb[0].mxu0
    %v13581 = vadd.f32 %v13540, %v13580
    %v13582 = vpop.f32.mrb[0].mxu0
    %13583 = vdwg.mxu0
    %13584 = vmatprep.subr.bf16.mxu0 %v7095
    %13585 = vmatpush1.bf16.xpose.msra.mxu0 %v7094
    %13586 = vmatprep.subr.bf16.mxu0 %v7291
    %13587 = vmatpush1.bf16.xpose.msra.mxu0 %v7290
    %13588 = vmatprep.subr.bf16.mxu0 %v7487
    %13589 = vmatpush1.bf16.xpose.msra.mxu0 %v7486
    %13590 = vmatprep.subr.bf16.mxu0 %v7683
    %13591 = vmatpush1.bf16.xpose.msra.mxu0 %v7682
    %13592 = vmatprep.subr.bf16.mxu0 %v7879
    %13593 = vmatpush1.bf16.xpose.msra.mxu0 %v7878
    %13594 = vmatprep.subr.bf16.mxu0 %v8075
    %13595 = vmatpush1.bf16.xpose.msra.mxu0 %v8074
    %13596 = vmatprep.subr.bf16.mxu0 %v8271
    %13597 = vmatpush1.bf16.xpose.msra.mxu0 %v8270
    %13598 = vmatprep.subr.bf16.mxu0 %v8467
    %13599 = vmatpush1.bf16.xpose.msra.mxu0 %v8466
    %13600 = vmatprep.subr.bf16.mxu0 0
    %13601 = vmatpush1.bf16.xpose.msra.mxu0 0
    %13602 = vmatprep.subr.bf16.mxu0 0
    %13603 = vmatpush1.bf16.xpose.msra.mxu0 0
    %13604 = vmatprep.subr.bf16.mxu0 0
    %13605 = vmatpush1.bf16.xpose.msra.mxu0 0
    %13606 = vmatprep.subr.bf16.mxu0 0
    %13607 = vmatpush1.bf16.xpose.msra.mxu0 0
    %13608 = vmatprep.subr.bf16.mxu0 0
    %13609 = vmatpush1.bf16.xpose.msra.mxu0 0
    %13610 = vmatprep.subr.bf16.mxu0 0
    %13611 = vmatpush1.bf16.xpose.msra.mxu0 0
    %13612 = vmatprep.subr.bf16.mxu0 0
    %13613 = vmatpush1.bf16.xpose.msra.mxu0 0
    %13614 = vmatprep.subr.bf16.mxu0 0
    %13615 = vmatpush1.bf16.xpose.msra.mxu0 0
    %13616 = vmatprep.mubr.bf16.mxu0 %v620
    %13617 = vmatmul.mubr.bf16.gmra.mrb[0].mxu0 %v619
    %v13618 = vpop.f32.mrb[0].mxu0
    %v13619 = vadd.f32 %v13578, %v13618
    %v13620 = vpop.f32.mrb[0].mxu0
    %v13621 = vpop.f32.mrb[0].mxu0
    %v13622 = vadd.f32 %v13581, %v13621
    %v13623 = vpop.f32.mrb[0].mxu0
    %13624 = vdwg.mxu0
    %13625 = vmatprep.subr.bf16.mxu0 %v7097
    %13626 = vmatpush1.bf16.xpose.msra.mxu0 %v7096
    %13627 = vmatprep.subr.bf16.mxu0 %v7293
    %13628 = vmatpush1.bf16.xpose.msra.mxu0 %v7292
    %13629 = vmatprep.subr.bf16.mxu0 %v7489
    %13630 = vmatpush1.bf16.xpose.msra.mxu0 %v7488
    %13631 = vmatprep.subr.bf16.mxu0 %v7685
    %13632 = vmatpush1.bf16.xpose.msra.mxu0 %v7684
    %13633 = vmatprep.subr.bf16.mxu0 %v7881
    %13634 = vmatpush1.bf16.xpose.msra.mxu0 %v7880
    %13635 = vmatprep.subr.bf16.mxu0 %v8077
    %13636 = vmatpush1.bf16.xpose.msra.mxu0 %v8076
    %13637 = vmatprep.subr.bf16.mxu0 %v8273
    %13638 = vmatpush1.bf16.xpose.msra.mxu0 %v8272
    %13639 = vmatprep.subr.bf16.mxu0 %v8469
    %13640 = vmatpush1.bf16.xpose.msra.mxu0 %v8468
    %13641 = vmatprep.subr.bf16.mxu0 0
    %13642 = vmatpush1.bf16.xpose.msra.mxu0 0
    %13643 = vmatprep.subr.bf16.mxu0 0
    %13644 = vmatpush1.bf16.xpose.msra.mxu0 0
    %13645 = vmatprep.subr.bf16.mxu0 0
    %13646 = vmatpush1.bf16.xpose.msra.mxu0 0
    %13647 = vmatprep.subr.bf16.mxu0 0
    %13648 = vmatpush1.bf16.xpose.msra.mxu0 0
    %13649 = vmatprep.subr.bf16.mxu0 0
    %13650 = vmatpush1.bf16.xpose.msra.mxu0 0
    %13651 = vmatprep.subr.bf16.mxu0 0
    %13652 = vmatpush1.bf16.xpose.msra.mxu0 0
    %13653 = vmatprep.subr.bf16.mxu0 0
    %13654 = vmatpush1.bf16.xpose.msra.mxu0 0
    %13655 = vmatprep.subr.bf16.mxu0 0
    %13656 = vmatpush1.bf16.xpose.msra.mxu0 0
    %13657 = vmatprep.mubr.bf16.mxu0 %v622
    %13658 = vmatmul.mubr.bf16.gmra.mrb[0].mxu0 %v621
    %v13659 = vpop.f32.mrb[0].mxu0
    %v13660 = vadd.f32 %v13619, %v13659
    %v13661 = vpop.f32.mrb[0].mxu0
    %v13662 = vpop.f32.mrb[0].mxu0
    %v13663 = vadd.f32 %v13622, %v13662
    %v13664 = vpop.f32.mrb[0].mxu0
    %13665 = vdwg.mxu0
    %13666 = vmatprep.subr.bf16.mxu0 %v7099
    %13667 = vmatpush1.bf16.xpose.msra.mxu0 %v7098
    %13668 = vmatprep.subr.bf16.mxu0 %v7295
    %13669 = vmatpush1.bf16.xpose.msra.mxu0 %v7294
    %13670 = vmatprep.subr.bf16.mxu0 %v7491
    %13671 = vmatpush1.bf16.xpose.msra.mxu0 %v7490
    %13672 = vmatprep.subr.bf16.mxu0 %v7687
    %13673 = vmatpush1.bf16.xpose.msra.mxu0 %v7686
    %13674 = vmatprep.subr.bf16.mxu0 %v7883
    %13675 = vmatpush1.bf16.xpose.msra.mxu0 %v7882
    %13676 = vmatprep.subr.bf16.mxu0 %v8079
    %13677 = vmatpush1.bf16.xpose.msra.mxu0 %v8078
    %13678 = vmatprep.subr.bf16.mxu0 %v8275
    %13679 = vmatpush1.bf16.xpose.msra.mxu0 %v8274
    %13680 = vmatprep.subr.bf16.mxu0 %v8471
    %13681 = vmatpush1.bf16.xpose.msra.mxu0 %v8470
    %13682 = vmatprep.subr.bf16.mxu0 0
    %13683 = vmatpush1.bf16.xpose.msra.mxu0 0
    %13684 = vmatprep.subr.bf16.mxu0 0
    %13685 = vmatpush1.bf16.xpose.msra.mxu0 0
    %13686 = vmatprep.subr.bf16.mxu0 0
    %13687 = vmatpush1.bf16.xpose.msra.mxu0 0
    %13688 = vmatprep.subr.bf16.mxu0 0
    %13689 = vmatpush1.bf16.xpose.msra.mxu0 0
    %13690 = vmatprep.subr.bf16.mxu0 0
    %13691 = vmatpush1.bf16.xpose.msra.mxu0 0
    %13692 = vmatprep.subr.bf16.mxu0 0
    %13693 = vmatpush1.bf16.xpose.msra.mxu0 0
    %13694 = vmatprep.subr.bf16.mxu0 0
    %13695 = vmatpush1.bf16.xpose.msra.mxu0 0
    %13696 = vmatprep.subr.bf16.mxu0 0
    %13697 = vmatpush1.bf16.xpose.msra.mxu0 0
    %13698 = vmatprep.mubr.bf16.mxu0 %v624
    %13699 = vmatmul.mubr.bf16.gmra.mrb[0].mxu0 %v623
    %v13700 = vpop.f32.mrb[0].mxu0
    %v13701 = vadd.f32 %v13660, %v13700
    %v13702 = vpop.f32.mrb[0].mxu0
    %v13703 = vpop.f32.mrb[0].mxu0
    %v13704 = vadd.f32 %v13663, %v13703
    %v13705 = vpop.f32.mrb[0].mxu0
    %13706 = vdwg.mxu0
    %13707 = vmatprep.subr.bf16.mxu0 %v7101
    %13708 = vmatpush1.bf16.xpose.msra.mxu0 %v7100
    %13709 = vmatprep.subr.bf16.mxu0 %v7297
    %13710 = vmatpush1.bf16.xpose.msra.mxu0 %v7296
    %13711 = vmatprep.subr.bf16.mxu0 %v7493
    %13712 = vmatpush1.bf16.xpose.msra.mxu0 %v7492
    %13713 = vmatprep.subr.bf16.mxu0 %v7689
    %13714 = vmatpush1.bf16.xpose.msra.mxu0 %v7688
    %13715 = vmatprep.subr.bf16.mxu0 %v7885
    %13716 = vmatpush1.bf16.xpose.msra.mxu0 %v7884
    %13717 = vmatprep.subr.bf16.mxu0 %v8081
    %13718 = vmatpush1.bf16.xpose.msra.mxu0 %v8080
    %13719 = vmatprep.subr.bf16.mxu0 %v8277
    %13720 = vmatpush1.bf16.xpose.msra.mxu0 %v8276
    %13721 = vmatprep.subr.bf16.mxu0 %v8473
    %13722 = vmatpush1.bf16.xpose.msra.mxu0 %v8472
    %13723 = vmatprep.subr.bf16.mxu0 0
    %13724 = vmatpush1.bf16.xpose.msra.mxu0 0
    %13725 = vmatprep.subr.bf16.mxu0 0
    %13726 = vmatpush1.bf16.xpose.msra.mxu0 0
    %13727 = vmatprep.subr.bf16.mxu0 0
    %13728 = vmatpush1.bf16.xpose.msra.mxu0 0
    %13729 = vmatprep.subr.bf16.mxu0 0
    %13730 = vmatpush1.bf16.xpose.msra.mxu0 0
    %13731 = vmatprep.subr.bf16.mxu0 0
    %13732 = vmatpush1.bf16.xpose.msra.mxu0 0
    %13733 = vmatprep.subr.bf16.mxu0 0
    %13734 = vmatpush1.bf16.xpose.msra.mxu0 0
    %13735 = vmatprep.subr.bf16.mxu0 0
    %13736 = vmatpush1.bf16.xpose.msra.mxu0 0
    %13737 = vmatprep.subr.bf16.mxu0 0
    %13738 = vmatpush1.bf16.xpose.msra.mxu0 0
    %13739 = vmatprep.mubr.bf16.mxu0 %v626
    %13740 = vmatmul.mubr.bf16.gmra.mrb[0].mxu0 %v625
    %v13741 = vpop.f32.mrb[0].mxu0
    %v13742 = vadd.f32 %v13701, %v13741
    %v13743 = vpop.f32.mrb[0].mxu0
    %v13744 = vpop.f32.mrb[0].mxu0
    %v13745 = vadd.f32 %v13704, %v13744
    %v13746 = vpop.f32.mrb[0].mxu0
    %13747 = vdwg.mxu0
    %13748 = vmatprep.subr.bf16.mxu0 %v7103
    %13749 = vmatpush1.bf16.xpose.msra.mxu0 %v7102
    %13750 = vmatprep.subr.bf16.mxu0 %v7299
    %13751 = vmatpush1.bf16.xpose.msra.mxu0 %v7298
    %13752 = vmatprep.subr.bf16.mxu0 %v7495
    %13753 = vmatpush1.bf16.xpose.msra.mxu0 %v7494
    %13754 = vmatprep.subr.bf16.mxu0 %v7691
    %13755 = vmatpush1.bf16.xpose.msra.mxu0 %v7690
    %13756 = vmatprep.subr.bf16.mxu0 %v7887
    %13757 = vmatpush1.bf16.xpose.msra.mxu0 %v7886
    %13758 = vmatprep.subr.bf16.mxu0 %v8083
    %13759 = vmatpush1.bf16.xpose.msra.mxu0 %v8082
    %13760 = vmatprep.subr.bf16.mxu0 %v8279
    %13761 = vmatpush1.bf16.xpose.msra.mxu0 %v8278
    %13762 = vmatprep.subr.bf16.mxu0 %v8475
    %13763 = vmatpush1.bf16.xpose.msra.mxu0 %v8474
    %13764 = vmatprep.subr.bf16.mxu0 0
    %13765 = vmatpush1.bf16.xpose.msra.mxu0 0
    %13766 = vmatprep.subr.bf16.mxu0 0
    %13767 = vmatpush1.bf16.xpose.msra.mxu0 0
    %13768 = vmatprep.subr.bf16.mxu0 0
    %13769 = vmatpush1.bf16.xpose.msra.mxu0 0
    %13770 = vmatprep.subr.bf16.mxu0 0
    %13771 = vmatpush1.bf16.xpose.msra.mxu0 0
    %13772 = vmatprep.subr.bf16.mxu0 0
    %13773 = vmatpush1.bf16.xpose.msra.mxu0 0
    %13774 = vmatprep.subr.bf16.mxu0 0
    %13775 = vmatpush1.bf16.xpose.msra.mxu0 0
    %13776 = vmatprep.subr.bf16.mxu0 0
    %13777 = vmatpush1.bf16.xpose.msra.mxu0 0
    %13778 = vmatprep.subr.bf16.mxu0 0
    %13779 = vmatpush1.bf16.xpose.msra.mxu0 0
    %13780 = vmatprep.mubr.bf16.mxu0 %v628
    %13781 = vmatmul.mubr.bf16.gmra.mrb[0].mxu0 %v627
    %v13782 = vpop.f32.mrb[0].mxu0
    %v13783 = vadd.f32 %v13742, %v13782
    %v13784 = vpop.f32.mrb[0].mxu0
    %v13785 = vpop.f32.mrb[0].mxu0
    %v13786 = vadd.f32 %v13745, %v13785
    %v13787 = vpop.f32.mrb[0].mxu0
    %13788 = vdwg.mxu0
    %13789 = vmatprep.subr.bf16.mxu0 %v7105
    %13790 = vmatpush1.bf16.xpose.msra.mxu0 %v7104
    %13791 = vmatprep.subr.bf16.mxu0 %v7301
    %13792 = vmatpush1.bf16.xpose.msra.mxu0 %v7300
    %13793 = vmatprep.subr.bf16.mxu0 %v7497
    %13794 = vmatpush1.bf16.xpose.msra.mxu0 %v7496
    %13795 = vmatprep.subr.bf16.mxu0 %v7693
    %13796 = vmatpush1.bf16.xpose.msra.mxu0 %v7692
    %13797 = vmatprep.subr.bf16.mxu0 %v7889
    %13798 = vmatpush1.bf16.xpose.msra.mxu0 %v7888
    %13799 = vmatprep.subr.bf16.mxu0 %v8085
    %13800 = vmatpush1.bf16.xpose.msra.mxu0 %v8084
    %13801 = vmatprep.subr.bf16.mxu0 %v8281
    %13802 = vmatpush1.bf16.xpose.msra.mxu0 %v8280
    %13803 = vmatprep.subr.bf16.mxu0 %v8477
    %13804 = vmatpush1.bf16.xpose.msra.mxu0 %v8476
    %13805 = vmatprep.subr.bf16.mxu0 0
    %13806 = vmatpush1.bf16.xpose.msra.mxu0 0
    %13807 = vmatprep.subr.bf16.mxu0 0
    %13808 = vmatpush1.bf16.xpose.msra.mxu0 0
    %13809 = vmatprep.subr.bf16.mxu0 0
    %13810 = vmatpush1.bf16.xpose.msra.mxu0 0
    %13811 = vmatprep.subr.bf16.mxu0 0
    %13812 = vmatpush1.bf16.xpose.msra.mxu0 0
    %13813 = vmatprep.subr.bf16.mxu0 0
    %13814 = vmatpush1.bf16.xpose.msra.mxu0 0
    %13815 = vmatprep.subr.bf16.mxu0 0
    %13816 = vmatpush1.bf16.xpose.msra.mxu0 0
    %13817 = vmatprep.subr.bf16.mxu0 0
    %13818 = vmatpush1.bf16.xpose.msra.mxu0 0
    %13819 = vmatprep.subr.bf16.mxu0 0
    %13820 = vmatpush1.bf16.xpose.msra.mxu0 0
    %13821 = vmatprep.mubr.bf16.mxu0 %v630
    %13822 = vmatmul.mubr.bf16.gmra.mrb[0].mxu0 %v629
    %v13823 = vpop.f32.mrb[0].mxu0
    %v13824 = vadd.f32 %v13783, %v13823
    %v13825 = vpop.f32.mrb[0].mxu0
    %v13826 = vpop.f32.mrb[0].mxu0
    %v13827 = vadd.f32 %v13786, %v13826
    %v13828 = vpop.f32.mrb[0].mxu0
    %13829 = vdwg.mxu0
    %13830 = vmatprep.subr.bf16.mxu0 %v7107
    %13831 = vmatpush1.bf16.xpose.msra.mxu0 %v7106
    %13832 = vmatprep.subr.bf16.mxu0 %v7303
    %13833 = vmatpush1.bf16.xpose.msra.mxu0 %v7302
    %13834 = vmatprep.subr.bf16.mxu0 %v7499
    %13835 = vmatpush1.bf16.xpose.msra.mxu0 %v7498
    %13836 = vmatprep.subr.bf16.mxu0 %v7695
    %13837 = vmatpush1.bf16.xpose.msra.mxu0 %v7694
    %13838 = vmatprep.subr.bf16.mxu0 %v7891
    %13839 = vmatpush1.bf16.xpose.msra.mxu0 %v7890
    %13840 = vmatprep.subr.bf16.mxu0 %v8087
    %13841 = vmatpush1.bf16.xpose.msra.mxu0 %v8086
    %13842 = vmatprep.subr.bf16.mxu0 %v8283
    %13843 = vmatpush1.bf16.xpose.msra.mxu0 %v8282
    %13844 = vmatprep.subr.bf16.mxu0 %v8479
    %13845 = vmatpush1.bf16.xpose.msra.mxu0 %v8478
    %13846 = vmatprep.subr.bf16.mxu0 0
    %13847 = vmatpush1.bf16.xpose.msra.mxu0 0
    %13848 = vmatprep.subr.bf16.mxu0 0
    %13849 = vmatpush1.bf16.xpose.msra.mxu0 0
    %13850 = vmatprep.subr.bf16.mxu0 0
    %13851 = vmatpush1.bf16.xpose.msra.mxu0 0
    %13852 = vmatprep.subr.bf16.mxu0 0
    %13853 = vmatpush1.bf16.xpose.msra.mxu0 0
    %13854 = vmatprep.subr.bf16.mxu0 0
    %13855 = vmatpush1.bf16.xpose.msra.mxu0 0
    %13856 = vmatprep.subr.bf16.mxu0 0
    %13857 = vmatpush1.bf16.xpose.msra.mxu0 0
    %13858 = vmatprep.subr.bf16.mxu0 0
    %13859 = vmatpush1.bf16.xpose.msra.mxu0 0
    %13860 = vmatprep.subr.bf16.mxu0 0
    %13861 = vmatpush1.bf16.xpose.msra.mxu0 0
    %13862 = vmatprep.mubr.bf16.mxu0 %v632
    %13863 = vmatmul.mubr.bf16.gmra.mrb[0].mxu0 %v631
    %v13864 = vpop.f32.mrb[0].mxu0
    %v13865 = vadd.f32 %v13824, %v13864
    %v13866 = vpop.f32.mrb[0].mxu0
    %v13867 = vpop.f32.mrb[0].mxu0
    %v13868 = vadd.f32 %v13827, %v13867
    %v13869 = vpop.f32.mrb[0].mxu0
    %13870 = vdwg.mxu0
    %13871 = vmatprep.subr.bf16.mxu0 %v7109
    %13872 = vmatpush1.bf16.xpose.msra.mxu0 %v7108
    %13873 = vmatprep.subr.bf16.mxu0 %v7305
    %13874 = vmatpush1.bf16.xpose.msra.mxu0 %v7304
    %13875 = vmatprep.subr.bf16.mxu0 %v7501
    %13876 = vmatpush1.bf16.xpose.msra.mxu0 %v7500
    %13877 = vmatprep.subr.bf16.mxu0 %v7697
    %13878 = vmatpush1.bf16.xpose.msra.mxu0 %v7696
    %13879 = vmatprep.subr.bf16.mxu0 %v7893
    %13880 = vmatpush1.bf16.xpose.msra.mxu0 %v7892
    %13881 = vmatprep.subr.bf16.mxu0 %v8089
    %13882 = vmatpush1.bf16.xpose.msra.mxu0 %v8088
    %13883 = vmatprep.subr.bf16.mxu0 %v8285
    %13884 = vmatpush1.bf16.xpose.msra.mxu0 %v8284
    %13885 = vmatprep.subr.bf16.mxu0 %v8481
    %13886 = vmatpush1.bf16.xpose.msra.mxu0 %v8480
    %13887 = vmatprep.subr.bf16.mxu0 0
    %13888 = vmatpush1.bf16.xpose.msra.mxu0 0
    %13889 = vmatprep.subr.bf16.mxu0 0
    %13890 = vmatpush1.bf16.xpose.msra.mxu0 0
    %13891 = vmatprep.subr.bf16.mxu0 0
    %13892 = vmatpush1.bf16.xpose.msra.mxu0 0
    %13893 = vmatprep.subr.bf16.mxu0 0
    %13894 = vmatpush1.bf16.xpose.msra.mxu0 0
    %13895 = vmatprep.subr.bf16.mxu0 0
    %13896 = vmatpush1.bf16.xpose.msra.mxu0 0
    %13897 = vmatprep.subr.bf16.mxu0 0
    %13898 = vmatpush1.bf16.xpose.msra.mxu0 0
    %13899 = vmatprep.subr.bf16.mxu0 0
    %13900 = vmatpush1.bf16.xpose.msra.mxu0 0
    %13901 = vmatprep.subr.bf16.mxu0 0
    %13902 = vmatpush1.bf16.xpose.msra.mxu0 0
    %13903 = vmatprep.mubr.bf16.mxu0 %v634
    %13904 = vmatmul.mubr.bf16.gmra.mrb[0].mxu0 %v633
    %v13905 = vpop.f32.mrb[0].mxu0
    %v13906 = vadd.f32 %v13865, %v13905
    %v13907 = vpop.f32.mrb[0].mxu0
    %v13908 = vpop.f32.mrb[0].mxu0
    %v13909 = vadd.f32 %v13868, %v13908
    %v13910 = vpop.f32.mrb[0].mxu0
    %13911 = vdwg.mxu0
    %13912 = vmatprep.subr.bf16.mxu0 %v7111
    %13913 = vmatpush1.bf16.xpose.msra.mxu0 %v7110
    %13914 = vmatprep.subr.bf16.mxu0 %v7307
    %13915 = vmatpush1.bf16.xpose.msra.mxu0 %v7306
    %13916 = vmatprep.subr.bf16.mxu0 %v7503
    %13917 = vmatpush1.bf16.xpose.msra.mxu0 %v7502
    %13918 = vmatprep.subr.bf16.mxu0 %v7699
    %13919 = vmatpush1.bf16.xpose.msra.mxu0 %v7698
    %13920 = vmatprep.subr.bf16.mxu0 %v7895
    %13921 = vmatpush1.bf16.xpose.msra.mxu0 %v7894
    %13922 = vmatprep.subr.bf16.mxu0 %v8091
    %13923 = vmatpush1.bf16.xpose.msra.mxu0 %v8090
    %13924 = vmatprep.subr.bf16.mxu0 %v8287
    %13925 = vmatpush1.bf16.xpose.msra.mxu0 %v8286
    %13926 = vmatprep.subr.bf16.mxu0 %v8483
    %13927 = vmatpush1.bf16.xpose.msra.mxu0 %v8482
    %13928 = vmatprep.subr.bf16.mxu0 0
    %13929 = vmatpush1.bf16.xpose.msra.mxu0 0
    %13930 = vmatprep.subr.bf16.mxu0 0
    %13931 = vmatpush1.bf16.xpose.msra.mxu0 0
    %13932 = vmatprep.subr.bf16.mxu0 0
    %13933 = vmatpush1.bf16.xpose.msra.mxu0 0
    %13934 = vmatprep.subr.bf16.mxu0 0
    %13935 = vmatpush1.bf16.xpose.msra.mxu0 0
    %13936 = vmatprep.subr.bf16.mxu0 0
    %13937 = vmatpush1.bf16.xpose.msra.mxu0 0
    %13938 = vmatprep.subr.bf16.mxu0 0
    %13939 = vmatpush1.bf16.xpose.msra.mxu0 0
    %13940 = vmatprep.subr.bf16.mxu0 0
    %13941 = vmatpush1.bf16.xpose.msra.mxu0 0
    %13942 = vmatprep.subr.bf16.mxu0 0
    %13943 = vmatpush1.bf16.xpose.msra.mxu0 0
    %13944 = vmatprep.mubr.bf16.mxu0 %v636
    %13945 = vmatmul.mubr.bf16.gmra.mrb[0].mxu0 %v635
    %v13946 = vpop.f32.mrb[0].mxu0
    %v13947 = vadd.f32 %v13906, %v13946
    %v13948 = vpop.f32.mrb[0].mxu0
    %v13949 = vpop.f32.mrb[0].mxu0
    %v13950 = vadd.f32 %v13909, %v13949
    %v13951 = vpop.f32.mrb[0].mxu0
    %13952 = vdwg.mxu0
    %13953 = vmatprep.subr.bf16.mxu0 %v7113
    %13954 = vmatpush1.bf16.xpose.msra.mxu0 %v7112
    %13955 = vmatprep.subr.bf16.mxu0 %v7309
    %13956 = vmatpush1.bf16.xpose.msra.mxu0 %v7308
    %13957 = vmatprep.subr.bf16.mxu0 %v7505
    %13958 = vmatpush1.bf16.xpose.msra.mxu0 %v7504
    %13959 = vmatprep.subr.bf16.mxu0 %v7701
    %13960 = vmatpush1.bf16.xpose.msra.mxu0 %v7700
    %13961 = vmatprep.subr.bf16.mxu0 %v7897
    %13962 = vmatpush1.bf16.xpose.msra.mxu0 %v7896
    %13963 = vmatprep.subr.bf16.mxu0 %v8093
    %13964 = vmatpush1.bf16.xpose.msra.mxu0 %v8092
    %13965 = vmatprep.subr.bf16.mxu0 %v8289
    %13966 = vmatpush1.bf16.xpose.msra.mxu0 %v8288
    %13967 = vmatprep.subr.bf16.mxu0 %v8485
    %13968 = vmatpush1.bf16.xpose.msra.mxu0 %v8484
    %13969 = vmatprep.subr.bf16.mxu0 0
    %13970 = vmatpush1.bf16.xpose.msra.mxu0 0
    %13971 = vmatprep.subr.bf16.mxu0 0
    %13972 = vmatpush1.bf16.xpose.msra.mxu0 0
    %13973 = vmatprep.subr.bf16.mxu0 0
    %13974 = vmatpush1.bf16.xpose.msra.mxu0 0
    %13975 = vmatprep.subr.bf16.mxu0 0
    %13976 = vmatpush1.bf16.xpose.msra.mxu0 0
    %13977 = vmatprep.subr.bf16.mxu0 0
    %13978 = vmatpush1.bf16.xpose.msra.mxu0 0
    %13979 = vmatprep.subr.bf16.mxu0 0
    %13980 = vmatpush1.bf16.xpose.msra.mxu0 0
    %13981 = vmatprep.subr.bf16.mxu0 0
    %13982 = vmatpush1.bf16.xpose.msra.mxu0 0
    %13983 = vmatprep.subr.bf16.mxu0 0
    %13984 = vmatpush1.bf16.xpose.msra.mxu0 0
    %13985 = vmatprep.mubr.bf16.mxu0 %v638
    %13986 = vmatmul.mubr.bf16.gmra.mrb[0].mxu0 %v637
    %v13987 = vpop.f32.mrb[0].mxu0
    %v13988 = vadd.f32 %v13947, %v13987
    %v13989 = vpop.f32.mrb[0].mxu0
    %v13990 = vpop.f32.mrb[0].mxu0
    %v13991 = vadd.f32 %v13950, %v13990
    %v13992 = vpop.f32.mrb[0].mxu0
    %13993 = vdwg.mxu0
    %13994 = vmatprep.subr.bf16.mxu0 %v7115
    %13995 = vmatpush1.bf16.xpose.msra.mxu0 %v7114
    %13996 = vmatprep.subr.bf16.mxu0 %v7311
    %13997 = vmatpush1.bf16.xpose.msra.mxu0 %v7310
    %13998 = vmatprep.subr.bf16.mxu0 %v7507
    %13999 = vmatpush1.bf16.xpose.msra.mxu0 %v7506
    %14000 = vmatprep.subr.bf16.mxu0 %v7703
    %14001 = vmatpush1.bf16.xpose.msra.mxu0 %v7702
    %14002 = vmatprep.subr.bf16.mxu0 %v7899
    %14003 = vmatpush1.bf16.xpose.msra.mxu0 %v7898
    %14004 = vmatprep.subr.bf16.mxu0 %v8095
    %14005 = vmatpush1.bf16.xpose.msra.mxu0 %v8094
    %14006 = vmatprep.subr.bf16.mxu0 %v8291
    %14007 = vmatpush1.bf16.xpose.msra.mxu0 %v8290
    %14008 = vmatprep.subr.bf16.mxu0 %v8487
    %14009 = vmatpush1.bf16.xpose.msra.mxu0 %v8486
    %14010 = vmatprep.subr.bf16.mxu0 0
    %14011 = vmatpush1.bf16.xpose.msra.mxu0 0
    %14012 = vmatprep.subr.bf16.mxu0 0
    %14013 = vmatpush1.bf16.xpose.msra.mxu0 0
    %14014 = vmatprep.subr.bf16.mxu0 0
    %14015 = vmatpush1.bf16.xpose.msra.mxu0 0
    %14016 = vmatprep.subr.bf16.mxu0 0
    %14017 = vmatpush1.bf16.xpose.msra.mxu0 0
    %14018 = vmatprep.subr.bf16.mxu0 0
    %14019 = vmatpush1.bf16.xpose.msra.mxu0 0
    %14020 = vmatprep.subr.bf16.mxu0 0
    %14021 = vmatpush1.bf16.xpose.msra.mxu0 0
    %14022 = vmatprep.subr.bf16.mxu0 0
    %14023 = vmatpush1.bf16.xpose.msra.mxu0 0
    %14024 = vmatprep.subr.bf16.mxu0 0
    %14025 = vmatpush1.bf16.xpose.msra.mxu0 0
    %14026 = vmatprep.mubr.bf16.mxu0 %v640
    %14027 = vmatmul.mubr.bf16.gmra.mrb[0].mxu0 %v639
    %v14028 = vpop.f32.mrb[0].mxu0
    %v14029 = vadd.f32 %v13988, %v14028
    %v14030 = vpop.f32.mrb[0].mxu0
    %v14031 = vpop.f32.mrb[0].mxu0
    %v14032 = vadd.f32 %v13991, %v14031
    %v14033 = vpop.f32.mrb[0].mxu0
    %14034 = vdwg.mxu0
    %14035 = vmatprep.subr.bf16.mxu0 %v7117
    %14036 = vmatpush1.bf16.xpose.msra.mxu0 %v7116
    %14037 = vmatprep.subr.bf16.mxu0 %v7313
    %14038 = vmatpush1.bf16.xpose.msra.mxu0 %v7312
    %14039 = vmatprep.subr.bf16.mxu0 %v7509
    %14040 = vmatpush1.bf16.xpose.msra.mxu0 %v7508
    %14041 = vmatprep.subr.bf16.mxu0 %v7705
    %14042 = vmatpush1.bf16.xpose.msra.mxu0 %v7704
    %14043 = vmatprep.subr.bf16.mxu0 %v7901
    %14044 = vmatpush1.bf16.xpose.msra.mxu0 %v7900
    %14045 = vmatprep.subr.bf16.mxu0 %v8097
    %14046 = vmatpush1.bf16.xpose.msra.mxu0 %v8096
    %14047 = vmatprep.subr.bf16.mxu0 %v8293
    %14048 = vmatpush1.bf16.xpose.msra.mxu0 %v8292
    %14049 = vmatprep.subr.bf16.mxu0 %v8489
    %14050 = vmatpush1.bf16.xpose.msra.mxu0 %v8488
    %14051 = vmatprep.subr.bf16.mxu0 0
    %14052 = vmatpush1.bf16.xpose.msra.mxu0 0
    %14053 = vmatprep.subr.bf16.mxu0 0
    %14054 = vmatpush1.bf16.xpose.msra.mxu0 0
    %14055 = vmatprep.subr.bf16.mxu0 0
    %14056 = vmatpush1.bf16.xpose.msra.mxu0 0
    %14057 = vmatprep.subr.bf16.mxu0 0
    %14058 = vmatpush1.bf16.xpose.msra.mxu0 0
    %14059 = vmatprep.subr.bf16.mxu0 0
    %14060 = vmatpush1.bf16.xpose.msra.mxu0 0
    %14061 = vmatprep.subr.bf16.mxu0 0
    %14062 = vmatpush1.bf16.xpose.msra.mxu0 0
    %14063 = vmatprep.subr.bf16.mxu0 0
    %14064 = vmatpush1.bf16.xpose.msra.mxu0 0
    %14065 = vmatprep.subr.bf16.mxu0 0
    %14066 = vmatpush1.bf16.xpose.msra.mxu0 0
    %14067 = vmatprep.mubr.bf16.mxu0 %v642
    %14068 = vmatmul.mubr.bf16.gmra.mrb[0].mxu0 %v641
    %v14069 = vpop.f32.mrb[0].mxu0
    %v14070 = vadd.f32 %v14029, %v14069
    %v14071 = vpop.f32.mrb[0].mxu0
    %v14072 = vpop.f32.mrb[0].mxu0
    %v14073 = vadd.f32 %v14032, %v14072
    %v14074 = vpop.f32.mrb[0].mxu0
    %14075 = vdwg.mxu0
    %14076 = vst [vmem:[#allocation8] sm:$0xff] %v14070
    %14077 = vst [vmem:[#allocation8 + $0x8] sm:$0xff] %v14073
    // Predicated region
    $region26: #{tpu_custom_call.1} parent=1 // pred_check
      _
    $region27: #{tpu_custom_call.1} parent=1 // pred_check_branch
      %14079 = sbr.rel (0) target = $region29
    $region28: #{tpu_custom_call.1} parent=1 // pred_region
      %s14081 = ssub.s32 256, 256
      %14082 = vsyncadd [#allocation4], %s14081
      %s14083 = sshll.u32 [#allocation8], 4
      %s14084 = int_to_ptr.vmem [resolvable:$true] %s14083
      %14089 = dma.vmem_to_hbm [thread:$0]  %s14084, 256, %s3, [#allocation4], 128, 128, 8
    $region29: #{tpu_custom_call.1} parent=1 // pred_fallthru
      _
    // Predicated region
    $region30: #{tpu_custom_call.1} parent=1 // pred_check
      _
    $region31: #{tpu_custom_call.1} parent=1 // pred_check_branch
      %14091 = sbr.rel (0) target = $region33
    $region32: #{tpu_custom_call.1} parent=1 // pred_region
      %14092 = dma.done [#allocation4], 256
    $region33: #{tpu_custom_call.1} parent=1 // pred_fallthru
      _
    %14093 = vsyncpa [#allocation3], 1
    %14094 = vsyncpa [#allocation6], 1
    %14095 = vsyncpa [#allocation4], 1

</llo_original>
